<compile_context>
chip_gen: v7x
topology: tpu7x:2x2x1
jax: 0.10.0
libtpu: 0.0.40
codegen_flags: <defaults>
</compile_context>

<pallas_src>
import functools

import jax
import jax.numpy as jnp
from jax.experimental import pallas as pl
from jax.experimental.pallas import tpu as pltpu


# ----------------------------------------------------------------------------
# Fused wavefront kernel: 4 stacked LSTM layers + Linear head, VMEM-resident.
# ----------------------------------------------------------------------------
def _fused_lstm_wavefront_kernel(T, B, H, D, L, x_ref, *refs):
    """x_ref: (B, T, D) batch-first input.

    refs layout:
      [w_ih_0, w_hh_0, b_0, ..., w_ih_{L-1}, w_hh_{L-1}, b_{L-1},
       w_lin, b_lin, out_ref]
      w_ih_l : (D_in_l, 4H)   w_hh_l : (H, 4H)   b_l : (1, 4H)
      w_lin  : (H, OUT_LANES) b_lin  : (1, OUT_LANES)   out : (B, T, OUT_LANES)
    """
    layer_refs = refs[: 3 * L]
    w_lin_ref, b_lin_ref, out_ref = refs[3 * L:]

    # Everything is tiny; load once into values (vregs / VMEM-resident).
    x = x_ref[...]                                        # (B, T, D)
    w_ih = [layer_refs[3 * l][...] for l in range(L)]     # (D_in, 4H)
    w_hh = [layer_refs[3 * l + 1][...] for l in range(L)]  # (H, 4H)
    bias = [layer_refs[3 * l + 2][...] for l in range(L)]  # (1, 4H)
    w_lin = w_lin_ref[...]                                # (H, OUT_LANES)
    b_lin = b_lin_ref[...]                                # (1, OUT_LANES)

    # Per-layer recurrent state (h_l[t-1], c_l[t-1]).
    h = [jnp.zeros((B, H), jnp.float32) for _ in range(L)]
    c = [jnp.zeros((B, H), jnp.float32) for _ in range(L)]

    # Wavefront: stage s handles all (l, t) with l + t = s.  All cells inside a
    # stage are mutually independent and depend only on stage s-1, so the
    # serial chain is T + L - 1 stages.  Layers are visited in DECREASING order
    # so that h[l-1] still holds h_{l-1}[t] (it is only advanced to time t+1
    # later in the same stage).  Fully unrolled static loop (T, L small) gives
    # the LLO scheduler full visibility to overlap MXU / EUP / XLU work.
    for s in range(T + L - 1):
        for l in range(L - 1, -1, -1):
            t = s - l
            if t < 0 or t >= T:
                continue

            x_in = x[:, t, :] if l == 0 else h[l - 1]     # (B, D_in_l)

            # Two small independent MXU pushes; only the w_hh one is on the
            # recurrent chain of this layer.
            gates = (
                jnp.dot(x_in, w_ih[l], preferred_element_type=jnp.float32)
                + jnp.dot(h[l], w_hh[l], preferred_element_type=jnp.float32)
                + bias[l]
            )                                             # (B, 4H)

            # Two full-vreg EUP passes instead of four narrow per-gate ones.
            sig = jax.nn.sigmoid(gates)                   # (B, 4H)
            tnh = jnp.tanh(gates)                         # (B, 4H)
            i_g = sig[:, 0 * H:1 * H]
            f_g = sig[:, 1 * H:2 * H]
            g_g = tnh[:, 2 * H:3 * H]
            o_g = sig[:, 3 * H:4 * H]
            # (H=32 slices need XLU lane realignment; vanishes for H >= 128.)

            c[l] = f_g * c[l] + i_g * g_g
            h[l] = o_g * jnp.tanh(c[l])

            if l == L - 1:
                # Linear head per final-layer step — off the critical chain.
                y = (
                    jnp.dot(h[l], w_lin, preferred_element_type=jnp.float32)
                    + b_lin
                )                                         # (B, OUT_LANES)
                out_ref[:, pl.ds(t, 1), :] = y[:, None, :]


# ----------------------------------------------------------------------------
# Parameter init (deterministic, mimics PyTorch uniform(-1/sqrt(H), 1/sqrt(H)))
# ----------------------------------------------------------------------------
def init_params(key, data_dimension, hidden_size=64, num_layers=4):
    params = {"lstm": []}
    bound = 1.0 / jnp.sqrt(hidden_size)
    for layer in range(num_layers):
        d_in = data_dimension if layer == 0 else hidden_size
        key, k1, k2, k3, k4 = jax.random.split(key, 5)
        w_ih = jax.random.uniform(k1, (4 * hidden_size, d_in),
                                  minval=-bound, maxval=bound, dtype=jnp.float32)
        w_hh = jax.random.uniform(k2, (4 * hidden_size, hidden_size),
                                  minval=-bound, maxval=bound, dtype=jnp.float32)
        b_ih = jax.random.uniform(k3, (4 * hidden_size,),
                                  minval=-bound, maxval=bound, dtype=jnp.float32)
        b_hh = jax.random.uniform(k4, (4 * hidden_size,),
                                  minval=-bound, maxval=bound, dtype=jnp.float32)
        params["lstm"].append({
            # stored pre-transposed for the x @ W layout used in the kernel
            "w_ih": w_ih.T,                               # (d_in, 4H)
            "w_hh": w_hh.T,                               # (H, 4H)
            "bias": (b_ih + b_hh).reshape(1, 4 * hidden_size),
        })

    key, k1, k2 = jax.random.split(key, 3)
    lin_bound = 1.0 / jnp.sqrt(hidden_size)
    w_lin = jax.random.uniform(k1, (data_dimension, hidden_size),
                               minval=-lin_bound, maxval=lin_bound, dtype=jnp.float32)
    b_lin = jax.random.uniform(k2, (data_dimension,),
                               minval=-lin_bound, maxval=lin_bound, dtype=jnp.float32)
    # Lane-dense head: zero-pad output columns to a multiple of 128 lanes
    # (free at init time; kernel stores are unmasked, wrapper slices back).
    out_lanes = max(128, ((data_dimension + 127) // 128) * 128)
    w_lin_p = jnp.zeros((hidden_size, out_lanes), jnp.float32)
    w_lin_p = w_lin_p.at[:, :data_dimension].set(w_lin.T)
    b_lin_p = jnp.zeros((1, out_lanes), jnp.float32)
    b_lin_p = b_lin_p.at[:, :data_dimension].set(b_lin.reshape(1, -1))
    params["linear"] = {"w": w_lin_p, "b": b_lin_p}
    return params


# ----------------------------------------------------------------------------
# Full forward pass (matches LSTMModel.forward in eval mode)
# ----------------------------------------------------------------------------
@jax.jit
def lstm_model_forward(x_btd, params):
    """x_btd: (B, T, D) batch_first input -> (B, T, D) output."""
    B, T, D = x_btd.shape
    L = len(params["lstm"])
    H = params["lstm"][0]["w_hh"].shape[0]
    OUTL = params["linear"]["w"].shape[1]

    flat_inputs = [x_btd]
    for lp in params["lstm"]:
        flat_inputs += [lp["w_ih"], lp["w_hh"], lp["bias"]]
    flat_inputs += [params["linear"]["w"], params["linear"]["b"]]

    kernel = functools.partial(_fused_lstm_wavefront_kernel, T, B, H, D, L)

    # Advisory cost hint so XLA schedules around the custom call correctly.
    flops = 0
    for lp in params["lstm"]:
        d_in = int(lp["w_ih"].shape[0])
        flops += 2 * T * B * (d_in + H) * 4 * H
    flops += 2 * T * B * H * OUTL
    transcendentals = 9 * L * T * B * H
    bytes_accessed = 4 * (
        B * T * D
        + sum(int(a.size) for lp in params["lstm"] for a in lp.values())
        + int(params["linear"]["w"].size) + int(params["linear"]["b"].size)
        + B * T * OUTL
    )

    y_pad = pl.pallas_call(
        kernel,
        out_shape=jax.ShapeDtypeStruct((B, T, OUTL), jnp.float32),
        in_specs=[pl.BlockSpec(memory_space=pltpu.MemorySpace.VMEM)]
        * len(flat_inputs),
        out_specs=pl.BlockSpec(memory_space=pltpu.MemorySpace.VMEM),
        cost_estimate=pl.CostEstimate(
            flops=flops,
            transcendentals=transcendentals,
            bytes_accessed=bytes_accessed,
        ),
    )(*flat_inputs)

    # Lane-padded -> actual feature width (cheap slice, no transpose).
    return y_pad[:, :, :D]


# ----------------------------------------------------------------------------
# Pure-JAX sequential reference (for correctness validation only)
# ----------------------------------------------------------------------------
def _reference_forward(x_btd, params):
    B, T, D = x_btd.shape
    H = params["lstm"][0]["w_hh"].shape[0]
    layer_in = x_btd
    for lp in params["lstm"]:
        h = jnp.zeros((B, H), jnp.float32)
        c = jnp.zeros((B, H), jnp.float32)
        outs = []
        for t in range(T):
            gates = layer_in[:, t, :] @ lp["w_ih"] + h @ lp["w_hh"] + lp["bias"]
            i = jax.nn.sigmoid(gates[:, 0 * H:1 * H])
            f = jax.nn.sigmoid(gates[:, 1 * H:2 * H])
            g = jnp.tanh(gates[:, 2 * H:3 * H])
            o = jax.nn.sigmoid(gates[:, 3 * H:4 * H])
            c = f * c + i * g
            h = o * jnp.tanh(c)
            outs.append(h)
        layer_in = jnp.stack(outs, axis=1)                # (B, T, H)
    y = layer_in @ params["linear"]["w"] + params["linear"]["b"]
    return y[:, :, :D]


if __name__ == "__main__":
    data_dimension = 16
    hidden_size = 32
    num_layers = 4
    batch, seq = 2, 8

    key = jax.random.PRNGKey(0)
    key, kx = jax.random.split(key)
    x = jax.random.normal(kx, (batch, seq, data_dimension), dtype=jnp.float32)

    params = init_params(key, data_dimension, hidden_size, num_layers)

    out = lstm_model_forward(x, params)
    out = jax.block_until_ready(out)
    assert out.shape == (batch, seq, data_dimension), out.shape

    ref = _reference_forward(x, params)
    assert bool(jnp.all(jnp.isfinite(out)))
    assert bool(jnp.allclose(out, ref, rtol=1e-4, atol=1e-4)), (
        float(jnp.max(jnp.abs(out - ref))))
    print("KERNEL_OK")
</pallas_src>

<mosaic_0001>
module attributes {stable_mosaic.version = 11 : i64} {
  func.func @_fused_lstm_wavefront_kernel(%arg0: memref<2x8x16xf32, #tpu.memory_space<vmem>>, %arg1: memref<16x128xf32, #tpu.memory_space<vmem>>, %arg2: memref<32x128xf32, #tpu.memory_space<vmem>>, %arg3: memref<1x128xf32, #tpu.memory_space<vmem>>, %arg4: memref<32x128xf32, #tpu.memory_space<vmem>>, %arg5: memref<32x128xf32, #tpu.memory_space<vmem>>, %arg6: memref<1x128xf32, #tpu.memory_space<vmem>>, %arg7: memref<32x128xf32, #tpu.memory_space<vmem>>, %arg8: memref<32x128xf32, #tpu.memory_space<vmem>>, %arg9: memref<1x128xf32, #tpu.memory_space<vmem>>, %arg10: memref<32x128xf32, #tpu.memory_space<vmem>>, %arg11: memref<32x128xf32, #tpu.memory_space<vmem>>, %arg12: memref<1x128xf32, #tpu.memory_space<vmem>>, %arg13: memref<32x128xf32, #tpu.memory_space<vmem>>, %arg14: memref<1x128xf32, #tpu.memory_space<vmem>>, %arg15: memref<2x8x128xf32, #tpu.memory_space<vmem>>) attributes {dimension_semantics = [], scalar_prefetch = 0 : i64, scratch_operands = 0 : i64, tpu.core_type = #tpu.core_type<tc>} {
    %c0 = arith.constant 0 : index
    %c0_0 = arith.constant 0 : index
    %c0_1 = arith.constant 0 : index
    %0 = vector.load %arg0[%c0, %c0_0, %c0_1] : memref<2x8x16xf32, #tpu.memory_space<vmem>>, vector<2x8x16xf32>
    %c0_2 = arith.constant 0 : index
    %c0_3 = arith.constant 0 : index
    %1 = vector.load %arg1[%c0_2, %c0_3] : memref<16x128xf32, #tpu.memory_space<vmem>>, vector<16x128xf32>
    %c0_4 = arith.constant 0 : index
    %c0_5 = arith.constant 0 : index
    %2 = vector.load %arg4[%c0_4, %c0_5] : memref<32x128xf32, #tpu.memory_space<vmem>>, vector<32x128xf32>
    %c0_6 = arith.constant 0 : index
    %c0_7 = arith.constant 0 : index
    %3 = vector.load %arg7[%c0_6, %c0_7] : memref<32x128xf32, #tpu.memory_space<vmem>>, vector<32x128xf32>
    %c0_8 = arith.constant 0 : index
    %c0_9 = arith.constant 0 : index
    %4 = vector.load %arg10[%c0_8, %c0_9] : memref<32x128xf32, #tpu.memory_space<vmem>>, vector<32x128xf32>
    %c0_10 = arith.constant 0 : index
    %c0_11 = arith.constant 0 : index
    %5 = vector.load %arg2[%c0_10, %c0_11] : memref<32x128xf32, #tpu.memory_space<vmem>>, vector<32x128xf32>
    %c0_12 = arith.constant 0 : index
    %c0_13 = arith.constant 0 : index
    %6 = vector.load %arg5[%c0_12, %c0_13] : memref<32x128xf32, #tpu.memory_space<vmem>>, vector<32x128xf32>
    %c0_14 = arith.constant 0 : index
    %c0_15 = arith.constant 0 : index
    %7 = vector.load %arg8[%c0_14, %c0_15] : memref<32x128xf32, #tpu.memory_space<vmem>>, vector<32x128xf32>
    %c0_16 = arith.constant 0 : index
    %c0_17 = arith.constant 0 : index
    %8 = vector.load %arg11[%c0_16, %c0_17] : memref<32x128xf32, #tpu.memory_space<vmem>>, vector<32x128xf32>
    %c0_18 = arith.constant 0 : index
    %c0_19 = arith.constant 0 : index
    %9 = vector.load %arg3[%c0_18, %c0_19] : memref<1x128xf32, #tpu.memory_space<vmem>>, vector<1x128xf32>
    %c0_20 = arith.constant 0 : index
    %c0_21 = arith.constant 0 : index
    %10 = vector.load %arg6[%c0_20, %c0_21] : memref<1x128xf32, #tpu.memory_space<vmem>>, vector<1x128xf32>
    %c0_22 = arith.constant 0 : index
    %c0_23 = arith.constant 0 : index
    %11 = vector.load %arg9[%c0_22, %c0_23] : memref<1x128xf32, #tpu.memory_space<vmem>>, vector<1x128xf32>
    %c0_24 = arith.constant 0 : index
    %c0_25 = arith.constant 0 : index
    %12 = vector.load %arg12[%c0_24, %c0_25] : memref<1x128xf32, #tpu.memory_space<vmem>>, vector<1x128xf32>
    %c0_26 = arith.constant 0 : index
    %c0_27 = arith.constant 0 : index
    %13 = vector.load %arg13[%c0_26, %c0_27] : memref<32x128xf32, #tpu.memory_space<vmem>>, vector<32x128xf32>
    %c0_28 = arith.constant 0 : index
    %c0_29 = arith.constant 0 : index
    %14 = vector.load %arg14[%c0_28, %c0_29] : memref<1x128xf32, #tpu.memory_space<vmem>>, vector<1x128xf32>
    %cst = arith.constant 0.000000e+00 : f32
    %15 = vector.broadcast %cst : f32 to vector<2x32xf32>
    %cst_30 = arith.constant 0.000000e+00 : f32
    %16 = vector.broadcast %cst_30 : f32 to vector<2x32xf32>
    %cst_31 = arith.constant 0.000000e+00 : f32
    %17 = vector.broadcast %cst_31 : f32 to vector<2x32xf32>
    %cst_32 = arith.constant 0.000000e+00 : f32
    %18 = vector.broadcast %cst_32 : f32 to vector<2x32xf32>
    %cst_33 = arith.constant 0.000000e+00 : f32
    %19 = vector.broadcast %cst_33 : f32 to vector<2x32xf32>
    %cst_34 = arith.constant 0.000000e+00 : f32
    %20 = vector.broadcast %cst_34 : f32 to vector<2x32xf32>
    %cst_35 = arith.constant 0.000000e+00 : f32
    %21 = vector.broadcast %cst_35 : f32 to vector<2x32xf32>
    %cst_36 = arith.constant 0.000000e+00 : f32
    %22 = vector.broadcast %cst_36 : f32 to vector<2x32xf32>
    %23 = vector.extract_strided_slice %0 {offsets = [0, 0, 0], sizes = [2, 1, 16], strides = [1, 1, 1]} : vector<2x8x16xf32> to vector<2x1x16xf32>
    %24 = vector.shape_cast %23 : vector<2x1x16xf32> to vector<2x16xf32>
    %cst_37 = arith.constant dense<0.000000e+00> : vector<2x128xf32>
    %25 = tpu.matmul %24, %1, %cst_37 {dimension_numbers = #tpu.dot_dimension_numbers<[1], [0], [0], [1], [0, 0, 1, 1], [], []>} : vector<2x16xf32>, vector<16x128xf32>, vector<2x128xf32> -> vector<2x128xf32>
    %cst_38 = arith.constant dense<0.000000e+00> : vector<2x128xf32>
    %26 = tpu.matmul %15, %5, %cst_38 {dimension_numbers = #tpu.dot_dimension_numbers<[1], [0], [0], [1], [0, 0, 1, 1], [], []>} : vector<2x32xf32>, vector<32x128xf32>, vector<2x128xf32> -> vector<2x128xf32>
    %27 = arith.addf %25, %26 : vector<2x128xf32>
    %28 = vector.broadcast %9 : vector<1x128xf32> to vector<2x128xf32>
    %29 = arith.addf %27, %28 : vector<2x128xf32>
    %30 = arith.negf %29 : vector<2x128xf32>
    %31 = math.exp %30 : vector<2x128xf32>
    %cst_39 = arith.constant 1.000000e+00 : f32
    %32 = vector.broadcast %cst_39 : f32 to vector<2x128xf32>
    %33 = arith.addf %32, %31 : vector<2x128xf32>
    %34 = arith.divf %32, %33 : vector<2x128xf32>
    %35 = math.tanh %29 : vector<2x128xf32>
    %36 = vector.extract_strided_slice %34 {offsets = [0, 0], sizes = [2, 32], strides = [1, 1]} : vector<2x128xf32> to vector<2x32xf32>
    %37 = vector.extract_strided_slice %34 {offsets = [0, 32], sizes = [2, 32], strides = [1, 1]} : vector<2x128xf32> to vector<2x32xf32>
    %38 = vector.extract_strided_slice %35 {offsets = [0, 64], sizes = [2, 32], strides = [1, 1]} : vector<2x128xf32> to vector<2x32xf32>
    %39 = vector.extract_strided_slice %34 {offsets = [0, 96], sizes = [2, 32], strides = [1, 1]} : vector<2x128xf32> to vector<2x32xf32>
    %40 = arith.mulf %37, %19 : vector<2x32xf32>
    %41 = arith.mulf %36, %38 : vector<2x32xf32>
    %42 = arith.addf %40, %41 : vector<2x32xf32>
    %43 = math.tanh %42 : vector<2x32xf32>
    %44 = arith.mulf %39, %43 : vector<2x32xf32>
    %cst_40 = arith.constant dense<0.000000e+00> : vector<2x128xf32>
    %45 = tpu.matmul %44, %2, %cst_40 {dimension_numbers = #tpu.dot_dimension_numbers<[1], [0], [0], [1], [0, 0, 1, 1], [], []>} : vector<2x32xf32>, vector<32x128xf32>, vector<2x128xf32> -> vector<2x128xf32>
    %cst_41 = arith.constant dense<0.000000e+00> : vector<2x128xf32>
    %46 = tpu.matmul %16, %6, %cst_41 {dimension_numbers = #tpu.dot_dimension_numbers<[1], [0], [0], [1], [0, 0, 1, 1], [], []>} : vector<2x32xf32>, vector<32x128xf32>, vector<2x128xf32> -> vector<2x128xf32>
    %47 = arith.addf %45, %46 : vector<2x128xf32>
    %48 = vector.broadcast %10 : vector<1x128xf32> to vector<2x128xf32>
    %49 = arith.addf %47, %48 : vector<2x128xf32>
    %50 = arith.negf %49 : vector<2x128xf32>
    %51 = math.exp %50 : vector<2x128xf32>
    %cst_42 = arith.constant 1.000000e+00 : f32
    %52 = vector.broadcast %cst_42 : f32 to vector<2x128xf32>
    %53 = arith.addf %52, %51 : vector<2x128xf32>
    %54 = arith.divf %52, %53 : vector<2x128xf32>
    %55 = math.tanh %49 : vector<2x128xf32>
    %56 = vector.extract_strided_slice %54 {offsets = [0, 0], sizes = [2, 32], strides = [1, 1]} : vector<2x128xf32> to vector<2x32xf32>
    %57 = vector.extract_strided_slice %54 {offsets = [0, 32], sizes = [2, 32], strides = [1, 1]} : vector<2x128xf32> to vector<2x32xf32>
    %58 = vector.extract_strided_slice %55 {offsets = [0, 64], sizes = [2, 32], strides = [1, 1]} : vector<2x128xf32> to vector<2x32xf32>
    %59 = vector.extract_strided_slice %54 {offsets = [0, 96], sizes = [2, 32], strides = [1, 1]} : vector<2x128xf32> to vector<2x32xf32>
    %60 = arith.mulf %57, %20 : vector<2x32xf32>
    %61 = arith.mulf %56, %58 : vector<2x32xf32>
    %62 = arith.addf %60, %61 : vector<2x32xf32>
    %63 = math.tanh %62 : vector<2x32xf32>
    %64 = arith.mulf %59, %63 : vector<2x32xf32>
    %65 = vector.extract_strided_slice %0 {offsets = [0, 1, 0], sizes = [2, 1, 16], strides = [1, 1, 1]} : vector<2x8x16xf32> to vector<2x1x16xf32>
    %66 = vector.shape_cast %65 : vector<2x1x16xf32> to vector<2x16xf32>
    %cst_43 = arith.constant dense<0.000000e+00> : vector<2x128xf32>
    %67 = tpu.matmul %66, %1, %cst_43 {dimension_numbers = #tpu.dot_dimension_numbers<[1], [0], [0], [1], [0, 0, 1, 1], [], []>} : vector<2x16xf32>, vector<16x128xf32>, vector<2x128xf32> -> vector<2x128xf32>
    %cst_44 = arith.constant dense<0.000000e+00> : vector<2x128xf32>
    %68 = tpu.matmul %44, %5, %cst_44 {dimension_numbers = #tpu.dot_dimension_numbers<[1], [0], [0], [1], [0, 0, 1, 1], [], []>} : vector<2x32xf32>, vector<32x128xf32>, vector<2x128xf32> -> vector<2x128xf32>
    %69 = arith.addf %67, %68 : vector<2x128xf32>
    %70 = vector.broadcast %9 : vector<1x128xf32> to vector<2x128xf32>
    %71 = arith.addf %69, %70 : vector<2x128xf32>
    %72 = arith.negf %71 : vector<2x128xf32>
    %73 = math.exp %72 : vector<2x128xf32>
    %cst_45 = arith.constant 1.000000e+00 : f32
    %74 = vector.broadcast %cst_45 : f32 to vector<2x128xf32>
    %75 = arith.addf %74, %73 : vector<2x128xf32>
    %76 = arith.divf %74, %75 : vector<2x128xf32>
    %77 = math.tanh %71 : vector<2x128xf32>
    %78 = vector.extract_strided_slice %76 {offsets = [0, 0], sizes = [2, 32], strides = [1, 1]} : vector<2x128xf32> to vector<2x32xf32>
    %79 = vector.extract_strided_slice %76 {offsets = [0, 32], sizes = [2, 32], strides = [1, 1]} : vector<2x128xf32> to vector<2x32xf32>
    %80 = vector.extract_strided_slice %77 {offsets = [0, 64], sizes = [2, 32], strides = [1, 1]} : vector<2x128xf32> to vector<2x32xf32>
    %81 = vector.extract_strided_slice %76 {offsets = [0, 96], sizes = [2, 32], strides = [1, 1]} : vector<2x128xf32> to vector<2x32xf32>
    %82 = arith.mulf %79, %42 : vector<2x32xf32>
    %83 = arith.mulf %78, %80 : vector<2x32xf32>
    %84 = arith.addf %82, %83 : vector<2x32xf32>
    %85 = math.tanh %84 : vector<2x32xf32>
    %86 = arith.mulf %81, %85 : vector<2x32xf32>
    %cst_46 = arith.constant dense<0.000000e+00> : vector<2x128xf32>
    %87 = tpu.matmul %64, %3, %cst_46 {dimension_numbers = #tpu.dot_dimension_numbers<[1], [0], [0], [1], [0, 0, 1, 1], [], []>} : vector<2x32xf32>, vector<32x128xf32>, vector<2x128xf32> -> vector<2x128xf32>
    %cst_47 = arith.constant dense<0.000000e+00> : vector<2x128xf32>
    %88 = tpu.matmul %17, %7, %cst_47 {dimension_numbers = #tpu.dot_dimension_numbers<[1], [0], [0], [1], [0, 0, 1, 1], [], []>} : vector<2x32xf32>, vector<32x128xf32>, vector<2x128xf32> -> vector<2x128xf32>
    %89 = arith.addf %87, %88 : vector<2x128xf32>
    %90 = vector.broadcast %11 : vector<1x128xf32> to vector<2x128xf32>
    %91 = arith.addf %89, %90 : vector<2x128xf32>
    %92 = arith.negf %91 : vector<2x128xf32>
    %93 = math.exp %92 : vector<2x128xf32>
    %cst_48 = arith.constant 1.000000e+00 : f32
    %94 = vector.broadcast %cst_48 : f32 to vector<2x128xf32>
    %95 = arith.addf %94, %93 : vector<2x128xf32>
    %96 = arith.divf %94, %95 : vector<2x128xf32>
    %97 = math.tanh %91 : vector<2x128xf32>
    %98 = vector.extract_strided_slice %96 {offsets = [0, 0], sizes = [2, 32], strides = [1, 1]} : vector<2x128xf32> to vector<2x32xf32>
    %99 = vector.extract_strided_slice %96 {offsets = [0, 32], sizes = [2, 32], strides = [1, 1]} : vector<2x128xf32> to vector<2x32xf32>
    %100 = vector.extract_strided_slice %97 {offsets = [0, 64], sizes = [2, 32], strides = [1, 1]} : vector<2x128xf32> to vector<2x32xf32>
    %101 = vector.extract_strided_slice %96 {offsets = [0, 96], sizes = [2, 32], strides = [1, 1]} : vector<2x128xf32> to vector<2x32xf32>
    %102 = arith.mulf %99, %21 : vector<2x32xf32>
    %103 = arith.mulf %98, %100 : vector<2x32xf32>
    %104 = arith.addf %102, %103 : vector<2x32xf32>
    %105 = math.tanh %104 : vector<2x32xf32>
    %106 = arith.mulf %101, %105 : vector<2x32xf32>
    %cst_49 = arith.constant dense<0.000000e+00> : vector<2x128xf32>
    %107 = tpu.matmul %86, %2, %cst_49 {dimension_numbers = #tpu.dot_dimension_numbers<[1], [0], [0], [1], [0, 0, 1, 1], [], []>} : vector<2x32xf32>, vector<32x128xf32>, vector<2x128xf32> -> vector<2x128xf32>
    %cst_50 = arith.constant dense<0.000000e+00> : vector<2x128xf32>
    %108 = tpu.matmul %64, %6, %cst_50 {dimension_numbers = #tpu.dot_dimension_numbers<[1], [0], [0], [1], [0, 0, 1, 1], [], []>} : vector<2x32xf32>, vector<32x128xf32>, vector<2x128xf32> -> vector<2x128xf32>
    %109 = arith.addf %107, %108 : vector<2x128xf32>
    %110 = vector.broadcast %10 : vector<1x128xf32> to vector<2x128xf32>
    %111 = arith.addf %109, %110 : vector<2x128xf32>
    %112 = arith.negf %111 : vector<2x128xf32>
    %113 = math.exp %112 : vector<2x128xf32>
    %cst_51 = arith.constant 1.000000e+00 : f32
    %114 = vector.broadcast %cst_51 : f32 to vector<2x128xf32>
    %115 = arith.addf %114, %113 : vector<2x128xf32>
    %116 = arith.divf %114, %115 : vector<2x128xf32>
    %117 = math.tanh %111 : vector<2x128xf32>
    %118 = vector.extract_strided_slice %116 {offsets = [0, 0], sizes = [2, 32], strides = [1, 1]} : vector<2x128xf32> to vector<2x32xf32>
    %119 = vector.extract_strided_slice %116 {offsets = [0, 32], sizes = [2, 32], strides = [1, 1]} : vector<2x128xf32> to vector<2x32xf32>
    %120 = vector.extract_strided_slice %117 {offsets = [0, 64], sizes = [2, 32], strides = [1, 1]} : vector<2x128xf32> to vector<2x32xf32>
    %121 = vector.extract_strided_slice %116 {offsets = [0, 96], sizes = [2, 32], strides = [1, 1]} : vector<2x128xf32> to vector<2x32xf32>
    %122 = arith.mulf %119, %62 : vector<2x32xf32>
    %123 = arith.mulf %118, %120 : vector<2x32xf32>
    %124 = arith.addf %122, %123 : vector<2x32xf32>
    %125 = math.tanh %124 : vector<2x32xf32>
    %126 = arith.mulf %121, %125 : vector<2x32xf32>
    %127 = vector.extract_strided_slice %0 {offsets = [0, 2, 0], sizes = [2, 1, 16], strides = [1, 1, 1]} : vector<2x8x16xf32> to vector<2x1x16xf32>
    %128 = vector.shape_cast %127 : vector<2x1x16xf32> to vector<2x16xf32>
    %cst_52 = arith.constant dense<0.000000e+00> : vector<2x128xf32>
    %129 = tpu.matmul %128, %1, %cst_52 {dimension_numbers = #tpu.dot_dimension_numbers<[1], [0], [0], [1], [0, 0, 1, 1], [], []>} : vector<2x16xf32>, vector<16x128xf32>, vector<2x128xf32> -> vector<2x128xf32>
    %cst_53 = arith.constant dense<0.000000e+00> : vector<2x128xf32>
    %130 = tpu.matmul %86, %5, %cst_53 {dimension_numbers = #tpu.dot_dimension_numbers<[1], [0], [0], [1], [0, 0, 1, 1], [], []>} : vector<2x32xf32>, vector<32x128xf32>, vector<2x128xf32> -> vector<2x128xf32>
    %131 = arith.addf %129, %130 : vector<2x128xf32>
    %132 = vector.broadcast %9 : vector<1x128xf32> to vector<2x128xf32>
    %133 = arith.addf %131, %132 : vector<2x128xf32>
    %134 = arith.negf %133 : vector<2x128xf32>
    %135 = math.exp %134 : vector<2x128xf32>
    %cst_54 = arith.constant 1.000000e+00 : f32
    %136 = vector.broadcast %cst_54 : f32 to vector<2x128xf32>
    %137 = arith.addf %136, %135 : vector<2x128xf32>
    %138 = arith.divf %136, %137 : vector<2x128xf32>
    %139 = math.tanh %133 : vector<2x128xf32>
    %140 = vector.extract_strided_slice %138 {offsets = [0, 0], sizes = [2, 32], strides = [1, 1]} : vector<2x128xf32> to vector<2x32xf32>
    %141 = vector.extract_strided_slice %138 {offsets = [0, 32], sizes = [2, 32], strides = [1, 1]} : vector<2x128xf32> to vector<2x32xf32>
    %142 = vector.extract_strided_slice %139 {offsets = [0, 64], sizes = [2, 32], strides = [1, 1]} : vector<2x128xf32> to vector<2x32xf32>
    %143 = vector.extract_strided_slice %138 {offsets = [0, 96], sizes = [2, 32], strides = [1, 1]} : vector<2x128xf32> to vector<2x32xf32>
    %144 = arith.mulf %141, %84 : vector<2x32xf32>
    %145 = arith.mulf %140, %142 : vector<2x32xf32>
    %146 = arith.addf %144, %145 : vector<2x32xf32>
    %147 = math.tanh %146 : vector<2x32xf32>
    %148 = arith.mulf %143, %147 : vector<2x32xf32>
    %cst_55 = arith.constant dense<0.000000e+00> : vector<2x128xf32>
    %149 = tpu.matmul %106, %4, %cst_55 {dimension_numbers = #tpu.dot_dimension_numbers<[1], [0], [0], [1], [0, 0, 1, 1], [], []>} : vector<2x32xf32>, vector<32x128xf32>, vector<2x128xf32> -> vector<2x128xf32>
    %cst_56 = arith.constant dense<0.000000e+00> : vector<2x128xf32>
    %150 = tpu.matmul %18, %8, %cst_56 {dimension_numbers = #tpu.dot_dimension_numbers<[1], [0], [0], [1], [0, 0, 1, 1], [], []>} : vector<2x32xf32>, vector<32x128xf32>, vector<2x128xf32> -> vector<2x128xf32>
    %151 = arith.addf %149, %150 : vector<2x128xf32>
    %152 = vector.broadcast %12 : vector<1x128xf32> to vector<2x128xf32>
    %153 = arith.addf %151, %152 : vector<2x128xf32>
    %154 = arith.negf %153 : vector<2x128xf32>
    %155 = math.exp %154 : vector<2x128xf32>
    %cst_57 = arith.constant 1.000000e+00 : f32
    %156 = vector.broadcast %cst_57 : f32 to vector<2x128xf32>
    %157 = arith.addf %156, %155 : vector<2x128xf32>
    %158 = arith.divf %156, %157 : vector<2x128xf32>
    %159 = math.tanh %153 : vector<2x128xf32>
    %160 = vector.extract_strided_slice %158 {offsets = [0, 0], sizes = [2, 32], strides = [1, 1]} : vector<2x128xf32> to vector<2x32xf32>
    %161 = vector.extract_strided_slice %158 {offsets = [0, 32], sizes = [2, 32], strides = [1, 1]} : vector<2x128xf32> to vector<2x32xf32>
    %162 = vector.extract_strided_slice %159 {offsets = [0, 64], sizes = [2, 32], strides = [1, 1]} : vector<2x128xf32> to vector<2x32xf32>
    %163 = vector.extract_strided_slice %158 {offsets = [0, 96], sizes = [2, 32], strides = [1, 1]} : vector<2x128xf32> to vector<2x32xf32>
    %164 = arith.mulf %161, %22 : vector<2x32xf32>
    %165 = arith.mulf %160, %162 : vector<2x32xf32>
    %166 = arith.addf %164, %165 : vector<2x32xf32>
    %167 = math.tanh %166 : vector<2x32xf32>
    %168 = arith.mulf %163, %167 : vector<2x32xf32>
    %cst_58 = arith.constant dense<0.000000e+00> : vector<2x128xf32>
    %169 = tpu.matmul %168, %13, %cst_58 {dimension_numbers = #tpu.dot_dimension_numbers<[1], [0], [0], [1], [0, 0, 1, 1], [], []>} : vector<2x32xf32>, vector<32x128xf32>, vector<2x128xf32> -> vector<2x128xf32>
    %170 = vector.broadcast %14 : vector<1x128xf32> to vector<2x128xf32>
    %171 = arith.addf %169, %170 : vector<2x128xf32>
    %172 = vector.shape_cast %171 : vector<2x128xf32> to vector<2x1x128xf32>
    %c0_59 = arith.constant 0 : index
    %c0_60 = arith.constant 0 : index
    %c0_61 = arith.constant 0 : index
    %173 = vector.load %arg15[%c0_59, %c0_60, %c0_61] : memref<2x8x128xf32, #tpu.memory_space<vmem>>, vector<2x1x128xf32>
    tpu.vector_store %arg15[%c0_59, %c0_60, %c0_61], %172 {strides = array<i32>} : memref<2x8x128xf32, #tpu.memory_space<vmem>>, vector<2x1x128xf32>,
    %cst_62 = arith.constant dense<0.000000e+00> : vector<2x128xf32>
    %174 = tpu.matmul %126, %3, %cst_62 {dimension_numbers = #tpu.dot_dimension_numbers<[1], [0], [0], [1], [0, 0, 1, 1], [], []>} : vector<2x32xf32>, vector<32x128xf32>, vector<2x128xf32> -> vector<2x128xf32>
    %cst_63 = arith.constant dense<0.000000e+00> : vector<2x128xf32>
    %175 = tpu.matmul %106, %7, %cst_63 {dimension_numbers = #tpu.dot_dimension_numbers<[1], [0], [0], [1], [0, 0, 1, 1], [], []>} : vector<2x32xf32>, vector<32x128xf32>, vector<2x128xf32> -> vector<2x128xf32>
    %176 = arith.addf %174, %175 : vector<2x128xf32>
    %177 = vector.broadcast %11 : vector<1x128xf32> to vector<2x128xf32>
    %178 = arith.addf %176, %177 : vector<2x128xf32>
    %179 = arith.negf %178 : vector<2x128xf32>
    %180 = math.exp %179 : vector<2x128xf32>
    %cst_64 = arith.constant 1.000000e+00 : f32
    %181 = vector.broadcast %cst_64 : f32 to vector<2x128xf32>
    %182 = arith.addf %181, %180 : vector<2x128xf32>
    %183 = arith.divf %181, %182 : vector<2x128xf32>
    %184 = math.tanh %178 : vector<2x128xf32>
    %185 = vector.extract_strided_slice %183 {offsets = [0, 0], sizes = [2, 32], strides = [1, 1]} : vector<2x128xf32> to vector<2x32xf32>
    %186 = vector.extract_strided_slice %183 {offsets = [0, 32], sizes = [2, 32], strides = [1, 1]} : vector<2x128xf32> to vector<2x32xf32>
    %187 = vector.extract_strided_slice %184 {offsets = [0, 64], sizes = [2, 32], strides = [1, 1]} : vector<2x128xf32> to vector<2x32xf32>
    %188 = vector.extract_strided_slice %183 {offsets = [0, 96], sizes = [2, 32], strides = [1, 1]} : vector<2x128xf32> to vector<2x32xf32>
    %189 = arith.mulf %186, %104 : vector<2x32xf32>
    %190 = arith.mulf %185, %187 : vector<2x32xf32>
    %191 = arith.addf %189, %190 : vector<2x32xf32>
    %192 = math.tanh %191 : vector<2x32xf32>
    %193 = arith.mulf %188, %192 : vector<2x32xf32>
    %cst_65 = arith.constant dense<0.000000e+00> : vector<2x128xf32>
    %194 = tpu.matmul %148, %2, %cst_65 {dimension_numbers = #tpu.dot_dimension_numbers<[1], [0], [0], [1], [0, 0, 1, 1], [], []>} : vector<2x32xf32>, vector<32x128xf32>, vector<2x128xf32> -> vector<2x128xf32>
    %cst_66 = arith.constant dense<0.000000e+00> : vector<2x128xf32>
    %195 = tpu.matmul %126, %6, %cst_66 {dimension_numbers = #tpu.dot_dimension_numbers<[1], [0], [0], [1], [0, 0, 1, 1], [], []>} : vector<2x32xf32>, vector<32x128xf32>, vector<2x128xf32> -> vector<2x128xf32>
    %196 = arith.addf %194, %195 : vector<2x128xf32>
    %197 = vector.broadcast %10 : vector<1x128xf32> to vector<2x128xf32>
    %198 = arith.addf %196, %197 : vector<2x128xf32>
    %199 = arith.negf %198 : vector<2x128xf32>
    %200 = math.exp %199 : vector<2x128xf32>
    %cst_67 = arith.constant 1.000000e+00 : f32
    %201 = vector.broadcast %cst_67 : f32 to vector<2x128xf32>
    %202 = arith.addf %201, %200 : vector<2x128xf32>
    %203 = arith.divf %201, %202 : vector<2x128xf32>
    %204 = math.tanh %198 : vector<2x128xf32>
    %205 = vector.extract_strided_slice %203 {offsets = [0, 0], sizes = [2, 32], strides = [1, 1]} : vector<2x128xf32> to vector<2x32xf32>
    %206 = vector.extract_strided_slice %203 {offsets = [0, 32], sizes = [2, 32], strides = [1, 1]} : vector<2x128xf32> to vector<2x32xf32>
    %207 = vector.extract_strided_slice %204 {offsets = [0, 64], sizes = [2, 32], strides = [1, 1]} : vector<2x128xf32> to vector<2x32xf32>
    %208 = vector.extract_strided_slice %203 {offsets = [0, 96], sizes = [2, 32], strides = [1, 1]} : vector<2x128xf32> to vector<2x32xf32>
    %209 = arith.mulf %206, %124 : vector<2x32xf32>
    %210 = arith.mulf %205, %207 : vector<2x32xf32>
    %211 = arith.addf %209, %210 : vector<2x32xf32>
    %212 = math.tanh %211 : vector<2x32xf32>
    %213 = arith.mulf %208, %212 : vector<2x32xf32>
    %214 = vector.extract_strided_slice %0 {offsets = [0, 3, 0], sizes = [2, 1, 16], strides = [1, 1, 1]} : vector<2x8x16xf32> to vector<2x1x16xf32>
    %215 = vector.shape_cast %214 : vector<2x1x16xf32> to vector<2x16xf32>
    %cst_68 = arith.constant dense<0.000000e+00> : vector<2x128xf32>
    %216 = tpu.matmul %215, %1, %cst_68 {dimension_numbers = #tpu.dot_dimension_numbers<[1], [0], [0], [1], [0, 0, 1, 1], [], []>} : vector<2x16xf32>, vector<16x128xf32>, vector<2x128xf32> -> vector<2x128xf32>
    %cst_69 = arith.constant dense<0.000000e+00> : vector<2x128xf32>
    %217 = tpu.matmul %148, %5, %cst_69 {dimension_numbers = #tpu.dot_dimension_numbers<[1], [0], [0], [1], [0, 0, 1, 1], [], []>} : vector<2x32xf32>, vector<32x128xf32>, vector<2x128xf32> -> vector<2x128xf32>
    %218 = arith.addf %216, %217 : vector<2x128xf32>
    %219 = vector.broadcast %9 : vector<1x128xf32> to vector<2x128xf32>
    %220 = arith.addf %218, %219 : vector<2x128xf32>
    %221 = arith.negf %220 : vector<2x128xf32>
    %222 = math.exp %221 : vector<2x128xf32>
    %cst_70 = arith.constant 1.000000e+00 : f32
    %223 = vector.broadcast %cst_70 : f32 to vector<2x128xf32>
    %224 = arith.addf %223, %222 : vector<2x128xf32>
    %225 = arith.divf %223, %224 : vector<2x128xf32>
    %226 = math.tanh %220 : vector<2x128xf32>
    %227 = vector.extract_strided_slice %225 {offsets = [0, 0], sizes = [2, 32], strides = [1, 1]} : vector<2x128xf32> to vector<2x32xf32>
    %228 = vector.extract_strided_slice %225 {offsets = [0, 32], sizes = [2, 32], strides = [1, 1]} : vector<2x128xf32> to vector<2x32xf32>
    %229 = vector.extract_strided_slice %226 {offsets = [0, 64], sizes = [2, 32], strides = [1, 1]} : vector<2x128xf32> to vector<2x32xf32>
    %230 = vector.extract_strided_slice %225 {offsets = [0, 96], sizes = [2, 32], strides = [1, 1]} : vector<2x128xf32> to vector<2x32xf32>
    %231 = arith.mulf %228, %146 : vector<2x32xf32>
    %232 = arith.mulf %227, %229 : vector<2x32xf32>
    %233 = arith.addf %231, %232 : vector<2x32xf32>
    %234 = math.tanh %233 : vector<2x32xf32>
    %235 = arith.mulf %230, %234 : vector<2x32xf32>
    %cst_71 = arith.constant dense<0.000000e+00> : vector<2x128xf32>
    %236 = tpu.matmul %193, %4, %cst_71 {dimension_numbers = #tpu.dot_dimension_numbers<[1], [0], [0], [1], [0, 0, 1, 1], [], []>} : vector<2x32xf32>, vector<32x128xf32>, vector<2x128xf32> -> vector<2x128xf32>
    %cst_72 = arith.constant dense<0.000000e+00> : vector<2x128xf32>
    %237 = tpu.matmul %168, %8, %cst_72 {dimension_numbers = #tpu.dot_dimension_numbers<[1], [0], [0], [1], [0, 0, 1, 1], [], []>} : vector<2x32xf32>, vector<32x128xf32>, vector<2x128xf32> -> vector<2x128xf32>
    %238 = arith.addf %236, %237 : vector<2x128xf32>
    %239 = vector.broadcast %12 : vector<1x128xf32> to vector<2x128xf32>
    %240 = arith.addf %238, %239 : vector<2x128xf32>
    %241 = arith.negf %240 : vector<2x128xf32>
    %242 = math.exp %241 : vector<2x128xf32>
    %cst_73 = arith.constant 1.000000e+00 : f32
    %243 = vector.broadcast %cst_73 : f32 to vector<2x128xf32>
    %244 = arith.addf %243, %242 : vector<2x128xf32>
    %245 = arith.divf %243, %244 : vector<2x128xf32>
    %246 = math.tanh %240 : vector<2x128xf32>
    %247 = vector.extract_strided_slice %245 {offsets = [0, 0], sizes = [2, 32], strides = [1, 1]} : vector<2x128xf32> to vector<2x32xf32>
    %248 = vector.extract_strided_slice %245 {offsets = [0, 32], sizes = [2, 32], strides = [1, 1]} : vector<2x128xf32> to vector<2x32xf32>
    %249 = vector.extract_strided_slice %246 {offsets = [0, 64], sizes = [2, 32], strides = [1, 1]} : vector<2x128xf32> to vector<2x32xf32>
    %250 = vector.extract_strided_slice %245 {offsets = [0, 96], sizes = [2, 32], strides = [1, 1]} : vector<2x128xf32> to vector<2x32xf32>
    %251 = arith.mulf %248, %166 : vector<2x32xf32>
    %252 = arith.mulf %247, %249 : vector<2x32xf32>
    %253 = arith.addf %251, %252 : vector<2x32xf32>
    %254 = math.tanh %253 : vector<2x32xf32>
    %255 = arith.mulf %250, %254 : vector<2x32xf32>
    %cst_74 = arith.constant dense<0.000000e+00> : vector<2x128xf32>
    %256 = tpu.matmul %255, %13, %cst_74 {dimension_numbers = #tpu.dot_dimension_numbers<[1], [0], [0], [1], [0, 0, 1, 1], [], []>} : vector<2x32xf32>, vector<32x128xf32>, vector<2x128xf32> -> vector<2x128xf32>
    %257 = vector.broadcast %14 : vector<1x128xf32> to vector<2x128xf32>
    %258 = arith.addf %256, %257 : vector<2x128xf32>
    %259 = vector.shape_cast %258 : vector<2x128xf32> to vector<2x1x128xf32>
    %c0_75 = arith.constant 0 : index
    %c1 = arith.constant 1 : index
    %c0_76 = arith.constant 0 : index
    %260 = vector.load %arg15[%c0_75, %c1, %c0_76] : memref<2x8x128xf32, #tpu.memory_space<vmem>>, vector<2x1x128xf32>
    tpu.vector_store %arg15[%c0_75, %c1, %c0_76], %259 {strides = array<i32>} : memref<2x8x128xf32, #tpu.memory_space<vmem>>, vector<2x1x128xf32>,
    %cst_77 = arith.constant dense<0.000000e+00> : vector<2x128xf32>
    %261 = tpu.matmul %213, %3, %cst_77 {dimension_numbers = #tpu.dot_dimension_numbers<[1], [0], [0], [1], [0, 0, 1, 1], [], []>} : vector<2x32xf32>, vector<32x128xf32>, vector<2x128xf32> -> vector<2x128xf32>
    %cst_78 = arith.constant dense<0.000000e+00> : vector<2x128xf32>
    %262 = tpu.matmul %193, %7, %cst_78 {dimension_numbers = #tpu.dot_dimension_numbers<[1], [0], [0], [1], [0, 0, 1, 1], [], []>} : vector<2x32xf32>, vector<32x128xf32>, vector<2x128xf32> -> vector<2x128xf32>
    %263 = arith.addf %261, %262 : vector<2x128xf32>
    %264 = vector.broadcast %11 : vector<1x128xf32> to vector<2x128xf32>
    %265 = arith.addf %263, %264 : vector<2x128xf32>
    %266 = arith.negf %265 : vector<2x128xf32>
    %267 = math.exp %266 : vector<2x128xf32>
    %cst_79 = arith.constant 1.000000e+00 : f32
    %268 = vector.broadcast %cst_79 : f32 to vector<2x128xf32>
    %269 = arith.addf %268, %267 : vector<2x128xf32>
    %270 = arith.divf %268, %269 : vector<2x128xf32>
    %271 = math.tanh %265 : vector<2x128xf32>
    %272 = vector.extract_strided_slice %270 {offsets = [0, 0], sizes = [2, 32], strides = [1, 1]} : vector<2x128xf32> to vector<2x32xf32>
    %273 = vector.extract_strided_slice %270 {offsets = [0, 32], sizes = [2, 32], strides = [1, 1]} : vector<2x128xf32> to vector<2x32xf32>
    %274 = vector.extract_strided_slice %271 {offsets = [0, 64], sizes = [2, 32], strides = [1, 1]} : vector<2x128xf32> to vector<2x32xf32>
    %275 = vector.extract_strided_slice %270 {offsets = [0, 96], sizes = [2, 32], strides = [1, 1]} : vector<2x128xf32> to vector<2x32xf32>
    %276 = arith.mulf %273, %191 : vector<2x32xf32>
    %277 = arith.mulf %272, %274 : vector<2x32xf32>
    %278 = arith.addf %276, %277 : vector<2x32xf32>
    %279 = math.tanh %278 : vector<2x32xf32>
    %280 = arith.mulf %275, %279 : vector<2x32xf32>
    %cst_80 = arith.constant dense<0.000000e+00> : vector<2x128xf32>
    %281 = tpu.matmul %235, %2, %cst_80 {dimension_numbers = #tpu.dot_dimension_numbers<[1], [0], [0], [1], [0, 0, 1, 1], [], []>} : vector<2x32xf32>, vector<32x128xf32>, vector<2x128xf32> -> vector<2x128xf32>
    %cst_81 = arith.constant dense<0.000000e+00> : vector<2x128xf32>
    %282 = tpu.matmul %213, %6, %cst_81 {dimension_numbers = #tpu.dot_dimension_numbers<[1], [0], [0], [1], [0, 0, 1, 1], [], []>} : vector<2x32xf32>, vector<32x128xf32>, vector<2x128xf32> -> vector<2x128xf32>
    %283 = arith.addf %281, %282 : vector<2x128xf32>
    %284 = vector.broadcast %10 : vector<1x128xf32> to vector<2x128xf32>
    %285 = arith.addf %283, %284 : vector<2x128xf32>
    %286 = arith.negf %285 : vector<2x128xf32>
    %287 = math.exp %286 : vector<2x128xf32>
    %cst_82 = arith.constant 1.000000e+00 : f32
    %288 = vector.broadcast %cst_82 : f32 to vector<2x128xf32>
    %289 = arith.addf %288, %287 : vector<2x128xf32>
    %290 = arith.divf %288, %289 : vector<2x128xf32>
    %291 = math.tanh %285 : vector<2x128xf32>
    %292 = vector.extract_strided_slice %290 {offsets = [0, 0], sizes = [2, 32], strides = [1, 1]} : vector<2x128xf32> to vector<2x32xf32>
    %293 = vector.extract_strided_slice %290 {offsets = [0, 32], sizes = [2, 32], strides = [1, 1]} : vector<2x128xf32> to vector<2x32xf32>
    %294 = vector.extract_strided_slice %291 {offsets = [0, 64], sizes = [2, 32], strides = [1, 1]} : vector<2x128xf32> to vector<2x32xf32>
    %295 = vector.extract_strided_slice %290 {offsets = [0, 96], sizes = [2, 32], strides = [1, 1]} : vector<2x128xf32> to vector<2x32xf32>
    %296 = arith.mulf %293, %211 : vector<2x32xf32>
    %297 = arith.mulf %292, %294 : vector<2x32xf32>
    %298 = arith.addf %296, %297 : vector<2x32xf32>
    %299 = math.tanh %298 : vector<2x32xf32>
    %300 = arith.mulf %295, %299 : vector<2x32xf32>
    %301 = vector.extract_strided_slice %0 {offsets = [0, 4, 0], sizes = [2, 1, 16], strides = [1, 1, 1]} : vector<2x8x16xf32> to vector<2x1x16xf32>
    %302 = vector.shape_cast %301 : vector<2x1x16xf32> to vector<2x16xf32>
    %cst_83 = arith.constant dense<0.000000e+00> : vector<2x128xf32>
    %303 = tpu.matmul %302, %1, %cst_83 {dimension_numbers = #tpu.dot_dimension_numbers<[1], [0], [0], [1], [0, 0, 1, 1], [], []>} : vector<2x16xf32>, vector<16x128xf32>, vector<2x128xf32> -> vector<2x128xf32>
    %cst_84 = arith.constant dense<0.000000e+00> : vector<2x128xf32>
    %304 = tpu.matmul %235, %5, %cst_84 {dimension_numbers = #tpu.dot_dimension_numbers<[1], [0], [0], [1], [0, 0, 1, 1], [], []>} : vector<2x32xf32>, vector<32x128xf32>, vector<2x128xf32> -> vector<2x128xf32>
    %305 = arith.addf %303, %304 : vector<2x128xf32>
    %306 = vector.broadcast %9 : vector<1x128xf32> to vector<2x128xf32>
    %307 = arith.addf %305, %306 : vector<2x128xf32>
    %308 = arith.negf %307 : vector<2x128xf32>
    %309 = math.exp %308 : vector<2x128xf32>
    %cst_85 = arith.constant 1.000000e+00 : f32
    %310 = vector.broadcast %cst_85 : f32 to vector<2x128xf32>
    %311 = arith.addf %310, %309 : vector<2x128xf32>
    %312 = arith.divf %310, %311 : vector<2x128xf32>
    %313 = math.tanh %307 : vector<2x128xf32>
    %314 = vector.extract_strided_slice %312 {offsets = [0, 0], sizes = [2, 32], strides = [1, 1]} : vector<2x128xf32> to vector<2x32xf32>
    %315 = vector.extract_strided_slice %312 {offsets = [0, 32], sizes = [2, 32], strides = [1, 1]} : vector<2x128xf32> to vector<2x32xf32>
    %316 = vector.extract_strided_slice %313 {offsets = [0, 64], sizes = [2, 32], strides = [1, 1]} : vector<2x128xf32> to vector<2x32xf32>
    %317 = vector.extract_strided_slice %312 {offsets = [0, 96], sizes = [2, 32], strides = [1, 1]} : vector<2x128xf32> to vector<2x32xf32>
    %318 = arith.mulf %315, %233 : vector<2x32xf32>
    %319 = arith.mulf %314, %316 : vector<2x32xf32>
    %320 = arith.addf %318, %319 : vector<2x32xf32>
    %321 = math.tanh %320 : vector<2x32xf32>
    %322 = arith.mulf %317, %321 : vector<2x32xf32>
    %cst_86 = arith.constant dense<0.000000e+00> : vector<2x128xf32>
    %323 = tpu.matmul %280, %4, %cst_86 {dimension_numbers = #tpu.dot_dimension_numbers<[1], [0], [0], [1], [0, 0, 1, 1], [], []>} : vector<2x32xf32>, vector<32x128xf32>, vector<2x128xf32> -> vector<2x128xf32>
    %cst_87 = arith.constant dense<0.000000e+00> : vector<2x128xf32>
    %324 = tpu.matmul %255, %8, %cst_87 {dimension_numbers = #tpu.dot_dimension_numbers<[1], [0], [0], [1], [0, 0, 1, 1], [], []>} : vector<2x32xf32>, vector<32x128xf32>, vector<2x128xf32> -> vector<2x128xf32>
    %325 = arith.addf %323, %324 : vector<2x128xf32>
    %326 = vector.broadcast %12 : vector<1x128xf32> to vector<2x128xf32>
    %327 = arith.addf %325, %326 : vector<2x128xf32>
    %328 = arith.negf %327 : vector<2x128xf32>
    %329 = math.exp %328 : vector<2x128xf32>
    %cst_88 = arith.constant 1.000000e+00 : f32
    %330 = vector.broadcast %cst_88 : f32 to vector<2x128xf32>
    %331 = arith.addf %330, %329 : vector<2x128xf32>
    %332 = arith.divf %330, %331 : vector<2x128xf32>
    %333 = math.tanh %327 : vector<2x128xf32>
    %334 = vector.extract_strided_slice %332 {offsets = [0, 0], sizes = [2, 32], strides = [1, 1]} : vector<2x128xf32> to vector<2x32xf32>
    %335 = vector.extract_strided_slice %332 {offsets = [0, 32], sizes = [2, 32], strides = [1, 1]} : vector<2x128xf32> to vector<2x32xf32>
    %336 = vector.extract_strided_slice %333 {offsets = [0, 64], sizes = [2, 32], strides = [1, 1]} : vector<2x128xf32> to vector<2x32xf32>
    %337 = vector.extract_strided_slice %332 {offsets = [0, 96], sizes = [2, 32], strides = [1, 1]} : vector<2x128xf32> to vector<2x32xf32>
    %338 = arith.mulf %335, %253 : vector<2x32xf32>
    %339 = arith.mulf %334, %336 : vector<2x32xf32>
    %340 = arith.addf %338, %339 : vector<2x32xf32>
    %341 = math.tanh %340 : vector<2x32xf32>
    %342 = arith.mulf %337, %341 : vector<2x32xf32>
    %cst_89 = arith.constant dense<0.000000e+00> : vector<2x128xf32>
    %343 = tpu.matmul %342, %13, %cst_89 {dimension_numbers = #tpu.dot_dimension_numbers<[1], [0], [0], [1], [0, 0, 1, 1], [], []>} : vector<2x32xf32>, vector<32x128xf32>, vector<2x128xf32> -> vector<2x128xf32>
    %344 = vector.broadcast %14 : vector<1x128xf32> to vector<2x128xf32>
    %345 = arith.addf %343, %344 : vector<2x128xf32>
    %346 = vector.shape_cast %345 : vector<2x128xf32> to vector<2x1x128xf32>
    %c0_90 = arith.constant 0 : index
    %c2 = arith.constant 2 : index
    %c0_91 = arith.constant 0 : index
    %347 = vector.load %arg15[%c0_90, %c2, %c0_91] : memref<2x8x128xf32, #tpu.memory_space<vmem>>, vector<2x1x128xf32>
    tpu.vector_store %arg15[%c0_90, %c2, %c0_91], %346 {strides = array<i32>} : memref<2x8x128xf32, #tpu.memory_space<vmem>>, vector<2x1x128xf32>,
    %cst_92 = arith.constant dense<0.000000e+00> : vector<2x128xf32>
    %348 = tpu.matmul %300, %3, %cst_92 {dimension_numbers = #tpu.dot_dimension_numbers<[1], [0], [0], [1], [0, 0, 1, 1], [], []>} : vector<2x32xf32>, vector<32x128xf32>, vector<2x128xf32> -> vector<2x128xf32>
    %cst_93 = arith.constant dense<0.000000e+00> : vector<2x128xf32>
    %349 = tpu.matmul %280, %7, %cst_93 {dimension_numbers = #tpu.dot_dimension_numbers<[1], [0], [0], [1], [0, 0, 1, 1], [], []>} : vector<2x32xf32>, vector<32x128xf32>, vector<2x128xf32> -> vector<2x128xf32>
    %350 = arith.addf %348, %349 : vector<2x128xf32>
    %351 = vector.broadcast %11 : vector<1x128xf32> to vector<2x128xf32>
    %352 = arith.addf %350, %351 : vector<2x128xf32>
    %353 = arith.negf %352 : vector<2x128xf32>
    %354 = math.exp %353 : vector<2x128xf32>
    %cst_94 = arith.constant 1.000000e+00 : f32
    %355 = vector.broadcast %cst_94 : f32 to vector<2x128xf32>
    %356 = arith.addf %355, %354 : vector<2x128xf32>
    %357 = arith.divf %355, %356 : vector<2x128xf32>
    %358 = math.tanh %352 : vector<2x128xf32>
    %359 = vector.extract_strided_slice %357 {offsets = [0, 0], sizes = [2, 32], strides = [1, 1]} : vector<2x128xf32> to vector<2x32xf32>
    %360 = vector.extract_strided_slice %357 {offsets = [0, 32], sizes = [2, 32], strides = [1, 1]} : vector<2x128xf32> to vector<2x32xf32>
    %361 = vector.extract_strided_slice %358 {offsets = [0, 64], sizes = [2, 32], strides = [1, 1]} : vector<2x128xf32> to vector<2x32xf32>
    %362 = vector.extract_strided_slice %357 {offsets = [0, 96], sizes = [2, 32], strides = [1, 1]} : vector<2x128xf32> to vector<2x32xf32>
    %363 = arith.mulf %360, %278 : vector<2x32xf32>
    %364 = arith.mulf %359, %361 : vector<2x32xf32>
    %365 = arith.addf %363, %364 : vector<2x32xf32>
    %366 = math.tanh %365 : vector<2x32xf32>
    %367 = arith.mulf %362, %366 : vector<2x32xf32>
    %cst_95 = arith.constant dense<0.000000e+00> : vector<2x128xf32>
    %368 = tpu.matmul %322, %2, %cst_95 {dimension_numbers = #tpu.dot_dimension_numbers<[1], [0], [0], [1], [0, 0, 1, 1], [], []>} : vector<2x32xf32>, vector<32x128xf32>, vector<2x128xf32> -> vector<2x128xf32>
    %cst_96 = arith.constant dense<0.000000e+00> : vector<2x128xf32>
    %369 = tpu.matmul %300, %6, %cst_96 {dimension_numbers = #tpu.dot_dimension_numbers<[1], [0], [0], [1], [0, 0, 1, 1], [], []>} : vector<2x32xf32>, vector<32x128xf32>, vector<2x128xf32> -> vector<2x128xf32>
    %370 = arith.addf %368, %369 : vector<2x128xf32>
    %371 = vector.broadcast %10 : vector<1x128xf32> to vector<2x128xf32>
    %372 = arith.addf %370, %371 : vector<2x128xf32>
    %373 = arith.negf %372 : vector<2x128xf32>
    %374 = math.exp %373 : vector<2x128xf32>
    %cst_97 = arith.constant 1.000000e+00 : f32
    %375 = vector.broadcast %cst_97 : f32 to vector<2x128xf32>
    %376 = arith.addf %375, %374 : vector<2x128xf32>
    %377 = arith.divf %375, %376 : vector<2x128xf32>
    %378 = math.tanh %372 : vector<2x128xf32>
    %379 = vector.extract_strided_slice %377 {offsets = [0, 0], sizes = [2, 32], strides = [1, 1]} : vector<2x128xf32> to vector<2x32xf32>
    %380 = vector.extract_strided_slice %377 {offsets = [0, 32], sizes = [2, 32], strides = [1, 1]} : vector<2x128xf32> to vector<2x32xf32>
    %381 = vector.extract_strided_slice %378 {offsets = [0, 64], sizes = [2, 32], strides = [1, 1]} : vector<2x128xf32> to vector<2x32xf32>
    %382 = vector.extract_strided_slice %377 {offsets = [0, 96], sizes = [2, 32], strides = [1, 1]} : vector<2x128xf32> to vector<2x32xf32>
    %383 = arith.mulf %380, %298 : vector<2x32xf32>
    %384 = arith.mulf %379, %381 : vector<2x32xf32>
    %385 = arith.addf %383, %384 : vector<2x32xf32>
    %386 = math.tanh %385 : vector<2x32xf32>
    %387 = arith.mulf %382, %386 : vector<2x32xf32>
    %388 = vector.extract_strided_slice %0 {offsets = [0, 5, 0], sizes = [2, 1, 16], strides = [1, 1, 1]} : vector<2x8x16xf32> to vector<2x1x16xf32>
    %389 = vector.shape_cast %388 : vector<2x1x16xf32> to vector<2x16xf32>
    %cst_98 = arith.constant dense<0.000000e+00> : vector<2x128xf32>
    %390 = tpu.matmul %389, %1, %cst_98 {dimension_numbers = #tpu.dot_dimension_numbers<[1], [0], [0], [1], [0, 0, 1, 1], [], []>} : vector<2x16xf32>, vector<16x128xf32>, vector<2x128xf32> -> vector<2x128xf32>
    %cst_99 = arith.constant dense<0.000000e+00> : vector<2x128xf32>
    %391 = tpu.matmul %322, %5, %cst_99 {dimension_numbers = #tpu.dot_dimension_numbers<[1], [0], [0], [1], [0, 0, 1, 1], [], []>} : vector<2x32xf32>, vector<32x128xf32>, vector<2x128xf32> -> vector<2x128xf32>
    %392 = arith.addf %390, %391 : vector<2x128xf32>
    %393 = vector.broadcast %9 : vector<1x128xf32> to vector<2x128xf32>
    %394 = arith.addf %392, %393 : vector<2x128xf32>
    %395 = arith.negf %394 : vector<2x128xf32>
    %396 = math.exp %395 : vector<2x128xf32>
    %cst_100 = arith.constant 1.000000e+00 : f32
    %397 = vector.broadcast %cst_100 : f32 to vector<2x128xf32>
    %398 = arith.addf %397, %396 : vector<2x128xf32>
    %399 = arith.divf %397, %398 : vector<2x128xf32>
    %400 = math.tanh %394 : vector<2x128xf32>
    %401 = vector.extract_strided_slice %399 {offsets = [0, 0], sizes = [2, 32], strides = [1, 1]} : vector<2x128xf32> to vector<2x32xf32>
    %402 = vector.extract_strided_slice %399 {offsets = [0, 32], sizes = [2, 32], strides = [1, 1]} : vector<2x128xf32> to vector<2x32xf32>
    %403 = vector.extract_strided_slice %400 {offsets = [0, 64], sizes = [2, 32], strides = [1, 1]} : vector<2x128xf32> to vector<2x32xf32>
    %404 = vector.extract_strided_slice %399 {offsets = [0, 96], sizes = [2, 32], strides = [1, 1]} : vector<2x128xf32> to vector<2x32xf32>
    %405 = arith.mulf %402, %320 : vector<2x32xf32>
    %406 = arith.mulf %401, %403 : vector<2x32xf32>
    %407 = arith.addf %405, %406 : vector<2x32xf32>
    %408 = math.tanh %407 : vector<2x32xf32>
    %409 = arith.mulf %404, %408 : vector<2x32xf32>
    %cst_101 = arith.constant dense<0.000000e+00> : vector<2x128xf32>
    %410 = tpu.matmul %367, %4, %cst_101 {dimension_numbers = #tpu.dot_dimension_numbers<[1], [0], [0], [1], [0, 0, 1, 1], [], []>} : vector<2x32xf32>, vector<32x128xf32>, vector<2x128xf32> -> vector<2x128xf32>
    %cst_102 = arith.constant dense<0.000000e+00> : vector<2x128xf32>
    %411 = tpu.matmul %342, %8, %cst_102 {dimension_numbers = #tpu.dot_dimension_numbers<[1], [0], [0], [1], [0, 0, 1, 1], [], []>} : vector<2x32xf32>, vector<32x128xf32>, vector<2x128xf32> -> vector<2x128xf32>
    %412 = arith.addf %410, %411 : vector<2x128xf32>
    %413 = vector.broadcast %12 : vector<1x128xf32> to vector<2x128xf32>
    %414 = arith.addf %412, %413 : vector<2x128xf32>
    %415 = arith.negf %414 : vector<2x128xf32>
    %416 = math.exp %415 : vector<2x128xf32>
    %cst_103 = arith.constant 1.000000e+00 : f32
    %417 = vector.broadcast %cst_103 : f32 to vector<2x128xf32>
    %418 = arith.addf %417, %416 : vector<2x128xf32>
    %419 = arith.divf %417, %418 : vector<2x128xf32>
    %420 = math.tanh %414 : vector<2x128xf32>
    %421 = vector.extract_strided_slice %419 {offsets = [0, 0], sizes = [2, 32], strides = [1, 1]} : vector<2x128xf32> to vector<2x32xf32>
    %422 = vector.extract_strided_slice %419 {offsets = [0, 32], sizes = [2, 32], strides = [1, 1]} : vector<2x128xf32> to vector<2x32xf32>
    %423 = vector.extract_strided_slice %420 {offsets = [0, 64], sizes = [2, 32], strides = [1, 1]} : vector<2x128xf32> to vector<2x32xf32>
    %424 = vector.extract_strided_slice %419 {offsets = [0, 96], sizes = [2, 32], strides = [1, 1]} : vector<2x128xf32> to vector<2x32xf32>
    %425 = arith.mulf %422, %340 : vector<2x32xf32>
    %426 = arith.mulf %421, %423 : vector<2x32xf32>
    %427 = arith.addf %425, %426 : vector<2x32xf32>
    %428 = math.tanh %427 : vector<2x32xf32>
    %429 = arith.mulf %424, %428 : vector<2x32xf32>
    %cst_104 = arith.constant dense<0.000000e+00> : vector<2x128xf32>
    %430 = tpu.matmul %429, %13, %cst_104 {dimension_numbers = #tpu.dot_dimension_numbers<[1], [0], [0], [1], [0, 0, 1, 1], [], []>} : vector<2x32xf32>, vector<32x128xf32>, vector<2x128xf32> -> vector<2x128xf32>
    %431 = vector.broadcast %14 : vector<1x128xf32> to vector<2x128xf32>
    %432 = arith.addf %430, %431 : vector<2x128xf32>
    %433 = vector.shape_cast %432 : vector<2x128xf32> to vector<2x1x128xf32>
    %c0_105 = arith.constant 0 : index
    %c3 = arith.constant 3 : index
    %c0_106 = arith.constant 0 : index
    %434 = vector.load %arg15[%c0_105, %c3, %c0_106] : memref<2x8x128xf32, #tpu.memory_space<vmem>>, vector<2x1x128xf32>
    tpu.vector_store %arg15[%c0_105, %c3, %c0_106], %433 {strides = array<i32>} : memref<2x8x128xf32, #tpu.memory_space<vmem>>, vector<2x1x128xf32>,
    %cst_107 = arith.constant dense<0.000000e+00> : vector<2x128xf32>
    %435 = tpu.matmul %387, %3, %cst_107 {dimension_numbers = #tpu.dot_dimension_numbers<[1], [0], [0], [1], [0, 0, 1, 1], [], []>} : vector<2x32xf32>, vector<32x128xf32>, vector<2x128xf32> -> vector<2x128xf32>
    %cst_108 = arith.constant dense<0.000000e+00> : vector<2x128xf32>
    %436 = tpu.matmul %367, %7, %cst_108 {dimension_numbers = #tpu.dot_dimension_numbers<[1], [0], [0], [1], [0, 0, 1, 1], [], []>} : vector<2x32xf32>, vector<32x128xf32>, vector<2x128xf32> -> vector<2x128xf32>
    %437 = arith.addf %435, %436 : vector<2x128xf32>
    %438 = vector.broadcast %11 : vector<1x128xf32> to vector<2x128xf32>
    %439 = arith.addf %437, %438 : vector<2x128xf32>
    %440 = arith.negf %439 : vector<2x128xf32>
    %441 = math.exp %440 : vector<2x128xf32>
    %cst_109 = arith.constant 1.000000e+00 : f32
    %442 = vector.broadcast %cst_109 : f32 to vector<2x128xf32>
    %443 = arith.addf %442, %441 : vector<2x128xf32>
    %444 = arith.divf %442, %443 : vector<2x128xf32>
    %445 = math.tanh %439 : vector<2x128xf32>
    %446 = vector.extract_strided_slice %444 {offsets = [0, 0], sizes = [2, 32], strides = [1, 1]} : vector<2x128xf32> to vector<2x32xf32>
    %447 = vector.extract_strided_slice %444 {offsets = [0, 32], sizes = [2, 32], strides = [1, 1]} : vector<2x128xf32> to vector<2x32xf32>
    %448 = vector.extract_strided_slice %445 {offsets = [0, 64], sizes = [2, 32], strides = [1, 1]} : vector<2x128xf32> to vector<2x32xf32>
    %449 = vector.extract_strided_slice %444 {offsets = [0, 96], sizes = [2, 32], strides = [1, 1]} : vector<2x128xf32> to vector<2x32xf32>
    %450 = arith.mulf %447, %365 : vector<2x32xf32>
    %451 = arith.mulf %446, %448 : vector<2x32xf32>
    %452 = arith.addf %450, %451 : vector<2x32xf32>
    %453 = math.tanh %452 : vector<2x32xf32>
    %454 = arith.mulf %449, %453 : vector<2x32xf32>
    %cst_110 = arith.constant dense<0.000000e+00> : vector<2x128xf32>
    %455 = tpu.matmul %409, %2, %cst_110 {dimension_numbers = #tpu.dot_dimension_numbers<[1], [0], [0], [1], [0, 0, 1, 1], [], []>} : vector<2x32xf32>, vector<32x128xf32>, vector<2x128xf32> -> vector<2x128xf32>
    %cst_111 = arith.constant dense<0.000000e+00> : vector<2x128xf32>
    %456 = tpu.matmul %387, %6, %cst_111 {dimension_numbers = #tpu.dot_dimension_numbers<[1], [0], [0], [1], [0, 0, 1, 1], [], []>} : vector<2x32xf32>, vector<32x128xf32>, vector<2x128xf32> -> vector<2x128xf32>
    %457 = arith.addf %455, %456 : vector<2x128xf32>
    %458 = vector.broadcast %10 : vector<1x128xf32> to vector<2x128xf32>
    %459 = arith.addf %457, %458 : vector<2x128xf32>
    %460 = arith.negf %459 : vector<2x128xf32>
    %461 = math.exp %460 : vector<2x128xf32>
    %cst_112 = arith.constant 1.000000e+00 : f32
    %462 = vector.broadcast %cst_112 : f32 to vector<2x128xf32>
    %463 = arith.addf %462, %461 : vector<2x128xf32>
    %464 = arith.divf %462, %463 : vector<2x128xf32>
    %465 = math.tanh %459 : vector<2x128xf32>
    %466 = vector.extract_strided_slice %464 {offsets = [0, 0], sizes = [2, 32], strides = [1, 1]} : vector<2x128xf32> to vector<2x32xf32>
    %467 = vector.extract_strided_slice %464 {offsets = [0, 32], sizes = [2, 32], strides = [1, 1]} : vector<2x128xf32> to vector<2x32xf32>
    %468 = vector.extract_strided_slice %465 {offsets = [0, 64], sizes = [2, 32], strides = [1, 1]} : vector<2x128xf32> to vector<2x32xf32>
    %469 = vector.extract_strided_slice %464 {offsets = [0, 96], sizes = [2, 32], strides = [1, 1]} : vector<2x128xf32> to vector<2x32xf32>
    %470 = arith.mulf %467, %385 : vector<2x32xf32>
    %471 = arith.mulf %466, %468 : vector<2x32xf32>
    %472 = arith.addf %470, %471 : vector<2x32xf32>
    %473 = math.tanh %472 : vector<2x32xf32>
    %474 = arith.mulf %469, %473 : vector<2x32xf32>
    %475 = vector.extract_strided_slice %0 {offsets = [0, 6, 0], sizes = [2, 1, 16], strides = [1, 1, 1]} : vector<2x8x16xf32> to vector<2x1x16xf32>
    %476 = vector.shape_cast %475 : vector<2x1x16xf32> to vector<2x16xf32>
    %cst_113 = arith.constant dense<0.000000e+00> : vector<2x128xf32>
    %477 = tpu.matmul %476, %1, %cst_113 {dimension_numbers = #tpu.dot_dimension_numbers<[1], [0], [0], [1], [0, 0, 1, 1], [], []>} : vector<2x16xf32>, vector<16x128xf32>, vector<2x128xf32> -> vector<2x128xf32>
    %cst_114 = arith.constant dense<0.000000e+00> : vector<2x128xf32>
    %478 = tpu.matmul %409, %5, %cst_114 {dimension_numbers = #tpu.dot_dimension_numbers<[1], [0], [0], [1], [0, 0, 1, 1], [], []>} : vector<2x32xf32>, vector<32x128xf32>, vector<2x128xf32> -> vector<2x128xf32>
    %479 = arith.addf %477, %478 : vector<2x128xf32>
    %480 = vector.broadcast %9 : vector<1x128xf32> to vector<2x128xf32>
    %481 = arith.addf %479, %480 : vector<2x128xf32>
    %482 = arith.negf %481 : vector<2x128xf32>
    %483 = math.exp %482 : vector<2x128xf32>
    %cst_115 = arith.constant 1.000000e+00 : f32
    %484 = vector.broadcast %cst_115 : f32 to vector<2x128xf32>
    %485 = arith.addf %484, %483 : vector<2x128xf32>
    %486 = arith.divf %484, %485 : vector<2x128xf32>
    %487 = math.tanh %481 : vector<2x128xf32>
    %488 = vector.extract_strided_slice %486 {offsets = [0, 0], sizes = [2, 32], strides = [1, 1]} : vector<2x128xf32> to vector<2x32xf32>
    %489 = vector.extract_strided_slice %486 {offsets = [0, 32], sizes = [2, 32], strides = [1, 1]} : vector<2x128xf32> to vector<2x32xf32>
    %490 = vector.extract_strided_slice %487 {offsets = [0, 64], sizes = [2, 32], strides = [1, 1]} : vector<2x128xf32> to vector<2x32xf32>
    %491 = vector.extract_strided_slice %486 {offsets = [0, 96], sizes = [2, 32], strides = [1, 1]} : vector<2x128xf32> to vector<2x32xf32>
    %492 = arith.mulf %489, %407 : vector<2x32xf32>
    %493 = arith.mulf %488, %490 : vector<2x32xf32>
    %494 = arith.addf %492, %493 : vector<2x32xf32>
    %495 = math.tanh %494 : vector<2x32xf32>
    %496 = arith.mulf %491, %495 : vector<2x32xf32>
    %cst_116 = arith.constant dense<0.000000e+00> : vector<2x128xf32>
    %497 = tpu.matmul %454, %4, %cst_116 {dimension_numbers = #tpu.dot_dimension_numbers<[1], [0], [0], [1], [0, 0, 1, 1], [], []>} : vector<2x32xf32>, vector<32x128xf32>, vector<2x128xf32> -> vector<2x128xf32>
    %cst_117 = arith.constant dense<0.000000e+00> : vector<2x128xf32>
    %498 = tpu.matmul %429, %8, %cst_117 {dimension_numbers = #tpu.dot_dimension_numbers<[1], [0], [0], [1], [0, 0, 1, 1], [], []>} : vector<2x32xf32>, vector<32x128xf32>, vector<2x128xf32> -> vector<2x128xf32>
    %499 = arith.addf %497, %498 : vector<2x128xf32>
    %500 = vector.broadcast %12 : vector<1x128xf32> to vector<2x128xf32>
    %501 = arith.addf %499, %500 : vector<2x128xf32>
    %502 = arith.negf %501 : vector<2x128xf32>
    %503 = math.exp %502 : vector<2x128xf32>
    %cst_118 = arith.constant 1.000000e+00 : f32
    %504 = vector.broadcast %cst_118 : f32 to vector<2x128xf32>
    %505 = arith.addf %504, %503 : vector<2x128xf32>
    %506 = arith.divf %504, %505 : vector<2x128xf32>
    %507 = math.tanh %501 : vector<2x128xf32>
    %508 = vector.extract_strided_slice %506 {offsets = [0, 0], sizes = [2, 32], strides = [1, 1]} : vector<2x128xf32> to vector<2x32xf32>
    %509 = vector.extract_strided_slice %506 {offsets = [0, 32], sizes = [2, 32], strides = [1, 1]} : vector<2x128xf32> to vector<2x32xf32>
    %510 = vector.extract_strided_slice %507 {offsets = [0, 64], sizes = [2, 32], strides = [1, 1]} : vector<2x128xf32> to vector<2x32xf32>
    %511 = vector.extract_strided_slice %506 {offsets = [0, 96], sizes = [2, 32], strides = [1, 1]} : vector<2x128xf32> to vector<2x32xf32>
    %512 = arith.mulf %509, %427 : vector<2x32xf32>
    %513 = arith.mulf %508, %510 : vector<2x32xf32>
    %514 = arith.addf %512, %513 : vector<2x32xf32>
    %515 = math.tanh %514 : vector<2x32xf32>
    %516 = arith.mulf %511, %515 : vector<2x32xf32>
    %cst_119 = arith.constant dense<0.000000e+00> : vector<2x128xf32>
    %517 = tpu.matmul %516, %13, %cst_119 {dimension_numbers = #tpu.dot_dimension_numbers<[1], [0], [0], [1], [0, 0, 1, 1], [], []>} : vector<2x32xf32>, vector<32x128xf32>, vector<2x128xf32> -> vector<2x128xf32>
    %518 = vector.broadcast %14 : vector<1x128xf32> to vector<2x128xf32>
    %519 = arith.addf %517, %518 : vector<2x128xf32>
    %520 = vector.shape_cast %519 : vector<2x128xf32> to vector<2x1x128xf32>
    %c0_120 = arith.constant 0 : index
    %c4 = arith.constant 4 : index
    %c0_121 = arith.constant 0 : index
    %521 = vector.load %arg15[%c0_120, %c4, %c0_121] : memref<2x8x128xf32, #tpu.memory_space<vmem>>, vector<2x1x128xf32>
    tpu.vector_store %arg15[%c0_120, %c4, %c0_121], %520 {strides = array<i32>} : memref<2x8x128xf32, #tpu.memory_space<vmem>>, vector<2x1x128xf32>,
    %cst_122 = arith.constant dense<0.000000e+00> : vector<2x128xf32>
    %522 = tpu.matmul %474, %3, %cst_122 {dimension_numbers = #tpu.dot_dimension_numbers<[1], [0], [0], [1], [0, 0, 1, 1], [], []>} : vector<2x32xf32>, vector<32x128xf32>, vector<2x128xf32> -> vector<2x128xf32>
    %cst_123 = arith.constant dense<0.000000e+00> : vector<2x128xf32>
    %523 = tpu.matmul %454, %7, %cst_123 {dimension_numbers = #tpu.dot_dimension_numbers<[1], [0], [0], [1], [0, 0, 1, 1], [], []>} : vector<2x32xf32>, vector<32x128xf32>, vector<2x128xf32> -> vector<2x128xf32>
    %524 = arith.addf %522, %523 : vector<2x128xf32>
    %525 = vector.broadcast %11 : vector<1x128xf32> to vector<2x128xf32>
    %526 = arith.addf %524, %525 : vector<2x128xf32>
    %527 = arith.negf %526 : vector<2x128xf32>
    %528 = math.exp %527 : vector<2x128xf32>
    %cst_124 = arith.constant 1.000000e+00 : f32
    %529 = vector.broadcast %cst_124 : f32 to vector<2x128xf32>
    %530 = arith.addf %529, %528 : vector<2x128xf32>
    %531 = arith.divf %529, %530 : vector<2x128xf32>
    %532 = math.tanh %526 : vector<2x128xf32>
    %533 = vector.extract_strided_slice %531 {offsets = [0, 0], sizes = [2, 32], strides = [1, 1]} : vector<2x128xf32> to vector<2x32xf32>
    %534 = vector.extract_strided_slice %531 {offsets = [0, 32], sizes = [2, 32], strides = [1, 1]} : vector<2x128xf32> to vector<2x32xf32>
    %535 = vector.extract_strided_slice %532 {offsets = [0, 64], sizes = [2, 32], strides = [1, 1]} : vector<2x128xf32> to vector<2x32xf32>
    %536 = vector.extract_strided_slice %531 {offsets = [0, 96], sizes = [2, 32], strides = [1, 1]} : vector<2x128xf32> to vector<2x32xf32>
    %537 = arith.mulf %534, %452 : vector<2x32xf32>
    %538 = arith.mulf %533, %535 : vector<2x32xf32>
    %539 = arith.addf %537, %538 : vector<2x32xf32>
    %540 = math.tanh %539 : vector<2x32xf32>
    %541 = arith.mulf %536, %540 : vector<2x32xf32>
    %cst_125 = arith.constant dense<0.000000e+00> : vector<2x128xf32>
    %542 = tpu.matmul %496, %2, %cst_125 {dimension_numbers = #tpu.dot_dimension_numbers<[1], [0], [0], [1], [0, 0, 1, 1], [], []>} : vector<2x32xf32>, vector<32x128xf32>, vector<2x128xf32> -> vector<2x128xf32>
    %cst_126 = arith.constant dense<0.000000e+00> : vector<2x128xf32>
    %543 = tpu.matmul %474, %6, %cst_126 {dimension_numbers = #tpu.dot_dimension_numbers<[1], [0], [0], [1], [0, 0, 1, 1], [], []>} : vector<2x32xf32>, vector<32x128xf32>, vector<2x128xf32> -> vector<2x128xf32>
    %544 = arith.addf %542, %543 : vector<2x128xf32>
    %545 = vector.broadcast %10 : vector<1x128xf32> to vector<2x128xf32>
    %546 = arith.addf %544, %545 : vector<2x128xf32>
    %547 = arith.negf %546 : vector<2x128xf32>
    %548 = math.exp %547 : vector<2x128xf32>
    %cst_127 = arith.constant 1.000000e+00 : f32
    %549 = vector.broadcast %cst_127 : f32 to vector<2x128xf32>
    %550 = arith.addf %549, %548 : vector<2x128xf32>
    %551 = arith.divf %549, %550 : vector<2x128xf32>
    %552 = math.tanh %546 : vector<2x128xf32>
    %553 = vector.extract_strided_slice %551 {offsets = [0, 0], sizes = [2, 32], strides = [1, 1]} : vector<2x128xf32> to vector<2x32xf32>
    %554 = vector.extract_strided_slice %551 {offsets = [0, 32], sizes = [2, 32], strides = [1, 1]} : vector<2x128xf32> to vector<2x32xf32>
    %555 = vector.extract_strided_slice %552 {offsets = [0, 64], sizes = [2, 32], strides = [1, 1]} : vector<2x128xf32> to vector<2x32xf32>
    %556 = vector.extract_strided_slice %551 {offsets = [0, 96], sizes = [2, 32], strides = [1, 1]} : vector<2x128xf32> to vector<2x32xf32>
    %557 = arith.mulf %554, %472 : vector<2x32xf32>
    %558 = arith.mulf %553, %555 : vector<2x32xf32>
    %559 = arith.addf %557, %558 : vector<2x32xf32>
    %560 = math.tanh %559 : vector<2x32xf32>
    %561 = arith.mulf %556, %560 : vector<2x32xf32>
    %562 = vector.extract_strided_slice %0 {offsets = [0, 7, 0], sizes = [2, 1, 16], strides = [1, 1, 1]} : vector<2x8x16xf32> to vector<2x1x16xf32>
    %563 = vector.shape_cast %562 : vector<2x1x16xf32> to vector<2x16xf32>
    %cst_128 = arith.constant dense<0.000000e+00> : vector<2x128xf32>
    %564 = tpu.matmul %563, %1, %cst_128 {dimension_numbers = #tpu.dot_dimension_numbers<[1], [0], [0], [1], [0, 0, 1, 1], [], []>} : vector<2x16xf32>, vector<16x128xf32>, vector<2x128xf32> -> vector<2x128xf32>
    %cst_129 = arith.constant dense<0.000000e+00> : vector<2x128xf32>
    %565 = tpu.matmul %496, %5, %cst_129 {dimension_numbers = #tpu.dot_dimension_numbers<[1], [0], [0], [1], [0, 0, 1, 1], [], []>} : vector<2x32xf32>, vector<32x128xf32>, vector<2x128xf32> -> vector<2x128xf32>
    %566 = arith.addf %564, %565 : vector<2x128xf32>
    %567 = vector.broadcast %9 : vector<1x128xf32> to vector<2x128xf32>
    %568 = arith.addf %566, %567 : vector<2x128xf32>
    %569 = arith.negf %568 : vector<2x128xf32>
    %570 = math.exp %569 : vector<2x128xf32>
    %cst_130 = arith.constant 1.000000e+00 : f32
    %571 = vector.broadcast %cst_130 : f32 to vector<2x128xf32>
    %572 = arith.addf %571, %570 : vector<2x128xf32>
    %573 = arith.divf %571, %572 : vector<2x128xf32>
    %574 = math.tanh %568 : vector<2x128xf32>
    %575 = vector.extract_strided_slice %573 {offsets = [0, 0], sizes = [2, 32], strides = [1, 1]} : vector<2x128xf32> to vector<2x32xf32>
    %576 = vector.extract_strided_slice %573 {offsets = [0, 32], sizes = [2, 32], strides = [1, 1]} : vector<2x128xf32> to vector<2x32xf32>
    %577 = vector.extract_strided_slice %574 {offsets = [0, 64], sizes = [2, 32], strides = [1, 1]} : vector<2x128xf32> to vector<2x32xf32>
    %578 = vector.extract_strided_slice %573 {offsets = [0, 96], sizes = [2, 32], strides = [1, 1]} : vector<2x128xf32> to vector<2x32xf32>
    %579 = arith.mulf %576, %494 : vector<2x32xf32>
    %580 = arith.mulf %575, %577 : vector<2x32xf32>
    %581 = arith.addf %579, %580 : vector<2x32xf32>
    %582 = math.tanh %581 : vector<2x32xf32>
    %583 = arith.mulf %578, %582 : vector<2x32xf32>
    %cst_131 = arith.constant dense<0.000000e+00> : vector<2x128xf32>
    %584 = tpu.matmul %541, %4, %cst_131 {dimension_numbers = #tpu.dot_dimension_numbers<[1], [0], [0], [1], [0, 0, 1, 1], [], []>} : vector<2x32xf32>, vector<32x128xf32>, vector<2x128xf32> -> vector<2x128xf32>
    %cst_132 = arith.constant dense<0.000000e+00> : vector<2x128xf32>
    %585 = tpu.matmul %516, %8, %cst_132 {dimension_numbers = #tpu.dot_dimension_numbers<[1], [0], [0], [1], [0, 0, 1, 1], [], []>} : vector<2x32xf32>, vector<32x128xf32>, vector<2x128xf32> -> vector<2x128xf32>
    %586 = arith.addf %584, %585 : vector<2x128xf32>
    %587 = vector.broadcast %12 : vector<1x128xf32> to vector<2x128xf32>
    %588 = arith.addf %586, %587 : vector<2x128xf32>
    %589 = arith.negf %588 : vector<2x128xf32>
    %590 = math.exp %589 : vector<2x128xf32>
    %cst_133 = arith.constant 1.000000e+00 : f32
    %591 = vector.broadcast %cst_133 : f32 to vector<2x128xf32>
    %592 = arith.addf %591, %590 : vector<2x128xf32>
    %593 = arith.divf %591, %592 : vector<2x128xf32>
    %594 = math.tanh %588 : vector<2x128xf32>
    %595 = vector.extract_strided_slice %593 {offsets = [0, 0], sizes = [2, 32], strides = [1, 1]} : vector<2x128xf32> to vector<2x32xf32>
    %596 = vector.extract_strided_slice %593 {offsets = [0, 32], sizes = [2, 32], strides = [1, 1]} : vector<2x128xf32> to vector<2x32xf32>
    %597 = vector.extract_strided_slice %594 {offsets = [0, 64], sizes = [2, 32], strides = [1, 1]} : vector<2x128xf32> to vector<2x32xf32>
    %598 = vector.extract_strided_slice %593 {offsets = [0, 96], sizes = [2, 32], strides = [1, 1]} : vector<2x128xf32> to vector<2x32xf32>
    %599 = arith.mulf %596, %514 : vector<2x32xf32>
    %600 = arith.mulf %595, %597 : vector<2x32xf32>
    %601 = arith.addf %599, %600 : vector<2x32xf32>
    %602 = math.tanh %601 : vector<2x32xf32>
    %603 = arith.mulf %598, %602 : vector<2x32xf32>
    %cst_134 = arith.constant dense<0.000000e+00> : vector<2x128xf32>
    %604 = tpu.matmul %603, %13, %cst_134 {dimension_numbers = #tpu.dot_dimension_numbers<[1], [0], [0], [1], [0, 0, 1, 1], [], []>} : vector<2x32xf32>, vector<32x128xf32>, vector<2x128xf32> -> vector<2x128xf32>
    %605 = vector.broadcast %14 : vector<1x128xf32> to vector<2x128xf32>
    %606 = arith.addf %604, %605 : vector<2x128xf32>
    %607 = vector.shape_cast %606 : vector<2x128xf32> to vector<2x1x128xf32>
    %c0_135 = arith.constant 0 : index
    %c5 = arith.constant 5 : index
    %c0_136 = arith.constant 0 : index
    %608 = vector.load %arg15[%c0_135, %c5, %c0_136] : memref<2x8x128xf32, #tpu.memory_space<vmem>>, vector<2x1x128xf32>
    tpu.vector_store %arg15[%c0_135, %c5, %c0_136], %607 {strides = array<i32>} : memref<2x8x128xf32, #tpu.memory_space<vmem>>, vector<2x1x128xf32>,
    %cst_137 = arith.constant dense<0.000000e+00> : vector<2x128xf32>
    %609 = tpu.matmul %561, %3, %cst_137 {dimension_numbers = #tpu.dot_dimension_numbers<[1], [0], [0], [1], [0, 0, 1, 1], [], []>} : vector<2x32xf32>, vector<32x128xf32>, vector<2x128xf32> -> vector<2x128xf32>
    %cst_138 = arith.constant dense<0.000000e+00> : vector<2x128xf32>
    %610 = tpu.matmul %541, %7, %cst_138 {dimension_numbers = #tpu.dot_dimension_numbers<[1], [0], [0], [1], [0, 0, 1, 1], [], []>} : vector<2x32xf32>, vector<32x128xf32>, vector<2x128xf32> -> vector<2x128xf32>
    %611 = arith.addf %609, %610 : vector<2x128xf32>
    %612 = vector.broadcast %11 : vector<1x128xf32> to vector<2x128xf32>
    %613 = arith.addf %611, %612 : vector<2x128xf32>
    %614 = arith.negf %613 : vector<2x128xf32>
    %615 = math.exp %614 : vector<2x128xf32>
    %cst_139 = arith.constant 1.000000e+00 : f32
    %616 = vector.broadcast %cst_139 : f32 to vector<2x128xf32>
    %617 = arith.addf %616, %615 : vector<2x128xf32>
    %618 = arith.divf %616, %617 : vector<2x128xf32>
    %619 = math.tanh %613 : vector<2x128xf32>
    %620 = vector.extract_strided_slice %618 {offsets = [0, 0], sizes = [2, 32], strides = [1, 1]} : vector<2x128xf32> to vector<2x32xf32>
    %621 = vector.extract_strided_slice %618 {offsets = [0, 32], sizes = [2, 32], strides = [1, 1]} : vector<2x128xf32> to vector<2x32xf32>
    %622 = vector.extract_strided_slice %619 {offsets = [0, 64], sizes = [2, 32], strides = [1, 1]} : vector<2x128xf32> to vector<2x32xf32>
    %623 = vector.extract_strided_slice %618 {offsets = [0, 96], sizes = [2, 32], strides = [1, 1]} : vector<2x128xf32> to vector<2x32xf32>
    %624 = arith.mulf %621, %539 : vector<2x32xf32>
    %625 = arith.mulf %620, %622 : vector<2x32xf32>
    %626 = arith.addf %624, %625 : vector<2x32xf32>
    %627 = math.tanh %626 : vector<2x32xf32>
    %628 = arith.mulf %623, %627 : vector<2x32xf32>
    %cst_140 = arith.constant dense<0.000000e+00> : vector<2x128xf32>
    %629 = tpu.matmul %583, %2, %cst_140 {dimension_numbers = #tpu.dot_dimension_numbers<[1], [0], [0], [1], [0, 0, 1, 1], [], []>} : vector<2x32xf32>, vector<32x128xf32>, vector<2x128xf32> -> vector<2x128xf32>
    %cst_141 = arith.constant dense<0.000000e+00> : vector<2x128xf32>
    %630 = tpu.matmul %561, %6, %cst_141 {dimension_numbers = #tpu.dot_dimension_numbers<[1], [0], [0], [1], [0, 0, 1, 1], [], []>} : vector<2x32xf32>, vector<32x128xf32>, vector<2x128xf32> -> vector<2x128xf32>
    %631 = arith.addf %629, %630 : vector<2x128xf32>
    %632 = vector.broadcast %10 : vector<1x128xf32> to vector<2x128xf32>
    %633 = arith.addf %631, %632 : vector<2x128xf32>
    %634 = arith.negf %633 : vector<2x128xf32>
    %635 = math.exp %634 : vector<2x128xf32>
    %cst_142 = arith.constant 1.000000e+00 : f32
    %636 = vector.broadcast %cst_142 : f32 to vector<2x128xf32>
    %637 = arith.addf %636, %635 : vector<2x128xf32>
    %638 = arith.divf %636, %637 : vector<2x128xf32>
    %639 = math.tanh %633 : vector<2x128xf32>
    %640 = vector.extract_strided_slice %638 {offsets = [0, 0], sizes = [2, 32], strides = [1, 1]} : vector<2x128xf32> to vector<2x32xf32>
    %641 = vector.extract_strided_slice %638 {offsets = [0, 32], sizes = [2, 32], strides = [1, 1]} : vector<2x128xf32> to vector<2x32xf32>
    %642 = vector.extract_strided_slice %639 {offsets = [0, 64], sizes = [2, 32], strides = [1, 1]} : vector<2x128xf32> to vector<2x32xf32>
    %643 = vector.extract_strided_slice %638 {offsets = [0, 96], sizes = [2, 32], strides = [1, 1]} : vector<2x128xf32> to vector<2x32xf32>
    %644 = arith.mulf %641, %559 : vector<2x32xf32>
    %645 = arith.mulf %640, %642 : vector<2x32xf32>
    %646 = arith.addf %644, %645 : vector<2x32xf32>
    %647 = math.tanh %646 : vector<2x32xf32>
    %648 = arith.mulf %643, %647 : vector<2x32xf32>
    %cst_143 = arith.constant dense<0.000000e+00> : vector<2x128xf32>
    %649 = tpu.matmul %628, %4, %cst_143 {dimension_numbers = #tpu.dot_dimension_numbers<[1], [0], [0], [1], [0, 0, 1, 1], [], []>} : vector<2x32xf32>, vector<32x128xf32>, vector<2x128xf32> -> vector<2x128xf32>
    %cst_144 = arith.constant dense<0.000000e+00> : vector<2x128xf32>
    %650 = tpu.matmul %603, %8, %cst_144 {dimension_numbers = #tpu.dot_dimension_numbers<[1], [0], [0], [1], [0, 0, 1, 1], [], []>} : vector<2x32xf32>, vector<32x128xf32>, vector<2x128xf32> -> vector<2x128xf32>
    %651 = arith.addf %649, %650 : vector<2x128xf32>
    %652 = vector.broadcast %12 : vector<1x128xf32> to vector<2x128xf32>
    %653 = arith.addf %651, %652 : vector<2x128xf32>
    %654 = arith.negf %653 : vector<2x128xf32>
    %655 = math.exp %654 : vector<2x128xf32>
    %cst_145 = arith.constant 1.000000e+00 : f32
    %656 = vector.broadcast %cst_145 : f32 to vector<2x128xf32>
    %657 = arith.addf %656, %655 : vector<2x128xf32>
    %658 = arith.divf %656, %657 : vector<2x128xf32>
    %659 = math.tanh %653 : vector<2x128xf32>
    %660 = vector.extract_strided_slice %658 {offsets = [0, 0], sizes = [2, 32], strides = [1, 1]} : vector<2x128xf32> to vector<2x32xf32>
    %661 = vector.extract_strided_slice %658 {offsets = [0, 32], sizes = [2, 32], strides = [1, 1]} : vector<2x128xf32> to vector<2x32xf32>
    %662 = vector.extract_strided_slice %659 {offsets = [0, 64], sizes = [2, 32], strides = [1, 1]} : vector<2x128xf32> to vector<2x32xf32>
    %663 = vector.extract_strided_slice %658 {offsets = [0, 96], sizes = [2, 32], strides = [1, 1]} : vector<2x128xf32> to vector<2x32xf32>
    %664 = arith.mulf %661, %601 : vector<2x32xf32>
    %665 = arith.mulf %660, %662 : vector<2x32xf32>
    %666 = arith.addf %664, %665 : vector<2x32xf32>
    %667 = math.tanh %666 : vector<2x32xf32>
    %668 = arith.mulf %663, %667 : vector<2x32xf32>
    %cst_146 = arith.constant dense<0.000000e+00> : vector<2x128xf32>
    %669 = tpu.matmul %668, %13, %cst_146 {dimension_numbers = #tpu.dot_dimension_numbers<[1], [0], [0], [1], [0, 0, 1, 1], [], []>} : vector<2x32xf32>, vector<32x128xf32>, vector<2x128xf32> -> vector<2x128xf32>
    %670 = vector.broadcast %14 : vector<1x128xf32> to vector<2x128xf32>
    %671 = arith.addf %669, %670 : vector<2x128xf32>
    %672 = vector.shape_cast %671 : vector<2x128xf32> to vector<2x1x128xf32>
    %c0_147 = arith.constant 0 : index
    %c6 = arith.constant 6 : index
    %c0_148 = arith.constant 0 : index
    %673 = vector.load %arg15[%c0_147, %c6, %c0_148] : memref<2x8x128xf32, #tpu.memory_space<vmem>>, vector<2x1x128xf32>
    tpu.vector_store %arg15[%c0_147, %c6, %c0_148], %672 {strides = array<i32>} : memref<2x8x128xf32, #tpu.memory_space<vmem>>, vector<2x1x128xf32>,
    %cst_149 = arith.constant dense<0.000000e+00> : vector<2x128xf32>
    %674 = tpu.matmul %648, %3, %cst_149 {dimension_numbers = #tpu.dot_dimension_numbers<[1], [0], [0], [1], [0, 0, 1, 1], [], []>} : vector<2x32xf32>, vector<32x128xf32>, vector<2x128xf32> -> vector<2x128xf32>
    %cst_150 = arith.constant dense<0.000000e+00> : vector<2x128xf32>
    %675 = tpu.matmul %628, %7, %cst_150 {dimension_numbers = #tpu.dot_dimension_numbers<[1], [0], [0], [1], [0, 0, 1, 1], [], []>} : vector<2x32xf32>, vector<32x128xf32>, vector<2x128xf32> -> vector<2x128xf32>
    %676 = arith.addf %674, %675 : vector<2x128xf32>
    %677 = vector.broadcast %11 : vector<1x128xf32> to vector<2x128xf32>
    %678 = arith.addf %676, %677 : vector<2x128xf32>
    %679 = arith.negf %678 : vector<2x128xf32>
    %680 = math.exp %679 : vector<2x128xf32>
    %cst_151 = arith.constant 1.000000e+00 : f32
    %681 = vector.broadcast %cst_151 : f32 to vector<2x128xf32>
    %682 = arith.addf %681, %680 : vector<2x128xf32>
    %683 = arith.divf %681, %682 : vector<2x128xf32>
    %684 = math.tanh %678 : vector<2x128xf32>
    %685 = vector.extract_strided_slice %683 {offsets = [0, 0], sizes = [2, 32], strides = [1, 1]} : vector<2x128xf32> to vector<2x32xf32>
    %686 = vector.extract_strided_slice %683 {offsets = [0, 32], sizes = [2, 32], strides = [1, 1]} : vector<2x128xf32> to vector<2x32xf32>
    %687 = vector.extract_strided_slice %684 {offsets = [0, 64], sizes = [2, 32], strides = [1, 1]} : vector<2x128xf32> to vector<2x32xf32>
    %688 = vector.extract_strided_slice %683 {offsets = [0, 96], sizes = [2, 32], strides = [1, 1]} : vector<2x128xf32> to vector<2x32xf32>
    %689 = arith.mulf %686, %626 : vector<2x32xf32>
    %690 = arith.mulf %685, %687 : vector<2x32xf32>
    %691 = arith.addf %689, %690 : vector<2x32xf32>
    %692 = math.tanh %691 : vector<2x32xf32>
    %693 = arith.mulf %688, %692 : vector<2x32xf32>
    %cst_152 = arith.constant dense<0.000000e+00> : vector<2x128xf32>
    %694 = tpu.matmul %693, %4, %cst_152 {dimension_numbers = #tpu.dot_dimension_numbers<[1], [0], [0], [1], [0, 0, 1, 1], [], []>} : vector<2x32xf32>, vector<32x128xf32>, vector<2x128xf32> -> vector<2x128xf32>
    %cst_153 = arith.constant dense<0.000000e+00> : vector<2x128xf32>
    %695 = tpu.matmul %668, %8, %cst_153 {dimension_numbers = #tpu.dot_dimension_numbers<[1], [0], [0], [1], [0, 0, 1, 1], [], []>} : vector<2x32xf32>, vector<32x128xf32>, vector<2x128xf32> -> vector<2x128xf32>
    %696 = arith.addf %694, %695 : vector<2x128xf32>
    %697 = vector.broadcast %12 : vector<1x128xf32> to vector<2x128xf32>
    %698 = arith.addf %696, %697 : vector<2x128xf32>
    %699 = arith.negf %698 : vector<2x128xf32>
    %700 = math.exp %699 : vector<2x128xf32>
    %cst_154 = arith.constant 1.000000e+00 : f32
    %701 = vector.broadcast %cst_154 : f32 to vector<2x128xf32>
    %702 = arith.addf %701, %700 : vector<2x128xf32>
    %703 = arith.divf %701, %702 : vector<2x128xf32>
    %704 = math.tanh %698 : vector<2x128xf32>
    %705 = vector.extract_strided_slice %703 {offsets = [0, 0], sizes = [2, 32], strides = [1, 1]} : vector<2x128xf32> to vector<2x32xf32>
    %706 = vector.extract_strided_slice %703 {offsets = [0, 32], sizes = [2, 32], strides = [1, 1]} : vector<2x128xf32> to vector<2x32xf32>
    %707 = vector.extract_strided_slice %704 {offsets = [0, 64], sizes = [2, 32], strides = [1, 1]} : vector<2x128xf32> to vector<2x32xf32>
    %708 = vector.extract_strided_slice %703 {offsets = [0, 96], sizes = [2, 32], strides = [1, 1]} : vector<2x128xf32> to vector<2x32xf32>
    %709 = arith.mulf %706, %666 : vector<2x32xf32>
    %710 = arith.mulf %705, %707 : vector<2x32xf32>
    %711 = arith.addf %709, %710 : vector<2x32xf32>
    %712 = math.tanh %711 : vector<2x32xf32>
    %713 = arith.mulf %708, %712 : vector<2x32xf32>
    %cst_155 = arith.constant dense<0.000000e+00> : vector<2x128xf32>
    %714 = tpu.matmul %713, %13, %cst_155 {dimension_numbers = #tpu.dot_dimension_numbers<[1], [0], [0], [1], [0, 0, 1, 1], [], []>} : vector<2x32xf32>, vector<32x128xf32>, vector<2x128xf32> -> vector<2x128xf32>
    %715 = vector.broadcast %14 : vector<1x128xf32> to vector<2x128xf32>
    %716 = arith.addf %714, %715 : vector<2x128xf32>
    %717 = vector.shape_cast %716 : vector<2x128xf32> to vector<2x1x128xf32>
    %c0_156 = arith.constant 0 : index
    %c7 = arith.constant 7 : index
    %c0_157 = arith.constant 0 : index
    %718 = vector.load %arg15[%c0_156, %c7, %c0_157] : memref<2x8x128xf32, #tpu.memory_space<vmem>>, vector<2x1x128xf32>
    tpu.vector_store %arg15[%c0_156, %c7, %c0_157], %717 {strides = array<i32>} : memref<2x8x128xf32, #tpu.memory_space<vmem>>, vector<2x1x128xf32>,
    return
  }
}

</mosaic_0001>

<llo_original>
// kernel: lstm_model_forward.1
$region0: #{lstm_model_forward.1}
  #allocation0 [shape = 'u32[]', space=smem, size = 0x4, offset = 0x4, fixed_abs, tag = 'smem constant byte address 0x4 - core index']
  #allocation1 [shape = 'u32[144,128]{1,0:T(1,128)}', space=vmem, size = 0x12000, scoped, tag = 'internal scratch']
  %s0 = inlined_call_operand.hbm [shape: f32[2,8,16], index: 0, kind: input, shape index: {}]
  %s1 = inlined_call_operand.hbm [shape: f32[16,128], index: 1, kind: input, shape index: {}]
  %s2 = inlined_call_operand.hbm [shape: f32[32,128], index: 2, kind: input, shape index: {}]
  %s3 = inlined_call_operand.vmem [shape: f32[1,128], index: 3, kind: input, shape index: {}]
  %s4 = inlined_call_operand.hbm [shape: f32[32,128], index: 4, kind: input, shape index: {}]
  %s5 = inlined_call_operand.hbm [shape: f32[32,128], index: 5, kind: input, shape index: {}]
  %s6 = inlined_call_operand.vmem [shape: f32[1,128], index: 6, kind: input, shape index: {}]
  %s7 = inlined_call_operand.vmem [shape: f32[32,128], index: 7, kind: input, shape index: {}]
  %s8 = inlined_call_operand.hbm [shape: f32[32,128], index: 8, kind: input, shape index: {}]
  %s9 = inlined_call_operand.vmem [shape: f32[1,128], index: 9, kind: input, shape index: {}]
  %s10 = inlined_call_operand.hbm [shape: f32[32,128], index: 10, kind: input, shape index: {}]
  %s11 = inlined_call_operand.hbm [shape: f32[32,128], index: 11, kind: input, shape index: {}]
  %s12 = inlined_call_operand.vmem [shape: f32[1,128], index: 12, kind: input, shape index: {}]
  %s13 = inlined_call_operand.hbm [shape: f32[32,128], index: 13, kind: input, shape index: {}]
  %s14 = inlined_call_operand.hbm [shape: f32[1,128], index: 14, kind: input, shape index: {}]
  %s15 = inlined_call_operand.hbm [shape: f32[2,8,128], index: 15, kind: output, shape index: {}]
  %s16 = sld [smem:[#allocation0]]
  $region110: #{lstm_model_forward.1} parent=0
    _
  %s18 = ssub.s32 1, %s16
  %s19 = scalar_select 0, %s18, %s16
  $region1: #{lstm_model_forward.1} parent=0
    #allocation2 [shape = 'u8[8192]{0}', space=vmem, size = 0x2000, scoped, tag = 'input window, operand 0, single buffered']
    #allocation3 [shape = 's32[1]{0}', space=sflag, size = 0x4, scoped, tag = 'scoped memory for lstm_model_forward.1']
    #allocation4 [shape = 's32[1]{0}', space=sflag, size = 0x4, scoped, tag = 'scoped memory for lstm_model_forward.1']
    #allocation5 [shape = 'u8[8192]{0}', space=vmem, size = 0x2000, scoped, tag = 'input window, operand 1, single buffered']
    #allocation6 [shape = 's32[1]{0}', space=sflag, size = 0x4, scoped, tag = 'scoped memory for lstm_model_forward.1']
    #allocation7 [shape = 'u8[16384]{0}', space=vmem, size = 0x4000, scoped, tag = 'input window, operand 2, single buffered']
    #allocation8 [shape = 'u8[16384]{0}', space=vmem, size = 0x4000, scoped, tag = 'input window, operand 4, single buffered']
    #allocation9 [shape = 's32[1]{0}', space=sflag, size = 0x4, scoped, tag = 'scoped memory for lstm_model_forward.1']
    #allocation10 [shape = 'u8[16384]{0}', space=vmem, size = 0x4000, scoped, tag = 'input window, operand 5, single buffered']
    #allocation11 [shape = 'u8[16384]{0}', space=vmem, size = 0x4000, scoped, tag = 'input window, operand 8, single buffered']
    #allocation12 [shape = 's32[1]{0}', space=sflag, size = 0x4, scoped, tag = 'scoped memory for lstm_model_forward.1']
    #allocation13 [shape = 'u8[16384]{0}', space=vmem, size = 0x4000, scoped, tag = 'input window, operand 10, single buffered']
    #allocation14 [shape = 'u8[16384]{0}', space=vmem, size = 0x4000, scoped, tag = 'input window, operand 11, single buffered']
    #allocation15 [shape = 's32[1]{0}', space=sflag, size = 0x4, scoped, tag = 'scoped memory for lstm_model_forward.1']
    #allocation16 [shape = 'u8[16384]{0}', space=vmem, size = 0x4000, scoped, tag = 'input window, operand 13, single buffered']
    #allocation17 [shape = 'u8[512]{0}', space=vmem, size = 0x400, scoped, tag = 'input window, operand 14, single buffered']
    #allocation18 [shape = 's32[1]{0}', space=sflag, size = 0x4, scoped, tag = 'scoped memory for lstm_model_forward.1']
    #allocation19 [shape = 'u8[8192]{0}', space=vmem, size = 0x2000, scoped, tag = 'output window, operand 0, single buffered']
    %20 = vsyncpa [#allocation3], 0
    %21 = vsyncpa [#allocation6], 0
    %22 = vsyncpa [#allocation9], 0
    %23 = vsyncpa [#allocation12], 0
    %24 = vsyncpa [#allocation15], 0
    %25 = vsyncpa [#allocation18], 0
    %26 = vsyncpa [#allocation4], 0
    // Predicated region
    $region2: #{lstm_model_forward.1} parent=1 // pred_check
      _
    $region3: #{lstm_model_forward.1} parent=1 // pred_check_branch
      %28 = sbr.rel (0) target = $region5
    $region4: #{lstm_model_forward.1} parent=1 // pred_region
      %s30 = ssub.s32 256, 256
      %31 = vsyncadd [#allocation3], %s30
      %s32 = sshll.u32 [#allocation2], 4
      %s33 = int_to_ptr.vmem [resolvable:$true] %s32
      %38 = dma.hbm_to_vmem [thread:$0]  %s0, 256, %s33, [#allocation3], 128, 128, 8
    $region5: #{lstm_model_forward.1} parent=1 // pred_fallthru
      _
    // Predicated region
    $region6: #{lstm_model_forward.1} parent=1 // pred_check
      _
    $region7: #{lstm_model_forward.1} parent=1 // pred_check_branch
      %40 = sbr.rel (0) target = $region9
    $region8: #{lstm_model_forward.1} parent=1 // pred_region
      %s42 = ssub.s32 256, 256
      %43 = vsyncadd [#allocation6], %s42
      %s44 = sshll.u32 [#allocation5], 4
      %s45 = int_to_ptr.vmem [resolvable:$true] %s44
      %50 = dma.hbm_to_vmem [thread:$0]  %s1, 256, %s45, [#allocation6], 128, 128, 8
    $region9: #{lstm_model_forward.1} parent=1 // pred_fallthru
      _
    // Predicated region
    $region10: #{lstm_model_forward.1} parent=1 // pred_check
      _
    $region11: #{lstm_model_forward.1} parent=1 // pred_check_branch
      %52 = sbr.rel (0) target = $region13
    $region12: #{lstm_model_forward.1} parent=1 // pred_region
      %s54 = ssub.s32 512, 512
      %55 = vsyncadd [#allocation6], %s54
      %s56 = sshll.u32 [#allocation7], 4
      %s57 = int_to_ptr.vmem [resolvable:$true] %s56
      %62 = dma.hbm_to_vmem [thread:$0]  %s2, 512, %s57, [#allocation6], 128, 128, 8
    $region13: #{lstm_model_forward.1} parent=1 // pred_fallthru
      _
    // Predicated region
    $region14: #{lstm_model_forward.1} parent=1 // pred_check
      _
    $region15: #{lstm_model_forward.1} parent=1 // pred_check_branch
      %64 = sbr.rel (0) target = $region17
    $region16: #{lstm_model_forward.1} parent=1 // pred_region
      _
    $region17: #{lstm_model_forward.1} parent=1 // pred_fallthru
      _
    // Predicated region
    $region18: #{lstm_model_forward.1} parent=1 // pred_check
      _
    $region19: #{lstm_model_forward.1} parent=1 // pred_check_branch
      %66 = sbr.rel (0) target = $region21
    $region20: #{lstm_model_forward.1} parent=1 // pred_region
      %s68 = ssub.s32 512, 512
      %69 = vsyncadd [#allocation9], %s68
      %s70 = sshll.u32 [#allocation8], 4
      %s71 = int_to_ptr.vmem [resolvable:$true] %s70
      %76 = dma.hbm_to_vmem [thread:$0]  %s4, 512, %s71, [#allocation9], 128, 128, 8
    $region21: #{lstm_model_forward.1} parent=1 // pred_fallthru
      _
    // Predicated region
    $region22: #{lstm_model_forward.1} parent=1 // pred_check
      _
    $region23: #{lstm_model_forward.1} parent=1 // pred_check_branch
      %78 = sbr.rel (0) target = $region25
    $region24: #{lstm_model_forward.1} parent=1 // pred_region
      %s80 = ssub.s32 512, 512
      %81 = vsyncadd [#allocation9], %s80
      %s82 = sshll.u32 [#allocation10], 4
      %s83 = int_to_ptr.vmem [resolvable:$true] %s82
      %88 = dma.hbm_to_vmem [thread:$0]  %s5, 512, %s83, [#allocation9], 128, 128, 8
    $region25: #{lstm_model_forward.1} parent=1 // pred_fallthru
      _
    // Predicated region
    $region26: #{lstm_model_forward.1} parent=1 // pred_check
      _
    $region27: #{lstm_model_forward.1} parent=1 // pred_check_branch
      %90 = sbr.rel (0) target = $region29
    $region28: #{lstm_model_forward.1} parent=1 // pred_region
      _
    $region29: #{lstm_model_forward.1} parent=1 // pred_fallthru
      _
    // Predicated region
    $region30: #{lstm_model_forward.1} parent=1 // pred_check
      _
    $region31: #{lstm_model_forward.1} parent=1 // pred_check_branch
      %92 = sbr.rel (0) target = $region33
    $region32: #{lstm_model_forward.1} parent=1 // pred_region
      _
    $region33: #{lstm_model_forward.1} parent=1 // pred_fallthru
      _
    // Predicated region
    $region34: #{lstm_model_forward.1} parent=1 // pred_check
      _
    $region35: #{lstm_model_forward.1} parent=1 // pred_check_branch
      %94 = sbr.rel (0) target = $region37
    $region36: #{lstm_model_forward.1} parent=1 // pred_region
      %s96 = ssub.s32 512, 512
      %97 = vsyncadd [#allocation12], %s96
      %s98 = sshll.u32 [#allocation11], 4
      %s99 = int_to_ptr.vmem [resolvable:$true] %s98
      %104 = dma.hbm_to_vmem [thread:$0]  %s8, 512, %s99, [#allocation12], 128, 128, 8
    $region37: #{lstm_model_forward.1} parent=1 // pred_fallthru
      _
    // Predicated region
    $region38: #{lstm_model_forward.1} parent=1 // pred_check
      _
    $region39: #{lstm_model_forward.1} parent=1 // pred_check_branch
      %106 = sbr.rel (0) target = $region41
    $region40: #{lstm_model_forward.1} parent=1 // pred_region
      _
    $region41: #{lstm_model_forward.1} parent=1 // pred_fallthru
      _
    // Predicated region
    $region42: #{lstm_model_forward.1} parent=1 // pred_check
      _
    $region43: #{lstm_model_forward.1} parent=1 // pred_check_branch
      %108 = sbr.rel (0) target = $region45
    $region44: #{lstm_model_forward.1} parent=1 // pred_region
      %s110 = ssub.s32 512, 512
      %111 = vsyncadd [#allocation12], %s110
      %s112 = sshll.u32 [#allocation13], 4
      %s113 = int_to_ptr.vmem [resolvable:$true] %s112
      %118 = dma.hbm_to_vmem [thread:$0]  %s10, 512, %s113, [#allocation12], 128, 128, 8
    $region45: #{lstm_model_forward.1} parent=1 // pred_fallthru
      _
    // Predicated region
    $region46: #{lstm_model_forward.1} parent=1 // pred_check
      _
    $region47: #{lstm_model_forward.1} parent=1 // pred_check_branch
      %120 = sbr.rel (0) target = $region49
    $region48: #{lstm_model_forward.1} parent=1 // pred_region
      %s122 = ssub.s32 512, 512
      %123 = vsyncadd [#allocation15], %s122
      %s124 = sshll.u32 [#allocation14], 4
      %s125 = int_to_ptr.vmem [resolvable:$true] %s124
      %130 = dma.hbm_to_vmem [thread:$0]  %s11, 512, %s125, [#allocation15], 128, 128, 8
    $region49: #{lstm_model_forward.1} parent=1 // pred_fallthru
      _
    // Predicated region
    $region50: #{lstm_model_forward.1} parent=1 // pred_check
      _
    $region51: #{lstm_model_forward.1} parent=1 // pred_check_branch
      %132 = sbr.rel (0) target = $region53
    $region52: #{lstm_model_forward.1} parent=1 // pred_region
      _
    $region53: #{lstm_model_forward.1} parent=1 // pred_fallthru
      _
    // Predicated region
    $region54: #{lstm_model_forward.1} parent=1 // pred_check
      _
    $region55: #{lstm_model_forward.1} parent=1 // pred_check_branch
      %134 = sbr.rel (0) target = $region57
    $region56: #{lstm_model_forward.1} parent=1 // pred_region
      %s136 = ssub.s32 512, 512
      %137 = vsyncadd [#allocation15], %s136
      %s138 = sshll.u32 [#allocation16], 4
      %s139 = int_to_ptr.vmem [resolvable:$true] %s138
      %144 = dma.hbm_to_vmem [thread:$0]  %s13, 512, %s139, [#allocation15], 128, 128, 8
    $region57: #{lstm_model_forward.1} parent=1 // pred_fallthru
      _
    // Predicated region
    $region58: #{lstm_model_forward.1} parent=1 // pred_check
      _
    $region59: #{lstm_model_forward.1} parent=1 // pred_check_branch
      %146 = sbr.rel (0) target = $region61
    $region60: #{lstm_model_forward.1} parent=1 // pred_region
      %s148 = ssub.s32 16, 16
      %149 = vsyncadd [#allocation18], %s148
      %s151 = sshll.u32 [#allocation17], 4
      %s152 = int_to_ptr.vmem [resolvable:$true] %s151
      %154 = dma.hbm_to_vmem [thread:$0]  %s14, 16, %s152, [#allocation18]
    $region61: #{lstm_model_forward.1} parent=1 // pred_fallthru
      _
    // Predicated region
    $region62: #{lstm_model_forward.1} parent=1 // pred_check
      _
    $region63: #{lstm_model_forward.1} parent=1 // pred_check_branch
      %156 = sbr.rel (0) target = $region65
    $region64: #{lstm_model_forward.1} parent=1 // pred_region
      %157 = dma.done [#allocation3], 256
    $region65: #{lstm_model_forward.1} parent=1 // pred_fallthru
      _
    // Predicated region
    $region66: #{lstm_model_forward.1} parent=1 // pred_check
      _
    $region67: #{lstm_model_forward.1} parent=1 // pred_check_branch
      %159 = sbr.rel (0) target = $region69
    $region68: #{lstm_model_forward.1} parent=1 // pred_region
      %160 = dma.done [#allocation6], 256
    $region69: #{lstm_model_forward.1} parent=1 // pred_fallthru
      _
    // Predicated region
    $region70: #{lstm_model_forward.1} parent=1 // pred_check
      _
    $region71: #{lstm_model_forward.1} parent=1 // pred_check_branch
      %162 = sbr.rel (0) target = $region73
    $region72: #{lstm_model_forward.1} parent=1 // pred_region
      %163 = dma.done [#allocation6], 512
    $region73: #{lstm_model_forward.1} parent=1 // pred_fallthru
      _
    // Predicated region
    $region74: #{lstm_model_forward.1} parent=1 // pred_check
      _
    $region75: #{lstm_model_forward.1} parent=1 // pred_check_branch
      %165 = sbr.rel (0) target = $region77
    $region76: #{lstm_model_forward.1} parent=1 // pred_region
      %166 = dma.done [#allocation9], 512
    $region77: #{lstm_model_forward.1} parent=1 // pred_fallthru
      _
    // Predicated region
    $region78: #{lstm_model_forward.1} parent=1 // pred_check
      _
    $region79: #{lstm_model_forward.1} parent=1 // pred_check_branch
      %168 = sbr.rel (0) target = $region81
    $region80: #{lstm_model_forward.1} parent=1 // pred_region
      %169 = dma.done [#allocation9], 512
    $region81: #{lstm_model_forward.1} parent=1 // pred_fallthru
      _
    // Predicated region
    $region82: #{lstm_model_forward.1} parent=1 // pred_check
      _
    $region83: #{lstm_model_forward.1} parent=1 // pred_check_branch
      %171 = sbr.rel (0) target = $region85
    $region84: #{lstm_model_forward.1} parent=1 // pred_region
      %172 = dma.done [#allocation12], 512
    $region85: #{lstm_model_forward.1} parent=1 // pred_fallthru
      _
    // Predicated region
    $region86: #{lstm_model_forward.1} parent=1 // pred_check
      _
    $region87: #{lstm_model_forward.1} parent=1 // pred_check_branch
      %174 = sbr.rel (0) target = $region89
    $region88: #{lstm_model_forward.1} parent=1 // pred_region
      %175 = dma.done [#allocation12], 512
    $region89: #{lstm_model_forward.1} parent=1 // pred_fallthru
      _
    // Predicated region
    $region90: #{lstm_model_forward.1} parent=1 // pred_check
      _
    $region91: #{lstm_model_forward.1} parent=1 // pred_check_branch
      %177 = sbr.rel (0) target = $region93
    $region92: #{lstm_model_forward.1} parent=1 // pred_region
      %178 = dma.done [#allocation15], 512
    $region93: #{lstm_model_forward.1} parent=1 // pred_fallthru
      _
    // Predicated region
    $region94: #{lstm_model_forward.1} parent=1 // pred_check
      _
    $region95: #{lstm_model_forward.1} parent=1 // pred_check_branch
      %180 = sbr.rel (0) target = $region97
    $region96: #{lstm_model_forward.1} parent=1 // pred_region
      %181 = dma.done [#allocation15], 512
    $region97: #{lstm_model_forward.1} parent=1 // pred_fallthru
      _
    // Predicated region
    $region98: #{lstm_model_forward.1} parent=1 // pred_check
      _
    $region99: #{lstm_model_forward.1} parent=1 // pred_check_branch
      %183 = sbr.rel (0) target = $region101
    $region100: #{lstm_model_forward.1} parent=1 // pred_region
      %184 = dma.done [#allocation18], 16
    $region101: #{lstm_model_forward.1} parent=1 // pred_fallthru
      _
    %v185 = vld [vmem:[#allocation2] sm:$0xff]
    %v186 = vld [vmem:[#allocation2 + $0x8] sm:$0xff]
    %v187 = vld [vmem:[#allocation5] sm:$0xff]
    %v188 = vld [vmem:[#allocation5 + $0x8] sm:$0xff]
    %v189 = vld [vmem:[#allocation8] sm:$0xff]
    %v190 = vld [vmem:[#allocation8 + $0x8] sm:$0xff]
    %v191 = vld [vmem:[#allocation8 + $0x10] sm:$0xff]
    %v192 = vld [vmem:[#allocation8 + $0x18] sm:$0xff]
    %v193 = vld [vmem:[%s7] sm:$0xff]
    %v194 = vld [vmem:[%s7 + $0x8] sm:$0xff]
    %v195 = vld [vmem:[%s7 + $0x10] sm:$0xff]
    %v196 = vld [vmem:[%s7 + $0x18] sm:$0xff]
    %v197 = vld [vmem:[#allocation13] sm:$0xff]
    %v198 = vld [vmem:[#allocation13 + $0x8] sm:$0xff]
    %v199 = vld [vmem:[#allocation13 + $0x10] sm:$0xff]
    %v200 = vld [vmem:[#allocation13 + $0x18] sm:$0xff]
    %v201 = vld [vmem:[#allocation7] sm:$0xff]
    %v202 = vld [vmem:[#allocation7 + $0x8] sm:$0xff]
    %v203 = vld [vmem:[#allocation7 + $0x10] sm:$0xff]
    %v204 = vld [vmem:[#allocation7 + $0x18] sm:$0xff]
    %v205 = vld [vmem:[#allocation10] sm:$0xff]
    %v206 = vld [vmem:[#allocation10 + $0x8] sm:$0xff]
    %v207 = vld [vmem:[#allocation10 + $0x10] sm:$0xff]
    %v208 = vld [vmem:[#allocation10 + $0x18] sm:$0xff]
    %v209 = vld [vmem:[#allocation11] sm:$0xff]
    %v210 = vld [vmem:[#allocation11 + $0x8] sm:$0xff]
    %v211 = vld [vmem:[#allocation11 + $0x10] sm:$0xff]
    %v212 = vld [vmem:[#allocation11 + $0x18] sm:$0xff]
    %v213 = vld [vmem:[#allocation14] sm:$0xff]
    %v214 = vld [vmem:[#allocation14 + $0x8] sm:$0xff]
    %v215 = vld [vmem:[#allocation14 + $0x10] sm:$0xff]
    %v216 = vld [vmem:[#allocation14 + $0x18] sm:$0xff]
    %v217 = vld [vmem:[%s3] sm:$0x1]
    %v218 = vld [vmem:[%s6] sm:$0x1]
    %v219 = vld [vmem:[%s9] sm:$0x1]
    %v220 = vld [vmem:[%s12] sm:$0x1]
    %v221 = vld [vmem:[#allocation16] sm:$0xff]
    %v222 = vld [vmem:[#allocation16 + $0x8] sm:$0xff]
    %v223 = vld [vmem:[#allocation16 + $0x10] sm:$0xff]
    %v224 = vld [vmem:[#allocation16 + $0x18] sm:$0xff]
    %v225 = vld [vmem:[#allocation17] sm:$0x1]
    %vm226 = vcmask 261120
    %v228 = vsel %vm226, 0.0, 0
    %230 = vmatprep.subr.mxu0 0.0
    %231 = vmatpush1.msra.mxu0 %v201
    %232 = vmatprep.subr.mxu0 0.0
    %233 = vmatpush1.msra.mxu0 %v202
    %234 = vmatprep.subr.mxu0 0.0
    %235 = vmatpush1.msra.mxu0 %v203
    %236 = vmatprep.subr.mxu0 0.0
    %237 = vmatpush1.msra.mxu0 %v204
    %238 = vmatprep.subr.mxu0 0.0
    %239 = vmatpush1.msra.mxu0 0.0
    %240 = vmatprep.subr.mxu0 0.0
    %241 = vmatpush1.msra.mxu0 0.0
    %242 = vmatprep.subr.mxu0 0.0
    %243 = vmatpush1.msra.mxu0 0.0
    %244 = vmatprep.subr.mxu0 0.0
    %245 = vmatpush1.msra.mxu0 0.0
    %246 = vmatprep.subr.mxu0 0.0
    %247 = vmatpush1.msra.mxu0 0.0
    %248 = vmatprep.subr.mxu0 0.0
    %249 = vmatpush1.msra.mxu0 0.0
    %250 = vmatprep.subr.mxu0 0.0
    %251 = vmatpush1.msra.mxu0 0.0
    %252 = vmatprep.subr.mxu0 0.0
    %253 = vmatpush1.msra.mxu0 0.0
    %254 = vmatprep.subr.mxu0 0.0
    %255 = vmatpush1.msra.mxu0 0.0
    %256 = vmatprep.subr.mxu0 0.0
    %257 = vmatpush1.msra.mxu0 0.0
    %258 = vmatprep.subr.mxu0 0.0
    %259 = vmatpush1.msra.mxu0 0.0
    %260 = vmatprep.subr.mxu0 0.0
    %261 = vmatpush1.msra.mxu0 0.0
    %262 = vmatprep.subr.mxu0 0.0
    %263 = vmatpush1.msra.mxu0 0.0
    %264 = vmatprep.subr.mxu0 0.0
    %265 = vmatpush1.msra.mxu0 0.0
    %266 = vmatprep.subr.mxu0 0.0
    %267 = vmatpush1.msra.mxu0 0.0
    %268 = vmatprep.subr.mxu0 0.0
    %269 = vmatpush1.msra.mxu0 0.0
    %270 = vmatprep.subr.mxu0 0.0
    %271 = vmatpush1.msra.mxu0 0.0
    %272 = vmatprep.subr.mxu0 0.0
    %273 = vmatpush1.msra.mxu0 0.0
    %274 = vmatprep.subr.mxu0 0.0
    %275 = vmatpush1.msra.mxu0 0.0
    %276 = vmatprep.subr.mxu0 0.0
    %277 = vmatpush1.msra.mxu0 0.0
    %278 = vmatprep.subr.mxu0 0.0
    %279 = vmatpush1.msra.mxu0 0.0
    %280 = vmatprep.subr.mxu0 0.0
    %281 = vmatpush1.msra.mxu0 0.0
    %282 = vmatprep.subr.mxu0 0.0
    %283 = vmatpush1.msra.mxu0 0.0
    %284 = vmatprep.subr.mxu0 0.0
    %285 = vmatpush1.msra.mxu0 0.0
    %286 = vmatprep.subr.mxu0 0.0
    %287 = vmatpush1.msra.mxu0 0.0
    %288 = vmatprep.subr.mxu0 0.0
    %289 = vmatpush1.msra.mxu0 0.0
    %290 = vmatprep.subr.mxu0 0.0
    %291 = vmatpush1.msra.mxu0 0.0
    %292 = vmatprep.subr.mxu0 0.0
    %293 = vmatpush1.msra.mxu0 0.0
    %294 = vmatprep.mubr.f32.mxu0 0.0
    %295 = vmatmul.mubr.f32.gmra.mrb[0].mxu0 %v228
    %v296 = vpop.f32.mrb[0].mxu0
    %v297 = vadd.f32 0.0, %v296
    %v298 = vpop.f32.mrb[0].mxu0
    %299 = vdwg.mxu0
    %v302 = vrot.slane %v186, 7
    %vm303 = vcmask 1041409
    %v304 = vsel %vm303, %v302, %v185
    %vm305 = vcmask 130048
    %v306 = vsel %vm305, %v304, 0
    %308 = vmatprep.subr.mxu0 0.0
    %309 = vmatpush1.msra.mxu0 %v187
    %310 = vmatprep.subr.mxu0 0.0
    %311 = vmatpush1.msra.mxu0 %v188
    %312 = vmatprep.subr.mxu0 0.0
    %313 = vmatpush1.msra.mxu0 0.0
    %314 = vmatprep.subr.mxu0 0.0
    %315 = vmatpush1.msra.mxu0 0.0
    %316 = vmatprep.subr.mxu0 0.0
    %317 = vmatpush1.msra.mxu0 0.0
    %318 = vmatprep.subr.mxu0 0.0
    %319 = vmatpush1.msra.mxu0 0.0
    %320 = vmatprep.subr.mxu0 0.0
    %321 = vmatpush1.msra.mxu0 0.0
    %322 = vmatprep.subr.mxu0 0.0
    %323 = vmatpush1.msra.mxu0 0.0
    %324 = vmatprep.subr.mxu0 0.0
    %325 = vmatpush1.msra.mxu0 0.0
    %326 = vmatprep.subr.mxu0 0.0
    %327 = vmatpush1.msra.mxu0 0.0
    %328 = vmatprep.subr.mxu0 0.0
    %329 = vmatpush1.msra.mxu0 0.0
    %330 = vmatprep.subr.mxu0 0.0
    %331 = vmatpush1.msra.mxu0 0.0
    %332 = vmatprep.subr.mxu0 0.0
    %333 = vmatpush1.msra.mxu0 0.0
    %334 = vmatprep.subr.mxu0 0.0
    %335 = vmatpush1.msra.mxu0 0.0
    %336 = vmatprep.subr.mxu0 0.0
    %337 = vmatpush1.msra.mxu0 0.0
    %338 = vmatprep.subr.mxu0 0.0
    %339 = vmatpush1.msra.mxu0 0.0
    %340 = vmatprep.subr.mxu0 0.0
    %341 = vmatpush1.msra.mxu0 0.0
    %342 = vmatprep.subr.mxu0 0.0
    %343 = vmatpush1.msra.mxu0 0.0
    %344 = vmatprep.subr.mxu0 0.0
    %345 = vmatpush1.msra.mxu0 0.0
    %346 = vmatprep.subr.mxu0 0.0
    %347 = vmatpush1.msra.mxu0 0.0
    %348 = vmatprep.subr.mxu0 0.0
    %349 = vmatpush1.msra.mxu0 0.0
    %350 = vmatprep.subr.mxu0 0.0
    %351 = vmatpush1.msra.mxu0 0.0
    %352 = vmatprep.subr.mxu0 0.0
    %353 = vmatpush1.msra.mxu0 0.0
    %354 = vmatprep.subr.mxu0 0.0
    %355 = vmatpush1.msra.mxu0 0.0
    %356 = vmatprep.subr.mxu0 0.0
    %357 = vmatpush1.msra.mxu0 0.0
    %358 = vmatprep.subr.mxu0 0.0
    %359 = vmatpush1.msra.mxu0 0.0
    %360 = vmatprep.subr.mxu0 0.0
    %361 = vmatpush1.msra.mxu0 0.0
    %362 = vmatprep.subr.mxu0 0.0
    %363 = vmatpush1.msra.mxu0 0.0
    %364 = vmatprep.subr.mxu0 0.0
    %365 = vmatpush1.msra.mxu0 0.0
    %366 = vmatprep.subr.mxu0 0.0
    %367 = vmatpush1.msra.mxu0 0.0
    %368 = vmatprep.subr.mxu0 0.0
    %369 = vmatpush1.msra.mxu0 0.0
    %370 = vmatprep.subr.mxu0 0.0
    %371 = vmatpush1.msra.mxu0 0.0
    %372 = vmatprep.mubr.f32.mxu0 0.0
    %373 = vmatmul.mubr.f32.gmra.mrb[0].mxu0 %v306
    %v374 = vpop.f32.mrb[0].mxu0
    %v375 = vadd.f32 %v297, %v374
    %v376 = vpop.f32.mrb[0].mxu0
    %377 = vdwg.mxu0
    %v379 = vlaneseq
    %v380 = vshrl.u32 %v379, 7
    %v381 = vsub.s32 0, %v380
    %v382 = vrot.slane %v217, %v381
    %v384 = vadd.f32 %v375, %v382
    %v385 = vxor.u32 %v384, 2147483648
    %v386 = vmul.f32 %v385, 1.442695
    %v387 = vpow.pop %v386
    %v388 = vadd.f32 %v387, 1.0
    %v389 = vrcp.pop %v388
    %v390 = vmul.f32 1.0, %v389
    %v391 = vtanh.pop %v384
    %v392 = vmul.f32 %v390, 0.0
    %394 = vrot.lane.b32.xlu0 %v391, 64
    %v395 = vpop.permute.xlu0 %394
    %v397 = vmul.f32 %v390, %v395
    %399 = vrot.lane.b32.xlu0 %v397, 32
    %v400 = vpop.permute.xlu0 %399
    %v402 = vadd.f32 %v392, %v400
    %v403 = vtanh.pop %v402
    %405 = vrot.lane.b32.xlu0 %v403, 64
    %v406 = vpop.permute.xlu0 %405
    %v408 = vmul.f32 %v390, %v406
    %409 = vmatprep.subr.mxu0 0.0
    %410 = vmatpush1.msra.mxu0 %v205
    %411 = vmatprep.subr.mxu0 0.0
    %412 = vmatpush1.msra.mxu0 %v206
    %413 = vmatprep.subr.mxu0 0.0
    %414 = vmatpush1.msra.mxu0 %v207
    %415 = vmatprep.subr.mxu0 0.0
    %416 = vmatpush1.msra.mxu0 %v208
    %417 = vmatprep.subr.mxu0 0.0
    %418 = vmatpush1.msra.mxu0 0.0
    %419 = vmatprep.subr.mxu0 0.0
    %420 = vmatpush1.msra.mxu0 0.0
    %421 = vmatprep.subr.mxu0 0.0
    %422 = vmatpush1.msra.mxu0 0.0
    %423 = vmatprep.subr.mxu0 0.0
    %424 = vmatpush1.msra.mxu0 0.0
    %425 = vmatprep.subr.mxu0 0.0
    %426 = vmatpush1.msra.mxu0 0.0
    %427 = vmatprep.subr.mxu0 0.0
    %428 = vmatpush1.msra.mxu0 0.0
    %429 = vmatprep.subr.mxu0 0.0
    %430 = vmatpush1.msra.mxu0 0.0
    %431 = vmatprep.subr.mxu0 0.0
    %432 = vmatpush1.msra.mxu0 0.0
    %433 = vmatprep.subr.mxu0 0.0
    %434 = vmatpush1.msra.mxu0 0.0
    %435 = vmatprep.subr.mxu0 0.0
    %436 = vmatpush1.msra.mxu0 0.0
    %437 = vmatprep.subr.mxu0 0.0
    %438 = vmatpush1.msra.mxu0 0.0
    %439 = vmatprep.subr.mxu0 0.0
    %440 = vmatpush1.msra.mxu0 0.0
    %441 = vmatprep.subr.mxu0 0.0
    %442 = vmatpush1.msra.mxu0 0.0
    %443 = vmatprep.subr.mxu0 0.0
    %444 = vmatpush1.msra.mxu0 0.0
    %445 = vmatprep.subr.mxu0 0.0
    %446 = vmatpush1.msra.mxu0 0.0
    %447 = vmatprep.subr.mxu0 0.0
    %448 = vmatpush1.msra.mxu0 0.0
    %449 = vmatprep.subr.mxu0 0.0
    %450 = vmatpush1.msra.mxu0 0.0
    %451 = vmatprep.subr.mxu0 0.0
    %452 = vmatpush1.msra.mxu0 0.0
    %453 = vmatprep.subr.mxu0 0.0
    %454 = vmatpush1.msra.mxu0 0.0
    %455 = vmatprep.subr.mxu0 0.0
    %456 = vmatpush1.msra.mxu0 0.0
    %457 = vmatprep.subr.mxu0 0.0
    %458 = vmatpush1.msra.mxu0 0.0
    %459 = vmatprep.subr.mxu0 0.0
    %460 = vmatpush1.msra.mxu0 0.0
    %461 = vmatprep.subr.mxu0 0.0
    %462 = vmatpush1.msra.mxu0 0.0
    %463 = vmatprep.subr.mxu0 0.0
    %464 = vmatpush1.msra.mxu0 0.0
    %465 = vmatprep.subr.mxu0 0.0
    %466 = vmatpush1.msra.mxu0 0.0
    %467 = vmatprep.subr.mxu0 0.0
    %468 = vmatpush1.msra.mxu0 0.0
    %469 = vmatprep.subr.mxu0 0.0
    %470 = vmatpush1.msra.mxu0 0.0
    %471 = vmatprep.subr.mxu0 0.0
    %472 = vmatpush1.msra.mxu0 0.0
    %473 = vmatprep.mubr.f32.mxu0 0.0
    %474 = vmatmul.mubr.f32.gmra.mrb[0].mxu0 %v228
    %v475 = vpop.f32.mrb[0].mxu0
    %v476 = vadd.f32 0.0, %v475
    %v477 = vpop.f32.mrb[0].mxu0
    %478 = vdwg.mxu0
    %480 = vrot.lane.b32.xlu0 %v408, 32
    %v481 = vpop.permute.xlu0 %480
    %v482 = vsel %vm226, %v481, 0
    %484 = vmatprep.subr.mxu0 0.0
    %485 = vmatpush1.msra.mxu0 %v189
    %486 = vmatprep.subr.mxu0 0.0
    %487 = vmatpush1.msra.mxu0 %v190
    %488 = vmatprep.subr.mxu0 0.0
    %489 = vmatpush1.msra.mxu0 %v191
    %490 = vmatprep.subr.mxu0 0.0
    %491 = vmatpush1.msra.mxu0 %v192
    %492 = vmatprep.subr.mxu0 0.0
    %493 = vmatpush1.msra.mxu0 0.0
    %494 = vmatprep.subr.mxu0 0.0
    %495 = vmatpush1.msra.mxu0 0.0
    %496 = vmatprep.subr.mxu0 0.0
    %497 = vmatpush1.msra.mxu0 0.0
    %498 = vmatprep.subr.mxu0 0.0
    %499 = vmatpush1.msra.mxu0 0.0
    %500 = vmatprep.subr.mxu0 0.0
    %501 = vmatpush1.msra.mxu0 0.0
    %502 = vmatprep.subr.mxu0 0.0
    %503 = vmatpush1.msra.mxu0 0.0
    %504 = vmatprep.subr.mxu0 0.0
    %505 = vmatpush1.msra.mxu0 0.0
    %506 = vmatprep.subr.mxu0 0.0
    %507 = vmatpush1.msra.mxu0 0.0
    %508 = vmatprep.subr.mxu0 0.0
    %509 = vmatpush1.msra.mxu0 0.0
    %510 = vmatprep.subr.mxu0 0.0
    %511 = vmatpush1.msra.mxu0 0.0
    %512 = vmatprep.subr.mxu0 0.0
    %513 = vmatpush1.msra.mxu0 0.0
    %514 = vmatprep.subr.mxu0 0.0
    %515 = vmatpush1.msra.mxu0 0.0
    %516 = vmatprep.subr.mxu0 0.0
    %517 = vmatpush1.msra.mxu0 0.0
    %518 = vmatprep.subr.mxu0 0.0
    %519 = vmatpush1.msra.mxu0 0.0
    %520 = vmatprep.subr.mxu0 0.0
    %521 = vmatpush1.msra.mxu0 0.0
    %522 = vmatprep.subr.mxu0 0.0
    %523 = vmatpush1.msra.mxu0 0.0
    %524 = vmatprep.subr.mxu0 0.0
    %525 = vmatpush1.msra.mxu0 0.0
    %526 = vmatprep.subr.mxu0 0.0
    %527 = vmatpush1.msra.mxu0 0.0
    %528 = vmatprep.subr.mxu0 0.0
    %529 = vmatpush1.msra.mxu0 0.0
    %530 = vmatprep.subr.mxu0 0.0
    %531 = vmatpush1.msra.mxu0 0.0
    %532 = vmatprep.subr.mxu0 0.0
    %533 = vmatpush1.msra.mxu0 0.0
    %534 = vmatprep.subr.mxu0 0.0
    %535 = vmatpush1.msra.mxu0 0.0
    %536 = vmatprep.subr.mxu0 0.0
    %537 = vmatpush1.msra.mxu0 0.0
    %538 = vmatprep.subr.mxu0 0.0
    %539 = vmatpush1.msra.mxu0 0.0
    %540 = vmatprep.subr.mxu0 0.0
    %541 = vmatpush1.msra.mxu0 0.0
    %542 = vmatprep.subr.mxu0 0.0
    %543 = vmatpush1.msra.mxu0 0.0
    %544 = vmatprep.subr.mxu0 0.0
    %545 = vmatpush1.msra.mxu0 0.0
    %546 = vmatprep.subr.mxu0 0.0
    %547 = vmatpush1.msra.mxu0 0.0
    %548 = vmatprep.mubr.f32.mxu0 0.0
    %549 = vmatmul.mubr.f32.gmra.mrb[0].mxu0 %v482
    %v550 = vpop.f32.mrb[0].mxu0
    %v551 = vadd.f32 %v476, %v550
    %v552 = vpop.f32.mrb[0].mxu0
    %553 = vdwg.mxu0
    %v555 = vlaneseq
    %v556 = vshrl.u32 %v555, 7
    %v557 = vsub.s32 0, %v556
    %v558 = vrot.slane %v218, %v557
    %v560 = vadd.f32 %v551, %v558
    %v561 = vxor.u32 %v560, 2147483648
    %v562 = vmul.f32 %v561, 1.442695
    %v563 = vpow.pop %v562
    %v564 = vadd.f32 %v563, 1.0
    %v565 = vrcp.pop %v564
    %v566 = vmul.f32 1.0, %v565
    %v567 = vtanh.pop %v560
    %v568 = vmul.f32 %v566, 0.0
    %570 = vrot.lane.b32.xlu0 %v567, 64
    %v571 = vpop.permute.xlu0 %570
    %v573 = vmul.f32 %v566, %v571
    %575 = vrot.lane.b32.xlu0 %v573, 32
    %v576 = vpop.permute.xlu0 %575
    %v578 = vadd.f32 %v568, %v576
    %v579 = vtanh.pop %v578
    %581 = vrot.lane.b32.xlu0 %v579, 64
    %v582 = vpop.permute.xlu0 %581
    %v584 = vmul.f32 %v566, %v582
    %585 = vmatprep.subr.mxu0 0.0
    %586 = vmatpush1.msra.mxu0 %v201
    %587 = vmatprep.subr.mxu0 0.0
    %588 = vmatpush1.msra.mxu0 %v202
    %589 = vmatprep.subr.mxu0 0.0
    %590 = vmatpush1.msra.mxu0 %v203
    %591 = vmatprep.subr.mxu0 0.0
    %592 = vmatpush1.msra.mxu0 %v204
    %593 = vmatprep.subr.mxu0 0.0
    %594 = vmatpush1.msra.mxu0 0.0
    %595 = vmatprep.subr.mxu0 0.0
    %596 = vmatpush1.msra.mxu0 0.0
    %597 = vmatprep.subr.mxu0 0.0
    %598 = vmatpush1.msra.mxu0 0.0
    %599 = vmatprep.subr.mxu0 0.0
    %600 = vmatpush1.msra.mxu0 0.0
    %601 = vmatprep.subr.mxu0 0.0
    %602 = vmatpush1.msra.mxu0 0.0
    %603 = vmatprep.subr.mxu0 0.0
    %604 = vmatpush1.msra.mxu0 0.0
    %605 = vmatprep.subr.mxu0 0.0
    %606 = vmatpush1.msra.mxu0 0.0
    %607 = vmatprep.subr.mxu0 0.0
    %608 = vmatpush1.msra.mxu0 0.0
    %609 = vmatprep.subr.mxu0 0.0
    %610 = vmatpush1.msra.mxu0 0.0
    %611 = vmatprep.subr.mxu0 0.0
    %612 = vmatpush1.msra.mxu0 0.0
    %613 = vmatprep.subr.mxu0 0.0
    %614 = vmatpush1.msra.mxu0 0.0
    %615 = vmatprep.subr.mxu0 0.0
    %616 = vmatpush1.msra.mxu0 0.0
    %617 = vmatprep.subr.mxu0 0.0
    %618 = vmatpush1.msra.mxu0 0.0
    %619 = vmatprep.subr.mxu0 0.0
    %620 = vmatpush1.msra.mxu0 0.0
    %621 = vmatprep.subr.mxu0 0.0
    %622 = vmatpush1.msra.mxu0 0.0
    %623 = vmatprep.subr.mxu0 0.0
    %624 = vmatpush1.msra.mxu0 0.0
    %625 = vmatprep.subr.mxu0 0.0
    %626 = vmatpush1.msra.mxu0 0.0
    %627 = vmatprep.subr.mxu0 0.0
    %628 = vmatpush1.msra.mxu0 0.0
    %629 = vmatprep.subr.mxu0 0.0
    %630 = vmatpush1.msra.mxu0 0.0
    %631 = vmatprep.subr.mxu0 0.0
    %632 = vmatpush1.msra.mxu0 0.0
    %633 = vmatprep.subr.mxu0 0.0
    %634 = vmatpush1.msra.mxu0 0.0
    %635 = vmatprep.subr.mxu0 0.0
    %636 = vmatpush1.msra.mxu0 0.0
    %637 = vmatprep.subr.mxu0 0.0
    %638 = vmatpush1.msra.mxu0 0.0
    %639 = vmatprep.subr.mxu0 0.0
    %640 = vmatpush1.msra.mxu0 0.0
    %641 = vmatprep.subr.mxu0 0.0
    %642 = vmatpush1.msra.mxu0 0.0
    %643 = vmatprep.subr.mxu0 0.0
    %644 = vmatpush1.msra.mxu0 0.0
    %645 = vmatprep.subr.mxu0 0.0
    %646 = vmatpush1.msra.mxu0 0.0
    %647 = vmatprep.subr.mxu0 0.0
    %648 = vmatpush1.msra.mxu0 0.0
    %649 = vmatprep.mubr.f32.mxu0 0.0
    %650 = vmatmul.mubr.f32.gmra.mrb[0].mxu0 %v482
    %v651 = vpop.f32.mrb[0].mxu0
    %v652 = vadd.f32 0.0, %v651
    %v653 = vpop.f32.mrb[0].mxu0
    %654 = vdwg.mxu0
    %v655 = vrot.slane %v185, 1
    %v656 = vsel %vm303, %v186, %v655
    %v657 = vsel %vm305, %v656, 0
    %659 = vmatprep.subr.mxu0 0.0
    %660 = vmatpush1.msra.mxu0 %v187
    %661 = vmatprep.subr.mxu0 0.0
    %662 = vmatpush1.msra.mxu0 %v188
    %663 = vmatprep.subr.mxu0 0.0
    %664 = vmatpush1.msra.mxu0 0.0
    %665 = vmatprep.subr.mxu0 0.0
    %666 = vmatpush1.msra.mxu0 0.0
    %667 = vmatprep.subr.mxu0 0.0
    %668 = vmatpush1.msra.mxu0 0.0
    %669 = vmatprep.subr.mxu0 0.0
    %670 = vmatpush1.msra.mxu0 0.0
    %671 = vmatprep.subr.mxu0 0.0
    %672 = vmatpush1.msra.mxu0 0.0
    %673 = vmatprep.subr.mxu0 0.0
    %674 = vmatpush1.msra.mxu0 0.0
    %675 = vmatprep.subr.mxu0 0.0
    %676 = vmatpush1.msra.mxu0 0.0
    %677 = vmatprep.subr.mxu0 0.0
    %678 = vmatpush1.msra.mxu0 0.0
    %679 = vmatprep.subr.mxu0 0.0
    %680 = vmatpush1.msra.mxu0 0.0
    %681 = vmatprep.subr.mxu0 0.0
    %682 = vmatpush1.msra.mxu0 0.0
    %683 = vmatprep.subr.mxu0 0.0
    %684 = vmatpush1.msra.mxu0 0.0
    %685 = vmatprep.subr.mxu0 0.0
    %686 = vmatpush1.msra.mxu0 0.0
    %687 = vmatprep.subr.mxu0 0.0
    %688 = vmatpush1.msra.mxu0 0.0
    %689 = vmatprep.subr.mxu0 0.0
    %690 = vmatpush1.msra.mxu0 0.0
    %691 = vmatprep.subr.mxu0 0.0
    %692 = vmatpush1.msra.mxu0 0.0
    %693 = vmatprep.subr.mxu0 0.0
    %694 = vmatpush1.msra.mxu0 0.0
    %695 = vmatprep.subr.mxu0 0.0
    %696 = vmatpush1.msra.mxu0 0.0
    %697 = vmatprep.subr.mxu0 0.0
    %698 = vmatpush1.msra.mxu0 0.0
    %699 = vmatprep.subr.mxu0 0.0
    %700 = vmatpush1.msra.mxu0 0.0
    %701 = vmatprep.subr.mxu0 0.0
    %702 = vmatpush1.msra.mxu0 0.0
    %703 = vmatprep.subr.mxu0 0.0
    %704 = vmatpush1.msra.mxu0 0.0
    %705 = vmatprep.subr.mxu0 0.0
    %706 = vmatpush1.msra.mxu0 0.0
    %707 = vmatprep.subr.mxu0 0.0
    %708 = vmatpush1.msra.mxu0 0.0
    %709 = vmatprep.subr.mxu0 0.0
    %710 = vmatpush1.msra.mxu0 0.0
    %711 = vmatprep.subr.mxu0 0.0
    %712 = vmatpush1.msra.mxu0 0.0
    %713 = vmatprep.subr.mxu0 0.0
    %714 = vmatpush1.msra.mxu0 0.0
    %715 = vmatprep.subr.mxu0 0.0
    %716 = vmatpush1.msra.mxu0 0.0
    %717 = vmatprep.subr.mxu0 0.0
    %718 = vmatpush1.msra.mxu0 0.0
    %719 = vmatprep.subr.mxu0 0.0
    %720 = vmatpush1.msra.mxu0 0.0
    %721 = vmatprep.subr.mxu0 0.0
    %722 = vmatpush1.msra.mxu0 0.0
    %723 = vmatprep.mubr.f32.mxu0 0.0
    %724 = vmatmul.mubr.f32.gmra.mrb[0].mxu0 %v657
    %v725 = vpop.f32.mrb[0].mxu0
    %v726 = vadd.f32 %v652, %v725
    %v727 = vpop.f32.mrb[0].mxu0
    %728 = vdwg.mxu0
    %v729 = vadd.f32 %v726, %v382
    %v730 = vxor.u32 %v729, 2147483648
    %v731 = vmul.f32 %v730, 1.442695
    %v732 = vpow.pop %v731
    %v733 = vadd.f32 %v732, 1.0
    %v734 = vrcp.pop %v733
    %v735 = vmul.f32 1.0, %v734
    %v736 = vtanh.pop %v729
    %v737 = vmul.f32 %v735, %v402
    %739 = vrot.lane.b32.xlu0 %v736, 64
    %v740 = vpop.permute.xlu0 %739
    %v742 = vmul.f32 %v735, %v740
    %744 = vrot.lane.b32.xlu0 %v742, 32
    %v745 = vpop.permute.xlu0 %744
    %v747 = vadd.f32 %v737, %v745
    %v748 = vtanh.pop %v747
    %750 = vrot.lane.b32.xlu0 %v748, 64
    %v751 = vpop.permute.xlu0 %750
    %v753 = vmul.f32 %v735, %v751
    %754 = vmatprep.subr.mxu0 0.0
    %755 = vmatpush1.msra.mxu0 %v209
    %756 = vmatprep.subr.mxu0 0.0
    %757 = vmatpush1.msra.mxu0 %v210
    %758 = vmatprep.subr.mxu0 0.0
    %759 = vmatpush1.msra.mxu0 %v211
    %760 = vmatprep.subr.mxu0 0.0
    %761 = vmatpush1.msra.mxu0 %v212
    %762 = vmatprep.subr.mxu0 0.0
    %763 = vmatpush1.msra.mxu0 0.0
    %764 = vmatprep.subr.mxu0 0.0
    %765 = vmatpush1.msra.mxu0 0.0
    %766 = vmatprep.subr.mxu0 0.0
    %767 = vmatpush1.msra.mxu0 0.0
    %768 = vmatprep.subr.mxu0 0.0
    %769 = vmatpush1.msra.mxu0 0.0
    %770 = vmatprep.subr.mxu0 0.0
    %771 = vmatpush1.msra.mxu0 0.0
    %772 = vmatprep.subr.mxu0 0.0
    %773 = vmatpush1.msra.mxu0 0.0
    %774 = vmatprep.subr.mxu0 0.0
    %775 = vmatpush1.msra.mxu0 0.0
    %776 = vmatprep.subr.mxu0 0.0
    %777 = vmatpush1.msra.mxu0 0.0
    %778 = vmatprep.subr.mxu0 0.0
    %779 = vmatpush1.msra.mxu0 0.0
    %780 = vmatprep.subr.mxu0 0.0
    %781 = vmatpush1.msra.mxu0 0.0
    %782 = vmatprep.subr.mxu0 0.0
    %783 = vmatpush1.msra.mxu0 0.0
    %784 = vmatprep.subr.mxu0 0.0
    %785 = vmatpush1.msra.mxu0 0.0
    %786 = vmatprep.subr.mxu0 0.0
    %787 = vmatpush1.msra.mxu0 0.0
    %788 = vmatprep.subr.mxu0 0.0
    %789 = vmatpush1.msra.mxu0 0.0
    %790 = vmatprep.subr.mxu0 0.0
    %791 = vmatpush1.msra.mxu0 0.0
    %792 = vmatprep.subr.mxu0 0.0
    %793 = vmatpush1.msra.mxu0 0.0
    %794 = vmatprep.subr.mxu0 0.0
    %795 = vmatpush1.msra.mxu0 0.0
    %796 = vmatprep.subr.mxu0 0.0
    %797 = vmatpush1.msra.mxu0 0.0
    %798 = vmatprep.subr.mxu0 0.0
    %799 = vmatpush1.msra.mxu0 0.0
    %800 = vmatprep.subr.mxu0 0.0
    %801 = vmatpush1.msra.mxu0 0.0
    %802 = vmatprep.subr.mxu0 0.0
    %803 = vmatpush1.msra.mxu0 0.0
    %804 = vmatprep.subr.mxu0 0.0
    %805 = vmatpush1.msra.mxu0 0.0
    %806 = vmatprep.subr.mxu0 0.0
    %807 = vmatpush1.msra.mxu0 0.0
    %808 = vmatprep.subr.mxu0 0.0
    %809 = vmatpush1.msra.mxu0 0.0
    %810 = vmatprep.subr.mxu0 0.0
    %811 = vmatpush1.msra.mxu0 0.0
    %812 = vmatprep.subr.mxu0 0.0
    %813 = vmatpush1.msra.mxu0 0.0
    %814 = vmatprep.subr.mxu0 0.0
    %815 = vmatpush1.msra.mxu0 0.0
    %816 = vmatprep.subr.mxu0 0.0
    %817 = vmatpush1.msra.mxu0 0.0
    %818 = vmatprep.mubr.f32.mxu0 0.0
    %819 = vmatmul.mubr.f32.gmra.mrb[0].mxu0 %v228
    %v820 = vpop.f32.mrb[0].mxu0
    %v821 = vadd.f32 0.0, %v820
    %v822 = vpop.f32.mrb[0].mxu0
    %823 = vdwg.mxu0
    %825 = vrot.lane.b32.xlu0 %v584, 32
    %v826 = vpop.permute.xlu0 %825
    %v827 = vsel %vm226, %v826, 0
    %829 = vmatprep.subr.mxu0 0.0
    %830 = vmatpush1.msra.mxu0 %v193
    %831 = vmatprep.subr.mxu0 0.0
    %832 = vmatpush1.msra.mxu0 %v194
    %833 = vmatprep.subr.mxu0 0.0
    %834 = vmatpush1.msra.mxu0 %v195
    %835 = vmatprep.subr.mxu0 0.0
    %836 = vmatpush1.msra.mxu0 %v196
    %837 = vmatprep.subr.mxu0 0.0
    %838 = vmatpush1.msra.mxu0 0.0
    %839 = vmatprep.subr.mxu0 0.0
    %840 = vmatpush1.msra.mxu0 0.0
    %841 = vmatprep.subr.mxu0 0.0
    %842 = vmatpush1.msra.mxu0 0.0
    %843 = vmatprep.subr.mxu0 0.0
    %844 = vmatpush1.msra.mxu0 0.0
    %845 = vmatprep.subr.mxu0 0.0
    %846 = vmatpush1.msra.mxu0 0.0
    %847 = vmatprep.subr.mxu0 0.0
    %848 = vmatpush1.msra.mxu0 0.0
    %849 = vmatprep.subr.mxu0 0.0
    %850 = vmatpush1.msra.mxu0 0.0
    %851 = vmatprep.subr.mxu0 0.0
    %852 = vmatpush1.msra.mxu0 0.0
    %853 = vmatprep.subr.mxu0 0.0
    %854 = vmatpush1.msra.mxu0 0.0
    %855 = vmatprep.subr.mxu0 0.0
    %856 = vmatpush1.msra.mxu0 0.0
    %857 = vmatprep.subr.mxu0 0.0
    %858 = vmatpush1.msra.mxu0 0.0
    %859 = vmatprep.subr.mxu0 0.0
    %860 = vmatpush1.msra.mxu0 0.0
    %861 = vmatprep.subr.mxu0 0.0
    %862 = vmatpush1.msra.mxu0 0.0
    %863 = vmatprep.subr.mxu0 0.0
    %864 = vmatpush1.msra.mxu0 0.0
    %865 = vmatprep.subr.mxu0 0.0
    %866 = vmatpush1.msra.mxu0 0.0
    %867 = vmatprep.subr.mxu0 0.0
    %868 = vmatpush1.msra.mxu0 0.0
    %869 = vmatprep.subr.mxu0 0.0
    %870 = vmatpush1.msra.mxu0 0.0
    %871 = vmatprep.subr.mxu0 0.0
    %872 = vmatpush1.msra.mxu0 0.0
    %873 = vmatprep.subr.mxu0 0.0
    %874 = vmatpush1.msra.mxu0 0.0
    %875 = vmatprep.subr.mxu0 0.0
    %876 = vmatpush1.msra.mxu0 0.0
    %877 = vmatprep.subr.mxu0 0.0
    %878 = vmatpush1.msra.mxu0 0.0
    %879 = vmatprep.subr.mxu0 0.0
    %880 = vmatpush1.msra.mxu0 0.0
    %881 = vmatprep.subr.mxu0 0.0
    %882 = vmatpush1.msra.mxu0 0.0
    %883 = vmatprep.subr.mxu0 0.0
    %884 = vmatpush1.msra.mxu0 0.0
    %885 = vmatprep.subr.mxu0 0.0
    %886 = vmatpush1.msra.mxu0 0.0
    %887 = vmatprep.subr.mxu0 0.0
    %888 = vmatpush1.msra.mxu0 0.0
    %889 = vmatprep.subr.mxu0 0.0
    %890 = vmatpush1.msra.mxu0 0.0
    %891 = vmatprep.subr.mxu0 0.0
    %892 = vmatpush1.msra.mxu0 0.0
    %893 = vmatprep.mubr.f32.mxu0 0.0
    %894 = vmatmul.mubr.f32.gmra.mrb[0].mxu0 %v827
    %v895 = vpop.f32.mrb[0].mxu0
    %v896 = vadd.f32 %v821, %v895
    %v897 = vpop.f32.mrb[0].mxu0
    %898 = vdwg.mxu0
    %v900 = vlaneseq
    %v901 = vshrl.u32 %v900, 7
    %v902 = vsub.s32 0, %v901
    %v903 = vrot.slane %v219, %v902
    %v905 = vadd.f32 %v896, %v903
    %v906 = vxor.u32 %v905, 2147483648
    %v907 = vmul.f32 %v906, 1.442695
    %v908 = vpow.pop %v907
    %v909 = vadd.f32 %v908, 1.0
    %v910 = vrcp.pop %v909
    %v911 = vmul.f32 1.0, %v910
    %v912 = vtanh.pop %v905
    %v913 = vmul.f32 %v911, 0.0
    %915 = vrot.lane.b32.xlu0 %v912, 64
    %v916 = vpop.permute.xlu0 %915
    %v918 = vmul.f32 %v911, %v916
    %920 = vrot.lane.b32.xlu0 %v918, 32
    %v921 = vpop.permute.xlu0 %920
    %v923 = vadd.f32 %v913, %v921
    %v924 = vtanh.pop %v923
    %926 = vrot.lane.b32.xlu0 %v924, 64
    %v927 = vpop.permute.xlu0 %926
    %v929 = vmul.f32 %v911, %v927
    %930 = vmatprep.subr.mxu0 0.0
    %931 = vmatpush1.msra.mxu0 %v205
    %932 = vmatprep.subr.mxu0 0.0
    %933 = vmatpush1.msra.mxu0 %v206
    %934 = vmatprep.subr.mxu0 0.0
    %935 = vmatpush1.msra.mxu0 %v207
    %936 = vmatprep.subr.mxu0 0.0
    %937 = vmatpush1.msra.mxu0 %v208
    %938 = vmatprep.subr.mxu0 0.0
    %939 = vmatpush1.msra.mxu0 0.0
    %940 = vmatprep.subr.mxu0 0.0
    %941 = vmatpush1.msra.mxu0 0.0
    %942 = vmatprep.subr.mxu0 0.0
    %943 = vmatpush1.msra.mxu0 0.0
    %944 = vmatprep.subr.mxu0 0.0
    %945 = vmatpush1.msra.mxu0 0.0
    %946 = vmatprep.subr.mxu0 0.0
    %947 = vmatpush1.msra.mxu0 0.0
    %948 = vmatprep.subr.mxu0 0.0
    %949 = vmatpush1.msra.mxu0 0.0
    %950 = vmatprep.subr.mxu0 0.0
    %951 = vmatpush1.msra.mxu0 0.0
    %952 = vmatprep.subr.mxu0 0.0
    %953 = vmatpush1.msra.mxu0 0.0
    %954 = vmatprep.subr.mxu0 0.0
    %955 = vmatpush1.msra.mxu0 0.0
    %956 = vmatprep.subr.mxu0 0.0
    %957 = vmatpush1.msra.mxu0 0.0
    %958 = vmatprep.subr.mxu0 0.0
    %959 = vmatpush1.msra.mxu0 0.0
    %960 = vmatprep.subr.mxu0 0.0
    %961 = vmatpush1.msra.mxu0 0.0
    %962 = vmatprep.subr.mxu0 0.0
    %963 = vmatpush1.msra.mxu0 0.0
    %964 = vmatprep.subr.mxu0 0.0
    %965 = vmatpush1.msra.mxu0 0.0
    %966 = vmatprep.subr.mxu0 0.0
    %967 = vmatpush1.msra.mxu0 0.0
    %968 = vmatprep.subr.mxu0 0.0
    %969 = vmatpush1.msra.mxu0 0.0
    %970 = vmatprep.subr.mxu0 0.0
    %971 = vmatpush1.msra.mxu0 0.0
    %972 = vmatprep.subr.mxu0 0.0
    %973 = vmatpush1.msra.mxu0 0.0
    %974 = vmatprep.subr.mxu0 0.0
    %975 = vmatpush1.msra.mxu0 0.0
    %976 = vmatprep.subr.mxu0 0.0
    %977 = vmatpush1.msra.mxu0 0.0
    %978 = vmatprep.subr.mxu0 0.0
    %979 = vmatpush1.msra.mxu0 0.0
    %980 = vmatprep.subr.mxu0 0.0
    %981 = vmatpush1.msra.mxu0 0.0
    %982 = vmatprep.subr.mxu0 0.0
    %983 = vmatpush1.msra.mxu0 0.0
    %984 = vmatprep.subr.mxu0 0.0
    %985 = vmatpush1.msra.mxu0 0.0
    %986 = vmatprep.subr.mxu0 0.0
    %987 = vmatpush1.msra.mxu0 0.0
    %988 = vmatprep.subr.mxu0 0.0
    %989 = vmatpush1.msra.mxu0 0.0
    %990 = vmatprep.subr.mxu0 0.0
    %991 = vmatpush1.msra.mxu0 0.0
    %992 = vmatprep.subr.mxu0 0.0
    %993 = vmatpush1.msra.mxu0 0.0
    %994 = vmatprep.mubr.f32.mxu0 0.0
    %995 = vmatmul.mubr.f32.gmra.mrb[0].mxu0 %v827
    %v996 = vpop.f32.mrb[0].mxu0
    %v997 = vadd.f32 0.0, %v996
    %v998 = vpop.f32.mrb[0].mxu0
    %999 = vdwg.mxu0
    %1001 = vrot.lane.b32.xlu0 %v753, 32
    %v1002 = vpop.permute.xlu0 %1001
    %v1003 = vsel %vm226, %v1002, 0
    %1005 = vmatprep.subr.mxu0 0.0
    %1006 = vmatpush1.msra.mxu0 %v189
    %1007 = vmatprep.subr.mxu0 0.0
    %1008 = vmatpush1.msra.mxu0 %v190
    %1009 = vmatprep.subr.mxu0 0.0
    %1010 = vmatpush1.msra.mxu0 %v191
    %1011 = vmatprep.subr.mxu0 0.0
    %1012 = vmatpush1.msra.mxu0 %v192
    %1013 = vmatprep.subr.mxu0 0.0
    %1014 = vmatpush1.msra.mxu0 0.0
    %1015 = vmatprep.subr.mxu0 0.0
    %1016 = vmatpush1.msra.mxu0 0.0
    %1017 = vmatprep.subr.mxu0 0.0
    %1018 = vmatpush1.msra.mxu0 0.0
    %1019 = vmatprep.subr.mxu0 0.0
    %1020 = vmatpush1.msra.mxu0 0.0
    %1021 = vmatprep.subr.mxu0 0.0
    %1022 = vmatpush1.msra.mxu0 0.0
    %1023 = vmatprep.subr.mxu0 0.0
    %1024 = vmatpush1.msra.mxu0 0.0
    %1025 = vmatprep.subr.mxu0 0.0
    %1026 = vmatpush1.msra.mxu0 0.0
    %1027 = vmatprep.subr.mxu0 0.0
    %1028 = vmatpush1.msra.mxu0 0.0
    %1029 = vmatprep.subr.mxu0 0.0
    %1030 = vmatpush1.msra.mxu0 0.0
    %1031 = vmatprep.subr.mxu0 0.0
    %1032 = vmatpush1.msra.mxu0 0.0
    %1033 = vmatprep.subr.mxu0 0.0
    %1034 = vmatpush1.msra.mxu0 0.0
    %1035 = vmatprep.subr.mxu0 0.0
    %1036 = vmatpush1.msra.mxu0 0.0
    %1037 = vmatprep.subr.mxu0 0.0
    %1038 = vmatpush1.msra.mxu0 0.0
    %1039 = vmatprep.subr.mxu0 0.0
    %1040 = vmatpush1.msra.mxu0 0.0
    %1041 = vmatprep.subr.mxu0 0.0
    %1042 = vmatpush1.msra.mxu0 0.0
    %1043 = vmatprep.subr.mxu0 0.0
    %1044 = vmatpush1.msra.mxu0 0.0
    %1045 = vmatprep.subr.mxu0 0.0
    %1046 = vmatpush1.msra.mxu0 0.0
    %1047 = vmatprep.subr.mxu0 0.0
    %1048 = vmatpush1.msra.mxu0 0.0
    %1049 = vmatprep.subr.mxu0 0.0
    %1050 = vmatpush1.msra.mxu0 0.0
    %1051 = vmatprep.subr.mxu0 0.0
    %1052 = vmatpush1.msra.mxu0 0.0
    %1053 = vmatprep.subr.mxu0 0.0
    %1054 = vmatpush1.msra.mxu0 0.0
    %1055 = vmatprep.subr.mxu0 0.0
    %1056 = vmatpush1.msra.mxu0 0.0
    %1057 = vmatprep.subr.mxu0 0.0
    %1058 = vmatpush1.msra.mxu0 0.0
    %1059 = vmatprep.subr.mxu0 0.0
    %1060 = vmatpush1.msra.mxu0 0.0
    %1061 = vmatprep.subr.mxu0 0.0
    %1062 = vmatpush1.msra.mxu0 0.0
    %1063 = vmatprep.subr.mxu0 0.0
    %1064 = vmatpush1.msra.mxu0 0.0
    %1065 = vmatprep.subr.mxu0 0.0
    %1066 = vmatpush1.msra.mxu0 0.0
    %1067 = vmatprep.subr.mxu0 0.0
    %1068 = vmatpush1.msra.mxu0 0.0
    %1069 = vmatprep.mubr.f32.mxu0 0.0
    %1070 = vmatmul.mubr.f32.gmra.mrb[0].mxu0 %v1003
    %v1071 = vpop.f32.mrb[0].mxu0
    %v1072 = vadd.f32 %v997, %v1071
    %v1073 = vpop.f32.mrb[0].mxu0
    %1074 = vdwg.mxu0
    %v1075 = vadd.f32 %v1072, %v558
    %v1076 = vxor.u32 %v1075, 2147483648
    %v1077 = vmul.f32 %v1076, 1.442695
    %v1078 = vpow.pop %v1077
    %v1079 = vadd.f32 %v1078, 1.0
    %v1080 = vrcp.pop %v1079
    %v1081 = vmul.f32 1.0, %v1080
    %v1082 = vtanh.pop %v1075
    %v1083 = vmul.f32 %v1081, %v578
    %1085 = vrot.lane.b32.xlu0 %v1082, 64
    %v1086 = vpop.permute.xlu0 %1085
    %v1088 = vmul.f32 %v1081, %v1086
    %1090 = vrot.lane.b32.xlu0 %v1088, 32
    %v1091 = vpop.permute.xlu0 %1090
    %v1093 = vadd.f32 %v1083, %v1091
    %v1094 = vtanh.pop %v1093
    %1096 = vrot.lane.b32.xlu0 %v1094, 64
    %v1097 = vpop.permute.xlu0 %1096
    %v1099 = vmul.f32 %v1081, %v1097
    %1100 = vmatprep.subr.mxu0 0.0
    %1101 = vmatpush1.msra.mxu0 %v201
    %1102 = vmatprep.subr.mxu0 0.0
    %1103 = vmatpush1.msra.mxu0 %v202
    %1104 = vmatprep.subr.mxu0 0.0
    %1105 = vmatpush1.msra.mxu0 %v203
    %1106 = vmatprep.subr.mxu0 0.0
    %1107 = vmatpush1.msra.mxu0 %v204
    %1108 = vmatprep.subr.mxu0 0.0
    %1109 = vmatpush1.msra.mxu0 0.0
    %1110 = vmatprep.subr.mxu0 0.0
    %1111 = vmatpush1.msra.mxu0 0.0
    %1112 = vmatprep.subr.mxu0 0.0
    %1113 = vmatpush1.msra.mxu0 0.0
    %1114 = vmatprep.subr.mxu0 0.0
    %1115 = vmatpush1.msra.mxu0 0.0
    %1116 = vmatprep.subr.mxu0 0.0
    %1117 = vmatpush1.msra.mxu0 0.0
    %1118 = vmatprep.subr.mxu0 0.0
    %1119 = vmatpush1.msra.mxu0 0.0
    %1120 = vmatprep.subr.mxu0 0.0
    %1121 = vmatpush1.msra.mxu0 0.0
    %1122 = vmatprep.subr.mxu0 0.0
    %1123 = vmatpush1.msra.mxu0 0.0
    %1124 = vmatprep.subr.mxu0 0.0
    %1125 = vmatpush1.msra.mxu0 0.0
    %1126 = vmatprep.subr.mxu0 0.0
    %1127 = vmatpush1.msra.mxu0 0.0
    %1128 = vmatprep.subr.mxu0 0.0
    %1129 = vmatpush1.msra.mxu0 0.0
    %1130 = vmatprep.subr.mxu0 0.0
    %1131 = vmatpush1.msra.mxu0 0.0
    %1132 = vmatprep.subr.mxu0 0.0
    %1133 = vmatpush1.msra.mxu0 0.0
    %1134 = vmatprep.subr.mxu0 0.0
    %1135 = vmatpush1.msra.mxu0 0.0
    %1136 = vmatprep.subr.mxu0 0.0
    %1137 = vmatpush1.msra.mxu0 0.0
    %1138 = vmatprep.subr.mxu0 0.0
    %1139 = vmatpush1.msra.mxu0 0.0
    %1140 = vmatprep.subr.mxu0 0.0
    %1141 = vmatpush1.msra.mxu0 0.0
    %1142 = vmatprep.subr.mxu0 0.0
    %1143 = vmatpush1.msra.mxu0 0.0
    %1144 = vmatprep.subr.mxu0 0.0
    %1145 = vmatpush1.msra.mxu0 0.0
    %1146 = vmatprep.subr.mxu0 0.0
    %1147 = vmatpush1.msra.mxu0 0.0
    %1148 = vmatprep.subr.mxu0 0.0
    %1149 = vmatpush1.msra.mxu0 0.0
    %1150 = vmatprep.subr.mxu0 0.0
    %1151 = vmatpush1.msra.mxu0 0.0
    %1152 = vmatprep.subr.mxu0 0.0
    %1153 = vmatpush1.msra.mxu0 0.0
    %1154 = vmatprep.subr.mxu0 0.0
    %1155 = vmatpush1.msra.mxu0 0.0
    %1156 = vmatprep.subr.mxu0 0.0
    %1157 = vmatpush1.msra.mxu0 0.0
    %1158 = vmatprep.subr.mxu0 0.0
    %1159 = vmatpush1.msra.mxu0 0.0
    %1160 = vmatprep.subr.mxu0 0.0
    %1161 = vmatpush1.msra.mxu0 0.0
    %1162 = vmatprep.subr.mxu0 0.0
    %1163 = vmatpush1.msra.mxu0 0.0
    %1164 = vmatprep.mubr.f32.mxu0 0.0
    %1165 = vmatmul.mubr.f32.gmra.mrb[0].mxu0 %v1003
    %v1166 = vpop.f32.mrb[0].mxu0
    %v1167 = vadd.f32 0.0, %v1166
    %v1168 = vpop.f32.mrb[0].mxu0
    %1169 = vdwg.mxu0
    %v1170 = vrot.slane %v185, 2
    %v1171 = vrot.slane %v186, 1
    %v1172 = vsel %vm303, %v1171, %v1170
    %v1173 = vsel %vm305, %v1172, 0
    %1175 = vmatprep.subr.mxu0 0.0
    %1176 = vmatpush1.msra.mxu0 %v187
    %1177 = vmatprep.subr.mxu0 0.0
    %1178 = vmatpush1.msra.mxu0 %v188
    %1179 = vmatprep.subr.mxu0 0.0
    %1180 = vmatpush1.msra.mxu0 0.0
    %1181 = vmatprep.subr.mxu0 0.0
    %1182 = vmatpush1.msra.mxu0 0.0
    %1183 = vmatprep.subr.mxu0 0.0
    %1184 = vmatpush1.msra.mxu0 0.0
    %1185 = vmatprep.subr.mxu0 0.0
    %1186 = vmatpush1.msra.mxu0 0.0
    %1187 = vmatprep.subr.mxu0 0.0
    %1188 = vmatpush1.msra.mxu0 0.0
    %1189 = vmatprep.subr.mxu0 0.0
    %1190 = vmatpush1.msra.mxu0 0.0
    %1191 = vmatprep.subr.mxu0 0.0
    %1192 = vmatpush1.msra.mxu0 0.0
    %1193 = vmatprep.subr.mxu0 0.0
    %1194 = vmatpush1.msra.mxu0 0.0
    %1195 = vmatprep.subr.mxu0 0.0
    %1196 = vmatpush1.msra.mxu0 0.0
    %1197 = vmatprep.subr.mxu0 0.0
    %1198 = vmatpush1.msra.mxu0 0.0
    %1199 = vmatprep.subr.mxu0 0.0
    %1200 = vmatpush1.msra.mxu0 0.0
    %1201 = vmatprep.subr.mxu0 0.0
    %1202 = vmatpush1.msra.mxu0 0.0
    %1203 = vmatprep.subr.mxu0 0.0
    %1204 = vmatpush1.msra.mxu0 0.0
    %1205 = vmatprep.subr.mxu0 0.0
    %1206 = vmatpush1.msra.mxu0 0.0
    %1207 = vmatprep.subr.mxu0 0.0
    %1208 = vmatpush1.msra.mxu0 0.0
    %1209 = vmatprep.subr.mxu0 0.0
    %1210 = vmatpush1.msra.mxu0 0.0
    %1211 = vmatprep.subr.mxu0 0.0
    %1212 = vmatpush1.msra.mxu0 0.0
    %1213 = vmatprep.subr.mxu0 0.0
    %1214 = vmatpush1.msra.mxu0 0.0
    %1215 = vmatprep.subr.mxu0 0.0
    %1216 = vmatpush1.msra.mxu0 0.0
    %1217 = vmatprep.subr.mxu0 0.0
    %1218 = vmatpush1.msra.mxu0 0.0
    %1219 = vmatprep.subr.mxu0 0.0
    %1220 = vmatpush1.msra.mxu0 0.0
    %1221 = vmatprep.subr.mxu0 0.0
    %1222 = vmatpush1.msra.mxu0 0.0
    %1223 = vmatprep.subr.mxu0 0.0
    %1224 = vmatpush1.msra.mxu0 0.0
    %1225 = vmatprep.subr.mxu0 0.0
    %1226 = vmatpush1.msra.mxu0 0.0
    %1227 = vmatprep.subr.mxu0 0.0
    %1228 = vmatpush1.msra.mxu0 0.0
    %1229 = vmatprep.subr.mxu0 0.0
    %1230 = vmatpush1.msra.mxu0 0.0
    %1231 = vmatprep.subr.mxu0 0.0
    %1232 = vmatpush1.msra.mxu0 0.0
    %1233 = vmatprep.subr.mxu0 0.0
    %1234 = vmatpush1.msra.mxu0 0.0
    %1235 = vmatprep.subr.mxu0 0.0
    %1236 = vmatpush1.msra.mxu0 0.0
    %1237 = vmatprep.subr.mxu0 0.0
    %1238 = vmatpush1.msra.mxu0 0.0
    %1239 = vmatprep.mubr.f32.mxu0 0.0
    %1240 = vmatmul.mubr.f32.gmra.mrb[0].mxu0 %v1173
    %v1241 = vpop.f32.mrb[0].mxu0
    %v1242 = vadd.f32 %v1167, %v1241
    %v1243 = vpop.f32.mrb[0].mxu0
    %1244 = vdwg.mxu0
    %v1245 = vadd.f32 %v1242, %v382
    %v1246 = vxor.u32 %v1245, 2147483648
    %v1247 = vmul.f32 %v1246, 1.442695
    %v1248 = vpow.pop %v1247
    %v1249 = vadd.f32 %v1248, 1.0
    %v1250 = vrcp.pop %v1249
    %v1251 = vmul.f32 1.0, %v1250
    %v1252 = vtanh.pop %v1245
    %v1253 = vmul.f32 %v1251, %v747
    %1255 = vrot.lane.b32.xlu0 %v1252, 64
    %v1256 = vpop.permute.xlu0 %1255
    %v1258 = vmul.f32 %v1251, %v1256
    %1260 = vrot.lane.b32.xlu0 %v1258, 32
    %v1261 = vpop.permute.xlu0 %1260
    %v1263 = vadd.f32 %v1253, %v1261
    %v1264 = vtanh.pop %v1263
    %1266 = vrot.lane.b32.xlu0 %v1264, 64
    %v1267 = vpop.permute.xlu0 %1266
    %v1269 = vmul.f32 %v1251, %v1267
    %1270 = vmatprep.subr.mxu0 0.0
    %1271 = vmatpush1.msra.mxu0 %v213
    %1272 = vmatprep.subr.mxu0 0.0
    %1273 = vmatpush1.msra.mxu0 %v214
    %1274 = vmatprep.subr.mxu0 0.0
    %1275 = vmatpush1.msra.mxu0 %v215
    %1276 = vmatprep.subr.mxu0 0.0
    %1277 = vmatpush1.msra.mxu0 %v216
    %1278 = vmatprep.subr.mxu0 0.0
    %1279 = vmatpush1.msra.mxu0 0.0
    %1280 = vmatprep.subr.mxu0 0.0
    %1281 = vmatpush1.msra.mxu0 0.0
    %1282 = vmatprep.subr.mxu0 0.0
    %1283 = vmatpush1.msra.mxu0 0.0
    %1284 = vmatprep.subr.mxu0 0.0
    %1285 = vmatpush1.msra.mxu0 0.0
    %1286 = vmatprep.subr.mxu0 0.0
    %1287 = vmatpush1.msra.mxu0 0.0
    %1288 = vmatprep.subr.mxu0 0.0
    %1289 = vmatpush1.msra.mxu0 0.0
    %1290 = vmatprep.subr.mxu0 0.0
    %1291 = vmatpush1.msra.mxu0 0.0
    %1292 = vmatprep.subr.mxu0 0.0
    %1293 = vmatpush1.msra.mxu0 0.0
    %1294 = vmatprep.subr.mxu0 0.0
    %1295 = vmatpush1.msra.mxu0 0.0
    %1296 = vmatprep.subr.mxu0 0.0
    %1297 = vmatpush1.msra.mxu0 0.0
    %1298 = vmatprep.subr.mxu0 0.0
    %1299 = vmatpush1.msra.mxu0 0.0
    %1300 = vmatprep.subr.mxu0 0.0
    %1301 = vmatpush1.msra.mxu0 0.0
    %1302 = vmatprep.subr.mxu0 0.0
    %1303 = vmatpush1.msra.mxu0 0.0
    %1304 = vmatprep.subr.mxu0 0.0
    %1305 = vmatpush1.msra.mxu0 0.0
    %1306 = vmatprep.subr.mxu0 0.0
    %1307 = vmatpush1.msra.mxu0 0.0
    %1308 = vmatprep.subr.mxu0 0.0
    %1309 = vmatpush1.msra.mxu0 0.0
    %1310 = vmatprep.subr.mxu0 0.0
    %1311 = vmatpush1.msra.mxu0 0.0
    %1312 = vmatprep.subr.mxu0 0.0
    %1313 = vmatpush1.msra.mxu0 0.0
    %1314 = vmatprep.subr.mxu0 0.0
    %1315 = vmatpush1.msra.mxu0 0.0
    %1316 = vmatprep.subr.mxu0 0.0
    %1317 = vmatpush1.msra.mxu0 0.0
    %1318 = vmatprep.subr.mxu0 0.0
    %1319 = vmatpush1.msra.mxu0 0.0
    %1320 = vmatprep.subr.mxu0 0.0
    %1321 = vmatpush1.msra.mxu0 0.0
    %1322 = vmatprep.subr.mxu0 0.0
    %1323 = vmatpush1.msra.mxu0 0.0
    %1324 = vmatprep.subr.mxu0 0.0
    %1325 = vmatpush1.msra.mxu0 0.0
    %1326 = vmatprep.subr.mxu0 0.0
    %1327 = vmatpush1.msra.mxu0 0.0
    %1328 = vmatprep.subr.mxu0 0.0
    %1329 = vmatpush1.msra.mxu0 0.0
    %1330 = vmatprep.subr.mxu0 0.0
    %1331 = vmatpush1.msra.mxu0 0.0
    %1332 = vmatprep.subr.mxu0 0.0
    %1333 = vmatpush1.msra.mxu0 0.0
    %1334 = vmatprep.mubr.f32.mxu0 0.0
    %1335 = vmatmul.mubr.f32.gmra.mrb[0].mxu0 %v228
    %v1336 = vpop.f32.mrb[0].mxu0
    %v1337 = vadd.f32 0.0, %v1336
    %v1338 = vpop.f32.mrb[0].mxu0
    %1339 = vdwg.mxu0
    %1341 = vrot.lane.b32.xlu0 %v929, 32
    %v1342 = vpop.permute.xlu0 %1341
    %v1343 = vsel %vm226, %v1342, 0
    %1345 = vmatprep.subr.mxu0 0.0
    %1346 = vmatpush1.msra.mxu0 %v197
    %1347 = vmatprep.subr.mxu0 0.0
    %1348 = vmatpush1.msra.mxu0 %v198
    %1349 = vmatprep.subr.mxu0 0.0
    %1350 = vmatpush1.msra.mxu0 %v199
    %1351 = vmatprep.subr.mxu0 0.0
    %1352 = vmatpush1.msra.mxu0 %v200
    %1353 = vmatprep.subr.mxu0 0.0
    %1354 = vmatpush1.msra.mxu0 0.0
    %1355 = vmatprep.subr.mxu0 0.0
    %1356 = vmatpush1.msra.mxu0 0.0
    %1357 = vmatprep.subr.mxu0 0.0
    %1358 = vmatpush1.msra.mxu0 0.0
    %1359 = vmatprep.subr.mxu0 0.0
    %1360 = vmatpush1.msra.mxu0 0.0
    %1361 = vmatprep.subr.mxu0 0.0
    %1362 = vmatpush1.msra.mxu0 0.0
    %1363 = vmatprep.subr.mxu0 0.0
    %1364 = vmatpush1.msra.mxu0 0.0
    %1365 = vmatprep.subr.mxu0 0.0
    %1366 = vmatpush1.msra.mxu0 0.0
    %1367 = vmatprep.subr.mxu0 0.0
    %1368 = vmatpush1.msra.mxu0 0.0
    %1369 = vmatprep.subr.mxu0 0.0
    %1370 = vmatpush1.msra.mxu0 0.0
    %1371 = vmatprep.subr.mxu0 0.0
    %1372 = vmatpush1.msra.mxu0 0.0
    %1373 = vmatprep.subr.mxu0 0.0
    %1374 = vmatpush1.msra.mxu0 0.0
    %1375 = vmatprep.subr.mxu0 0.0
    %1376 = vmatpush1.msra.mxu0 0.0
    %1377 = vmatprep.subr.mxu0 0.0
    %1378 = vmatpush1.msra.mxu0 0.0
    %1379 = vmatprep.subr.mxu0 0.0
    %1380 = vmatpush1.msra.mxu0 0.0
    %1381 = vmatprep.subr.mxu0 0.0
    %1382 = vmatpush1.msra.mxu0 0.0
    %1383 = vmatprep.subr.mxu0 0.0
    %1384 = vmatpush1.msra.mxu0 0.0
    %1385 = vmatprep.subr.mxu0 0.0
    %1386 = vmatpush1.msra.mxu0 0.0
    %1387 = vmatprep.subr.mxu0 0.0
    %1388 = vmatpush1.msra.mxu0 0.0
    %1389 = vmatprep.subr.mxu0 0.0
    %1390 = vmatpush1.msra.mxu0 0.0
    %1391 = vmatprep.subr.mxu0 0.0
    %1392 = vmatpush1.msra.mxu0 0.0
    %1393 = vmatprep.subr.mxu0 0.0
    %1394 = vmatpush1.msra.mxu0 0.0
    %1395 = vmatprep.subr.mxu0 0.0
    %1396 = vmatpush1.msra.mxu0 0.0
    %1397 = vmatprep.subr.mxu0 0.0
    %1398 = vmatpush1.msra.mxu0 0.0
    %1399 = vmatprep.subr.mxu0 0.0
    %1400 = vmatpush1.msra.mxu0 0.0
    %1401 = vmatprep.subr.mxu0 0.0
    %1402 = vmatpush1.msra.mxu0 0.0
    %1403 = vmatprep.subr.mxu0 0.0
    %1404 = vmatpush1.msra.mxu0 0.0
    %1405 = vmatprep.subr.mxu0 0.0
    %1406 = vmatpush1.msra.mxu0 0.0
    %1407 = vmatprep.subr.mxu0 0.0
    %1408 = vmatpush1.msra.mxu0 0.0
    %1409 = vmatprep.mubr.f32.mxu0 0.0
    %1410 = vmatmul.mubr.f32.gmra.mrb[0].mxu0 %v1343
    %v1411 = vpop.f32.mrb[0].mxu0
    %v1412 = vadd.f32 %v1337, %v1411
    %v1413 = vpop.f32.mrb[0].mxu0
    %1414 = vdwg.mxu0
    %v1416 = vlaneseq
    %v1417 = vshrl.u32 %v1416, 7
    %v1418 = vsub.s32 0, %v1417
    %v1419 = vrot.slane %v220, %v1418
    %v1421 = vadd.f32 %v1412, %v1419
    %v1422 = vxor.u32 %v1421, 2147483648
    %v1423 = vmul.f32 %v1422, 1.442695
    %v1424 = vpow.pop %v1423
    %v1425 = vadd.f32 %v1424, 1.0
    %v1426 = vrcp.pop %v1425
    %v1427 = vmul.f32 1.0, %v1426
    %v1428 = vtanh.pop %v1421
    %v1429 = vmul.f32 %v1427, 0.0
    %1431 = vrot.lane.b32.xlu0 %v1428, 64
    %v1432 = vpop.permute.xlu0 %1431
    %v1434 = vmul.f32 %v1427, %v1432
    %1436 = vrot.lane.b32.xlu0 %v1434, 32
    %v1437 = vpop.permute.xlu0 %1436
    %v1439 = vadd.f32 %v1429, %v1437
    %v1440 = vtanh.pop %v1439
    %1442 = vrot.lane.b32.xlu0 %v1440, 64
    %v1443 = vpop.permute.xlu0 %1442
    %v1445 = vmul.f32 %v1427, %v1443
    %v1447 = vlaneseq
    %v1448 = vshrl.u32 %v1447, 7
    %v1449 = vsub.s32 0, %v1448
    %v1450 = vrot.slane %v225, %v1449
    %1453 = vrot.lane.b32.xlu0 %v1445, 32
    %v1454 = vpop.permute.xlu0 %1453
    %v1455 = vsel %vm226, %v1454, 0
    %1457 = vmatprep.subr.mxu0 0.0
    %1458 = vmatpush1.msra.mxu0 %v221
    %1459 = vmatprep.subr.mxu0 0.0
    %1460 = vmatpush1.msra.mxu0 %v222
    %1461 = vmatprep.subr.mxu0 0.0
    %1462 = vmatpush1.msra.mxu0 %v223
    %1463 = vmatprep.subr.mxu0 0.0
    %1464 = vmatpush1.msra.mxu0 %v224
    %1465 = vmatprep.subr.mxu0 0.0
    %1466 = vmatpush1.msra.mxu0 0.0
    %1467 = vmatprep.subr.mxu0 0.0
    %1468 = vmatpush1.msra.mxu0 0.0
    %1469 = vmatprep.subr.mxu0 0.0
    %1470 = vmatpush1.msra.mxu0 0.0
    %1471 = vmatprep.subr.mxu0 0.0
    %1472 = vmatpush1.msra.mxu0 0.0
    %1473 = vmatprep.subr.mxu0 0.0
    %1474 = vmatpush1.msra.mxu0 0.0
    %1475 = vmatprep.subr.mxu0 0.0
    %1476 = vmatpush1.msra.mxu0 0.0
    %1477 = vmatprep.subr.mxu0 0.0
    %1478 = vmatpush1.msra.mxu0 0.0
    %1479 = vmatprep.subr.mxu0 0.0
    %1480 = vmatpush1.msra.mxu0 0.0
    %1481 = vmatprep.subr.mxu0 0.0
    %1482 = vmatpush1.msra.mxu0 0.0
    %1483 = vmatprep.subr.mxu0 0.0
    %1484 = vmatpush1.msra.mxu0 0.0
    %1485 = vmatprep.subr.mxu0 0.0
    %1486 = vmatpush1.msra.mxu0 0.0
    %1487 = vmatprep.subr.mxu0 0.0
    %1488 = vmatpush1.msra.mxu0 0.0
    %1489 = vmatprep.subr.mxu0 0.0
    %1490 = vmatpush1.msra.mxu0 0.0
    %1491 = vmatprep.subr.mxu0 0.0
    %1492 = vmatpush1.msra.mxu0 0.0
    %1493 = vmatprep.subr.mxu0 0.0
    %1494 = vmatpush1.msra.mxu0 0.0
    %1495 = vmatprep.subr.mxu0 0.0
    %1496 = vmatpush1.msra.mxu0 0.0
    %1497 = vmatprep.subr.mxu0 0.0
    %1498 = vmatpush1.msra.mxu0 0.0
    %1499 = vmatprep.subr.mxu0 0.0
    %1500 = vmatpush1.msra.mxu0 0.0
    %1501 = vmatprep.subr.mxu0 0.0
    %1502 = vmatpush1.msra.mxu0 0.0
    %1503 = vmatprep.subr.mxu0 0.0
    %1504 = vmatpush1.msra.mxu0 0.0
    %1505 = vmatprep.subr.mxu0 0.0
    %1506 = vmatpush1.msra.mxu0 0.0
    %1507 = vmatprep.subr.mxu0 0.0
    %1508 = vmatpush1.msra.mxu0 0.0
    %1509 = vmatprep.subr.mxu0 0.0
    %1510 = vmatpush1.msra.mxu0 0.0
    %1511 = vmatprep.subr.mxu0 0.0
    %1512 = vmatpush1.msra.mxu0 0.0
    %1513 = vmatprep.subr.mxu0 0.0
    %1514 = vmatpush1.msra.mxu0 0.0
    %1515 = vmatprep.subr.mxu0 0.0
    %1516 = vmatpush1.msra.mxu0 0.0
    %1517 = vmatprep.subr.mxu0 0.0
    %1518 = vmatpush1.msra.mxu0 0.0
    %1519 = vmatprep.subr.mxu0 0.0
    %1520 = vmatpush1.msra.mxu0 0.0
    %1521 = vmatprep.mubr.f32.mxu0 0.0
    %1522 = vmatmul.mubr.f32.gmra.mrb[0].mxu0 %v1455
    %v1523 = vpop.f32.mrb[0].mxu0
    %v1524 = vadd.f32 %v1450, %v1523
    %v1525 = vpop.f32.mrb[0].mxu0
    %1526 = vdwg.mxu0
    %v1529 = vunpack.c.l.s4 1966171168
    %v1530 = vunpack.c.0.s8 %v1529
    %v1531 = vlaneseq
    %v1532 = vshrl.u32 %v1531, 7
    %v1533 = vsub.s32 %v1530, %v1532
    %v1534 = vrot.slane %v1524, %v1533
    %v1535 = vcombine.high %v1534, %v1534
    %v1537 = vunpack.c.l.s4 1966171168
    %v1538 = vunpack.c.0.s8 %v1537
    %v1539 = vlaneseq
    %v1540 = vshrl.u32 %v1539, 7
    %v1541 = vsub.s32 %v1538, %v1540
    %v1542 = vrot.slane %v1534, %v1541
    %v1544 = vunpack.c.l.s4 1966171168
    %v1545 = vunpack.c.0.s8 %v1544
    %v1546 = vlaneseq
    %v1547 = vshrl.u32 %v1546, 7
    %v1548 = vsub.s32 %v1545, %v1547
    %v1549 = vrot.slane %v1535, %v1548
    %1552 = vst [vmem:[#allocation19] sm:$0x1] %v1542
    %1553 = vst [vmem:[#allocation19 + $0x8] sm:$0x1] %v1549
    %1554 = vmatprep.subr.mxu0 0.0
    %1555 = vmatpush1.msra.mxu0 %v209
    %1556 = vmatprep.subr.mxu0 0.0
    %1557 = vmatpush1.msra.mxu0 %v210
    %1558 = vmatprep.subr.mxu0 0.0
    %1559 = vmatpush1.msra.mxu0 %v211
    %1560 = vmatprep.subr.mxu0 0.0
    %1561 = vmatpush1.msra.mxu0 %v212
    %1562 = vmatprep.subr.mxu0 0.0
    %1563 = vmatpush1.msra.mxu0 0.0
    %1564 = vmatprep.subr.mxu0 0.0
    %1565 = vmatpush1.msra.mxu0 0.0
    %1566 = vmatprep.subr.mxu0 0.0
    %1567 = vmatpush1.msra.mxu0 0.0
    %1568 = vmatprep.subr.mxu0 0.0
    %1569 = vmatpush1.msra.mxu0 0.0
    %1570 = vmatprep.subr.mxu0 0.0
    %1571 = vmatpush1.msra.mxu0 0.0
    %1572 = vmatprep.subr.mxu0 0.0
    %1573 = vmatpush1.msra.mxu0 0.0
    %1574 = vmatprep.subr.mxu0 0.0
    %1575 = vmatpush1.msra.mxu0 0.0
    %1576 = vmatprep.subr.mxu0 0.0
    %1577 = vmatpush1.msra.mxu0 0.0
    %1578 = vmatprep.subr.mxu0 0.0
    %1579 = vmatpush1.msra.mxu0 0.0
    %1580 = vmatprep.subr.mxu0 0.0
    %1581 = vmatpush1.msra.mxu0 0.0
    %1582 = vmatprep.subr.mxu0 0.0
    %1583 = vmatpush1.msra.mxu0 0.0
    %1584 = vmatprep.subr.mxu0 0.0
    %1585 = vmatpush1.msra.mxu0 0.0
    %1586 = vmatprep.subr.mxu0 0.0
    %1587 = vmatpush1.msra.mxu0 0.0
    %1588 = vmatprep.subr.mxu0 0.0
    %1589 = vmatpush1.msra.mxu0 0.0
    %1590 = vmatprep.subr.mxu0 0.0
    %1591 = vmatpush1.msra.mxu0 0.0
    %1592 = vmatprep.subr.mxu0 0.0
    %1593 = vmatpush1.msra.mxu0 0.0
    %1594 = vmatprep.subr.mxu0 0.0
    %1595 = vmatpush1.msra.mxu0 0.0
    %1596 = vmatprep.subr.mxu0 0.0
    %1597 = vmatpush1.msra.mxu0 0.0
    %1598 = vmatprep.subr.mxu0 0.0
    %1599 = vmatpush1.msra.mxu0 0.0
    %1600 = vmatprep.subr.mxu0 0.0
    %1601 = vmatpush1.msra.mxu0 0.0
    %1602 = vmatprep.subr.mxu0 0.0
    %1603 = vmatpush1.msra.mxu0 0.0
    %1604 = vmatprep.subr.mxu0 0.0
    %1605 = vmatpush1.msra.mxu0 0.0
    %1606 = vmatprep.subr.mxu0 0.0
    %1607 = vmatpush1.msra.mxu0 0.0
    %1608 = vmatprep.subr.mxu0 0.0
    %1609 = vmatpush1.msra.mxu0 0.0
    %1610 = vmatprep.subr.mxu0 0.0
    %1611 = vmatpush1.msra.mxu0 0.0
    %1612 = vmatprep.subr.mxu0 0.0
    %1613 = vmatpush1.msra.mxu0 0.0
    %1614 = vmatprep.subr.mxu0 0.0
    %1615 = vmatpush1.msra.mxu0 0.0
    %1616 = vmatprep.subr.mxu0 0.0
    %1617 = vmatpush1.msra.mxu0 0.0
    %1618 = vmatprep.mubr.f32.mxu0 0.0
    %1619 = vmatmul.mubr.f32.gmra.mrb[0].mxu0 %v1343
    %v1620 = vpop.f32.mrb[0].mxu0
    %v1621 = vadd.f32 0.0, %v1620
    %v1622 = vpop.f32.mrb[0].mxu0
    %1623 = vdwg.mxu0
    %1625 = vrot.lane.b32.xlu0 %v1099, 32
    %v1626 = vpop.permute.xlu0 %1625
    %v1627 = vsel %vm226, %v1626, 0
    %1629 = vmatprep.subr.mxu0 0.0
    %1630 = vmatpush1.msra.mxu0 %v193
    %1631 = vmatprep.subr.mxu0 0.0
    %1632 = vmatpush1.msra.mxu0 %v194
    %1633 = vmatprep.subr.mxu0 0.0
    %1634 = vmatpush1.msra.mxu0 %v195
    %1635 = vmatprep.subr.mxu0 0.0
    %1636 = vmatpush1.msra.mxu0 %v196
    %1637 = vmatprep.subr.mxu0 0.0
    %1638 = vmatpush1.msra.mxu0 0.0
    %1639 = vmatprep.subr.mxu0 0.0
    %1640 = vmatpush1.msra.mxu0 0.0
    %1641 = vmatprep.subr.mxu0 0.0
    %1642 = vmatpush1.msra.mxu0 0.0
    %1643 = vmatprep.subr.mxu0 0.0
    %1644 = vmatpush1.msra.mxu0 0.0
    %1645 = vmatprep.subr.mxu0 0.0
    %1646 = vmatpush1.msra.mxu0 0.0
    %1647 = vmatprep.subr.mxu0 0.0
    %1648 = vmatpush1.msra.mxu0 0.0
    %1649 = vmatprep.subr.mxu0 0.0
    %1650 = vmatpush1.msra.mxu0 0.0
    %1651 = vmatprep.subr.mxu0 0.0
    %1652 = vmatpush1.msra.mxu0 0.0
    %1653 = vmatprep.subr.mxu0 0.0
    %1654 = vmatpush1.msra.mxu0 0.0
    %1655 = vmatprep.subr.mxu0 0.0
    %1656 = vmatpush1.msra.mxu0 0.0
    %1657 = vmatprep.subr.mxu0 0.0
    %1658 = vmatpush1.msra.mxu0 0.0
    %1659 = vmatprep.subr.mxu0 0.0
    %1660 = vmatpush1.msra.mxu0 0.0
    %1661 = vmatprep.subr.mxu0 0.0
    %1662 = vmatpush1.msra.mxu0 0.0
    %1663 = vmatprep.subr.mxu0 0.0
    %1664 = vmatpush1.msra.mxu0 0.0
    %1665 = vmatprep.subr.mxu0 0.0
    %1666 = vmatpush1.msra.mxu0 0.0
    %1667 = vmatprep.subr.mxu0 0.0
    %1668 = vmatpush1.msra.mxu0 0.0
    %1669 = vmatprep.subr.mxu0 0.0
    %1670 = vmatpush1.msra.mxu0 0.0
    %1671 = vmatprep.subr.mxu0 0.0
    %1672 = vmatpush1.msra.mxu0 0.0
    %1673 = vmatprep.subr.mxu0 0.0
    %1674 = vmatpush1.msra.mxu0 0.0
    %1675 = vmatprep.subr.mxu0 0.0
    %1676 = vmatpush1.msra.mxu0 0.0
    %1677 = vmatprep.subr.mxu0 0.0
    %1678 = vmatpush1.msra.mxu0 0.0
    %1679 = vmatprep.subr.mxu0 0.0
    %1680 = vmatpush1.msra.mxu0 0.0
    %1681 = vmatprep.subr.mxu0 0.0
    %1682 = vmatpush1.msra.mxu0 0.0
    %1683 = vmatprep.subr.mxu0 0.0
    %1684 = vmatpush1.msra.mxu0 0.0
    %1685 = vmatprep.subr.mxu0 0.0
    %1686 = vmatpush1.msra.mxu0 0.0
    %1687 = vmatprep.subr.mxu0 0.0
    %1688 = vmatpush1.msra.mxu0 0.0
    %1689 = vmatprep.subr.mxu0 0.0
    %1690 = vmatpush1.msra.mxu0 0.0
    %1691 = vmatprep.subr.mxu0 0.0
    %1692 = vmatpush1.msra.mxu0 0.0
    %1693 = vmatprep.mubr.f32.mxu0 0.0
    %1694 = vmatmul.mubr.f32.gmra.mrb[0].mxu0 %v1627
    %v1695 = vpop.f32.mrb[0].mxu0
    %v1696 = vadd.f32 %v1621, %v1695
    %v1697 = vpop.f32.mrb[0].mxu0
    %1698 = vdwg.mxu0
    %v1699 = vadd.f32 %v1696, %v903
    %v1700 = vxor.u32 %v1699, 2147483648
    %v1701 = vmul.f32 %v1700, 1.442695
    %v1702 = vpow.pop %v1701
    %v1703 = vadd.f32 %v1702, 1.0
    %v1704 = vrcp.pop %v1703
    %v1705 = vmul.f32 1.0, %v1704
    %v1706 = vtanh.pop %v1699
    %v1707 = vmul.f32 %v1705, %v923
    %1709 = vrot.lane.b32.xlu0 %v1706, 64
    %v1710 = vpop.permute.xlu0 %1709
    %v1712 = vmul.f32 %v1705, %v1710
    %1714 = vrot.lane.b32.xlu0 %v1712, 32
    %v1715 = vpop.permute.xlu0 %1714
    %v1717 = vadd.f32 %v1707, %v1715
    %v1718 = vtanh.pop %v1717
    %1720 = vrot.lane.b32.xlu0 %v1718, 64
    %v1721 = vpop.permute.xlu0 %1720
    %v1723 = vmul.f32 %v1705, %v1721
    %1724 = vmatprep.subr.mxu0 0.0
    %1725 = vmatpush1.msra.mxu0 %v205
    %1726 = vmatprep.subr.mxu0 0.0
    %1727 = vmatpush1.msra.mxu0 %v206
    %1728 = vmatprep.subr.mxu0 0.0
    %1729 = vmatpush1.msra.mxu0 %v207
    %1730 = vmatprep.subr.mxu0 0.0
    %1731 = vmatpush1.msra.mxu0 %v208
    %1732 = vmatprep.subr.mxu0 0.0
    %1733 = vmatpush1.msra.mxu0 0.0
    %1734 = vmatprep.subr.mxu0 0.0
    %1735 = vmatpush1.msra.mxu0 0.0
    %1736 = vmatprep.subr.mxu0 0.0
    %1737 = vmatpush1.msra.mxu0 0.0
    %1738 = vmatprep.subr.mxu0 0.0
    %1739 = vmatpush1.msra.mxu0 0.0
    %1740 = vmatprep.subr.mxu0 0.0
    %1741 = vmatpush1.msra.mxu0 0.0
    %1742 = vmatprep.subr.mxu0 0.0
    %1743 = vmatpush1.msra.mxu0 0.0
    %1744 = vmatprep.subr.mxu0 0.0
    %1745 = vmatpush1.msra.mxu0 0.0
    %1746 = vmatprep.subr.mxu0 0.0
    %1747 = vmatpush1.msra.mxu0 0.0
    %1748 = vmatprep.subr.mxu0 0.0
    %1749 = vmatpush1.msra.mxu0 0.0
    %1750 = vmatprep.subr.mxu0 0.0
    %1751 = vmatpush1.msra.mxu0 0.0
    %1752 = vmatprep.subr.mxu0 0.0
    %1753 = vmatpush1.msra.mxu0 0.0
    %1754 = vmatprep.subr.mxu0 0.0
    %1755 = vmatpush1.msra.mxu0 0.0
    %1756 = vmatprep.subr.mxu0 0.0
    %1757 = vmatpush1.msra.mxu0 0.0
    %1758 = vmatprep.subr.mxu0 0.0
    %1759 = vmatpush1.msra.mxu0 0.0
    %1760 = vmatprep.subr.mxu0 0.0
    %1761 = vmatpush1.msra.mxu0 0.0
    %1762 = vmatprep.subr.mxu0 0.0
    %1763 = vmatpush1.msra.mxu0 0.0
    %1764 = vmatprep.subr.mxu0 0.0
    %1765 = vmatpush1.msra.mxu0 0.0
    %1766 = vmatprep.subr.mxu0 0.0
    %1767 = vmatpush1.msra.mxu0 0.0
    %1768 = vmatprep.subr.mxu0 0.0
    %1769 = vmatpush1.msra.mxu0 0.0
    %1770 = vmatprep.subr.mxu0 0.0
    %1771 = vmatpush1.msra.mxu0 0.0
    %1772 = vmatprep.subr.mxu0 0.0
    %1773 = vmatpush1.msra.mxu0 0.0
    %1774 = vmatprep.subr.mxu0 0.0
    %1775 = vmatpush1.msra.mxu0 0.0
    %1776 = vmatprep.subr.mxu0 0.0
    %1777 = vmatpush1.msra.mxu0 0.0
    %1778 = vmatprep.subr.mxu0 0.0
    %1779 = vmatpush1.msra.mxu0 0.0
    %1780 = vmatprep.subr.mxu0 0.0
    %1781 = vmatpush1.msra.mxu0 0.0
    %1782 = vmatprep.subr.mxu0 0.0
    %1783 = vmatpush1.msra.mxu0 0.0
    %1784 = vmatprep.subr.mxu0 0.0
    %1785 = vmatpush1.msra.mxu0 0.0
    %1786 = vmatprep.subr.mxu0 0.0
    %1787 = vmatpush1.msra.mxu0 0.0
    %1788 = vmatprep.mubr.f32.mxu0 0.0
    %1789 = vmatmul.mubr.f32.gmra.mrb[0].mxu0 %v1627
    %v1790 = vpop.f32.mrb[0].mxu0
    %v1791 = vadd.f32 0.0, %v1790
    %v1792 = vpop.f32.mrb[0].mxu0
    %1793 = vdwg.mxu0
    %1795 = vrot.lane.b32.xlu0 %v1269, 32
    %v1796 = vpop.permute.xlu0 %1795
    %v1797 = vsel %vm226, %v1796, 0
    %1799 = vmatprep.subr.mxu0 0.0
    %1800 = vmatpush1.msra.mxu0 %v189
    %1801 = vmatprep.subr.mxu0 0.0
    %1802 = vmatpush1.msra.mxu0 %v190
    %1803 = vmatprep.subr.mxu0 0.0
    %1804 = vmatpush1.msra.mxu0 %v191
    %1805 = vmatprep.subr.mxu0 0.0
    %1806 = vmatpush1.msra.mxu0 %v192
    %1807 = vmatprep.subr.mxu0 0.0
    %1808 = vmatpush1.msra.mxu0 0.0
    %1809 = vmatprep.subr.mxu0 0.0
    %1810 = vmatpush1.msra.mxu0 0.0
    %1811 = vmatprep.subr.mxu0 0.0
    %1812 = vmatpush1.msra.mxu0 0.0
    %1813 = vmatprep.subr.mxu0 0.0
    %1814 = vmatpush1.msra.mxu0 0.0
    %1815 = vmatprep.subr.mxu0 0.0
    %1816 = vmatpush1.msra.mxu0 0.0
    %1817 = vmatprep.subr.mxu0 0.0
    %1818 = vmatpush1.msra.mxu0 0.0
    %1819 = vmatprep.subr.mxu0 0.0
    %1820 = vmatpush1.msra.mxu0 0.0
    %1821 = vmatprep.subr.mxu0 0.0
    %1822 = vmatpush1.msra.mxu0 0.0
    %1823 = vmatprep.subr.mxu0 0.0
    %1824 = vmatpush1.msra.mxu0 0.0
    %1825 = vmatprep.subr.mxu0 0.0
    %1826 = vmatpush1.msra.mxu0 0.0
    %1827 = vmatprep.subr.mxu0 0.0
    %1828 = vmatpush1.msra.mxu0 0.0
    %1829 = vmatprep.subr.mxu0 0.0
    %1830 = vmatpush1.msra.mxu0 0.0
    %1831 = vmatprep.subr.mxu0 0.0
    %1832 = vmatpush1.msra.mxu0 0.0
    %1833 = vmatprep.subr.mxu0 0.0
    %1834 = vmatpush1.msra.mxu0 0.0
    %1835 = vmatprep.subr.mxu0 0.0
    %1836 = vmatpush1.msra.mxu0 0.0
    %1837 = vmatprep.subr.mxu0 0.0
    %1838 = vmatpush1.msra.mxu0 0.0
    %1839 = vmatprep.subr.mxu0 0.0
    %1840 = vmatpush1.msra.mxu0 0.0
    %1841 = vmatprep.subr.mxu0 0.0
    %1842 = vmatpush1.msra.mxu0 0.0
    %1843 = vmatprep.subr.mxu0 0.0
    %1844 = vmatpush1.msra.mxu0 0.0
    %1845 = vmatprep.subr.mxu0 0.0
    %1846 = vmatpush1.msra.mxu0 0.0
    %1847 = vmatprep.subr.mxu0 0.0
    %1848 = vmatpush1.msra.mxu0 0.0
    %1849 = vmatprep.subr.mxu0 0.0
    %1850 = vmatpush1.msra.mxu0 0.0
    %1851 = vmatprep.subr.mxu0 0.0
    %1852 = vmatpush1.msra.mxu0 0.0
    %1853 = vmatprep.subr.mxu0 0.0
    %1854 = vmatpush1.msra.mxu0 0.0
    %1855 = vmatprep.subr.mxu0 0.0
    %1856 = vmatpush1.msra.mxu0 0.0
    %1857 = vmatprep.subr.mxu0 0.0
    %1858 = vmatpush1.msra.mxu0 0.0
    %1859 = vmatprep.subr.mxu0 0.0
    %1860 = vmatpush1.msra.mxu0 0.0
    %1861 = vmatprep.subr.mxu0 0.0
    %1862 = vmatpush1.msra.mxu0 0.0
    %1863 = vmatprep.mubr.f32.mxu0 0.0
    %1864 = vmatmul.mubr.f32.gmra.mrb[0].mxu0 %v1797
    %v1865 = vpop.f32.mrb[0].mxu0
    %v1866 = vadd.f32 %v1791, %v1865
    %v1867 = vpop.f32.mrb[0].mxu0
    %1868 = vdwg.mxu0
    %v1869 = vadd.f32 %v1866, %v558
    %v1870 = vxor.u32 %v1869, 2147483648
    %v1871 = vmul.f32 %v1870, 1.442695
    %v1872 = vpow.pop %v1871
    %v1873 = vadd.f32 %v1872, 1.0
    %v1874 = vrcp.pop %v1873
    %v1875 = vmul.f32 1.0, %v1874
    %v1876 = vtanh.pop %v1869
    %v1877 = vmul.f32 %v1875, %v1093
    %1879 = vrot.lane.b32.xlu0 %v1876, 64
    %v1880 = vpop.permute.xlu0 %1879
    %v1882 = vmul.f32 %v1875, %v1880
    %1884 = vrot.lane.b32.xlu0 %v1882, 32
    %v1885 = vpop.permute.xlu0 %1884
    %v1887 = vadd.f32 %v1877, %v1885
    %v1888 = vtanh.pop %v1887
    %1890 = vrot.lane.b32.xlu0 %v1888, 64
    %v1891 = vpop.permute.xlu0 %1890
    %v1893 = vmul.f32 %v1875, %v1891
    %1894 = vmatprep.subr.mxu0 0.0
    %1895 = vmatpush1.msra.mxu0 %v201
    %1896 = vmatprep.subr.mxu0 0.0
    %1897 = vmatpush1.msra.mxu0 %v202
    %1898 = vmatprep.subr.mxu0 0.0
    %1899 = vmatpush1.msra.mxu0 %v203
    %1900 = vmatprep.subr.mxu0 0.0
    %1901 = vmatpush1.msra.mxu0 %v204
    %1902 = vmatprep.subr.mxu0 0.0
    %1903 = vmatpush1.msra.mxu0 0.0
    %1904 = vmatprep.subr.mxu0 0.0
    %1905 = vmatpush1.msra.mxu0 0.0
    %1906 = vmatprep.subr.mxu0 0.0
    %1907 = vmatpush1.msra.mxu0 0.0
    %1908 = vmatprep.subr.mxu0 0.0
    %1909 = vmatpush1.msra.mxu0 0.0
    %1910 = vmatprep.subr.mxu0 0.0
    %1911 = vmatpush1.msra.mxu0 0.0
    %1912 = vmatprep.subr.mxu0 0.0
    %1913 = vmatpush1.msra.mxu0 0.0
    %1914 = vmatprep.subr.mxu0 0.0
    %1915 = vmatpush1.msra.mxu0 0.0
    %1916 = vmatprep.subr.mxu0 0.0
    %1917 = vmatpush1.msra.mxu0 0.0
    %1918 = vmatprep.subr.mxu0 0.0
    %1919 = vmatpush1.msra.mxu0 0.0
    %1920 = vmatprep.subr.mxu0 0.0
    %1921 = vmatpush1.msra.mxu0 0.0
    %1922 = vmatprep.subr.mxu0 0.0
    %1923 = vmatpush1.msra.mxu0 0.0
    %1924 = vmatprep.subr.mxu0 0.0
    %1925 = vmatpush1.msra.mxu0 0.0
    %1926 = vmatprep.subr.mxu0 0.0
    %1927 = vmatpush1.msra.mxu0 0.0
    %1928 = vmatprep.subr.mxu0 0.0
    %1929 = vmatpush1.msra.mxu0 0.0
    %1930 = vmatprep.subr.mxu0 0.0
    %1931 = vmatpush1.msra.mxu0 0.0
    %1932 = vmatprep.subr.mxu0 0.0
    %1933 = vmatpush1.msra.mxu0 0.0
    %1934 = vmatprep.subr.mxu0 0.0
    %1935 = vmatpush1.msra.mxu0 0.0
    %1936 = vmatprep.subr.mxu0 0.0
    %1937 = vmatpush1.msra.mxu0 0.0
    %1938 = vmatprep.subr.mxu0 0.0
    %1939 = vmatpush1.msra.mxu0 0.0
    %1940 = vmatprep.subr.mxu0 0.0
    %1941 = vmatpush1.msra.mxu0 0.0
    %1942 = vmatprep.subr.mxu0 0.0
    %1943 = vmatpush1.msra.mxu0 0.0
    %1944 = vmatprep.subr.mxu0 0.0
    %1945 = vmatpush1.msra.mxu0 0.0
    %1946 = vmatprep.subr.mxu0 0.0
    %1947 = vmatpush1.msra.mxu0 0.0
    %1948 = vmatprep.subr.mxu0 0.0
    %1949 = vmatpush1.msra.mxu0 0.0
    %1950 = vmatprep.subr.mxu0 0.0
    %1951 = vmatpush1.msra.mxu0 0.0
    %1952 = vmatprep.subr.mxu0 0.0
    %1953 = vmatpush1.msra.mxu0 0.0
    %1954 = vmatprep.subr.mxu0 0.0
    %1955 = vmatpush1.msra.mxu0 0.0
    %1956 = vmatprep.subr.mxu0 0.0
    %1957 = vmatpush1.msra.mxu0 0.0
    %1958 = vmatprep.mubr.f32.mxu0 0.0
    %1959 = vmatmul.mubr.f32.gmra.mrb[0].mxu0 %v1797
    %v1960 = vpop.f32.mrb[0].mxu0
    %v1961 = vadd.f32 0.0, %v1960
    %v1962 = vpop.f32.mrb[0].mxu0
    %1963 = vdwg.mxu0
    %v1964 = vrot.slane %v185, 3
    %v1965 = vrot.slane %v186, 2
    %v1966 = vsel %vm303, %v1965, %v1964
    %v1967 = vsel %vm305, %v1966, 0
    %1969 = vmatprep.subr.mxu0 0.0
    %1970 = vmatpush1.msra.mxu0 %v187
    %1971 = vmatprep.subr.mxu0 0.0
    %1972 = vmatpush1.msra.mxu0 %v188
    %1973 = vmatprep.subr.mxu0 0.0
    %1974 = vmatpush1.msra.mxu0 0.0
    %1975 = vmatprep.subr.mxu0 0.0
    %1976 = vmatpush1.msra.mxu0 0.0
    %1977 = vmatprep.subr.mxu0 0.0
    %1978 = vmatpush1.msra.mxu0 0.0
    %1979 = vmatprep.subr.mxu0 0.0
    %1980 = vmatpush1.msra.mxu0 0.0
    %1981 = vmatprep.subr.mxu0 0.0
    %1982 = vmatpush1.msra.mxu0 0.0
    %1983 = vmatprep.subr.mxu0 0.0
    %1984 = vmatpush1.msra.mxu0 0.0
    %1985 = vmatprep.subr.mxu0 0.0
    %1986 = vmatpush1.msra.mxu0 0.0
    %1987 = vmatprep.subr.mxu0 0.0
    %1988 = vmatpush1.msra.mxu0 0.0
    %1989 = vmatprep.subr.mxu0 0.0
    %1990 = vmatpush1.msra.mxu0 0.0
    %1991 = vmatprep.subr.mxu0 0.0
    %1992 = vmatpush1.msra.mxu0 0.0
    %1993 = vmatprep.subr.mxu0 0.0
    %1994 = vmatpush1.msra.mxu0 0.0
    %1995 = vmatprep.subr.mxu0 0.0
    %1996 = vmatpush1.msra.mxu0 0.0
    %1997 = vmatprep.subr.mxu0 0.0
    %1998 = vmatpush1.msra.mxu0 0.0
    %1999 = vmatprep.subr.mxu0 0.0
    %2000 = vmatpush1.msra.mxu0 0.0
    %2001 = vmatprep.subr.mxu0 0.0
    %2002 = vmatpush1.msra.mxu0 0.0
    %2003 = vmatprep.subr.mxu0 0.0
    %2004 = vmatpush1.msra.mxu0 0.0
    %2005 = vmatprep.subr.mxu0 0.0
    %2006 = vmatpush1.msra.mxu0 0.0
    %2007 = vmatprep.subr.mxu0 0.0
    %2008 = vmatpush1.msra.mxu0 0.0
    %2009 = vmatprep.subr.mxu0 0.0
    %2010 = vmatpush1.msra.mxu0 0.0
    %2011 = vmatprep.subr.mxu0 0.0
    %2012 = vmatpush1.msra.mxu0 0.0
    %2013 = vmatprep.subr.mxu0 0.0
    %2014 = vmatpush1.msra.mxu0 0.0
    %2015 = vmatprep.subr.mxu0 0.0
    %2016 = vmatpush1.msra.mxu0 0.0
    %2017 = vmatprep.subr.mxu0 0.0
    %2018 = vmatpush1.msra.mxu0 0.0
    %2019 = vmatprep.subr.mxu0 0.0
    %2020 = vmatpush1.msra.mxu0 0.0
    %2021 = vmatprep.subr.mxu0 0.0
    %2022 = vmatpush1.msra.mxu0 0.0
    %2023 = vmatprep.subr.mxu0 0.0
    %2024 = vmatpush1.msra.mxu0 0.0
    %2025 = vmatprep.subr.mxu0 0.0
    %2026 = vmatpush1.msra.mxu0 0.0
    %2027 = vmatprep.subr.mxu0 0.0
    %2028 = vmatpush1.msra.mxu0 0.0
    %2029 = vmatprep.subr.mxu0 0.0
    %2030 = vmatpush1.msra.mxu0 0.0
    %2031 = vmatprep.subr.mxu0 0.0
    %2032 = vmatpush1.msra.mxu0 0.0
    %2033 = vmatprep.mubr.f32.mxu0 0.0
    %2034 = vmatmul.mubr.f32.gmra.mrb[0].mxu0 %v1967
    %v2035 = vpop.f32.mrb[0].mxu0
    %v2036 = vadd.f32 %v1961, %v2035
    %v2037 = vpop.f32.mrb[0].mxu0
    %2038 = vdwg.mxu0
    %v2039 = vadd.f32 %v2036, %v382
    %v2040 = vxor.u32 %v2039, 2147483648
    %v2041 = vmul.f32 %v2040, 1.442695
    %v2042 = vpow.pop %v2041
    %v2043 = vadd.f32 %v2042, 1.0
    %v2044 = vrcp.pop %v2043
    %v2045 = vmul.f32 1.0, %v2044
    %v2046 = vtanh.pop %v2039
    %v2047 = vmul.f32 %v2045, %v1263
    %2049 = vrot.lane.b32.xlu0 %v2046, 64
    %v2050 = vpop.permute.xlu0 %2049
    %v2052 = vmul.f32 %v2045, %v2050
    %2054 = vrot.lane.b32.xlu0 %v2052, 32
    %v2055 = vpop.permute.xlu0 %2054
    %v2057 = vadd.f32 %v2047, %v2055
    %v2058 = vtanh.pop %v2057
    %2060 = vrot.lane.b32.xlu0 %v2058, 64
    %v2061 = vpop.permute.xlu0 %2060
    %v2063 = vmul.f32 %v2045, %v2061
    %2064 = vmatprep.subr.mxu0 0.0
    %2065 = vmatpush1.msra.mxu0 %v213
    %2066 = vmatprep.subr.mxu0 0.0
    %2067 = vmatpush1.msra.mxu0 %v214
    %2068 = vmatprep.subr.mxu0 0.0
    %2069 = vmatpush1.msra.mxu0 %v215
    %2070 = vmatprep.subr.mxu0 0.0
    %2071 = vmatpush1.msra.mxu0 %v216
    %2072 = vmatprep.subr.mxu0 0.0
    %2073 = vmatpush1.msra.mxu0 0.0
    %2074 = vmatprep.subr.mxu0 0.0
    %2075 = vmatpush1.msra.mxu0 0.0
    %2076 = vmatprep.subr.mxu0 0.0
    %2077 = vmatpush1.msra.mxu0 0.0
    %2078 = vmatprep.subr.mxu0 0.0
    %2079 = vmatpush1.msra.mxu0 0.0
    %2080 = vmatprep.subr.mxu0 0.0
    %2081 = vmatpush1.msra.mxu0 0.0
    %2082 = vmatprep.subr.mxu0 0.0
    %2083 = vmatpush1.msra.mxu0 0.0
    %2084 = vmatprep.subr.mxu0 0.0
    %2085 = vmatpush1.msra.mxu0 0.0
    %2086 = vmatprep.subr.mxu0 0.0
    %2087 = vmatpush1.msra.mxu0 0.0
    %2088 = vmatprep.subr.mxu0 0.0
    %2089 = vmatpush1.msra.mxu0 0.0
    %2090 = vmatprep.subr.mxu0 0.0
    %2091 = vmatpush1.msra.mxu0 0.0
    %2092 = vmatprep.subr.mxu0 0.0
    %2093 = vmatpush1.msra.mxu0 0.0
    %2094 = vmatprep.subr.mxu0 0.0
    %2095 = vmatpush1.msra.mxu0 0.0
    %2096 = vmatprep.subr.mxu0 0.0
    %2097 = vmatpush1.msra.mxu0 0.0
    %2098 = vmatprep.subr.mxu0 0.0
    %2099 = vmatpush1.msra.mxu0 0.0
    %2100 = vmatprep.subr.mxu0 0.0
    %2101 = vmatpush1.msra.mxu0 0.0
    %2102 = vmatprep.subr.mxu0 0.0
    %2103 = vmatpush1.msra.mxu0 0.0
    %2104 = vmatprep.subr.mxu0 0.0
    %2105 = vmatpush1.msra.mxu0 0.0
    %2106 = vmatprep.subr.mxu0 0.0
    %2107 = vmatpush1.msra.mxu0 0.0
    %2108 = vmatprep.subr.mxu0 0.0
    %2109 = vmatpush1.msra.mxu0 0.0
    %2110 = vmatprep.subr.mxu0 0.0
    %2111 = vmatpush1.msra.mxu0 0.0
    %2112 = vmatprep.subr.mxu0 0.0
    %2113 = vmatpush1.msra.mxu0 0.0
    %2114 = vmatprep.subr.mxu0 0.0
    %2115 = vmatpush1.msra.mxu0 0.0
    %2116 = vmatprep.subr.mxu0 0.0
    %2117 = vmatpush1.msra.mxu0 0.0
    %2118 = vmatprep.subr.mxu0 0.0
    %2119 = vmatpush1.msra.mxu0 0.0
    %2120 = vmatprep.subr.mxu0 0.0
    %2121 = vmatpush1.msra.mxu0 0.0
    %2122 = vmatprep.subr.mxu0 0.0
    %2123 = vmatpush1.msra.mxu0 0.0
    %2124 = vmatprep.subr.mxu0 0.0
    %2125 = vmatpush1.msra.mxu0 0.0
    %2126 = vmatprep.subr.mxu0 0.0
    %2127 = vmatpush1.msra.mxu0 0.0
    %2128 = vmatprep.mubr.f32.mxu0 0.0
    %2129 = vmatmul.mubr.f32.gmra.mrb[0].mxu0 %v1455
    %v2130 = vpop.f32.mrb[0].mxu0
    %v2131 = vadd.f32 0.0, %v2130
    %v2132 = vpop.f32.mrb[0].mxu0
    %2133 = vdwg.mxu0
    %2135 = vrot.lane.b32.xlu0 %v1723, 32
    %v2136 = vpop.permute.xlu0 %2135
    %v2137 = vsel %vm226, %v2136, 0
    %2139 = vmatprep.subr.mxu0 0.0
    %2140 = vmatpush1.msra.mxu0 %v197
    %2141 = vmatprep.subr.mxu0 0.0
    %2142 = vmatpush1.msra.mxu0 %v198
    %2143 = vmatprep.subr.mxu0 0.0
    %2144 = vmatpush1.msra.mxu0 %v199
    %2145 = vmatprep.subr.mxu0 0.0
    %2146 = vmatpush1.msra.mxu0 %v200
    %2147 = vmatprep.subr.mxu0 0.0
    %2148 = vmatpush1.msra.mxu0 0.0
    %2149 = vmatprep.subr.mxu0 0.0
    %2150 = vmatpush1.msra.mxu0 0.0
    %2151 = vmatprep.subr.mxu0 0.0
    %2152 = vmatpush1.msra.mxu0 0.0
    %2153 = vmatprep.subr.mxu0 0.0
    %2154 = vmatpush1.msra.mxu0 0.0
    %2155 = vmatprep.subr.mxu0 0.0
    %2156 = vmatpush1.msra.mxu0 0.0
    %2157 = vmatprep.subr.mxu0 0.0
    %2158 = vmatpush1.msra.mxu0 0.0
    %2159 = vmatprep.subr.mxu0 0.0
    %2160 = vmatpush1.msra.mxu0 0.0
    %2161 = vmatprep.subr.mxu0 0.0
    %2162 = vmatpush1.msra.mxu0 0.0
    %2163 = vmatprep.subr.mxu0 0.0
    %2164 = vmatpush1.msra.mxu0 0.0
    %2165 = vmatprep.subr.mxu0 0.0
    %2166 = vmatpush1.msra.mxu0 0.0
    %2167 = vmatprep.subr.mxu0 0.0
    %2168 = vmatpush1.msra.mxu0 0.0
    %2169 = vmatprep.subr.mxu0 0.0
    %2170 = vmatpush1.msra.mxu0 0.0
    %2171 = vmatprep.subr.mxu0 0.0
    %2172 = vmatpush1.msra.mxu0 0.0
    %2173 = vmatprep.subr.mxu0 0.0
    %2174 = vmatpush1.msra.mxu0 0.0
    %2175 = vmatprep.subr.mxu0 0.0
    %2176 = vmatpush1.msra.mxu0 0.0
    %2177 = vmatprep.subr.mxu0 0.0
    %2178 = vmatpush1.msra.mxu0 0.0
    %2179 = vmatprep.subr.mxu0 0.0
    %2180 = vmatpush1.msra.mxu0 0.0
    %2181 = vmatprep.subr.mxu0 0.0
    %2182 = vmatpush1.msra.mxu0 0.0
    %2183 = vmatprep.subr.mxu0 0.0
    %2184 = vmatpush1.msra.mxu0 0.0
    %2185 = vmatprep.subr.mxu0 0.0
    %2186 = vmatpush1.msra.mxu0 0.0
    %2187 = vmatprep.subr.mxu0 0.0
    %2188 = vmatpush1.msra.mxu0 0.0
    %2189 = vmatprep.subr.mxu0 0.0
    %2190 = vmatpush1.msra.mxu0 0.0
    %2191 = vmatprep.subr.mxu0 0.0
    %2192 = vmatpush1.msra.mxu0 0.0
    %2193 = vmatprep.subr.mxu0 0.0
    %2194 = vmatpush1.msra.mxu0 0.0
    %2195 = vmatprep.subr.mxu0 0.0
    %2196 = vmatpush1.msra.mxu0 0.0
    %2197 = vmatprep.subr.mxu0 0.0
    %2198 = vmatpush1.msra.mxu0 0.0
    %2199 = vmatprep.subr.mxu0 0.0
    %2200 = vmatpush1.msra.mxu0 0.0
    %2201 = vmatprep.subr.mxu0 0.0
    %2202 = vmatpush1.msra.mxu0 0.0
    %2203 = vmatprep.mubr.f32.mxu0 0.0
    %2204 = vmatmul.mubr.f32.gmra.mrb[0].mxu0 %v2137
    %v2205 = vpop.f32.mrb[0].mxu0
    %v2206 = vadd.f32 %v2131, %v2205
    %v2207 = vpop.f32.mrb[0].mxu0
    %2208 = vdwg.mxu0
    %v2209 = vadd.f32 %v2206, %v1419
    %v2210 = vxor.u32 %v2209, 2147483648
    %v2211 = vmul.f32 %v2210, 1.442695
    %v2212 = vpow.pop %v2211
    %v2213 = vadd.f32 %v2212, 1.0
    %v2214 = vrcp.pop %v2213
    %v2215 = vmul.f32 1.0, %v2214
    %v2216 = vtanh.pop %v2209
    %v2217 = vmul.f32 %v2215, %v1439
    %2219 = vrot.lane.b32.xlu0 %v2216, 64
    %v2220 = vpop.permute.xlu0 %2219
    %v2222 = vmul.f32 %v2215, %v2220
    %2224 = vrot.lane.b32.xlu0 %v2222, 32
    %v2225 = vpop.permute.xlu0 %2224
    %v2227 = vadd.f32 %v2217, %v2225
    %v2228 = vtanh.pop %v2227
    %2230 = vrot.lane.b32.xlu0 %v2228, 64
    %v2231 = vpop.permute.xlu0 %2230
    %v2233 = vmul.f32 %v2215, %v2231
    %2235 = vrot.lane.b32.xlu0 %v2233, 32
    %v2236 = vpop.permute.xlu0 %2235
    %v2237 = vsel %vm226, %v2236, 0
    %2239 = vmatprep.subr.mxu0 0.0
    %2240 = vmatpush1.msra.mxu0 %v221
    %2241 = vmatprep.subr.mxu0 0.0
    %2242 = vmatpush1.msra.mxu0 %v222
    %2243 = vmatprep.subr.mxu0 0.0
    %2244 = vmatpush1.msra.mxu0 %v223
    %2245 = vmatprep.subr.mxu0 0.0
    %2246 = vmatpush1.msra.mxu0 %v224
    %2247 = vmatprep.subr.mxu0 0.0
    %2248 = vmatpush1.msra.mxu0 0.0
    %2249 = vmatprep.subr.mxu0 0.0
    %2250 = vmatpush1.msra.mxu0 0.0
    %2251 = vmatprep.subr.mxu0 0.0
    %2252 = vmatpush1.msra.mxu0 0.0
    %2253 = vmatprep.subr.mxu0 0.0
    %2254 = vmatpush1.msra.mxu0 0.0
    %2255 = vmatprep.subr.mxu0 0.0
    %2256 = vmatpush1.msra.mxu0 0.0
    %2257 = vmatprep.subr.mxu0 0.0
    %2258 = vmatpush1.msra.mxu0 0.0
    %2259 = vmatprep.subr.mxu0 0.0
    %2260 = vmatpush1.msra.mxu0 0.0
    %2261 = vmatprep.subr.mxu0 0.0
    %2262 = vmatpush1.msra.mxu0 0.0
    %2263 = vmatprep.subr.mxu0 0.0
    %2264 = vmatpush1.msra.mxu0 0.0
    %2265 = vmatprep.subr.mxu0 0.0
    %2266 = vmatpush1.msra.mxu0 0.0
    %2267 = vmatprep.subr.mxu0 0.0
    %2268 = vmatpush1.msra.mxu0 0.0
    %2269 = vmatprep.subr.mxu0 0.0
    %2270 = vmatpush1.msra.mxu0 0.0
    %2271 = vmatprep.subr.mxu0 0.0
    %2272 = vmatpush1.msra.mxu0 0.0
    %2273 = vmatprep.subr.mxu0 0.0
    %2274 = vmatpush1.msra.mxu0 0.0
    %2275 = vmatprep.subr.mxu0 0.0
    %2276 = vmatpush1.msra.mxu0 0.0
    %2277 = vmatprep.subr.mxu0 0.0
    %2278 = vmatpush1.msra.mxu0 0.0
    %2279 = vmatprep.subr.mxu0 0.0
    %2280 = vmatpush1.msra.mxu0 0.0
    %2281 = vmatprep.subr.mxu0 0.0
    %2282 = vmatpush1.msra.mxu0 0.0
    %2283 = vmatprep.subr.mxu0 0.0
    %2284 = vmatpush1.msra.mxu0 0.0
    %2285 = vmatprep.subr.mxu0 0.0
    %2286 = vmatpush1.msra.mxu0 0.0
    %2287 = vmatprep.subr.mxu0 0.0
    %2288 = vmatpush1.msra.mxu0 0.0
    %2289 = vmatprep.subr.mxu0 0.0
    %2290 = vmatpush1.msra.mxu0 0.0
    %2291 = vmatprep.subr.mxu0 0.0
    %2292 = vmatpush1.msra.mxu0 0.0
    %2293 = vmatprep.subr.mxu0 0.0
    %2294 = vmatpush1.msra.mxu0 0.0
    %2295 = vmatprep.subr.mxu0 0.0
    %2296 = vmatpush1.msra.mxu0 0.0
    %2297 = vmatprep.subr.mxu0 0.0
    %2298 = vmatpush1.msra.mxu0 0.0
    %2299 = vmatprep.subr.mxu0 0.0
    %2300 = vmatpush1.msra.mxu0 0.0
    %2301 = vmatprep.subr.mxu0 0.0
    %2302 = vmatpush1.msra.mxu0 0.0
    %2303 = vmatprep.mubr.f32.mxu0 0.0
    %2304 = vmatmul.mubr.f32.gmra.mrb[0].mxu0 %v2237
    %v2305 = vpop.f32.mrb[0].mxu0
    %v2306 = vadd.f32 %v1450, %v2305
    %v2307 = vpop.f32.mrb[0].mxu0
    %2308 = vdwg.mxu0
    %v2311 = vunpack.c.l.s4 1966171168
    %v2312 = vunpack.c.0.s8 %v2311
    %v2313 = vlaneseq
    %v2314 = vshrl.u32 %v2313, 7
    %v2315 = vsub.s32 %v2312, %v2314
    %v2316 = vrot.slane %v2306, %v2315
    %v2317 = vcombine.high %v2316, %v2316
    %v2319 = vunpack.c.l.s4 1966171168
    %v2320 = vunpack.c.0.s8 %v2319
    %v2321 = vlaneseq
    %v2322 = vshrl.u32 %v2321, 7
    %v2323 = vsub.s32 %v2320, %v2322
    %v2324 = vrot.slane %v2316, %v2323
    %v2326 = vunpack.c.l.s4 1966171168
    %v2327 = vunpack.c.0.s8 %v2326
    %v2328 = vlaneseq
    %v2329 = vshrl.u32 %v2328, 7
    %v2330 = vsub.s32 %v2327, %v2329
    %v2331 = vrot.slane %v2317, %v2330
    %2334 = vst [vmem:[#allocation19 + $0x1] sm:$0x1] %v2324
    %2335 = vst [vmem:[#allocation19 + $0x9] sm:$0x1] %v2331
    %2336 = vmatprep.subr.mxu0 0.0
    %2337 = vmatpush1.msra.mxu0 %v209
    %2338 = vmatprep.subr.mxu0 0.0
    %2339 = vmatpush1.msra.mxu0 %v210
    %2340 = vmatprep.subr.mxu0 0.0
    %2341 = vmatpush1.msra.mxu0 %v211
    %2342 = vmatprep.subr.mxu0 0.0
    %2343 = vmatpush1.msra.mxu0 %v212
    %2344 = vmatprep.subr.mxu0 0.0
    %2345 = vmatpush1.msra.mxu0 0.0
    %2346 = vmatprep.subr.mxu0 0.0
    %2347 = vmatpush1.msra.mxu0 0.0
    %2348 = vmatprep.subr.mxu0 0.0
    %2349 = vmatpush1.msra.mxu0 0.0
    %2350 = vmatprep.subr.mxu0 0.0
    %2351 = vmatpush1.msra.mxu0 0.0
    %2352 = vmatprep.subr.mxu0 0.0
    %2353 = vmatpush1.msra.mxu0 0.0
    %2354 = vmatprep.subr.mxu0 0.0
    %2355 = vmatpush1.msra.mxu0 0.0
    %2356 = vmatprep.subr.mxu0 0.0
    %2357 = vmatpush1.msra.mxu0 0.0
    %2358 = vmatprep.subr.mxu0 0.0
    %2359 = vmatpush1.msra.mxu0 0.0
    %2360 = vmatprep.subr.mxu0 0.0
    %2361 = vmatpush1.msra.mxu0 0.0
    %2362 = vmatprep.subr.mxu0 0.0
    %2363 = vmatpush1.msra.mxu0 0.0
    %2364 = vmatprep.subr.mxu0 0.0
    %2365 = vmatpush1.msra.mxu0 0.0
    %2366 = vmatprep.subr.mxu0 0.0
    %2367 = vmatpush1.msra.mxu0 0.0
    %2368 = vmatprep.subr.mxu0 0.0
    %2369 = vmatpush1.msra.mxu0 0.0
    %2370 = vmatprep.subr.mxu0 0.0
    %2371 = vmatpush1.msra.mxu0 0.0
    %2372 = vmatprep.subr.mxu0 0.0
    %2373 = vmatpush1.msra.mxu0 0.0
    %2374 = vmatprep.subr.mxu0 0.0
    %2375 = vmatpush1.msra.mxu0 0.0
    %2376 = vmatprep.subr.mxu0 0.0
    %2377 = vmatpush1.msra.mxu0 0.0
    %2378 = vmatprep.subr.mxu0 0.0
    %2379 = vmatpush1.msra.mxu0 0.0
    %2380 = vmatprep.subr.mxu0 0.0
    %2381 = vmatpush1.msra.mxu0 0.0
    %2382 = vmatprep.subr.mxu0 0.0
    %2383 = vmatpush1.msra.mxu0 0.0
    %2384 = vmatprep.subr.mxu0 0.0
    %2385 = vmatpush1.msra.mxu0 0.0
    %2386 = vmatprep.subr.mxu0 0.0
    %2387 = vmatpush1.msra.mxu0 0.0
    %2388 = vmatprep.subr.mxu0 0.0
    %2389 = vmatpush1.msra.mxu0 0.0
    %2390 = vmatprep.subr.mxu0 0.0
    %2391 = vmatpush1.msra.mxu0 0.0
    %2392 = vmatprep.subr.mxu0 0.0
    %2393 = vmatpush1.msra.mxu0 0.0
    %2394 = vmatprep.subr.mxu0 0.0
    %2395 = vmatpush1.msra.mxu0 0.0
    %2396 = vmatprep.subr.mxu0 0.0
    %2397 = vmatpush1.msra.mxu0 0.0
    %2398 = vmatprep.subr.mxu0 0.0
    %2399 = vmatpush1.msra.mxu0 0.0
    %2400 = vmatprep.mubr.f32.mxu0 0.0
    %2401 = vmatmul.mubr.f32.gmra.mrb[0].mxu0 %v2137
    %v2402 = vpop.f32.mrb[0].mxu0
    %v2403 = vadd.f32 0.0, %v2402
    %v2404 = vpop.f32.mrb[0].mxu0
    %2405 = vdwg.mxu0
    %2407 = vrot.lane.b32.xlu0 %v1893, 32
    %v2408 = vpop.permute.xlu0 %2407
    %v2409 = vsel %vm226, %v2408, 0
    %2411 = vmatprep.subr.mxu0 0.0
    %2412 = vmatpush1.msra.mxu0 %v193
    %2413 = vmatprep.subr.mxu0 0.0
    %2414 = vmatpush1.msra.mxu0 %v194
    %2415 = vmatprep.subr.mxu0 0.0
    %2416 = vmatpush1.msra.mxu0 %v195
    %2417 = vmatprep.subr.mxu0 0.0
    %2418 = vmatpush1.msra.mxu0 %v196
    %2419 = vmatprep.subr.mxu0 0.0
    %2420 = vmatpush1.msra.mxu0 0.0
    %2421 = vmatprep.subr.mxu0 0.0
    %2422 = vmatpush1.msra.mxu0 0.0
    %2423 = vmatprep.subr.mxu0 0.0
    %2424 = vmatpush1.msra.mxu0 0.0
    %2425 = vmatprep.subr.mxu0 0.0
    %2426 = vmatpush1.msra.mxu0 0.0
    %2427 = vmatprep.subr.mxu0 0.0
    %2428 = vmatpush1.msra.mxu0 0.0
    %2429 = vmatprep.subr.mxu0 0.0
    %2430 = vmatpush1.msra.mxu0 0.0
    %2431 = vmatprep.subr.mxu0 0.0
    %2432 = vmatpush1.msra.mxu0 0.0
    %2433 = vmatprep.subr.mxu0 0.0
    %2434 = vmatpush1.msra.mxu0 0.0
    %2435 = vmatprep.subr.mxu0 0.0
    %2436 = vmatpush1.msra.mxu0 0.0
    %2437 = vmatprep.subr.mxu0 0.0
    %2438 = vmatpush1.msra.mxu0 0.0
    %2439 = vmatprep.subr.mxu0 0.0
    %2440 = vmatpush1.msra.mxu0 0.0
    %2441 = vmatprep.subr.mxu0 0.0
    %2442 = vmatpush1.msra.mxu0 0.0
    %2443 = vmatprep.subr.mxu0 0.0
    %2444 = vmatpush1.msra.mxu0 0.0
    %2445 = vmatprep.subr.mxu0 0.0
    %2446 = vmatpush1.msra.mxu0 0.0
    %2447 = vmatprep.subr.mxu0 0.0
    %2448 = vmatpush1.msra.mxu0 0.0
    %2449 = vmatprep.subr.mxu0 0.0
    %2450 = vmatpush1.msra.mxu0 0.0
    %2451 = vmatprep.subr.mxu0 0.0
    %2452 = vmatpush1.msra.mxu0 0.0
    %2453 = vmatprep.subr.mxu0 0.0
    %2454 = vmatpush1.msra.mxu0 0.0
    %2455 = vmatprep.subr.mxu0 0.0
    %2456 = vmatpush1.msra.mxu0 0.0
    %2457 = vmatprep.subr.mxu0 0.0
    %2458 = vmatpush1.msra.mxu0 0.0
    %2459 = vmatprep.subr.mxu0 0.0
    %2460 = vmatpush1.msra.mxu0 0.0
    %2461 = vmatprep.subr.mxu0 0.0
    %2462 = vmatpush1.msra.mxu0 0.0
    %2463 = vmatprep.subr.mxu0 0.0
    %2464 = vmatpush1.msra.mxu0 0.0
    %2465 = vmatprep.subr.mxu0 0.0
    %2466 = vmatpush1.msra.mxu0 0.0
    %2467 = vmatprep.subr.mxu0 0.0
    %2468 = vmatpush1.msra.mxu0 0.0
    %2469 = vmatprep.subr.mxu0 0.0
    %2470 = vmatpush1.msra.mxu0 0.0
    %2471 = vmatprep.subr.mxu0 0.0
    %2472 = vmatpush1.msra.mxu0 0.0
    %2473 = vmatprep.subr.mxu0 0.0
    %2474 = vmatpush1.msra.mxu0 0.0
    %2475 = vmatprep.mubr.f32.mxu0 0.0
    %2476 = vmatmul.mubr.f32.gmra.mrb[0].mxu0 %v2409
    %v2477 = vpop.f32.mrb[0].mxu0
    %v2478 = vadd.f32 %v2403, %v2477
    %v2479 = vpop.f32.mrb[0].mxu0
    %2480 = vdwg.mxu0
    %v2481 = vadd.f32 %v2478, %v903
    %v2482 = vxor.u32 %v2481, 2147483648
    %v2483 = vmul.f32 %v2482, 1.442695
    %v2484 = vpow.pop %v2483
    %v2485 = vadd.f32 %v2484, 1.0
    %v2486 = vrcp.pop %v2485
    %v2487 = vmul.f32 1.0, %v2486
    %v2488 = vtanh.pop %v2481
    %v2489 = vmul.f32 %v2487, %v1717
    %2491 = vrot.lane.b32.xlu0 %v2488, 64
    %v2492 = vpop.permute.xlu0 %2491
    %v2494 = vmul.f32 %v2487, %v2492
    %2496 = vrot.lane.b32.xlu0 %v2494, 32
    %v2497 = vpop.permute.xlu0 %2496
    %v2499 = vadd.f32 %v2489, %v2497
    %v2500 = vtanh.pop %v2499
    %2502 = vrot.lane.b32.xlu0 %v2500, 64
    %v2503 = vpop.permute.xlu0 %2502
    %v2505 = vmul.f32 %v2487, %v2503
    %2506 = vmatprep.subr.mxu0 0.0
    %2507 = vmatpush1.msra.mxu0 %v205
    %2508 = vmatprep.subr.mxu0 0.0
    %2509 = vmatpush1.msra.mxu0 %v206
    %2510 = vmatprep.subr.mxu0 0.0
    %2511 = vmatpush1.msra.mxu0 %v207
    %2512 = vmatprep.subr.mxu0 0.0
    %2513 = vmatpush1.msra.mxu0 %v208
    %2514 = vmatprep.subr.mxu0 0.0
    %2515 = vmatpush1.msra.mxu0 0.0
    %2516 = vmatprep.subr.mxu0 0.0
    %2517 = vmatpush1.msra.mxu0 0.0
    %2518 = vmatprep.subr.mxu0 0.0
    %2519 = vmatpush1.msra.mxu0 0.0
    %2520 = vmatprep.subr.mxu0 0.0
    %2521 = vmatpush1.msra.mxu0 0.0
    %2522 = vmatprep.subr.mxu0 0.0
    %2523 = vmatpush1.msra.mxu0 0.0
    %2524 = vmatprep.subr.mxu0 0.0
    %2525 = vmatpush1.msra.mxu0 0.0
    %2526 = vmatprep.subr.mxu0 0.0
    %2527 = vmatpush1.msra.mxu0 0.0
    %2528 = vmatprep.subr.mxu0 0.0
    %2529 = vmatpush1.msra.mxu0 0.0
    %2530 = vmatprep.subr.mxu0 0.0
    %2531 = vmatpush1.msra.mxu0 0.0
    %2532 = vmatprep.subr.mxu0 0.0
    %2533 = vmatpush1.msra.mxu0 0.0
    %2534 = vmatprep.subr.mxu0 0.0
    %2535 = vmatpush1.msra.mxu0 0.0
    %2536 = vmatprep.subr.mxu0 0.0
    %2537 = vmatpush1.msra.mxu0 0.0
    %2538 = vmatprep.subr.mxu0 0.0
    %2539 = vmatpush1.msra.mxu0 0.0
    %2540 = vmatprep.subr.mxu0 0.0
    %2541 = vmatpush1.msra.mxu0 0.0
    %2542 = vmatprep.subr.mxu0 0.0
    %2543 = vmatpush1.msra.mxu0 0.0
    %2544 = vmatprep.subr.mxu0 0.0
    %2545 = vmatpush1.msra.mxu0 0.0
    %2546 = vmatprep.subr.mxu0 0.0
    %2547 = vmatpush1.msra.mxu0 0.0
    %2548 = vmatprep.subr.mxu0 0.0
    %2549 = vmatpush1.msra.mxu0 0.0
    %2550 = vmatprep.subr.mxu0 0.0
    %2551 = vmatpush1.msra.mxu0 0.0
    %2552 = vmatprep.subr.mxu0 0.0
    %2553 = vmatpush1.msra.mxu0 0.0
    %2554 = vmatprep.subr.mxu0 0.0
    %2555 = vmatpush1.msra.mxu0 0.0
    %2556 = vmatprep.subr.mxu0 0.0
    %2557 = vmatpush1.msra.mxu0 0.0
    %2558 = vmatprep.subr.mxu0 0.0
    %2559 = vmatpush1.msra.mxu0 0.0
    %2560 = vmatprep.subr.mxu0 0.0
    %2561 = vmatpush1.msra.mxu0 0.0
    %2562 = vmatprep.subr.mxu0 0.0
    %2563 = vmatpush1.msra.mxu0 0.0
    %2564 = vmatprep.subr.mxu0 0.0
    %2565 = vmatpush1.msra.mxu0 0.0
    %2566 = vmatprep.subr.mxu0 0.0
    %2567 = vmatpush1.msra.mxu0 0.0
    %2568 = vmatprep.subr.mxu0 0.0
    %2569 = vmatpush1.msra.mxu0 0.0
    %2570 = vmatprep.mubr.f32.mxu0 0.0
    %2571 = vmatmul.mubr.f32.gmra.mrb[0].mxu0 %v2409
    %v2572 = vpop.f32.mrb[0].mxu0
    %v2573 = vadd.f32 0.0, %v2572
    %v2574 = vpop.f32.mrb[0].mxu0
    %2575 = vdwg.mxu0
    %2577 = vrot.lane.b32.xlu0 %v2063, 32
    %v2578 = vpop.permute.xlu0 %2577
    %v2579 = vsel %vm226, %v2578, 0
    %2581 = vmatprep.subr.mxu0 0.0
    %2582 = vmatpush1.msra.mxu0 %v189
    %2583 = vmatprep.subr.mxu0 0.0
    %2584 = vmatpush1.msra.mxu0 %v190
    %2585 = vmatprep.subr.mxu0 0.0
    %2586 = vmatpush1.msra.mxu0 %v191
    %2587 = vmatprep.subr.mxu0 0.0
    %2588 = vmatpush1.msra.mxu0 %v192
    %2589 = vmatprep.subr.mxu0 0.0
    %2590 = vmatpush1.msra.mxu0 0.0
    %2591 = vmatprep.subr.mxu0 0.0
    %2592 = vmatpush1.msra.mxu0 0.0
    %2593 = vmatprep.subr.mxu0 0.0
    %2594 = vmatpush1.msra.mxu0 0.0
    %2595 = vmatprep.subr.mxu0 0.0
    %2596 = vmatpush1.msra.mxu0 0.0
    %2597 = vmatprep.subr.mxu0 0.0
    %2598 = vmatpush1.msra.mxu0 0.0
    %2599 = vmatprep.subr.mxu0 0.0
    %2600 = vmatpush1.msra.mxu0 0.0
    %2601 = vmatprep.subr.mxu0 0.0
    %2602 = vmatpush1.msra.mxu0 0.0
    %2603 = vmatprep.subr.mxu0 0.0
    %2604 = vmatpush1.msra.mxu0 0.0
    %2605 = vmatprep.subr.mxu0 0.0
    %2606 = vmatpush1.msra.mxu0 0.0
    %2607 = vmatprep.subr.mxu0 0.0
    %2608 = vmatpush1.msra.mxu0 0.0
    %2609 = vmatprep.subr.mxu0 0.0
    %2610 = vmatpush1.msra.mxu0 0.0
    %2611 = vmatprep.subr.mxu0 0.0
    %2612 = vmatpush1.msra.mxu0 0.0
    %2613 = vmatprep.subr.mxu0 0.0
    %2614 = vmatpush1.msra.mxu0 0.0
    %2615 = vmatprep.subr.mxu0 0.0
    %2616 = vmatpush1.msra.mxu0 0.0
    %2617 = vmatprep.subr.mxu0 0.0
    %2618 = vmatpush1.msra.mxu0 0.0
    %2619 = vmatprep.subr.mxu0 0.0
    %2620 = vmatpush1.msra.mxu0 0.0
    %2621 = vmatprep.subr.mxu0 0.0
    %2622 = vmatpush1.msra.mxu0 0.0
    %2623 = vmatprep.subr.mxu0 0.0
    %2624 = vmatpush1.msra.mxu0 0.0
    %2625 = vmatprep.subr.mxu0 0.0
    %2626 = vmatpush1.msra.mxu0 0.0
    %2627 = vmatprep.subr.mxu0 0.0
    %2628 = vmatpush1.msra.mxu0 0.0
    %2629 = vmatprep.subr.mxu0 0.0
    %2630 = vmatpush1.msra.mxu0 0.0
    %2631 = vmatprep.subr.mxu0 0.0
    %2632 = vmatpush1.msra.mxu0 0.0
    %2633 = vmatprep.subr.mxu0 0.0
    %2634 = vmatpush1.msra.mxu0 0.0
    %2635 = vmatprep.subr.mxu0 0.0
    %2636 = vmatpush1.msra.mxu0 0.0
    %2637 = vmatprep.subr.mxu0 0.0
    %2638 = vmatpush1.msra.mxu0 0.0
    %2639 = vmatprep.subr.mxu0 0.0
    %2640 = vmatpush1.msra.mxu0 0.0
    %2641 = vmatprep.subr.mxu0 0.0
    %2642 = vmatpush1.msra.mxu0 0.0
    %2643 = vmatprep.subr.mxu0 0.0
    %2644 = vmatpush1.msra.mxu0 0.0
    %2645 = vmatprep.mubr.f32.mxu0 0.0
    %2646 = vmatmul.mubr.f32.gmra.mrb[0].mxu0 %v2579
    %v2647 = vpop.f32.mrb[0].mxu0
    %v2648 = vadd.f32 %v2573, %v2647
    %v2649 = vpop.f32.mrb[0].mxu0
    %2650 = vdwg.mxu0
    %v2651 = vadd.f32 %v2648, %v558
    %v2652 = vxor.u32 %v2651, 2147483648
    %v2653 = vmul.f32 %v2652, 1.442695
    %v2654 = vpow.pop %v2653
    %v2655 = vadd.f32 %v2654, 1.0
    %v2656 = vrcp.pop %v2655
    %v2657 = vmul.f32 1.0, %v2656
    %v2658 = vtanh.pop %v2651
    %v2659 = vmul.f32 %v2657, %v1887
    %2661 = vrot.lane.b32.xlu0 %v2658, 64
    %v2662 = vpop.permute.xlu0 %2661
    %v2664 = vmul.f32 %v2657, %v2662
    %2666 = vrot.lane.b32.xlu0 %v2664, 32
    %v2667 = vpop.permute.xlu0 %2666
    %v2669 = vadd.f32 %v2659, %v2667
    %v2670 = vtanh.pop %v2669
    %2672 = vrot.lane.b32.xlu0 %v2670, 64
    %v2673 = vpop.permute.xlu0 %2672
    %v2675 = vmul.f32 %v2657, %v2673
    %2676 = vmatprep.subr.mxu0 0.0
    %2677 = vmatpush1.msra.mxu0 %v201
    %2678 = vmatprep.subr.mxu0 0.0
    %2679 = vmatpush1.msra.mxu0 %v202
    %2680 = vmatprep.subr.mxu0 0.0
    %2681 = vmatpush1.msra.mxu0 %v203
    %2682 = vmatprep.subr.mxu0 0.0
    %2683 = vmatpush1.msra.mxu0 %v204
    %2684 = vmatprep.subr.mxu0 0.0
    %2685 = vmatpush1.msra.mxu0 0.0
    %2686 = vmatprep.subr.mxu0 0.0
    %2687 = vmatpush1.msra.mxu0 0.0
    %2688 = vmatprep.subr.mxu0 0.0
    %2689 = vmatpush1.msra.mxu0 0.0
    %2690 = vmatprep.subr.mxu0 0.0
    %2691 = vmatpush1.msra.mxu0 0.0
    %2692 = vmatprep.subr.mxu0 0.0
    %2693 = vmatpush1.msra.mxu0 0.0
    %2694 = vmatprep.subr.mxu0 0.0
    %2695 = vmatpush1.msra.mxu0 0.0
    %2696 = vmatprep.subr.mxu0 0.0
    %2697 = vmatpush1.msra.mxu0 0.0
    %2698 = vmatprep.subr.mxu0 0.0
    %2699 = vmatpush1.msra.mxu0 0.0
    %2700 = vmatprep.subr.mxu0 0.0
    %2701 = vmatpush1.msra.mxu0 0.0
    %2702 = vmatprep.subr.mxu0 0.0
    %2703 = vmatpush1.msra.mxu0 0.0
    %2704 = vmatprep.subr.mxu0 0.0
    %2705 = vmatpush1.msra.mxu0 0.0
    %2706 = vmatprep.subr.mxu0 0.0
    %2707 = vmatpush1.msra.mxu0 0.0
    %2708 = vmatprep.subr.mxu0 0.0
    %2709 = vmatpush1.msra.mxu0 0.0
    %2710 = vmatprep.subr.mxu0 0.0
    %2711 = vmatpush1.msra.mxu0 0.0
    %2712 = vmatprep.subr.mxu0 0.0
    %2713 = vmatpush1.msra.mxu0 0.0
    %2714 = vmatprep.subr.mxu0 0.0
    %2715 = vmatpush1.msra.mxu0 0.0
    %2716 = vmatprep.subr.mxu0 0.0
    %2717 = vmatpush1.msra.mxu0 0.0
    %2718 = vmatprep.subr.mxu0 0.0
    %2719 = vmatpush1.msra.mxu0 0.0
    %2720 = vmatprep.subr.mxu0 0.0
    %2721 = vmatpush1.msra.mxu0 0.0
    %2722 = vmatprep.subr.mxu0 0.0
    %2723 = vmatpush1.msra.mxu0 0.0
    %2724 = vmatprep.subr.mxu0 0.0
    %2725 = vmatpush1.msra.mxu0 0.0
    %2726 = vmatprep.subr.mxu0 0.0
    %2727 = vmatpush1.msra.mxu0 0.0
    %2728 = vmatprep.subr.mxu0 0.0
    %2729 = vmatpush1.msra.mxu0 0.0
    %2730 = vmatprep.subr.mxu0 0.0
    %2731 = vmatpush1.msra.mxu0 0.0
    %2732 = vmatprep.subr.mxu0 0.0
    %2733 = vmatpush1.msra.mxu0 0.0
    %2734 = vmatprep.subr.mxu0 0.0
    %2735 = vmatpush1.msra.mxu0 0.0
    %2736 = vmatprep.subr.mxu0 0.0
    %2737 = vmatpush1.msra.mxu0 0.0
    %2738 = vmatprep.subr.mxu0 0.0
    %2739 = vmatpush1.msra.mxu0 0.0
    %2740 = vmatprep.mubr.f32.mxu0 0.0
    %2741 = vmatmul.mubr.f32.gmra.mrb[0].mxu0 %v2579
    %v2742 = vpop.f32.mrb[0].mxu0
    %v2743 = vadd.f32 0.0, %v2742
    %v2744 = vpop.f32.mrb[0].mxu0
    %2745 = vdwg.mxu0
    %v2746 = vrot.slane %v185, 4
    %v2747 = vrot.slane %v186, 3
    %v2748 = vsel %vm303, %v2747, %v2746
    %v2749 = vsel %vm305, %v2748, 0
    %2751 = vmatprep.subr.mxu0 0.0
    %2752 = vmatpush1.msra.mxu0 %v187
    %2753 = vmatprep.subr.mxu0 0.0
    %2754 = vmatpush1.msra.mxu0 %v188
    %2755 = vmatprep.subr.mxu0 0.0
    %2756 = vmatpush1.msra.mxu0 0.0
    %2757 = vmatprep.subr.mxu0 0.0
    %2758 = vmatpush1.msra.mxu0 0.0
    %2759 = vmatprep.subr.mxu0 0.0
    %2760 = vmatpush1.msra.mxu0 0.0
    %2761 = vmatprep.subr.mxu0 0.0
    %2762 = vmatpush1.msra.mxu0 0.0
    %2763 = vmatprep.subr.mxu0 0.0
    %2764 = vmatpush1.msra.mxu0 0.0
    %2765 = vmatprep.subr.mxu0 0.0
    %2766 = vmatpush1.msra.mxu0 0.0
    %2767 = vmatprep.subr.mxu0 0.0
    %2768 = vmatpush1.msra.mxu0 0.0
    %2769 = vmatprep.subr.mxu0 0.0
    %2770 = vmatpush1.msra.mxu0 0.0
    %2771 = vmatprep.subr.mxu0 0.0
    %2772 = vmatpush1.msra.mxu0 0.0
    %2773 = vmatprep.subr.mxu0 0.0
    %2774 = vmatpush1.msra.mxu0 0.0
    %2775 = vmatprep.subr.mxu0 0.0
    %2776 = vmatpush1.msra.mxu0 0.0
    %2777 = vmatprep.subr.mxu0 0.0
    %2778 = vmatpush1.msra.mxu0 0.0
    %2779 = vmatprep.subr.mxu0 0.0
    %2780 = vmatpush1.msra.mxu0 0.0
    %2781 = vmatprep.subr.mxu0 0.0
    %2782 = vmatpush1.msra.mxu0 0.0
    %2783 = vmatprep.subr.mxu0 0.0
    %2784 = vmatpush1.msra.mxu0 0.0
    %2785 = vmatprep.subr.mxu0 0.0
    %2786 = vmatpush1.msra.mxu0 0.0
    %2787 = vmatprep.subr.mxu0 0.0
    %2788 = vmatpush1.msra.mxu0 0.0
    %2789 = vmatprep.subr.mxu0 0.0
    %2790 = vmatpush1.msra.mxu0 0.0
    %2791 = vmatprep.subr.mxu0 0.0
    %2792 = vmatpush1.msra.mxu0 0.0
    %2793 = vmatprep.subr.mxu0 0.0
    %2794 = vmatpush1.msra.mxu0 0.0
    %2795 = vmatprep.subr.mxu0 0.0
    %2796 = vmatpush1.msra.mxu0 0.0
    %2797 = vmatprep.subr.mxu0 0.0
    %2798 = vmatpush1.msra.mxu0 0.0
    %2799 = vmatprep.subr.mxu0 0.0
    %2800 = vmatpush1.msra.mxu0 0.0
    %2801 = vmatprep.subr.mxu0 0.0
    %2802 = vmatpush1.msra.mxu0 0.0
    %2803 = vmatprep.subr.mxu0 0.0
    %2804 = vmatpush1.msra.mxu0 0.0
    %2805 = vmatprep.subr.mxu0 0.0
    %2806 = vmatpush1.msra.mxu0 0.0
    %2807 = vmatprep.subr.mxu0 0.0
    %2808 = vmatpush1.msra.mxu0 0.0
    %2809 = vmatprep.subr.mxu0 0.0
    %2810 = vmatpush1.msra.mxu0 0.0
    %2811 = vmatprep.subr.mxu0 0.0
    %2812 = vmatpush1.msra.mxu0 0.0
    %2813 = vmatprep.subr.mxu0 0.0
    %2814 = vmatpush1.msra.mxu0 0.0
    %2815 = vmatprep.mubr.f32.mxu0 0.0
    %2816 = vmatmul.mubr.f32.gmra.mrb[0].mxu0 %v2749
    %v2817 = vpop.f32.mrb[0].mxu0
    %v2818 = vadd.f32 %v2743, %v2817
    %v2819 = vpop.f32.mrb[0].mxu0
    %2820 = vdwg.mxu0
    %v2821 = vadd.f32 %v2818, %v382
    %v2822 = vxor.u32 %v2821, 2147483648
    %v2823 = vmul.f32 %v2822, 1.442695
    %v2824 = vpow.pop %v2823
    %v2825 = vadd.f32 %v2824, 1.0
    %v2826 = vrcp.pop %v2825
    %v2827 = vmul.f32 1.0, %v2826
    %v2828 = vtanh.pop %v2821
    %v2829 = vmul.f32 %v2827, %v2057
    %2831 = vrot.lane.b32.xlu0 %v2828, 64
    %v2832 = vpop.permute.xlu0 %2831
    %v2834 = vmul.f32 %v2827, %v2832
    %2836 = vrot.lane.b32.xlu0 %v2834, 32
    %v2837 = vpop.permute.xlu0 %2836
    %v2839 = vadd.f32 %v2829, %v2837
    %v2840 = vtanh.pop %v2839
    %2842 = vrot.lane.b32.xlu0 %v2840, 64
    %v2843 = vpop.permute.xlu0 %2842
    %v2845 = vmul.f32 %v2827, %v2843
    %2846 = vmatprep.subr.mxu0 0.0
    %2847 = vmatpush1.msra.mxu0 %v213
    %2848 = vmatprep.subr.mxu0 0.0
    %2849 = vmatpush1.msra.mxu0 %v214
    %2850 = vmatprep.subr.mxu0 0.0
    %2851 = vmatpush1.msra.mxu0 %v215
    %2852 = vmatprep.subr.mxu0 0.0
    %2853 = vmatpush1.msra.mxu0 %v216
    %2854 = vmatprep.subr.mxu0 0.0
    %2855 = vmatpush1.msra.mxu0 0.0
    %2856 = vmatprep.subr.mxu0 0.0
    %2857 = vmatpush1.msra.mxu0 0.0
    %2858 = vmatprep.subr.mxu0 0.0
    %2859 = vmatpush1.msra.mxu0 0.0
    %2860 = vmatprep.subr.mxu0 0.0
    %2861 = vmatpush1.msra.mxu0 0.0
    %2862 = vmatprep.subr.mxu0 0.0
    %2863 = vmatpush1.msra.mxu0 0.0
    %2864 = vmatprep.subr.mxu0 0.0
    %2865 = vmatpush1.msra.mxu0 0.0
    %2866 = vmatprep.subr.mxu0 0.0
    %2867 = vmatpush1.msra.mxu0 0.0
    %2868 = vmatprep.subr.mxu0 0.0
    %2869 = vmatpush1.msra.mxu0 0.0
    %2870 = vmatprep.subr.mxu0 0.0
    %2871 = vmatpush1.msra.mxu0 0.0
    %2872 = vmatprep.subr.mxu0 0.0
    %2873 = vmatpush1.msra.mxu0 0.0
    %2874 = vmatprep.subr.mxu0 0.0
    %2875 = vmatpush1.msra.mxu0 0.0
    %2876 = vmatprep.subr.mxu0 0.0
    %2877 = vmatpush1.msra.mxu0 0.0
    %2878 = vmatprep.subr.mxu0 0.0
    %2879 = vmatpush1.msra.mxu0 0.0
    %2880 = vmatprep.subr.mxu0 0.0
    %2881 = vmatpush1.msra.mxu0 0.0
    %2882 = vmatprep.subr.mxu0 0.0
    %2883 = vmatpush1.msra.mxu0 0.0
    %2884 = vmatprep.subr.mxu0 0.0
    %2885 = vmatpush1.msra.mxu0 0.0
    %2886 = vmatprep.subr.mxu0 0.0
    %2887 = vmatpush1.msra.mxu0 0.0
    %2888 = vmatprep.subr.mxu0 0.0
    %2889 = vmatpush1.msra.mxu0 0.0
    %2890 = vmatprep.subr.mxu0 0.0
    %2891 = vmatpush1.msra.mxu0 0.0
    %2892 = vmatprep.subr.mxu0 0.0
    %2893 = vmatpush1.msra.mxu0 0.0
    %2894 = vmatprep.subr.mxu0 0.0
    %2895 = vmatpush1.msra.mxu0 0.0
    %2896 = vmatprep.subr.mxu0 0.0
    %2897 = vmatpush1.msra.mxu0 0.0
    %2898 = vmatprep.subr.mxu0 0.0
    %2899 = vmatpush1.msra.mxu0 0.0
    %2900 = vmatprep.subr.mxu0 0.0
    %2901 = vmatpush1.msra.mxu0 0.0
    %2902 = vmatprep.subr.mxu0 0.0
    %2903 = vmatpush1.msra.mxu0 0.0
    %2904 = vmatprep.subr.mxu0 0.0
    %2905 = vmatpush1.msra.mxu0 0.0
    %2906 = vmatprep.subr.mxu0 0.0
    %2907 = vmatpush1.msra.mxu0 0.0
    %2908 = vmatprep.subr.mxu0 0.0
    %2909 = vmatpush1.msra.mxu0 0.0
    %2910 = vmatprep.mubr.f32.mxu0 0.0
    %2911 = vmatmul.mubr.f32.gmra.mrb[0].mxu0 %v2237
    %v2912 = vpop.f32.mrb[0].mxu0
    %v2913 = vadd.f32 0.0, %v2912
    %v2914 = vpop.f32.mrb[0].mxu0
    %2915 = vdwg.mxu0
    %2917 = vrot.lane.b32.xlu0 %v2505, 32
    %v2918 = vpop.permute.xlu0 %2917
    %v2919 = vsel %vm226, %v2918, 0
    %2921 = vmatprep.subr.mxu0 0.0
    %2922 = vmatpush1.msra.mxu0 %v197
    %2923 = vmatprep.subr.mxu0 0.0
    %2924 = vmatpush1.msra.mxu0 %v198
    %2925 = vmatprep.subr.mxu0 0.0
    %2926 = vmatpush1.msra.mxu0 %v199
    %2927 = vmatprep.subr.mxu0 0.0
    %2928 = vmatpush1.msra.mxu0 %v200
    %2929 = vmatprep.subr.mxu0 0.0
    %2930 = vmatpush1.msra.mxu0 0.0
    %2931 = vmatprep.subr.mxu0 0.0
    %2932 = vmatpush1.msra.mxu0 0.0
    %2933 = vmatprep.subr.mxu0 0.0
    %2934 = vmatpush1.msra.mxu0 0.0
    %2935 = vmatprep.subr.mxu0 0.0
    %2936 = vmatpush1.msra.mxu0 0.0
    %2937 = vmatprep.subr.mxu0 0.0
    %2938 = vmatpush1.msra.mxu0 0.0
    %2939 = vmatprep.subr.mxu0 0.0
    %2940 = vmatpush1.msra.mxu0 0.0
    %2941 = vmatprep.subr.mxu0 0.0
    %2942 = vmatpush1.msra.mxu0 0.0
    %2943 = vmatprep.subr.mxu0 0.0
    %2944 = vmatpush1.msra.mxu0 0.0
    %2945 = vmatprep.subr.mxu0 0.0
    %2946 = vmatpush1.msra.mxu0 0.0
    %2947 = vmatprep.subr.mxu0 0.0
    %2948 = vmatpush1.msra.mxu0 0.0
    %2949 = vmatprep.subr.mxu0 0.0
    %2950 = vmatpush1.msra.mxu0 0.0
    %2951 = vmatprep.subr.mxu0 0.0
    %2952 = vmatpush1.msra.mxu0 0.0
    %2953 = vmatprep.subr.mxu0 0.0
    %2954 = vmatpush1.msra.mxu0 0.0
    %2955 = vmatprep.subr.mxu0 0.0
    %2956 = vmatpush1.msra.mxu0 0.0
    %2957 = vmatprep.subr.mxu0 0.0
    %2958 = vmatpush1.msra.mxu0 0.0
    %2959 = vmatprep.subr.mxu0 0.0
    %2960 = vmatpush1.msra.mxu0 0.0
    %2961 = vmatprep.subr.mxu0 0.0
    %2962 = vmatpush1.msra.mxu0 0.0
    %2963 = vmatprep.subr.mxu0 0.0
    %2964 = vmatpush1.msra.mxu0 0.0
    %2965 = vmatprep.subr.mxu0 0.0
    %2966 = vmatpush1.msra.mxu0 0.0
    %2967 = vmatprep.subr.mxu0 0.0
    %2968 = vmatpush1.msra.mxu0 0.0
    %2969 = vmatprep.subr.mxu0 0.0
    %2970 = vmatpush1.msra.mxu0 0.0
    %2971 = vmatprep.subr.mxu0 0.0
    %2972 = vmatpush1.msra.mxu0 0.0
    %2973 = vmatprep.subr.mxu0 0.0
    %2974 = vmatpush1.msra.mxu0 0.0
    %2975 = vmatprep.subr.mxu0 0.0
    %2976 = vmatpush1.msra.mxu0 0.0
    %2977 = vmatprep.subr.mxu0 0.0
    %2978 = vmatpush1.msra.mxu0 0.0
    %2979 = vmatprep.subr.mxu0 0.0
    %2980 = vmatpush1.msra.mxu0 0.0
    %2981 = vmatprep.subr.mxu0 0.0
    %2982 = vmatpush1.msra.mxu0 0.0
    %2983 = vmatprep.subr.mxu0 0.0
    %2984 = vmatpush1.msra.mxu0 0.0
    %2985 = vmatprep.mubr.f32.mxu0 0.0
    %2986 = vmatmul.mubr.f32.gmra.mrb[0].mxu0 %v2919
    %v2987 = vpop.f32.mrb[0].mxu0
    %v2988 = vadd.f32 %v2913, %v2987
    %v2989 = vpop.f32.mrb[0].mxu0
    %2990 = vdwg.mxu0
    %v2991 = vadd.f32 %v2988, %v1419
    %v2992 = vxor.u32 %v2991, 2147483648
    %v2993 = vmul.f32 %v2992, 1.442695
    %v2994 = vpow.pop %v2993
    %v2995 = vadd.f32 %v2994, 1.0
    %v2996 = vrcp.pop %v2995
    %v2997 = vmul.f32 1.0, %v2996
    %v2998 = vtanh.pop %v2991
    %v2999 = vmul.f32 %v2997, %v2227
    %3001 = vrot.lane.b32.xlu0 %v2998, 64
    %v3002 = vpop.permute.xlu0 %3001
    %v3004 = vmul.f32 %v2997, %v3002
    %3006 = vrot.lane.b32.xlu0 %v3004, 32
    %v3007 = vpop.permute.xlu0 %3006
    %v3009 = vadd.f32 %v2999, %v3007
    %v3010 = vtanh.pop %v3009
    %3012 = vrot.lane.b32.xlu0 %v3010, 64
    %v3013 = vpop.permute.xlu0 %3012
    %v3015 = vmul.f32 %v2997, %v3013
    %3017 = vrot.lane.b32.xlu0 %v3015, 32
    %v3018 = vpop.permute.xlu0 %3017
    %v3019 = vsel %vm226, %v3018, 0
    %3021 = vmatprep.subr.mxu0 0.0
    %3022 = vmatpush1.msra.mxu0 %v221
    %3023 = vmatprep.subr.mxu0 0.0
    %3024 = vmatpush1.msra.mxu0 %v222
    %3025 = vmatprep.subr.mxu0 0.0
    %3026 = vmatpush1.msra.mxu0 %v223
    %3027 = vmatprep.subr.mxu0 0.0
    %3028 = vmatpush1.msra.mxu0 %v224
    %3029 = vmatprep.subr.mxu0 0.0
    %3030 = vmatpush1.msra.mxu0 0.0
    %3031 = vmatprep.subr.mxu0 0.0
    %3032 = vmatpush1.msra.mxu0 0.0
    %3033 = vmatprep.subr.mxu0 0.0
    %3034 = vmatpush1.msra.mxu0 0.0
    %3035 = vmatprep.subr.mxu0 0.0
    %3036 = vmatpush1.msra.mxu0 0.0
    %3037 = vmatprep.subr.mxu0 0.0
    %3038 = vmatpush1.msra.mxu0 0.0
    %3039 = vmatprep.subr.mxu0 0.0
    %3040 = vmatpush1.msra.mxu0 0.0
    %3041 = vmatprep.subr.mxu0 0.0
    %3042 = vmatpush1.msra.mxu0 0.0
    %3043 = vmatprep.subr.mxu0 0.0
    %3044 = vmatpush1.msra.mxu0 0.0
    %3045 = vmatprep.subr.mxu0 0.0
    %3046 = vmatpush1.msra.mxu0 0.0
    %3047 = vmatprep.subr.mxu0 0.0
    %3048 = vmatpush1.msra.mxu0 0.0
    %3049 = vmatprep.subr.mxu0 0.0
    %3050 = vmatpush1.msra.mxu0 0.0
    %3051 = vmatprep.subr.mxu0 0.0
    %3052 = vmatpush1.msra.mxu0 0.0
    %3053 = vmatprep.subr.mxu0 0.0
    %3054 = vmatpush1.msra.mxu0 0.0
    %3055 = vmatprep.subr.mxu0 0.0
    %3056 = vmatpush1.msra.mxu0 0.0
    %3057 = vmatprep.subr.mxu0 0.0
    %3058 = vmatpush1.msra.mxu0 0.0
    %3059 = vmatprep.subr.mxu0 0.0
    %3060 = vmatpush1.msra.mxu0 0.0
    %3061 = vmatprep.subr.mxu0 0.0
    %3062 = vmatpush1.msra.mxu0 0.0
    %3063 = vmatprep.subr.mxu0 0.0
    %3064 = vmatpush1.msra.mxu0 0.0
    %3065 = vmatprep.subr.mxu0 0.0
    %3066 = vmatpush1.msra.mxu0 0.0
    %3067 = vmatprep.subr.mxu0 0.0
    %3068 = vmatpush1.msra.mxu0 0.0
    %3069 = vmatprep.subr.mxu0 0.0
    %3070 = vmatpush1.msra.mxu0 0.0
    %3071 = vmatprep.subr.mxu0 0.0
    %3072 = vmatpush1.msra.mxu0 0.0
    %3073 = vmatprep.subr.mxu0 0.0
    %3074 = vmatpush1.msra.mxu0 0.0
    %3075 = vmatprep.subr.mxu0 0.0
    %3076 = vmatpush1.msra.mxu0 0.0
    %3077 = vmatprep.subr.mxu0 0.0
    %3078 = vmatpush1.msra.mxu0 0.0
    %3079 = vmatprep.subr.mxu0 0.0
    %3080 = vmatpush1.msra.mxu0 0.0
    %3081 = vmatprep.subr.mxu0 0.0
    %3082 = vmatpush1.msra.mxu0 0.0
    %3083 = vmatprep.subr.mxu0 0.0
    %3084 = vmatpush1.msra.mxu0 0.0
    %3085 = vmatprep.mubr.f32.mxu0 0.0
    %3086 = vmatmul.mubr.f32.gmra.mrb[0].mxu0 %v3019
    %v3087 = vpop.f32.mrb[0].mxu0
    %v3088 = vadd.f32 %v1450, %v3087
    %v3089 = vpop.f32.mrb[0].mxu0
    %3090 = vdwg.mxu0
    %v3093 = vunpack.c.l.s4 1966171168
    %v3094 = vunpack.c.0.s8 %v3093
    %v3095 = vlaneseq
    %v3096 = vshrl.u32 %v3095, 7
    %v3097 = vsub.s32 %v3094, %v3096
    %v3098 = vrot.slane %v3088, %v3097
    %v3099 = vcombine.high %v3098, %v3098
    %v3101 = vunpack.c.l.s4 1966171168
    %v3102 = vunpack.c.0.s8 %v3101
    %v3103 = vlaneseq
    %v3104 = vshrl.u32 %v3103, 7
    %v3105 = vsub.s32 %v3102, %v3104
    %v3106 = vrot.slane %v3098, %v3105
    %v3108 = vunpack.c.l.s4 1966171168
    %v3109 = vunpack.c.0.s8 %v3108
    %v3110 = vlaneseq
    %v3111 = vshrl.u32 %v3110, 7
    %v3112 = vsub.s32 %v3109, %v3111
    %v3113 = vrot.slane %v3099, %v3112
    %3116 = vst [vmem:[#allocation19 + $0x2] sm:$0x1] %v3106
    %3117 = vst [vmem:[#allocation19 + $0xa] sm:$0x1] %v3113
    %3118 = vmatprep.subr.mxu0 0.0
    %3119 = vmatpush1.msra.mxu0 %v209
    %3120 = vmatprep.subr.mxu0 0.0
    %3121 = vmatpush1.msra.mxu0 %v210
    %3122 = vmatprep.subr.mxu0 0.0
    %3123 = vmatpush1.msra.mxu0 %v211
    %3124 = vmatprep.subr.mxu0 0.0
    %3125 = vmatpush1.msra.mxu0 %v212
    %3126 = vmatprep.subr.mxu0 0.0
    %3127 = vmatpush1.msra.mxu0 0.0
    %3128 = vmatprep.subr.mxu0 0.0
    %3129 = vmatpush1.msra.mxu0 0.0
    %3130 = vmatprep.subr.mxu0 0.0
    %3131 = vmatpush1.msra.mxu0 0.0
    %3132 = vmatprep.subr.mxu0 0.0
    %3133 = vmatpush1.msra.mxu0 0.0
    %3134 = vmatprep.subr.mxu0 0.0
    %3135 = vmatpush1.msra.mxu0 0.0
    %3136 = vmatprep.subr.mxu0 0.0
    %3137 = vmatpush1.msra.mxu0 0.0
    %3138 = vmatprep.subr.mxu0 0.0
    %3139 = vmatpush1.msra.mxu0 0.0
    %3140 = vmatprep.subr.mxu0 0.0
    %3141 = vmatpush1.msra.mxu0 0.0
    %3142 = vmatprep.subr.mxu0 0.0
    %3143 = vmatpush1.msra.mxu0 0.0
    %3144 = vmatprep.subr.mxu0 0.0
    %3145 = vmatpush1.msra.mxu0 0.0
    %3146 = vmatprep.subr.mxu0 0.0
    %3147 = vmatpush1.msra.mxu0 0.0
    %3148 = vmatprep.subr.mxu0 0.0
    %3149 = vmatpush1.msra.mxu0 0.0
    %3150 = vmatprep.subr.mxu0 0.0
    %3151 = vmatpush1.msra.mxu0 0.0
    %3152 = vmatprep.subr.mxu0 0.0
    %3153 = vmatpush1.msra.mxu0 0.0
    %3154 = vmatprep.subr.mxu0 0.0
    %3155 = vmatpush1.msra.mxu0 0.0
    %3156 = vmatprep.subr.mxu0 0.0
    %3157 = vmatpush1.msra.mxu0 0.0
    %3158 = vmatprep.subr.mxu0 0.0
    %3159 = vmatpush1.msra.mxu0 0.0
    %3160 = vmatprep.subr.mxu0 0.0
    %3161 = vmatpush1.msra.mxu0 0.0
    %3162 = vmatprep.subr.mxu0 0.0
    %3163 = vmatpush1.msra.mxu0 0.0
    %3164 = vmatprep.subr.mxu0 0.0
    %3165 = vmatpush1.msra.mxu0 0.0
    %3166 = vmatprep.subr.mxu0 0.0
    %3167 = vmatpush1.msra.mxu0 0.0
    %3168 = vmatprep.subr.mxu0 0.0
    %3169 = vmatpush1.msra.mxu0 0.0
    %3170 = vmatprep.subr.mxu0 0.0
    %3171 = vmatpush1.msra.mxu0 0.0
    %3172 = vmatprep.subr.mxu0 0.0
    %3173 = vmatpush1.msra.mxu0 0.0
    %3174 = vmatprep.subr.mxu0 0.0
    %3175 = vmatpush1.msra.mxu0 0.0
    %3176 = vmatprep.subr.mxu0 0.0
    %3177 = vmatpush1.msra.mxu0 0.0
    %3178 = vmatprep.subr.mxu0 0.0
    %3179 = vmatpush1.msra.mxu0 0.0
    %3180 = vmatprep.subr.mxu0 0.0
    %3181 = vmatpush1.msra.mxu0 0.0
    %3182 = vmatprep.mubr.f32.mxu0 0.0
    %3183 = vmatmul.mubr.f32.gmra.mrb[0].mxu0 %v2919
    %v3184 = vpop.f32.mrb[0].mxu0
    %v3185 = vadd.f32 0.0, %v3184
    %v3186 = vpop.f32.mrb[0].mxu0
    %3187 = vdwg.mxu0
    %3189 = vrot.lane.b32.xlu0 %v2675, 32
    %v3190 = vpop.permute.xlu0 %3189
    %v3191 = vsel %vm226, %v3190, 0
    %3193 = vmatprep.subr.mxu0 0.0
    %3194 = vmatpush1.msra.mxu0 %v193
    %3195 = vmatprep.subr.mxu0 0.0
    %3196 = vmatpush1.msra.mxu0 %v194
    %3197 = vmatprep.subr.mxu0 0.0
    %3198 = vmatpush1.msra.mxu0 %v195
    %3199 = vmatprep.subr.mxu0 0.0
    %3200 = vmatpush1.msra.mxu0 %v196
    %3201 = vmatprep.subr.mxu0 0.0
    %3202 = vmatpush1.msra.mxu0 0.0
    %3203 = vmatprep.subr.mxu0 0.0
    %3204 = vmatpush1.msra.mxu0 0.0
    %3205 = vmatprep.subr.mxu0 0.0
    %3206 = vmatpush1.msra.mxu0 0.0
    %3207 = vmatprep.subr.mxu0 0.0
    %3208 = vmatpush1.msra.mxu0 0.0
    %3209 = vmatprep.subr.mxu0 0.0
    %3210 = vmatpush1.msra.mxu0 0.0
    %3211 = vmatprep.subr.mxu0 0.0
    %3212 = vmatpush1.msra.mxu0 0.0
    %3213 = vmatprep.subr.mxu0 0.0
    %3214 = vmatpush1.msra.mxu0 0.0
    %3215 = vmatprep.subr.mxu0 0.0
    %3216 = vmatpush1.msra.mxu0 0.0
    %3217 = vmatprep.subr.mxu0 0.0
    %3218 = vmatpush1.msra.mxu0 0.0
    %3219 = vmatprep.subr.mxu0 0.0
    %3220 = vmatpush1.msra.mxu0 0.0
    %3221 = vmatprep.subr.mxu0 0.0
    %3222 = vmatpush1.msra.mxu0 0.0
    %3223 = vmatprep.subr.mxu0 0.0
    %3224 = vmatpush1.msra.mxu0 0.0
    %3225 = vmatprep.subr.mxu0 0.0
    %3226 = vmatpush1.msra.mxu0 0.0
    %3227 = vmatprep.subr.mxu0 0.0
    %3228 = vmatpush1.msra.mxu0 0.0
    %3229 = vmatprep.subr.mxu0 0.0
    %3230 = vmatpush1.msra.mxu0 0.0
    %3231 = vmatprep.subr.mxu0 0.0
    %3232 = vmatpush1.msra.mxu0 0.0
    %3233 = vmatprep.subr.mxu0 0.0
    %3234 = vmatpush1.msra.mxu0 0.0
    %3235 = vmatprep.subr.mxu0 0.0
    %3236 = vmatpush1.msra.mxu0 0.0
    %3237 = vmatprep.subr.mxu0 0.0
    %3238 = vmatpush1.msra.mxu0 0.0
    %3239 = vmatprep.subr.mxu0 0.0
    %3240 = vmatpush1.msra.mxu0 0.0
    %3241 = vmatprep.subr.mxu0 0.0
    %3242 = vmatpush1.msra.mxu0 0.0
    %3243 = vmatprep.subr.mxu0 0.0
    %3244 = vmatpush1.msra.mxu0 0.0
    %3245 = vmatprep.subr.mxu0 0.0
    %3246 = vmatpush1.msra.mxu0 0.0
    %3247 = vmatprep.subr.mxu0 0.0
    %3248 = vmatpush1.msra.mxu0 0.0
    %3249 = vmatprep.subr.mxu0 0.0
    %3250 = vmatpush1.msra.mxu0 0.0
    %3251 = vmatprep.subr.mxu0 0.0
    %3252 = vmatpush1.msra.mxu0 0.0
    %3253 = vmatprep.subr.mxu0 0.0
    %3254 = vmatpush1.msra.mxu0 0.0
    %3255 = vmatprep.subr.mxu0 0.0
    %3256 = vmatpush1.msra.mxu0 0.0
    %3257 = vmatprep.mubr.f32.mxu0 0.0
    %3258 = vmatmul.mubr.f32.gmra.mrb[0].mxu0 %v3191
    %v3259 = vpop.f32.mrb[0].mxu0
    %v3260 = vadd.f32 %v3185, %v3259
    %v3261 = vpop.f32.mrb[0].mxu0
    %3262 = vdwg.mxu0
    %v3263 = vadd.f32 %v3260, %v903
    %v3264 = vxor.u32 %v3263, 2147483648
    %v3265 = vmul.f32 %v3264, 1.442695
    %v3266 = vpow.pop %v3265
    %v3267 = vadd.f32 %v3266, 1.0
    %v3268 = vrcp.pop %v3267
    %v3269 = vmul.f32 1.0, %v3268
    %v3270 = vtanh.pop %v3263
    %v3271 = vmul.f32 %v3269, %v2499
    %3273 = vrot.lane.b32.xlu0 %v3270, 64
    %v3274 = vpop.permute.xlu0 %3273
    %v3276 = vmul.f32 %v3269, %v3274
    %3278 = vrot.lane.b32.xlu0 %v3276, 32
    %v3279 = vpop.permute.xlu0 %3278
    %v3281 = vadd.f32 %v3271, %v3279
    %v3282 = vtanh.pop %v3281
    %3284 = vrot.lane.b32.xlu0 %v3282, 64
    %v3285 = vpop.permute.xlu0 %3284
    %v3287 = vmul.f32 %v3269, %v3285
    %3288 = vmatprep.subr.mxu0 0.0
    %3289 = vmatpush1.msra.mxu0 %v205
    %3290 = vmatprep.subr.mxu0 0.0
    %3291 = vmatpush1.msra.mxu0 %v206
    %3292 = vmatprep.subr.mxu0 0.0
    %3293 = vmatpush1.msra.mxu0 %v207
    %3294 = vmatprep.subr.mxu0 0.0
    %3295 = vmatpush1.msra.mxu0 %v208
    %3296 = vmatprep.subr.mxu0 0.0
    %3297 = vmatpush1.msra.mxu0 0.0
    %3298 = vmatprep.subr.mxu0 0.0
    %3299 = vmatpush1.msra.mxu0 0.0
    %3300 = vmatprep.subr.mxu0 0.0
    %3301 = vmatpush1.msra.mxu0 0.0
    %3302 = vmatprep.subr.mxu0 0.0
    %3303 = vmatpush1.msra.mxu0 0.0
    %3304 = vmatprep.subr.mxu0 0.0
    %3305 = vmatpush1.msra.mxu0 0.0
    %3306 = vmatprep.subr.mxu0 0.0
    %3307 = vmatpush1.msra.mxu0 0.0
    %3308 = vmatprep.subr.mxu0 0.0
    %3309 = vmatpush1.msra.mxu0 0.0
    %3310 = vmatprep.subr.mxu0 0.0
    %3311 = vmatpush1.msra.mxu0 0.0
    %3312 = vmatprep.subr.mxu0 0.0
    %3313 = vmatpush1.msra.mxu0 0.0
    %3314 = vmatprep.subr.mxu0 0.0
    %3315 = vmatpush1.msra.mxu0 0.0
    %3316 = vmatprep.subr.mxu0 0.0
    %3317 = vmatpush1.msra.mxu0 0.0
    %3318 = vmatprep.subr.mxu0 0.0
    %3319 = vmatpush1.msra.mxu0 0.0
    %3320 = vmatprep.subr.mxu0 0.0
    %3321 = vmatpush1.msra.mxu0 0.0
    %3322 = vmatprep.subr.mxu0 0.0
    %3323 = vmatpush1.msra.mxu0 0.0
    %3324 = vmatprep.subr.mxu0 0.0
    %3325 = vmatpush1.msra.mxu0 0.0
    %3326 = vmatprep.subr.mxu0 0.0
    %3327 = vmatpush1.msra.mxu0 0.0
    %3328 = vmatprep.subr.mxu0 0.0
    %3329 = vmatpush1.msra.mxu0 0.0
    %3330 = vmatprep.subr.mxu0 0.0
    %3331 = vmatpush1.msra.mxu0 0.0
    %3332 = vmatprep.subr.mxu0 0.0
    %3333 = vmatpush1.msra.mxu0 0.0
    %3334 = vmatprep.subr.mxu0 0.0
    %3335 = vmatpush1.msra.mxu0 0.0
    %3336 = vmatprep.subr.mxu0 0.0
    %3337 = vmatpush1.msra.mxu0 0.0
    %3338 = vmatprep.subr.mxu0 0.0
    %3339 = vmatpush1.msra.mxu0 0.0
    %3340 = vmatprep.subr.mxu0 0.0
    %3341 = vmatpush1.msra.mxu0 0.0
    %3342 = vmatprep.subr.mxu0 0.0
    %3343 = vmatpush1.msra.mxu0 0.0
    %3344 = vmatprep.subr.mxu0 0.0
    %3345 = vmatpush1.msra.mxu0 0.0
    %3346 = vmatprep.subr.mxu0 0.0
    %3347 = vmatpush1.msra.mxu0 0.0
    %3348 = vmatprep.subr.mxu0 0.0
    %3349 = vmatpush1.msra.mxu0 0.0
    %3350 = vmatprep.subr.mxu0 0.0
    %3351 = vmatpush1.msra.mxu0 0.0
    %3352 = vmatprep.mubr.f32.mxu0 0.0
    %3353 = vmatmul.mubr.f32.gmra.mrb[0].mxu0 %v3191
    %v3354 = vpop.f32.mrb[0].mxu0
    %v3355 = vadd.f32 0.0, %v3354
    %v3356 = vpop.f32.mrb[0].mxu0
    %3357 = vdwg.mxu0
    %3359 = vrot.lane.b32.xlu0 %v2845, 32
    %v3360 = vpop.permute.xlu0 %3359
    %v3361 = vsel %vm226, %v3360, 0
    %3363 = vmatprep.subr.mxu0 0.0
    %3364 = vmatpush1.msra.mxu0 %v189
    %3365 = vmatprep.subr.mxu0 0.0
    %3366 = vmatpush1.msra.mxu0 %v190
    %3367 = vmatprep.subr.mxu0 0.0
    %3368 = vmatpush1.msra.mxu0 %v191
    %3369 = vmatprep.subr.mxu0 0.0
    %3370 = vmatpush1.msra.mxu0 %v192
    %3371 = vmatprep.subr.mxu0 0.0
    %3372 = vmatpush1.msra.mxu0 0.0
    %3373 = vmatprep.subr.mxu0 0.0
    %3374 = vmatpush1.msra.mxu0 0.0
    %3375 = vmatprep.subr.mxu0 0.0
    %3376 = vmatpush1.msra.mxu0 0.0
    %3377 = vmatprep.subr.mxu0 0.0
    %3378 = vmatpush1.msra.mxu0 0.0
    %3379 = vmatprep.subr.mxu0 0.0
    %3380 = vmatpush1.msra.mxu0 0.0
    %3381 = vmatprep.subr.mxu0 0.0
    %3382 = vmatpush1.msra.mxu0 0.0
    %3383 = vmatprep.subr.mxu0 0.0
    %3384 = vmatpush1.msra.mxu0 0.0
    %3385 = vmatprep.subr.mxu0 0.0
    %3386 = vmatpush1.msra.mxu0 0.0
    %3387 = vmatprep.subr.mxu0 0.0
    %3388 = vmatpush1.msra.mxu0 0.0
    %3389 = vmatprep.subr.mxu0 0.0
    %3390 = vmatpush1.msra.mxu0 0.0
    %3391 = vmatprep.subr.mxu0 0.0
    %3392 = vmatpush1.msra.mxu0 0.0
    %3393 = vmatprep.subr.mxu0 0.0
    %3394 = vmatpush1.msra.mxu0 0.0
    %3395 = vmatprep.subr.mxu0 0.0
    %3396 = vmatpush1.msra.mxu0 0.0
    %3397 = vmatprep.subr.mxu0 0.0
    %3398 = vmatpush1.msra.mxu0 0.0
    %3399 = vmatprep.subr.mxu0 0.0
    %3400 = vmatpush1.msra.mxu0 0.0
    %3401 = vmatprep.subr.mxu0 0.0
    %3402 = vmatpush1.msra.mxu0 0.0
    %3403 = vmatprep.subr.mxu0 0.0
    %3404 = vmatpush1.msra.mxu0 0.0
    %3405 = vmatprep.subr.mxu0 0.0
    %3406 = vmatpush1.msra.mxu0 0.0
    %3407 = vmatprep.subr.mxu0 0.0
    %3408 = vmatpush1.msra.mxu0 0.0
    %3409 = vmatprep.subr.mxu0 0.0
    %3410 = vmatpush1.msra.mxu0 0.0
    %3411 = vmatprep.subr.mxu0 0.0
    %3412 = vmatpush1.msra.mxu0 0.0
    %3413 = vmatprep.subr.mxu0 0.0
    %3414 = vmatpush1.msra.mxu0 0.0
    %3415 = vmatprep.subr.mxu0 0.0
    %3416 = vmatpush1.msra.mxu0 0.0
    %3417 = vmatprep.subr.mxu0 0.0
    %3418 = vmatpush1.msra.mxu0 0.0
    %3419 = vmatprep.subr.mxu0 0.0
    %3420 = vmatpush1.msra.mxu0 0.0
    %3421 = vmatprep.subr.mxu0 0.0
    %3422 = vmatpush1.msra.mxu0 0.0
    %3423 = vmatprep.subr.mxu0 0.0
    %3424 = vmatpush1.msra.mxu0 0.0
    %3425 = vmatprep.subr.mxu0 0.0
    %3426 = vmatpush1.msra.mxu0 0.0
    %3427 = vmatprep.mubr.f32.mxu0 0.0
    %3428 = vmatmul.mubr.f32.gmra.mrb[0].mxu0 %v3361
    %v3429 = vpop.f32.mrb[0].mxu0
    %v3430 = vadd.f32 %v3355, %v3429
    %v3431 = vpop.f32.mrb[0].mxu0
    %3432 = vdwg.mxu0
    %v3433 = vadd.f32 %v3430, %v558
    %v3434 = vxor.u32 %v3433, 2147483648
    %v3435 = vmul.f32 %v3434, 1.442695
    %v3436 = vpow.pop %v3435
    %v3437 = vadd.f32 %v3436, 1.0
    %v3438 = vrcp.pop %v3437
    %v3439 = vmul.f32 1.0, %v3438
    %v3440 = vtanh.pop %v3433
    %v3441 = vmul.f32 %v3439, %v2669
    %3443 = vrot.lane.b32.xlu0 %v3440, 64
    %v3444 = vpop.permute.xlu0 %3443
    %v3446 = vmul.f32 %v3439, %v3444
    %3448 = vrot.lane.b32.xlu0 %v3446, 32
    %v3449 = vpop.permute.xlu0 %3448
    %v3451 = vadd.f32 %v3441, %v3449
    %v3452 = vtanh.pop %v3451
    %3454 = vrot.lane.b32.xlu0 %v3452, 64
    %v3455 = vpop.permute.xlu0 %3454
    %v3457 = vmul.f32 %v3439, %v3455
    %3458 = vmatprep.subr.mxu0 0.0
    %3459 = vmatpush1.msra.mxu0 %v201
    %3460 = vmatprep.subr.mxu0 0.0
    %3461 = vmatpush1.msra.mxu0 %v202
    %3462 = vmatprep.subr.mxu0 0.0
    %3463 = vmatpush1.msra.mxu0 %v203
    %3464 = vmatprep.subr.mxu0 0.0
    %3465 = vmatpush1.msra.mxu0 %v204
    %3466 = vmatprep.subr.mxu0 0.0
    %3467 = vmatpush1.msra.mxu0 0.0
    %3468 = vmatprep.subr.mxu0 0.0
    %3469 = vmatpush1.msra.mxu0 0.0
    %3470 = vmatprep.subr.mxu0 0.0
    %3471 = vmatpush1.msra.mxu0 0.0
    %3472 = vmatprep.subr.mxu0 0.0
    %3473 = vmatpush1.msra.mxu0 0.0
    %3474 = vmatprep.subr.mxu0 0.0
    %3475 = vmatpush1.msra.mxu0 0.0
    %3476 = vmatprep.subr.mxu0 0.0
    %3477 = vmatpush1.msra.mxu0 0.0
    %3478 = vmatprep.subr.mxu0 0.0
    %3479 = vmatpush1.msra.mxu0 0.0
    %3480 = vmatprep.subr.mxu0 0.0
    %3481 = vmatpush1.msra.mxu0 0.0
    %3482 = vmatprep.subr.mxu0 0.0
    %3483 = vmatpush1.msra.mxu0 0.0
    %3484 = vmatprep.subr.mxu0 0.0
    %3485 = vmatpush1.msra.mxu0 0.0
    %3486 = vmatprep.subr.mxu0 0.0
    %3487 = vmatpush1.msra.mxu0 0.0
    %3488 = vmatprep.subr.mxu0 0.0
    %3489 = vmatpush1.msra.mxu0 0.0
    %3490 = vmatprep.subr.mxu0 0.0
    %3491 = vmatpush1.msra.mxu0 0.0
    %3492 = vmatprep.subr.mxu0 0.0
    %3493 = vmatpush1.msra.mxu0 0.0
    %3494 = vmatprep.subr.mxu0 0.0
    %3495 = vmatpush1.msra.mxu0 0.0
    %3496 = vmatprep.subr.mxu0 0.0
    %3497 = vmatpush1.msra.mxu0 0.0
    %3498 = vmatprep.subr.mxu0 0.0
    %3499 = vmatpush1.msra.mxu0 0.0
    %3500 = vmatprep.subr.mxu0 0.0
    %3501 = vmatpush1.msra.mxu0 0.0
    %3502 = vmatprep.subr.mxu0 0.0
    %3503 = vmatpush1.msra.mxu0 0.0
    %3504 = vmatprep.subr.mxu0 0.0
    %3505 = vmatpush1.msra.mxu0 0.0
    %3506 = vmatprep.subr.mxu0 0.0
    %3507 = vmatpush1.msra.mxu0 0.0
    %3508 = vmatprep.subr.mxu0 0.0
    %3509 = vmatpush1.msra.mxu0 0.0
    %3510 = vmatprep.subr.mxu0 0.0
    %3511 = vmatpush1.msra.mxu0 0.0
    %3512 = vmatprep.subr.mxu0 0.0
    %3513 = vmatpush1.msra.mxu0 0.0
    %3514 = vmatprep.subr.mxu0 0.0
    %3515 = vmatpush1.msra.mxu0 0.0
    %3516 = vmatprep.subr.mxu0 0.0
    %3517 = vmatpush1.msra.mxu0 0.0
    %3518 = vmatprep.subr.mxu0 0.0
    %3519 = vmatpush1.msra.mxu0 0.0
    %3520 = vmatprep.subr.mxu0 0.0
    %3521 = vmatpush1.msra.mxu0 0.0
    %3522 = vmatprep.mubr.f32.mxu0 0.0
    %3523 = vmatmul.mubr.f32.gmra.mrb[0].mxu0 %v3361
    %v3524 = vpop.f32.mrb[0].mxu0
    %v3525 = vadd.f32 0.0, %v3524
    %v3526 = vpop.f32.mrb[0].mxu0
    %3527 = vdwg.mxu0
    %v3528 = vrot.slane %v185, 5
    %v3529 = vrot.slane %v186, 4
    %v3530 = vsel %vm303, %v3529, %v3528
    %v3531 = vsel %vm305, %v3530, 0
    %3533 = vmatprep.subr.mxu0 0.0
    %3534 = vmatpush1.msra.mxu0 %v187
    %3535 = vmatprep.subr.mxu0 0.0
    %3536 = vmatpush1.msra.mxu0 %v188
    %3537 = vmatprep.subr.mxu0 0.0
    %3538 = vmatpush1.msra.mxu0 0.0
    %3539 = vmatprep.subr.mxu0 0.0
    %3540 = vmatpush1.msra.mxu0 0.0
    %3541 = vmatprep.subr.mxu0 0.0
    %3542 = vmatpush1.msra.mxu0 0.0
    %3543 = vmatprep.subr.mxu0 0.0
    %3544 = vmatpush1.msra.mxu0 0.0
    %3545 = vmatprep.subr.mxu0 0.0
    %3546 = vmatpush1.msra.mxu0 0.0
    %3547 = vmatprep.subr.mxu0 0.0
    %3548 = vmatpush1.msra.mxu0 0.0
    %3549 = vmatprep.subr.mxu0 0.0
    %3550 = vmatpush1.msra.mxu0 0.0
    %3551 = vmatprep.subr.mxu0 0.0
    %3552 = vmatpush1.msra.mxu0 0.0
    %3553 = vmatprep.subr.mxu0 0.0
    %3554 = vmatpush1.msra.mxu0 0.0
    %3555 = vmatprep.subr.mxu0 0.0
    %3556 = vmatpush1.msra.mxu0 0.0
    %3557 = vmatprep.subr.mxu0 0.0
    %3558 = vmatpush1.msra.mxu0 0.0
    %3559 = vmatprep.subr.mxu0 0.0
    %3560 = vmatpush1.msra.mxu0 0.0
    %3561 = vmatprep.subr.mxu0 0.0
    %3562 = vmatpush1.msra.mxu0 0.0
    %3563 = vmatprep.subr.mxu0 0.0
    %3564 = vmatpush1.msra.mxu0 0.0
    %3565 = vmatprep.subr.mxu0 0.0
    %3566 = vmatpush1.msra.mxu0 0.0
    %3567 = vmatprep.subr.mxu0 0.0
    %3568 = vmatpush1.msra.mxu0 0.0
    %3569 = vmatprep.subr.mxu0 0.0
    %3570 = vmatpush1.msra.mxu0 0.0
    %3571 = vmatprep.subr.mxu0 0.0
    %3572 = vmatpush1.msra.mxu0 0.0
    %3573 = vmatprep.subr.mxu0 0.0
    %3574 = vmatpush1.msra.mxu0 0.0
    %3575 = vmatprep.subr.mxu0 0.0
    %3576 = vmatpush1.msra.mxu0 0.0
    %3577 = vmatprep.subr.mxu0 0.0
    %3578 = vmatpush1.msra.mxu0 0.0
    %3579 = vmatprep.subr.mxu0 0.0
    %3580 = vmatpush1.msra.mxu0 0.0
    %3581 = vmatprep.subr.mxu0 0.0
    %3582 = vmatpush1.msra.mxu0 0.0
    %3583 = vmatprep.subr.mxu0 0.0
    %3584 = vmatpush1.msra.mxu0 0.0
    %3585 = vmatprep.subr.mxu0 0.0
    %3586 = vmatpush1.msra.mxu0 0.0
    %3587 = vmatprep.subr.mxu0 0.0
    %3588 = vmatpush1.msra.mxu0 0.0
    %3589 = vmatprep.subr.mxu0 0.0
    %3590 = vmatpush1.msra.mxu0 0.0
    %3591 = vmatprep.subr.mxu0 0.0
    %3592 = vmatpush1.msra.mxu0 0.0
    %3593 = vmatprep.subr.mxu0 0.0
    %3594 = vmatpush1.msra.mxu0 0.0
    %3595 = vmatprep.subr.mxu0 0.0
    %3596 = vmatpush1.msra.mxu0 0.0
    %3597 = vmatprep.mubr.f32.mxu0 0.0
    %3598 = vmatmul.mubr.f32.gmra.mrb[0].mxu0 %v3531
    %v3599 = vpop.f32.mrb[0].mxu0
    %v3600 = vadd.f32 %v3525, %v3599
    %v3601 = vpop.f32.mrb[0].mxu0
    %3602 = vdwg.mxu0
    %v3603 = vadd.f32 %v3600, %v382
    %v3604 = vxor.u32 %v3603, 2147483648
    %v3605 = vmul.f32 %v3604, 1.442695
    %v3606 = vpow.pop %v3605
    %v3607 = vadd.f32 %v3606, 1.0
    %v3608 = vrcp.pop %v3607
    %v3609 = vmul.f32 1.0, %v3608
    %v3610 = vtanh.pop %v3603
    %v3611 = vmul.f32 %v3609, %v2839
    %3613 = vrot.lane.b32.xlu0 %v3610, 64
    %v3614 = vpop.permute.xlu0 %3613
    %v3616 = vmul.f32 %v3609, %v3614
    %3618 = vrot.lane.b32.xlu0 %v3616, 32
    %v3619 = vpop.permute.xlu0 %3618
    %v3621 = vadd.f32 %v3611, %v3619
    %v3622 = vtanh.pop %v3621
    %3624 = vrot.lane.b32.xlu0 %v3622, 64
    %v3625 = vpop.permute.xlu0 %3624
    %v3627 = vmul.f32 %v3609, %v3625
    %3628 = vmatprep.subr.mxu0 0.0
    %3629 = vmatpush1.msra.mxu0 %v213
    %3630 = vmatprep.subr.mxu0 0.0
    %3631 = vmatpush1.msra.mxu0 %v214
    %3632 = vmatprep.subr.mxu0 0.0
    %3633 = vmatpush1.msra.mxu0 %v215
    %3634 = vmatprep.subr.mxu0 0.0
    %3635 = vmatpush1.msra.mxu0 %v216
    %3636 = vmatprep.subr.mxu0 0.0
    %3637 = vmatpush1.msra.mxu0 0.0
    %3638 = vmatprep.subr.mxu0 0.0
    %3639 = vmatpush1.msra.mxu0 0.0
    %3640 = vmatprep.subr.mxu0 0.0
    %3641 = vmatpush1.msra.mxu0 0.0
    %3642 = vmatprep.subr.mxu0 0.0
    %3643 = vmatpush1.msra.mxu0 0.0
    %3644 = vmatprep.subr.mxu0 0.0
    %3645 = vmatpush1.msra.mxu0 0.0
    %3646 = vmatprep.subr.mxu0 0.0
    %3647 = vmatpush1.msra.mxu0 0.0
    %3648 = vmatprep.subr.mxu0 0.0
    %3649 = vmatpush1.msra.mxu0 0.0
    %3650 = vmatprep.subr.mxu0 0.0
    %3651 = vmatpush1.msra.mxu0 0.0
    %3652 = vmatprep.subr.mxu0 0.0
    %3653 = vmatpush1.msra.mxu0 0.0
    %3654 = vmatprep.subr.mxu0 0.0
    %3655 = vmatpush1.msra.mxu0 0.0
    %3656 = vmatprep.subr.mxu0 0.0
    %3657 = vmatpush1.msra.mxu0 0.0
    %3658 = vmatprep.subr.mxu0 0.0
    %3659 = vmatpush1.msra.mxu0 0.0
    %3660 = vmatprep.subr.mxu0 0.0
    %3661 = vmatpush1.msra.mxu0 0.0
    %3662 = vmatprep.subr.mxu0 0.0
    %3663 = vmatpush1.msra.mxu0 0.0
    %3664 = vmatprep.subr.mxu0 0.0
    %3665 = vmatpush1.msra.mxu0 0.0
    %3666 = vmatprep.subr.mxu0 0.0
    %3667 = vmatpush1.msra.mxu0 0.0
    %3668 = vmatprep.subr.mxu0 0.0
    %3669 = vmatpush1.msra.mxu0 0.0
    %3670 = vmatprep.subr.mxu0 0.0
    %3671 = vmatpush1.msra.mxu0 0.0
    %3672 = vmatprep.subr.mxu0 0.0
    %3673 = vmatpush1.msra.mxu0 0.0
    %3674 = vmatprep.subr.mxu0 0.0
    %3675 = vmatpush1.msra.mxu0 0.0
    %3676 = vmatprep.subr.mxu0 0.0
    %3677 = vmatpush1.msra.mxu0 0.0
    %3678 = vmatprep.subr.mxu0 0.0
    %3679 = vmatpush1.msra.mxu0 0.0
    %3680 = vmatprep.subr.mxu0 0.0
    %3681 = vmatpush1.msra.mxu0 0.0
    %3682 = vmatprep.subr.mxu0 0.0
    %3683 = vmatpush1.msra.mxu0 0.0
    %3684 = vmatprep.subr.mxu0 0.0
    %3685 = vmatpush1.msra.mxu0 0.0
    %3686 = vmatprep.subr.mxu0 0.0
    %3687 = vmatpush1.msra.mxu0 0.0
    %3688 = vmatprep.subr.mxu0 0.0
    %3689 = vmatpush1.msra.mxu0 0.0
    %3690 = vmatprep.subr.mxu0 0.0
    %3691 = vmatpush1.msra.mxu0 0.0
    %3692 = vmatprep.mubr.f32.mxu0 0.0
    %3693 = vmatmul.mubr.f32.gmra.mrb[0].mxu0 %v3019
    %v3694 = vpop.f32.mrb[0].mxu0
    %v3695 = vadd.f32 0.0, %v3694
    %v3696 = vpop.f32.mrb[0].mxu0
    %3697 = vdwg.mxu0
    %3699 = vrot.lane.b32.xlu0 %v3287, 32
    %v3700 = vpop.permute.xlu0 %3699
    %v3701 = vsel %vm226, %v3700, 0
    %3703 = vmatprep.subr.mxu0 0.0
    %3704 = vmatpush1.msra.mxu0 %v197
    %3705 = vmatprep.subr.mxu0 0.0
    %3706 = vmatpush1.msra.mxu0 %v198
    %3707 = vmatprep.subr.mxu0 0.0
    %3708 = vmatpush1.msra.mxu0 %v199
    %3709 = vmatprep.subr.mxu0 0.0
    %3710 = vmatpush1.msra.mxu0 %v200
    %3711 = vmatprep.subr.mxu0 0.0
    %3712 = vmatpush1.msra.mxu0 0.0
    %3713 = vmatprep.subr.mxu0 0.0
    %3714 = vmatpush1.msra.mxu0 0.0
    %3715 = vmatprep.subr.mxu0 0.0
    %3716 = vmatpush1.msra.mxu0 0.0
    %3717 = vmatprep.subr.mxu0 0.0
    %3718 = vmatpush1.msra.mxu0 0.0
    %3719 = vmatprep.subr.mxu0 0.0
    %3720 = vmatpush1.msra.mxu0 0.0
    %3721 = vmatprep.subr.mxu0 0.0
    %3722 = vmatpush1.msra.mxu0 0.0
    %3723 = vmatprep.subr.mxu0 0.0
    %3724 = vmatpush1.msra.mxu0 0.0
    %3725 = vmatprep.subr.mxu0 0.0
    %3726 = vmatpush1.msra.mxu0 0.0
    %3727 = vmatprep.subr.mxu0 0.0
    %3728 = vmatpush1.msra.mxu0 0.0
    %3729 = vmatprep.subr.mxu0 0.0
    %3730 = vmatpush1.msra.mxu0 0.0
    %3731 = vmatprep.subr.mxu0 0.0
    %3732 = vmatpush1.msra.mxu0 0.0
    %3733 = vmatprep.subr.mxu0 0.0
    %3734 = vmatpush1.msra.mxu0 0.0
    %3735 = vmatprep.subr.mxu0 0.0
    %3736 = vmatpush1.msra.mxu0 0.0
    %3737 = vmatprep.subr.mxu0 0.0
    %3738 = vmatpush1.msra.mxu0 0.0
    %3739 = vmatprep.subr.mxu0 0.0
    %3740 = vmatpush1.msra.mxu0 0.0
    %3741 = vmatprep.subr.mxu0 0.0
    %3742 = vmatpush1.msra.mxu0 0.0
    %3743 = vmatprep.subr.mxu0 0.0
    %3744 = vmatpush1.msra.mxu0 0.0
    %3745 = vmatprep.subr.mxu0 0.0
    %3746 = vmatpush1.msra.mxu0 0.0
    %3747 = vmatprep.subr.mxu0 0.0
    %3748 = vmatpush1.msra.mxu0 0.0
    %3749 = vmatprep.subr.mxu0 0.0
    %3750 = vmatpush1.msra.mxu0 0.0
    %3751 = vmatprep.subr.mxu0 0.0
    %3752 = vmatpush1.msra.mxu0 0.0
    %3753 = vmatprep.subr.mxu0 0.0
    %3754 = vmatpush1.msra.mxu0 0.0
    %3755 = vmatprep.subr.mxu0 0.0
    %3756 = vmatpush1.msra.mxu0 0.0
    %3757 = vmatprep.subr.mxu0 0.0
    %3758 = vmatpush1.msra.mxu0 0.0
    %3759 = vmatprep.subr.mxu0 0.0
    %3760 = vmatpush1.msra.mxu0 0.0
    %3761 = vmatprep.subr.mxu0 0.0
    %3762 = vmatpush1.msra.mxu0 0.0
    %3763 = vmatprep.subr.mxu0 0.0
    %3764 = vmatpush1.msra.mxu0 0.0
    %3765 = vmatprep.subr.mxu0 0.0
    %3766 = vmatpush1.msra.mxu0 0.0
    %3767 = vmatprep.mubr.f32.mxu0 0.0
    %3768 = vmatmul.mubr.f32.gmra.mrb[0].mxu0 %v3701
    %v3769 = vpop.f32.mrb[0].mxu0
    %v3770 = vadd.f32 %v3695, %v3769
    %v3771 = vpop.f32.mrb[0].mxu0
    %3772 = vdwg.mxu0
    %v3773 = vadd.f32 %v3770, %v1419
    %v3774 = vxor.u32 %v3773, 2147483648
    %v3775 = vmul.f32 %v3774, 1.442695
    %v3776 = vpow.pop %v3775
    %v3777 = vadd.f32 %v3776, 1.0
    %v3778 = vrcp.pop %v3777
    %v3779 = vmul.f32 1.0, %v3778
    %v3780 = vtanh.pop %v3773
    %v3781 = vmul.f32 %v3779, %v3009
    %3783 = vrot.lane.b32.xlu0 %v3780, 64
    %v3784 = vpop.permute.xlu0 %3783
    %v3786 = vmul.f32 %v3779, %v3784
    %3788 = vrot.lane.b32.xlu0 %v3786, 32
    %v3789 = vpop.permute.xlu0 %3788
    %v3791 = vadd.f32 %v3781, %v3789
    %v3792 = vtanh.pop %v3791
    %3794 = vrot.lane.b32.xlu0 %v3792, 64
    %v3795 = vpop.permute.xlu0 %3794
    %v3797 = vmul.f32 %v3779, %v3795
    %3799 = vrot.lane.b32.xlu0 %v3797, 32
    %v3800 = vpop.permute.xlu0 %3799
    %v3801 = vsel %vm226, %v3800, 0
    %3803 = vmatprep.subr.mxu0 0.0
    %3804 = vmatpush1.msra.mxu0 %v221
    %3805 = vmatprep.subr.mxu0 0.0
    %3806 = vmatpush1.msra.mxu0 %v222
    %3807 = vmatprep.subr.mxu0 0.0
    %3808 = vmatpush1.msra.mxu0 %v223
    %3809 = vmatprep.subr.mxu0 0.0
    %3810 = vmatpush1.msra.mxu0 %v224
    %3811 = vmatprep.subr.mxu0 0.0
    %3812 = vmatpush1.msra.mxu0 0.0
    %3813 = vmatprep.subr.mxu0 0.0
    %3814 = vmatpush1.msra.mxu0 0.0
    %3815 = vmatprep.subr.mxu0 0.0
    %3816 = vmatpush1.msra.mxu0 0.0
    %3817 = vmatprep.subr.mxu0 0.0
    %3818 = vmatpush1.msra.mxu0 0.0
    %3819 = vmatprep.subr.mxu0 0.0
    %3820 = vmatpush1.msra.mxu0 0.0
    %3821 = vmatprep.subr.mxu0 0.0
    %3822 = vmatpush1.msra.mxu0 0.0
    %3823 = vmatprep.subr.mxu0 0.0
    %3824 = vmatpush1.msra.mxu0 0.0
    %3825 = vmatprep.subr.mxu0 0.0
    %3826 = vmatpush1.msra.mxu0 0.0
    %3827 = vmatprep.subr.mxu0 0.0
    %3828 = vmatpush1.msra.mxu0 0.0
    %3829 = vmatprep.subr.mxu0 0.0
    %3830 = vmatpush1.msra.mxu0 0.0
    %3831 = vmatprep.subr.mxu0 0.0
    %3832 = vmatpush1.msra.mxu0 0.0
    %3833 = vmatprep.subr.mxu0 0.0
    %3834 = vmatpush1.msra.mxu0 0.0
    %3835 = vmatprep.subr.mxu0 0.0
    %3836 = vmatpush1.msra.mxu0 0.0
    %3837 = vmatprep.subr.mxu0 0.0
    %3838 = vmatpush1.msra.mxu0 0.0
    %3839 = vmatprep.subr.mxu0 0.0
    %3840 = vmatpush1.msra.mxu0 0.0
    %3841 = vmatprep.subr.mxu0 0.0
    %3842 = vmatpush1.msra.mxu0 0.0
    %3843 = vmatprep.subr.mxu0 0.0
    %3844 = vmatpush1.msra.mxu0 0.0
    %3845 = vmatprep.subr.mxu0 0.0
    %3846 = vmatpush1.msra.mxu0 0.0
    %3847 = vmatprep.subr.mxu0 0.0
    %3848 = vmatpush1.msra.mxu0 0.0
    %3849 = vmatprep.subr.mxu0 0.0
    %3850 = vmatpush1.msra.mxu0 0.0
    %3851 = vmatprep.subr.mxu0 0.0
    %3852 = vmatpush1.msra.mxu0 0.0
    %3853 = vmatprep.subr.mxu0 0.0
    %3854 = vmatpush1.msra.mxu0 0.0
    %3855 = vmatprep.subr.mxu0 0.0
    %3856 = vmatpush1.msra.mxu0 0.0
    %3857 = vmatprep.subr.mxu0 0.0
    %3858 = vmatpush1.msra.mxu0 0.0
    %3859 = vmatprep.subr.mxu0 0.0
    %3860 = vmatpush1.msra.mxu0 0.0
    %3861 = vmatprep.subr.mxu0 0.0
    %3862 = vmatpush1.msra.mxu0 0.0
    %3863 = vmatprep.subr.mxu0 0.0
    %3864 = vmatpush1.msra.mxu0 0.0
    %3865 = vmatprep.subr.mxu0 0.0
    %3866 = vmatpush1.msra.mxu0 0.0
    %3867 = vmatprep.mubr.f32.mxu0 0.0
    %3868 = vmatmul.mubr.f32.gmra.mrb[0].mxu0 %v3801
    %v3869 = vpop.f32.mrb[0].mxu0
    %v3870 = vadd.f32 %v1450, %v3869
    %v3871 = vpop.f32.mrb[0].mxu0
    %3872 = vdwg.mxu0
    %v3875 = vunpack.c.l.s4 1966171168
    %v3876 = vunpack.c.0.s8 %v3875
    %v3877 = vlaneseq
    %v3878 = vshrl.u32 %v3877, 7
    %v3879 = vsub.s32 %v3876, %v3878
    %v3880 = vrot.slane %v3870, %v3879
    %v3881 = vcombine.high %v3880, %v3880
    %v3883 = vunpack.c.l.s4 1966171168
    %v3884 = vunpack.c.0.s8 %v3883
    %v3885 = vlaneseq
    %v3886 = vshrl.u32 %v3885, 7
    %v3887 = vsub.s32 %v3884, %v3886
    %v3888 = vrot.slane %v3880, %v3887
    %v3890 = vunpack.c.l.s4 1966171168
    %v3891 = vunpack.c.0.s8 %v3890
    %v3892 = vlaneseq
    %v3893 = vshrl.u32 %v3892, 7
    %v3894 = vsub.s32 %v3891, %v3893
    %v3895 = vrot.slane %v3881, %v3894
    %3898 = vst [vmem:[#allocation19 + $0x3] sm:$0x1] %v3888
    %3899 = vst [vmem:[#allocation19 + $0xb] sm:$0x1] %v3895
    %3900 = vmatprep.subr.mxu0 0.0
    %3901 = vmatpush1.msra.mxu0 %v209
    %3902 = vmatprep.subr.mxu0 0.0
    %3903 = vmatpush1.msra.mxu0 %v210
    %3904 = vmatprep.subr.mxu0 0.0
    %3905 = vmatpush1.msra.mxu0 %v211
    %3906 = vmatprep.subr.mxu0 0.0
    %3907 = vmatpush1.msra.mxu0 %v212
    %3908 = vmatprep.subr.mxu0 0.0
    %3909 = vmatpush1.msra.mxu0 0.0
    %3910 = vmatprep.subr.mxu0 0.0
    %3911 = vmatpush1.msra.mxu0 0.0
    %3912 = vmatprep.subr.mxu0 0.0
    %3913 = vmatpush1.msra.mxu0 0.0
    %3914 = vmatprep.subr.mxu0 0.0
    %3915 = vmatpush1.msra.mxu0 0.0
    %3916 = vmatprep.subr.mxu0 0.0
    %3917 = vmatpush1.msra.mxu0 0.0
    %3918 = vmatprep.subr.mxu0 0.0
    %3919 = vmatpush1.msra.mxu0 0.0
    %3920 = vmatprep.subr.mxu0 0.0
    %3921 = vmatpush1.msra.mxu0 0.0
    %3922 = vmatprep.subr.mxu0 0.0
    %3923 = vmatpush1.msra.mxu0 0.0
    %3924 = vmatprep.subr.mxu0 0.0
    %3925 = vmatpush1.msra.mxu0 0.0
    %3926 = vmatprep.subr.mxu0 0.0
    %3927 = vmatpush1.msra.mxu0 0.0
    %3928 = vmatprep.subr.mxu0 0.0
    %3929 = vmatpush1.msra.mxu0 0.0
    %3930 = vmatprep.subr.mxu0 0.0
    %3931 = vmatpush1.msra.mxu0 0.0
    %3932 = vmatprep.subr.mxu0 0.0
    %3933 = vmatpush1.msra.mxu0 0.0
    %3934 = vmatprep.subr.mxu0 0.0
    %3935 = vmatpush1.msra.mxu0 0.0
    %3936 = vmatprep.subr.mxu0 0.0
    %3937 = vmatpush1.msra.mxu0 0.0
    %3938 = vmatprep.subr.mxu0 0.0
    %3939 = vmatpush1.msra.mxu0 0.0
    %3940 = vmatprep.subr.mxu0 0.0
    %3941 = vmatpush1.msra.mxu0 0.0
    %3942 = vmatprep.subr.mxu0 0.0
    %3943 = vmatpush1.msra.mxu0 0.0
    %3944 = vmatprep.subr.mxu0 0.0
    %3945 = vmatpush1.msra.mxu0 0.0
    %3946 = vmatprep.subr.mxu0 0.0
    %3947 = vmatpush1.msra.mxu0 0.0
    %3948 = vmatprep.subr.mxu0 0.0
    %3949 = vmatpush1.msra.mxu0 0.0
    %3950 = vmatprep.subr.mxu0 0.0
    %3951 = vmatpush1.msra.mxu0 0.0
    %3952 = vmatprep.subr.mxu0 0.0
    %3953 = vmatpush1.msra.mxu0 0.0
    %3954 = vmatprep.subr.mxu0 0.0
    %3955 = vmatpush1.msra.mxu0 0.0
    %3956 = vmatprep.subr.mxu0 0.0
    %3957 = vmatpush1.msra.mxu0 0.0
    %3958 = vmatprep.subr.mxu0 0.0
    %3959 = vmatpush1.msra.mxu0 0.0
    %3960 = vmatprep.subr.mxu0 0.0
    %3961 = vmatpush1.msra.mxu0 0.0
    %3962 = vmatprep.subr.mxu0 0.0
    %3963 = vmatpush1.msra.mxu0 0.0
    %3964 = vmatprep.mubr.f32.mxu0 0.0
    %3965 = vmatmul.mubr.f32.gmra.mrb[0].mxu0 %v3701
    %v3966 = vpop.f32.mrb[0].mxu0
    %v3967 = vadd.f32 0.0, %v3966
    %v3968 = vpop.f32.mrb[0].mxu0
    %3969 = vdwg.mxu0
    %3971 = vrot.lane.b32.xlu0 %v3457, 32
    %v3972 = vpop.permute.xlu0 %3971
    %v3973 = vsel %vm226, %v3972, 0
    %3975 = vmatprep.subr.mxu0 0.0
    %3976 = vmatpush1.msra.mxu0 %v193
    %3977 = vmatprep.subr.mxu0 0.0
    %3978 = vmatpush1.msra.mxu0 %v194
    %3979 = vmatprep.subr.mxu0 0.0
    %3980 = vmatpush1.msra.mxu0 %v195
    %3981 = vmatprep.subr.mxu0 0.0
    %3982 = vmatpush1.msra.mxu0 %v196
    %3983 = vmatprep.subr.mxu0 0.0
    %3984 = vmatpush1.msra.mxu0 0.0
    %3985 = vmatprep.subr.mxu0 0.0
    %3986 = vmatpush1.msra.mxu0 0.0
    %3987 = vmatprep.subr.mxu0 0.0
    %3988 = vmatpush1.msra.mxu0 0.0
    %3989 = vmatprep.subr.mxu0 0.0
    %3990 = vmatpush1.msra.mxu0 0.0
    %3991 = vmatprep.subr.mxu0 0.0
    %3992 = vmatpush1.msra.mxu0 0.0
    %3993 = vmatprep.subr.mxu0 0.0
    %3994 = vmatpush1.msra.mxu0 0.0
    %3995 = vmatprep.subr.mxu0 0.0
    %3996 = vmatpush1.msra.mxu0 0.0
    %3997 = vmatprep.subr.mxu0 0.0
    %3998 = vmatpush1.msra.mxu0 0.0
    %3999 = vmatprep.subr.mxu0 0.0
    %4000 = vmatpush1.msra.mxu0 0.0
    %4001 = vmatprep.subr.mxu0 0.0
    %4002 = vmatpush1.msra.mxu0 0.0
    %4003 = vmatprep.subr.mxu0 0.0
    %4004 = vmatpush1.msra.mxu0 0.0
    %4005 = vmatprep.subr.mxu0 0.0
    %4006 = vmatpush1.msra.mxu0 0.0
    %4007 = vmatprep.subr.mxu0 0.0
    %4008 = vmatpush1.msra.mxu0 0.0
    %4009 = vmatprep.subr.mxu0 0.0
    %4010 = vmatpush1.msra.mxu0 0.0
    %4011 = vmatprep.subr.mxu0 0.0
    %4012 = vmatpush1.msra.mxu0 0.0
    %4013 = vmatprep.subr.mxu0 0.0
    %4014 = vmatpush1.msra.mxu0 0.0
    %4015 = vmatprep.subr.mxu0 0.0
    %4016 = vmatpush1.msra.mxu0 0.0
    %4017 = vmatprep.subr.mxu0 0.0
    %4018 = vmatpush1.msra.mxu0 0.0
    %4019 = vmatprep.subr.mxu0 0.0
    %4020 = vmatpush1.msra.mxu0 0.0
    %4021 = vmatprep.subr.mxu0 0.0
    %4022 = vmatpush1.msra.mxu0 0.0
    %4023 = vmatprep.subr.mxu0 0.0
    %4024 = vmatpush1.msra.mxu0 0.0
    %4025 = vmatprep.subr.mxu0 0.0
    %4026 = vmatpush1.msra.mxu0 0.0
    %4027 = vmatprep.subr.mxu0 0.0
    %4028 = vmatpush1.msra.mxu0 0.0
    %4029 = vmatprep.subr.mxu0 0.0
    %4030 = vmatpush1.msra.mxu0 0.0
    %4031 = vmatprep.subr.mxu0 0.0
    %4032 = vmatpush1.msra.mxu0 0.0
    %4033 = vmatprep.subr.mxu0 0.0
    %4034 = vmatpush1.msra.mxu0 0.0
    %4035 = vmatprep.subr.mxu0 0.0
    %4036 = vmatpush1.msra.mxu0 0.0
    %4037 = vmatprep.subr.mxu0 0.0
    %4038 = vmatpush1.msra.mxu0 0.0
    %4039 = vmatprep.mubr.f32.mxu0 0.0
    %4040 = vmatmul.mubr.f32.gmra.mrb[0].mxu0 %v3973
    %v4041 = vpop.f32.mrb[0].mxu0
    %v4042 = vadd.f32 %v3967, %v4041
    %v4043 = vpop.f32.mrb[0].mxu0
    %4044 = vdwg.mxu0
    %v4045 = vadd.f32 %v4042, %v903
    %v4046 = vxor.u32 %v4045, 2147483648
    %v4047 = vmul.f32 %v4046, 1.442695
    %v4048 = vpow.pop %v4047
    %v4049 = vadd.f32 %v4048, 1.0
    %v4050 = vrcp.pop %v4049
    %v4051 = vmul.f32 1.0, %v4050
    %v4052 = vtanh.pop %v4045
    %v4053 = vmul.f32 %v4051, %v3281
    %4055 = vrot.lane.b32.xlu0 %v4052, 64
    %v4056 = vpop.permute.xlu0 %4055
    %v4058 = vmul.f32 %v4051, %v4056
    %4060 = vrot.lane.b32.xlu0 %v4058, 32
    %v4061 = vpop.permute.xlu0 %4060
    %v4063 = vadd.f32 %v4053, %v4061
    %v4064 = vtanh.pop %v4063
    %4066 = vrot.lane.b32.xlu0 %v4064, 64
    %v4067 = vpop.permute.xlu0 %4066
    %v4069 = vmul.f32 %v4051, %v4067
    %4070 = vmatprep.subr.mxu0 0.0
    %4071 = vmatpush1.msra.mxu0 %v205
    %4072 = vmatprep.subr.mxu0 0.0
    %4073 = vmatpush1.msra.mxu0 %v206
    %4074 = vmatprep.subr.mxu0 0.0
    %4075 = vmatpush1.msra.mxu0 %v207
    %4076 = vmatprep.subr.mxu0 0.0
    %4077 = vmatpush1.msra.mxu0 %v208
    %4078 = vmatprep.subr.mxu0 0.0
    %4079 = vmatpush1.msra.mxu0 0.0
    %4080 = vmatprep.subr.mxu0 0.0
    %4081 = vmatpush1.msra.mxu0 0.0
    %4082 = vmatprep.subr.mxu0 0.0
    %4083 = vmatpush1.msra.mxu0 0.0
    %4084 = vmatprep.subr.mxu0 0.0
    %4085 = vmatpush1.msra.mxu0 0.0
    %4086 = vmatprep.subr.mxu0 0.0
    %4087 = vmatpush1.msra.mxu0 0.0
    %4088 = vmatprep.subr.mxu0 0.0
    %4089 = vmatpush1.msra.mxu0 0.0
    %4090 = vmatprep.subr.mxu0 0.0
    %4091 = vmatpush1.msra.mxu0 0.0
    %4092 = vmatprep.subr.mxu0 0.0
    %4093 = vmatpush1.msra.mxu0 0.0
    %4094 = vmatprep.subr.mxu0 0.0
    %4095 = vmatpush1.msra.mxu0 0.0
    %4096 = vmatprep.subr.mxu0 0.0
    %4097 = vmatpush1.msra.mxu0 0.0
    %4098 = vmatprep.subr.mxu0 0.0
    %4099 = vmatpush1.msra.mxu0 0.0
    %4100 = vmatprep.subr.mxu0 0.0
    %4101 = vmatpush1.msra.mxu0 0.0
    %4102 = vmatprep.subr.mxu0 0.0
    %4103 = vmatpush1.msra.mxu0 0.0
    %4104 = vmatprep.subr.mxu0 0.0
    %4105 = vmatpush1.msra.mxu0 0.0
    %4106 = vmatprep.subr.mxu0 0.0
    %4107 = vmatpush1.msra.mxu0 0.0
    %4108 = vmatprep.subr.mxu0 0.0
    %4109 = vmatpush1.msra.mxu0 0.0
    %4110 = vmatprep.subr.mxu0 0.0
    %4111 = vmatpush1.msra.mxu0 0.0
    %4112 = vmatprep.subr.mxu0 0.0
    %4113 = vmatpush1.msra.mxu0 0.0
    %4114 = vmatprep.subr.mxu0 0.0
    %4115 = vmatpush1.msra.mxu0 0.0
    %4116 = vmatprep.subr.mxu0 0.0
    %4117 = vmatpush1.msra.mxu0 0.0
    %4118 = vmatprep.subr.mxu0 0.0
    %4119 = vmatpush1.msra.mxu0 0.0
    %4120 = vmatprep.subr.mxu0 0.0
    %4121 = vmatpush1.msra.mxu0 0.0
    %4122 = vmatprep.subr.mxu0 0.0
    %4123 = vmatpush1.msra.mxu0 0.0
    %4124 = vmatprep.subr.mxu0 0.0
    %4125 = vmatpush1.msra.mxu0 0.0
    %4126 = vmatprep.subr.mxu0 0.0
    %4127 = vmatpush1.msra.mxu0 0.0
    %4128 = vmatprep.subr.mxu0 0.0
    %4129 = vmatpush1.msra.mxu0 0.0
    %4130 = vmatprep.subr.mxu0 0.0
    %4131 = vmatpush1.msra.mxu0 0.0
    %4132 = vmatprep.subr.mxu0 0.0
    %4133 = vmatpush1.msra.mxu0 0.0
    %4134 = vmatprep.mubr.f32.mxu0 0.0
    %4135 = vmatmul.mubr.f32.gmra.mrb[0].mxu0 %v3973
    %v4136 = vpop.f32.mrb[0].mxu0
    %v4137 = vadd.f32 0.0, %v4136
    %v4138 = vpop.f32.mrb[0].mxu0
    %4139 = vdwg.mxu0
    %4141 = vrot.lane.b32.xlu0 %v3627, 32
    %v4142 = vpop.permute.xlu0 %4141
    %v4143 = vsel %vm226, %v4142, 0
    %4145 = vmatprep.subr.mxu0 0.0
    %4146 = vmatpush1.msra.mxu0 %v189
    %4147 = vmatprep.subr.mxu0 0.0
    %4148 = vmatpush1.msra.mxu0 %v190
    %4149 = vmatprep.subr.mxu0 0.0
    %4150 = vmatpush1.msra.mxu0 %v191
    %4151 = vmatprep.subr.mxu0 0.0
    %4152 = vmatpush1.msra.mxu0 %v192
    %4153 = vmatprep.subr.mxu0 0.0
    %4154 = vmatpush1.msra.mxu0 0.0
    %4155 = vmatprep.subr.mxu0 0.0
    %4156 = vmatpush1.msra.mxu0 0.0
    %4157 = vmatprep.subr.mxu0 0.0
    %4158 = vmatpush1.msra.mxu0 0.0
    %4159 = vmatprep.subr.mxu0 0.0
    %4160 = vmatpush1.msra.mxu0 0.0
    %4161 = vmatprep.subr.mxu0 0.0
    %4162 = vmatpush1.msra.mxu0 0.0
    %4163 = vmatprep.subr.mxu0 0.0
    %4164 = vmatpush1.msra.mxu0 0.0
    %4165 = vmatprep.subr.mxu0 0.0
    %4166 = vmatpush1.msra.mxu0 0.0
    %4167 = vmatprep.subr.mxu0 0.0
    %4168 = vmatpush1.msra.mxu0 0.0
    %4169 = vmatprep.subr.mxu0 0.0
    %4170 = vmatpush1.msra.mxu0 0.0
    %4171 = vmatprep.subr.mxu0 0.0
    %4172 = vmatpush1.msra.mxu0 0.0
    %4173 = vmatprep.subr.mxu0 0.0
    %4174 = vmatpush1.msra.mxu0 0.0
    %4175 = vmatprep.subr.mxu0 0.0
    %4176 = vmatpush1.msra.mxu0 0.0
    %4177 = vmatprep.subr.mxu0 0.0
    %4178 = vmatpush1.msra.mxu0 0.0
    %4179 = vmatprep.subr.mxu0 0.0
    %4180 = vmatpush1.msra.mxu0 0.0
    %4181 = vmatprep.subr.mxu0 0.0
    %4182 = vmatpush1.msra.mxu0 0.0
    %4183 = vmatprep.subr.mxu0 0.0
    %4184 = vmatpush1.msra.mxu0 0.0
    %4185 = vmatprep.subr.mxu0 0.0
    %4186 = vmatpush1.msra.mxu0 0.0
    %4187 = vmatprep.subr.mxu0 0.0
    %4188 = vmatpush1.msra.mxu0 0.0
    %4189 = vmatprep.subr.mxu0 0.0
    %4190 = vmatpush1.msra.mxu0 0.0
    %4191 = vmatprep.subr.mxu0 0.0
    %4192 = vmatpush1.msra.mxu0 0.0
    %4193 = vmatprep.subr.mxu0 0.0
    %4194 = vmatpush1.msra.mxu0 0.0
    %4195 = vmatprep.subr.mxu0 0.0
    %4196 = vmatpush1.msra.mxu0 0.0
    %4197 = vmatprep.subr.mxu0 0.0
    %4198 = vmatpush1.msra.mxu0 0.0
    %4199 = vmatprep.subr.mxu0 0.0
    %4200 = vmatpush1.msra.mxu0 0.0
    %4201 = vmatprep.subr.mxu0 0.0
    %4202 = vmatpush1.msra.mxu0 0.0
    %4203 = vmatprep.subr.mxu0 0.0
    %4204 = vmatpush1.msra.mxu0 0.0
    %4205 = vmatprep.subr.mxu0 0.0
    %4206 = vmatpush1.msra.mxu0 0.0
    %4207 = vmatprep.subr.mxu0 0.0
    %4208 = vmatpush1.msra.mxu0 0.0
    %4209 = vmatprep.mubr.f32.mxu0 0.0
    %4210 = vmatmul.mubr.f32.gmra.mrb[0].mxu0 %v4143
    %v4211 = vpop.f32.mrb[0].mxu0
    %v4212 = vadd.f32 %v4137, %v4211
    %v4213 = vpop.f32.mrb[0].mxu0
    %4214 = vdwg.mxu0
    %v4215 = vadd.f32 %v4212, %v558
    %v4216 = vxor.u32 %v4215, 2147483648
    %v4217 = vmul.f32 %v4216, 1.442695
    %v4218 = vpow.pop %v4217
    %v4219 = vadd.f32 %v4218, 1.0
    %v4220 = vrcp.pop %v4219
    %v4221 = vmul.f32 1.0, %v4220
    %v4222 = vtanh.pop %v4215
    %v4223 = vmul.f32 %v4221, %v3451
    %4225 = vrot.lane.b32.xlu0 %v4222, 64
    %v4226 = vpop.permute.xlu0 %4225
    %v4228 = vmul.f32 %v4221, %v4226
    %4230 = vrot.lane.b32.xlu0 %v4228, 32
    %v4231 = vpop.permute.xlu0 %4230
    %v4233 = vadd.f32 %v4223, %v4231
    %v4234 = vtanh.pop %v4233
    %4236 = vrot.lane.b32.xlu0 %v4234, 64
    %v4237 = vpop.permute.xlu0 %4236
    %v4239 = vmul.f32 %v4221, %v4237
    %4240 = vmatprep.subr.mxu0 0.0
    %4241 = vmatpush1.msra.mxu0 %v201
    %4242 = vmatprep.subr.mxu0 0.0
    %4243 = vmatpush1.msra.mxu0 %v202
    %4244 = vmatprep.subr.mxu0 0.0
    %4245 = vmatpush1.msra.mxu0 %v203
    %4246 = vmatprep.subr.mxu0 0.0
    %4247 = vmatpush1.msra.mxu0 %v204
    %4248 = vmatprep.subr.mxu0 0.0
    %4249 = vmatpush1.msra.mxu0 0.0
    %4250 = vmatprep.subr.mxu0 0.0
    %4251 = vmatpush1.msra.mxu0 0.0
    %4252 = vmatprep.subr.mxu0 0.0
    %4253 = vmatpush1.msra.mxu0 0.0
    %4254 = vmatprep.subr.mxu0 0.0
    %4255 = vmatpush1.msra.mxu0 0.0
    %4256 = vmatprep.subr.mxu0 0.0
    %4257 = vmatpush1.msra.mxu0 0.0
    %4258 = vmatprep.subr.mxu0 0.0
    %4259 = vmatpush1.msra.mxu0 0.0
    %4260 = vmatprep.subr.mxu0 0.0
    %4261 = vmatpush1.msra.mxu0 0.0
    %4262 = vmatprep.subr.mxu0 0.0
    %4263 = vmatpush1.msra.mxu0 0.0
    %4264 = vmatprep.subr.mxu0 0.0
    %4265 = vmatpush1.msra.mxu0 0.0
    %4266 = vmatprep.subr.mxu0 0.0
    %4267 = vmatpush1.msra.mxu0 0.0
    %4268 = vmatprep.subr.mxu0 0.0
    %4269 = vmatpush1.msra.mxu0 0.0
    %4270 = vmatprep.subr.mxu0 0.0
    %4271 = vmatpush1.msra.mxu0 0.0
    %4272 = vmatprep.subr.mxu0 0.0
    %4273 = vmatpush1.msra.mxu0 0.0
    %4274 = vmatprep.subr.mxu0 0.0
    %4275 = vmatpush1.msra.mxu0 0.0
    %4276 = vmatprep.subr.mxu0 0.0
    %4277 = vmatpush1.msra.mxu0 0.0
    %4278 = vmatprep.subr.mxu0 0.0
    %4279 = vmatpush1.msra.mxu0 0.0
    %4280 = vmatprep.subr.mxu0 0.0
    %4281 = vmatpush1.msra.mxu0 0.0
    %4282 = vmatprep.subr.mxu0 0.0
    %4283 = vmatpush1.msra.mxu0 0.0
    %4284 = vmatprep.subr.mxu0 0.0
    %4285 = vmatpush1.msra.mxu0 0.0
    %4286 = vmatprep.subr.mxu0 0.0
    %4287 = vmatpush1.msra.mxu0 0.0
    %4288 = vmatprep.subr.mxu0 0.0
    %4289 = vmatpush1.msra.mxu0 0.0
    %4290 = vmatprep.subr.mxu0 0.0
    %4291 = vmatpush1.msra.mxu0 0.0
    %4292 = vmatprep.subr.mxu0 0.0
    %4293 = vmatpush1.msra.mxu0 0.0
    %4294 = vmatprep.subr.mxu0 0.0
    %4295 = vmatpush1.msra.mxu0 0.0
    %4296 = vmatprep.subr.mxu0 0.0
    %4297 = vmatpush1.msra.mxu0 0.0
    %4298 = vmatprep.subr.mxu0 0.0
    %4299 = vmatpush1.msra.mxu0 0.0
    %4300 = vmatprep.subr.mxu0 0.0
    %4301 = vmatpush1.msra.mxu0 0.0
    %4302 = vmatprep.subr.mxu0 0.0
    %4303 = vmatpush1.msra.mxu0 0.0
    %4304 = vmatprep.mubr.f32.mxu0 0.0
    %4305 = vmatmul.mubr.f32.gmra.mrb[0].mxu0 %v4143
    %v4306 = vpop.f32.mrb[0].mxu0
    %v4307 = vadd.f32 0.0, %v4306
    %v4308 = vpop.f32.mrb[0].mxu0
    %4309 = vdwg.mxu0
    %v4310 = vrot.slane %v185, 6
    %v4311 = vrot.slane %v186, 5
    %v4312 = vsel %vm303, %v4311, %v4310
    %v4313 = vsel %vm305, %v4312, 0
    %4315 = vmatprep.subr.mxu0 0.0
    %4316 = vmatpush1.msra.mxu0 %v187
    %4317 = vmatprep.subr.mxu0 0.0
    %4318 = vmatpush1.msra.mxu0 %v188
    %4319 = vmatprep.subr.mxu0 0.0
    %4320 = vmatpush1.msra.mxu0 0.0
    %4321 = vmatprep.subr.mxu0 0.0
    %4322 = vmatpush1.msra.mxu0 0.0
    %4323 = vmatprep.subr.mxu0 0.0
    %4324 = vmatpush1.msra.mxu0 0.0
    %4325 = vmatprep.subr.mxu0 0.0
    %4326 = vmatpush1.msra.mxu0 0.0
    %4327 = vmatprep.subr.mxu0 0.0
    %4328 = vmatpush1.msra.mxu0 0.0
    %4329 = vmatprep.subr.mxu0 0.0
    %4330 = vmatpush1.msra.mxu0 0.0
    %4331 = vmatprep.subr.mxu0 0.0
    %4332 = vmatpush1.msra.mxu0 0.0
    %4333 = vmatprep.subr.mxu0 0.0
    %4334 = vmatpush1.msra.mxu0 0.0
    %4335 = vmatprep.subr.mxu0 0.0
    %4336 = vmatpush1.msra.mxu0 0.0
    %4337 = vmatprep.subr.mxu0 0.0
    %4338 = vmatpush1.msra.mxu0 0.0
    %4339 = vmatprep.subr.mxu0 0.0
    %4340 = vmatpush1.msra.mxu0 0.0
    %4341 = vmatprep.subr.mxu0 0.0
    %4342 = vmatpush1.msra.mxu0 0.0
    %4343 = vmatprep.subr.mxu0 0.0
    %4344 = vmatpush1.msra.mxu0 0.0
    %4345 = vmatprep.subr.mxu0 0.0
    %4346 = vmatpush1.msra.mxu0 0.0
    %4347 = vmatprep.subr.mxu0 0.0
    %4348 = vmatpush1.msra.mxu0 0.0
    %4349 = vmatprep.subr.mxu0 0.0
    %4350 = vmatpush1.msra.mxu0 0.0
    %4351 = vmatprep.subr.mxu0 0.0
    %4352 = vmatpush1.msra.mxu0 0.0
    %4353 = vmatprep.subr.mxu0 0.0
    %4354 = vmatpush1.msra.mxu0 0.0
    %4355 = vmatprep.subr.mxu0 0.0
    %4356 = vmatpush1.msra.mxu0 0.0
    %4357 = vmatprep.subr.mxu0 0.0
    %4358 = vmatpush1.msra.mxu0 0.0
    %4359 = vmatprep.subr.mxu0 0.0
    %4360 = vmatpush1.msra.mxu0 0.0
    %4361 = vmatprep.subr.mxu0 0.0
    %4362 = vmatpush1.msra.mxu0 0.0
    %4363 = vmatprep.subr.mxu0 0.0
    %4364 = vmatpush1.msra.mxu0 0.0
    %4365 = vmatprep.subr.mxu0 0.0
    %4366 = vmatpush1.msra.mxu0 0.0
    %4367 = vmatprep.subr.mxu0 0.0
    %4368 = vmatpush1.msra.mxu0 0.0
    %4369 = vmatprep.subr.mxu0 0.0
    %4370 = vmatpush1.msra.mxu0 0.0
    %4371 = vmatprep.subr.mxu0 0.0
    %4372 = vmatpush1.msra.mxu0 0.0
    %4373 = vmatprep.subr.mxu0 0.0
    %4374 = vmatpush1.msra.mxu0 0.0
    %4375 = vmatprep.subr.mxu0 0.0
    %4376 = vmatpush1.msra.mxu0 0.0
    %4377 = vmatprep.subr.mxu0 0.0
    %4378 = vmatpush1.msra.mxu0 0.0
    %4379 = vmatprep.mubr.f32.mxu0 0.0
    %4380 = vmatmul.mubr.f32.gmra.mrb[0].mxu0 %v4313
    %v4381 = vpop.f32.mrb[0].mxu0
    %v4382 = vadd.f32 %v4307, %v4381
    %v4383 = vpop.f32.mrb[0].mxu0
    %4384 = vdwg.mxu0
    %v4385 = vadd.f32 %v4382, %v382
    %v4386 = vxor.u32 %v4385, 2147483648
    %v4387 = vmul.f32 %v4386, 1.442695
    %v4388 = vpow.pop %v4387
    %v4389 = vadd.f32 %v4388, 1.0
    %v4390 = vrcp.pop %v4389
    %v4391 = vmul.f32 1.0, %v4390
    %v4392 = vtanh.pop %v4385
    %v4393 = vmul.f32 %v4391, %v3621
    %4395 = vrot.lane.b32.xlu0 %v4392, 64
    %v4396 = vpop.permute.xlu0 %4395
    %v4398 = vmul.f32 %v4391, %v4396
    %4400 = vrot.lane.b32.xlu0 %v4398, 32
    %v4401 = vpop.permute.xlu0 %4400
    %v4403 = vadd.f32 %v4393, %v4401
    %v4404 = vtanh.pop %v4403
    %4406 = vrot.lane.b32.xlu0 %v4404, 64
    %v4407 = vpop.permute.xlu0 %4406
    %v4409 = vmul.f32 %v4391, %v4407
    %4410 = vmatprep.subr.mxu0 0.0
    %4411 = vmatpush1.msra.mxu0 %v213
    %4412 = vmatprep.subr.mxu0 0.0
    %4413 = vmatpush1.msra.mxu0 %v214
    %4414 = vmatprep.subr.mxu0 0.0
    %4415 = vmatpush1.msra.mxu0 %v215
    %4416 = vmatprep.subr.mxu0 0.0
    %4417 = vmatpush1.msra.mxu0 %v216
    %4418 = vmatprep.subr.mxu0 0.0
    %4419 = vmatpush1.msra.mxu0 0.0
    %4420 = vmatprep.subr.mxu0 0.0
    %4421 = vmatpush1.msra.mxu0 0.0
    %4422 = vmatprep.subr.mxu0 0.0
    %4423 = vmatpush1.msra.mxu0 0.0
    %4424 = vmatprep.subr.mxu0 0.0
    %4425 = vmatpush1.msra.mxu0 0.0
    %4426 = vmatprep.subr.mxu0 0.0
    %4427 = vmatpush1.msra.mxu0 0.0
    %4428 = vmatprep.subr.mxu0 0.0
    %4429 = vmatpush1.msra.mxu0 0.0
    %4430 = vmatprep.subr.mxu0 0.0
    %4431 = vmatpush1.msra.mxu0 0.0
    %4432 = vmatprep.subr.mxu0 0.0
    %4433 = vmatpush1.msra.mxu0 0.0
    %4434 = vmatprep.subr.mxu0 0.0
    %4435 = vmatpush1.msra.mxu0 0.0
    %4436 = vmatprep.subr.mxu0 0.0
    %4437 = vmatpush1.msra.mxu0 0.0
    %4438 = vmatprep.subr.mxu0 0.0
    %4439 = vmatpush1.msra.mxu0 0.0
    %4440 = vmatprep.subr.mxu0 0.0
    %4441 = vmatpush1.msra.mxu0 0.0
    %4442 = vmatprep.subr.mxu0 0.0
    %4443 = vmatpush1.msra.mxu0 0.0
    %4444 = vmatprep.subr.mxu0 0.0
    %4445 = vmatpush1.msra.mxu0 0.0
    %4446 = vmatprep.subr.mxu0 0.0
    %4447 = vmatpush1.msra.mxu0 0.0
    %4448 = vmatprep.subr.mxu0 0.0
    %4449 = vmatpush1.msra.mxu0 0.0
    %4450 = vmatprep.subr.mxu0 0.0
    %4451 = vmatpush1.msra.mxu0 0.0
    %4452 = vmatprep.subr.mxu0 0.0
    %4453 = vmatpush1.msra.mxu0 0.0
    %4454 = vmatprep.subr.mxu0 0.0
    %4455 = vmatpush1.msra.mxu0 0.0
    %4456 = vmatprep.subr.mxu0 0.0
    %4457 = vmatpush1.msra.mxu0 0.0
    %4458 = vmatprep.subr.mxu0 0.0
    %4459 = vmatpush1.msra.mxu0 0.0
    %4460 = vmatprep.subr.mxu0 0.0
    %4461 = vmatpush1.msra.mxu0 0.0
    %4462 = vmatprep.subr.mxu0 0.0
    %4463 = vmatpush1.msra.mxu0 0.0
    %4464 = vmatprep.subr.mxu0 0.0
    %4465 = vmatpush1.msra.mxu0 0.0
    %4466 = vmatprep.subr.mxu0 0.0
    %4467 = vmatpush1.msra.mxu0 0.0
    %4468 = vmatprep.subr.mxu0 0.0
    %4469 = vmatpush1.msra.mxu0 0.0
    %4470 = vmatprep.subr.mxu0 0.0
    %4471 = vmatpush1.msra.mxu0 0.0
    %4472 = vmatprep.subr.mxu0 0.0
    %4473 = vmatpush1.msra.mxu0 0.0
    %4474 = vmatprep.mubr.f32.mxu0 0.0
    %4475 = vmatmul.mubr.f32.gmra.mrb[0].mxu0 %v3801
    %v4476 = vpop.f32.mrb[0].mxu0
    %v4477 = vadd.f32 0.0, %v4476
    %v4478 = vpop.f32.mrb[0].mxu0
    %4479 = vdwg.mxu0
    %4481 = vrot.lane.b32.xlu0 %v4069, 32
    %v4482 = vpop.permute.xlu0 %4481
    %v4483 = vsel %vm226, %v4482, 0
    %4485 = vmatprep.subr.mxu0 0.0
    %4486 = vmatpush1.msra.mxu0 %v197
    %4487 = vmatprep.subr.mxu0 0.0
    %4488 = vmatpush1.msra.mxu0 %v198
    %4489 = vmatprep.subr.mxu0 0.0
    %4490 = vmatpush1.msra.mxu0 %v199
    %4491 = vmatprep.subr.mxu0 0.0
    %4492 = vmatpush1.msra.mxu0 %v200
    %4493 = vmatprep.subr.mxu0 0.0
    %4494 = vmatpush1.msra.mxu0 0.0
    %4495 = vmatprep.subr.mxu0 0.0
    %4496 = vmatpush1.msra.mxu0 0.0
    %4497 = vmatprep.subr.mxu0 0.0
    %4498 = vmatpush1.msra.mxu0 0.0
    %4499 = vmatprep.subr.mxu0 0.0
    %4500 = vmatpush1.msra.mxu0 0.0
    %4501 = vmatprep.subr.mxu0 0.0
    %4502 = vmatpush1.msra.mxu0 0.0
    %4503 = vmatprep.subr.mxu0 0.0
    %4504 = vmatpush1.msra.mxu0 0.0
    %4505 = vmatprep.subr.mxu0 0.0
    %4506 = vmatpush1.msra.mxu0 0.0
    %4507 = vmatprep.subr.mxu0 0.0
    %4508 = vmatpush1.msra.mxu0 0.0
    %4509 = vmatprep.subr.mxu0 0.0
    %4510 = vmatpush1.msra.mxu0 0.0
    %4511 = vmatprep.subr.mxu0 0.0
    %4512 = vmatpush1.msra.mxu0 0.0
    %4513 = vmatprep.subr.mxu0 0.0
    %4514 = vmatpush1.msra.mxu0 0.0
    %4515 = vmatprep.subr.mxu0 0.0
    %4516 = vmatpush1.msra.mxu0 0.0
    %4517 = vmatprep.subr.mxu0 0.0
    %4518 = vmatpush1.msra.mxu0 0.0
    %4519 = vmatprep.subr.mxu0 0.0
    %4520 = vmatpush1.msra.mxu0 0.0
    %4521 = vmatprep.subr.mxu0 0.0
    %4522 = vmatpush1.msra.mxu0 0.0
    %4523 = vmatprep.subr.mxu0 0.0
    %4524 = vmatpush1.msra.mxu0 0.0
    %4525 = vmatprep.subr.mxu0 0.0
    %4526 = vmatpush1.msra.mxu0 0.0
    %4527 = vmatprep.subr.mxu0 0.0
    %4528 = vmatpush1.msra.mxu0 0.0
    %4529 = vmatprep.subr.mxu0 0.0
    %4530 = vmatpush1.msra.mxu0 0.0
    %4531 = vmatprep.subr.mxu0 0.0
    %4532 = vmatpush1.msra.mxu0 0.0
    %4533 = vmatprep.subr.mxu0 0.0
    %4534 = vmatpush1.msra.mxu0 0.0
    %4535 = vmatprep.subr.mxu0 0.0
    %4536 = vmatpush1.msra.mxu0 0.0
    %4537 = vmatprep.subr.mxu0 0.0
    %4538 = vmatpush1.msra.mxu0 0.0
    %4539 = vmatprep.subr.mxu0 0.0
    %4540 = vmatpush1.msra.mxu0 0.0
    %4541 = vmatprep.subr.mxu0 0.0
    %4542 = vmatpush1.msra.mxu0 0.0
    %4543 = vmatprep.subr.mxu0 0.0
    %4544 = vmatpush1.msra.mxu0 0.0
    %4545 = vmatprep.subr.mxu0 0.0
    %4546 = vmatpush1.msra.mxu0 0.0
    %4547 = vmatprep.subr.mxu0 0.0
    %4548 = vmatpush1.msra.mxu0 0.0
    %4549 = vmatprep.mubr.f32.mxu0 0.0
    %4550 = vmatmul.mubr.f32.gmra.mrb[0].mxu0 %v4483
    %v4551 = vpop.f32.mrb[0].mxu0
    %v4552 = vadd.f32 %v4477, %v4551
    %v4553 = vpop.f32.mrb[0].mxu0
    %4554 = vdwg.mxu0
    %v4555 = vadd.f32 %v4552, %v1419
    %v4556 = vxor.u32 %v4555, 2147483648
    %v4557 = vmul.f32 %v4556, 1.442695
    %v4558 = vpow.pop %v4557
    %v4559 = vadd.f32 %v4558, 1.0
    %v4560 = vrcp.pop %v4559
    %v4561 = vmul.f32 1.0, %v4560
    %v4562 = vtanh.pop %v4555
    %v4563 = vmul.f32 %v4561, %v3791
    %4565 = vrot.lane.b32.xlu0 %v4562, 64
    %v4566 = vpop.permute.xlu0 %4565
    %v4568 = vmul.f32 %v4561, %v4566
    %4570 = vrot.lane.b32.xlu0 %v4568, 32
    %v4571 = vpop.permute.xlu0 %4570
    %v4573 = vadd.f32 %v4563, %v4571
    %v4574 = vtanh.pop %v4573
    %4576 = vrot.lane.b32.xlu0 %v4574, 64
    %v4577 = vpop.permute.xlu0 %4576
    %v4579 = vmul.f32 %v4561, %v4577
    %4581 = vrot.lane.b32.xlu0 %v4579, 32
    %v4582 = vpop.permute.xlu0 %4581
    %v4583 = vsel %vm226, %v4582, 0
    %4585 = vmatprep.subr.mxu0 0.0
    %4586 = vmatpush1.msra.mxu0 %v221
    %4587 = vmatprep.subr.mxu0 0.0
    %4588 = vmatpush1.msra.mxu0 %v222
    %4589 = vmatprep.subr.mxu0 0.0
    %4590 = vmatpush1.msra.mxu0 %v223
    %4591 = vmatprep.subr.mxu0 0.0
    %4592 = vmatpush1.msra.mxu0 %v224
    %4593 = vmatprep.subr.mxu0 0.0
    %4594 = vmatpush1.msra.mxu0 0.0
    %4595 = vmatprep.subr.mxu0 0.0
    %4596 = vmatpush1.msra.mxu0 0.0
    %4597 = vmatprep.subr.mxu0 0.0
    %4598 = vmatpush1.msra.mxu0 0.0
    %4599 = vmatprep.subr.mxu0 0.0
    %4600 = vmatpush1.msra.mxu0 0.0
    %4601 = vmatprep.subr.mxu0 0.0
    %4602 = vmatpush1.msra.mxu0 0.0
    %4603 = vmatprep.subr.mxu0 0.0
    %4604 = vmatpush1.msra.mxu0 0.0
    %4605 = vmatprep.subr.mxu0 0.0
    %4606 = vmatpush1.msra.mxu0 0.0
    %4607 = vmatprep.subr.mxu0 0.0
    %4608 = vmatpush1.msra.mxu0 0.0
    %4609 = vmatprep.subr.mxu0 0.0
    %4610 = vmatpush1.msra.mxu0 0.0
    %4611 = vmatprep.subr.mxu0 0.0
    %4612 = vmatpush1.msra.mxu0 0.0
    %4613 = vmatprep.subr.mxu0 0.0
    %4614 = vmatpush1.msra.mxu0 0.0
    %4615 = vmatprep.subr.mxu0 0.0
    %4616 = vmatpush1.msra.mxu0 0.0
    %4617 = vmatprep.subr.mxu0 0.0
    %4618 = vmatpush1.msra.mxu0 0.0
    %4619 = vmatprep.subr.mxu0 0.0
    %4620 = vmatpush1.msra.mxu0 0.0
    %4621 = vmatprep.subr.mxu0 0.0
    %4622 = vmatpush1.msra.mxu0 0.0
    %4623 = vmatprep.subr.mxu0 0.0
    %4624 = vmatpush1.msra.mxu0 0.0
    %4625 = vmatprep.subr.mxu0 0.0
    %4626 = vmatpush1.msra.mxu0 0.0
    %4627 = vmatprep.subr.mxu0 0.0
    %4628 = vmatpush1.msra.mxu0 0.0
    %4629 = vmatprep.subr.mxu0 0.0
    %4630 = vmatpush1.msra.mxu0 0.0
    %4631 = vmatprep.subr.mxu0 0.0
    %4632 = vmatpush1.msra.mxu0 0.0
    %4633 = vmatprep.subr.mxu0 0.0
    %4634 = vmatpush1.msra.mxu0 0.0
    %4635 = vmatprep.subr.mxu0 0.0
    %4636 = vmatpush1.msra.mxu0 0.0
    %4637 = vmatprep.subr.mxu0 0.0
    %4638 = vmatpush1.msra.mxu0 0.0
    %4639 = vmatprep.subr.mxu0 0.0
    %4640 = vmatpush1.msra.mxu0 0.0
    %4641 = vmatprep.subr.mxu0 0.0
    %4642 = vmatpush1.msra.mxu0 0.0
    %4643 = vmatprep.subr.mxu0 0.0
    %4644 = vmatpush1.msra.mxu0 0.0
    %4645 = vmatprep.subr.mxu0 0.0
    %4646 = vmatpush1.msra.mxu0 0.0
    %4647 = vmatprep.subr.mxu0 0.0
    %4648 = vmatpush1.msra.mxu0 0.0
    %4649 = vmatprep.mubr.f32.mxu0 0.0
    %4650 = vmatmul.mubr.f32.gmra.mrb[0].mxu0 %v4583
    %v4651 = vpop.f32.mrb[0].mxu0
    %v4652 = vadd.f32 %v1450, %v4651
    %v4653 = vpop.f32.mrb[0].mxu0
    %4654 = vdwg.mxu0
    %v4657 = vunpack.c.l.s4 1966171168
    %v4658 = vunpack.c.0.s8 %v4657
    %v4659 = vlaneseq
    %v4660 = vshrl.u32 %v4659, 7
    %v4661 = vsub.s32 %v4658, %v4660
    %v4662 = vrot.slane %v4652, %v4661
    %v4663 = vcombine.high %v4662, %v4662
    %v4665 = vunpack.c.l.s4 1966171168
    %v4666 = vunpack.c.0.s8 %v4665
    %v4667 = vlaneseq
    %v4668 = vshrl.u32 %v4667, 7
    %v4669 = vsub.s32 %v4666, %v4668
    %v4670 = vrot.slane %v4662, %v4669
    %v4672 = vunpack.c.l.s4 1966171168
    %v4673 = vunpack.c.0.s8 %v4672
    %v4674 = vlaneseq
    %v4675 = vshrl.u32 %v4674, 7
    %v4676 = vsub.s32 %v4673, %v4675
    %v4677 = vrot.slane %v4663, %v4676
    %4680 = vst [vmem:[#allocation19 + $0x4] sm:$0x1] %v4670
    %4681 = vst [vmem:[#allocation19 + $0xc] sm:$0x1] %v4677
    %4682 = vmatprep.subr.mxu0 0.0
    %4683 = vmatpush1.msra.mxu0 %v209
    %4684 = vmatprep.subr.mxu0 0.0
    %4685 = vmatpush1.msra.mxu0 %v210
    %4686 = vmatprep.subr.mxu0 0.0
    %4687 = vmatpush1.msra.mxu0 %v211
    %4688 = vmatprep.subr.mxu0 0.0
    %4689 = vmatpush1.msra.mxu0 %v212
    %4690 = vmatprep.subr.mxu0 0.0
    %4691 = vmatpush1.msra.mxu0 0.0
    %4692 = vmatprep.subr.mxu0 0.0
    %4693 = vmatpush1.msra.mxu0 0.0
    %4694 = vmatprep.subr.mxu0 0.0
    %4695 = vmatpush1.msra.mxu0 0.0
    %4696 = vmatprep.subr.mxu0 0.0
    %4697 = vmatpush1.msra.mxu0 0.0
    %4698 = vmatprep.subr.mxu0 0.0
    %4699 = vmatpush1.msra.mxu0 0.0
    %4700 = vmatprep.subr.mxu0 0.0
    %4701 = vmatpush1.msra.mxu0 0.0
    %4702 = vmatprep.subr.mxu0 0.0
    %4703 = vmatpush1.msra.mxu0 0.0
    %4704 = vmatprep.subr.mxu0 0.0
    %4705 = vmatpush1.msra.mxu0 0.0
    %4706 = vmatprep.subr.mxu0 0.0
    %4707 = vmatpush1.msra.mxu0 0.0
    %4708 = vmatprep.subr.mxu0 0.0
    %4709 = vmatpush1.msra.mxu0 0.0
    %4710 = vmatprep.subr.mxu0 0.0
    %4711 = vmatpush1.msra.mxu0 0.0
    %4712 = vmatprep.subr.mxu0 0.0
    %4713 = vmatpush1.msra.mxu0 0.0
    %4714 = vmatprep.subr.mxu0 0.0
    %4715 = vmatpush1.msra.mxu0 0.0
    %4716 = vmatprep.subr.mxu0 0.0
    %4717 = vmatpush1.msra.mxu0 0.0
    %4718 = vmatprep.subr.mxu0 0.0
    %4719 = vmatpush1.msra.mxu0 0.0
    %4720 = vmatprep.subr.mxu0 0.0
    %4721 = vmatpush1.msra.mxu0 0.0
    %4722 = vmatprep.subr.mxu0 0.0
    %4723 = vmatpush1.msra.mxu0 0.0
    %4724 = vmatprep.subr.mxu0 0.0
    %4725 = vmatpush1.msra.mxu0 0.0
    %4726 = vmatprep.subr.mxu0 0.0
    %4727 = vmatpush1.msra.mxu0 0.0
    %4728 = vmatprep.subr.mxu0 0.0
    %4729 = vmatpush1.msra.mxu0 0.0
    %4730 = vmatprep.subr.mxu0 0.0
    %4731 = vmatpush1.msra.mxu0 0.0
    %4732 = vmatprep.subr.mxu0 0.0
    %4733 = vmatpush1.msra.mxu0 0.0
    %4734 = vmatprep.subr.mxu0 0.0
    %4735 = vmatpush1.msra.mxu0 0.0
    %4736 = vmatprep.subr.mxu0 0.0
    %4737 = vmatpush1.msra.mxu0 0.0
    %4738 = vmatprep.subr.mxu0 0.0
    %4739 = vmatpush1.msra.mxu0 0.0
    %4740 = vmatprep.subr.mxu0 0.0
    %4741 = vmatpush1.msra.mxu0 0.0
    %4742 = vmatprep.subr.mxu0 0.0
    %4743 = vmatpush1.msra.mxu0 0.0
    %4744 = vmatprep.subr.mxu0 0.0
    %4745 = vmatpush1.msra.mxu0 0.0
    %4746 = vmatprep.mubr.f32.mxu0 0.0
    %4747 = vmatmul.mubr.f32.gmra.mrb[0].mxu0 %v4483
    %v4748 = vpop.f32.mrb[0].mxu0
    %v4749 = vadd.f32 0.0, %v4748
    %v4750 = vpop.f32.mrb[0].mxu0
    %4751 = vdwg.mxu0
    %4753 = vrot.lane.b32.xlu0 %v4239, 32
    %v4754 = vpop.permute.xlu0 %4753
    %v4755 = vsel %vm226, %v4754, 0
    %4757 = vmatprep.subr.mxu0 0.0
    %4758 = vmatpush1.msra.mxu0 %v193
    %4759 = vmatprep.subr.mxu0 0.0
    %4760 = vmatpush1.msra.mxu0 %v194
    %4761 = vmatprep.subr.mxu0 0.0
    %4762 = vmatpush1.msra.mxu0 %v195
    %4763 = vmatprep.subr.mxu0 0.0
    %4764 = vmatpush1.msra.mxu0 %v196
    %4765 = vmatprep.subr.mxu0 0.0
    %4766 = vmatpush1.msra.mxu0 0.0
    %4767 = vmatprep.subr.mxu0 0.0
    %4768 = vmatpush1.msra.mxu0 0.0
    %4769 = vmatprep.subr.mxu0 0.0
    %4770 = vmatpush1.msra.mxu0 0.0
    %4771 = vmatprep.subr.mxu0 0.0
    %4772 = vmatpush1.msra.mxu0 0.0
    %4773 = vmatprep.subr.mxu0 0.0
    %4774 = vmatpush1.msra.mxu0 0.0
    %4775 = vmatprep.subr.mxu0 0.0
    %4776 = vmatpush1.msra.mxu0 0.0
    %4777 = vmatprep.subr.mxu0 0.0
    %4778 = vmatpush1.msra.mxu0 0.0
    %4779 = vmatprep.subr.mxu0 0.0
    %4780 = vmatpush1.msra.mxu0 0.0
    %4781 = vmatprep.subr.mxu0 0.0
    %4782 = vmatpush1.msra.mxu0 0.0
    %4783 = vmatprep.subr.mxu0 0.0
    %4784 = vmatpush1.msra.mxu0 0.0
    %4785 = vmatprep.subr.mxu0 0.0
    %4786 = vmatpush1.msra.mxu0 0.0
    %4787 = vmatprep.subr.mxu0 0.0
    %4788 = vmatpush1.msra.mxu0 0.0
    %4789 = vmatprep.subr.mxu0 0.0
    %4790 = vmatpush1.msra.mxu0 0.0
    %4791 = vmatprep.subr.mxu0 0.0
    %4792 = vmatpush1.msra.mxu0 0.0
    %4793 = vmatprep.subr.mxu0 0.0
    %4794 = vmatpush1.msra.mxu0 0.0
    %4795 = vmatprep.subr.mxu0 0.0
    %4796 = vmatpush1.msra.mxu0 0.0
    %4797 = vmatprep.subr.mxu0 0.0
    %4798 = vmatpush1.msra.mxu0 0.0
    %4799 = vmatprep.subr.mxu0 0.0
    %4800 = vmatpush1.msra.mxu0 0.0
    %4801 = vmatprep.subr.mxu0 0.0
    %4802 = vmatpush1.msra.mxu0 0.0
    %4803 = vmatprep.subr.mxu0 0.0
    %4804 = vmatpush1.msra.mxu0 0.0
    %4805 = vmatprep.subr.mxu0 0.0
    %4806 = vmatpush1.msra.mxu0 0.0
    %4807 = vmatprep.subr.mxu0 0.0
    %4808 = vmatpush1.msra.mxu0 0.0
    %4809 = vmatprep.subr.mxu0 0.0
    %4810 = vmatpush1.msra.mxu0 0.0
    %4811 = vmatprep.subr.mxu0 0.0
    %4812 = vmatpush1.msra.mxu0 0.0
    %4813 = vmatprep.subr.mxu0 0.0
    %4814 = vmatpush1.msra.mxu0 0.0
    %4815 = vmatprep.subr.mxu0 0.0
    %4816 = vmatpush1.msra.mxu0 0.0
    %4817 = vmatprep.subr.mxu0 0.0
    %4818 = vmatpush1.msra.mxu0 0.0
    %4819 = vmatprep.subr.mxu0 0.0
    %4820 = vmatpush1.msra.mxu0 0.0
    %4821 = vmatprep.mubr.f32.mxu0 0.0
    %4822 = vmatmul.mubr.f32.gmra.mrb[0].mxu0 %v4755
    %v4823 = vpop.f32.mrb[0].mxu0
    %v4824 = vadd.f32 %v4749, %v4823
    %v4825 = vpop.f32.mrb[0].mxu0
    %4826 = vdwg.mxu0
    %v4827 = vadd.f32 %v4824, %v903
    %v4828 = vxor.u32 %v4827, 2147483648
    %v4829 = vmul.f32 %v4828, 1.442695
    %v4830 = vpow.pop %v4829
    %v4831 = vadd.f32 %v4830, 1.0
    %v4832 = vrcp.pop %v4831
    %v4833 = vmul.f32 1.0, %v4832
    %v4834 = vtanh.pop %v4827
    %v4835 = vmul.f32 %v4833, %v4063
    %4837 = vrot.lane.b32.xlu0 %v4834, 64
    %v4838 = vpop.permute.xlu0 %4837
    %v4840 = vmul.f32 %v4833, %v4838
    %4842 = vrot.lane.b32.xlu0 %v4840, 32
    %v4843 = vpop.permute.xlu0 %4842
    %v4845 = vadd.f32 %v4835, %v4843
    %v4846 = vtanh.pop %v4845
    %4848 = vrot.lane.b32.xlu0 %v4846, 64
    %v4849 = vpop.permute.xlu0 %4848
    %v4851 = vmul.f32 %v4833, %v4849
    %4852 = vmatprep.subr.mxu0 0.0
    %4853 = vmatpush1.msra.mxu0 %v205
    %4854 = vmatprep.subr.mxu0 0.0
    %4855 = vmatpush1.msra.mxu0 %v206
    %4856 = vmatprep.subr.mxu0 0.0
    %4857 = vmatpush1.msra.mxu0 %v207
    %4858 = vmatprep.subr.mxu0 0.0
    %4859 = vmatpush1.msra.mxu0 %v208
    %4860 = vmatprep.subr.mxu0 0.0
    %4861 = vmatpush1.msra.mxu0 0.0
    %4862 = vmatprep.subr.mxu0 0.0
    %4863 = vmatpush1.msra.mxu0 0.0
    %4864 = vmatprep.subr.mxu0 0.0
    %4865 = vmatpush1.msra.mxu0 0.0
    %4866 = vmatprep.subr.mxu0 0.0
    %4867 = vmatpush1.msra.mxu0 0.0
    %4868 = vmatprep.subr.mxu0 0.0
    %4869 = vmatpush1.msra.mxu0 0.0
    %4870 = vmatprep.subr.mxu0 0.0
    %4871 = vmatpush1.msra.mxu0 0.0
    %4872 = vmatprep.subr.mxu0 0.0
    %4873 = vmatpush1.msra.mxu0 0.0
    %4874 = vmatprep.subr.mxu0 0.0
    %4875 = vmatpush1.msra.mxu0 0.0
    %4876 = vmatprep.subr.mxu0 0.0
    %4877 = vmatpush1.msra.mxu0 0.0
    %4878 = vmatprep.subr.mxu0 0.0
    %4879 = vmatpush1.msra.mxu0 0.0
    %4880 = vmatprep.subr.mxu0 0.0
    %4881 = vmatpush1.msra.mxu0 0.0
    %4882 = vmatprep.subr.mxu0 0.0
    %4883 = vmatpush1.msra.mxu0 0.0
    %4884 = vmatprep.subr.mxu0 0.0
    %4885 = vmatpush1.msra.mxu0 0.0
    %4886 = vmatprep.subr.mxu0 0.0
    %4887 = vmatpush1.msra.mxu0 0.0
    %4888 = vmatprep.subr.mxu0 0.0
    %4889 = vmatpush1.msra.mxu0 0.0
    %4890 = vmatprep.subr.mxu0 0.0
    %4891 = vmatpush1.msra.mxu0 0.0
    %4892 = vmatprep.subr.mxu0 0.0
    %4893 = vmatpush1.msra.mxu0 0.0
    %4894 = vmatprep.subr.mxu0 0.0
    %4895 = vmatpush1.msra.mxu0 0.0
    %4896 = vmatprep.subr.mxu0 0.0
    %4897 = vmatpush1.msra.mxu0 0.0
    %4898 = vmatprep.subr.mxu0 0.0
    %4899 = vmatpush1.msra.mxu0 0.0
    %4900 = vmatprep.subr.mxu0 0.0
    %4901 = vmatpush1.msra.mxu0 0.0
    %4902 = vmatprep.subr.mxu0 0.0
    %4903 = vmatpush1.msra.mxu0 0.0
    %4904 = vmatprep.subr.mxu0 0.0
    %4905 = vmatpush1.msra.mxu0 0.0
    %4906 = vmatprep.subr.mxu0 0.0
    %4907 = vmatpush1.msra.mxu0 0.0
    %4908 = vmatprep.subr.mxu0 0.0
    %4909 = vmatpush1.msra.mxu0 0.0
    %4910 = vmatprep.subr.mxu0 0.0
    %4911 = vmatpush1.msra.mxu0 0.0
    %4912 = vmatprep.subr.mxu0 0.0
    %4913 = vmatpush1.msra.mxu0 0.0
    %4914 = vmatprep.subr.mxu0 0.0
    %4915 = vmatpush1.msra.mxu0 0.0
    %4916 = vmatprep.mubr.f32.mxu0 0.0
    %4917 = vmatmul.mubr.f32.gmra.mrb[0].mxu0 %v4755
    %v4918 = vpop.f32.mrb[0].mxu0
    %v4919 = vadd.f32 0.0, %v4918
    %v4920 = vpop.f32.mrb[0].mxu0
    %4921 = vdwg.mxu0
    %4923 = vrot.lane.b32.xlu0 %v4409, 32
    %v4924 = vpop.permute.xlu0 %4923
    %v4925 = vsel %vm226, %v4924, 0
    %4927 = vmatprep.subr.mxu0 0.0
    %4928 = vmatpush1.msra.mxu0 %v189
    %4929 = vmatprep.subr.mxu0 0.0
    %4930 = vmatpush1.msra.mxu0 %v190
    %4931 = vmatprep.subr.mxu0 0.0
    %4932 = vmatpush1.msra.mxu0 %v191
    %4933 = vmatprep.subr.mxu0 0.0
    %4934 = vmatpush1.msra.mxu0 %v192
    %4935 = vmatprep.subr.mxu0 0.0
    %4936 = vmatpush1.msra.mxu0 0.0
    %4937 = vmatprep.subr.mxu0 0.0
    %4938 = vmatpush1.msra.mxu0 0.0
    %4939 = vmatprep.subr.mxu0 0.0
    %4940 = vmatpush1.msra.mxu0 0.0
    %4941 = vmatprep.subr.mxu0 0.0
    %4942 = vmatpush1.msra.mxu0 0.0
    %4943 = vmatprep.subr.mxu0 0.0
    %4944 = vmatpush1.msra.mxu0 0.0
    %4945 = vmatprep.subr.mxu0 0.0
    %4946 = vmatpush1.msra.mxu0 0.0
    %4947 = vmatprep.subr.mxu0 0.0
    %4948 = vmatpush1.msra.mxu0 0.0
    %4949 = vmatprep.subr.mxu0 0.0
    %4950 = vmatpush1.msra.mxu0 0.0
    %4951 = vmatprep.subr.mxu0 0.0
    %4952 = vmatpush1.msra.mxu0 0.0
    %4953 = vmatprep.subr.mxu0 0.0
    %4954 = vmatpush1.msra.mxu0 0.0
    %4955 = vmatprep.subr.mxu0 0.0
    %4956 = vmatpush1.msra.mxu0 0.0
    %4957 = vmatprep.subr.mxu0 0.0
    %4958 = vmatpush1.msra.mxu0 0.0
    %4959 = vmatprep.subr.mxu0 0.0
    %4960 = vmatpush1.msra.mxu0 0.0
    %4961 = vmatprep.subr.mxu0 0.0
    %4962 = vmatpush1.msra.mxu0 0.0
    %4963 = vmatprep.subr.mxu0 0.0
    %4964 = vmatpush1.msra.mxu0 0.0
    %4965 = vmatprep.subr.mxu0 0.0
    %4966 = vmatpush1.msra.mxu0 0.0
    %4967 = vmatprep.subr.mxu0 0.0
    %4968 = vmatpush1.msra.mxu0 0.0
    %4969 = vmatprep.subr.mxu0 0.0
    %4970 = vmatpush1.msra.mxu0 0.0
    %4971 = vmatprep.subr.mxu0 0.0
    %4972 = vmatpush1.msra.mxu0 0.0
    %4973 = vmatprep.subr.mxu0 0.0
    %4974 = vmatpush1.msra.mxu0 0.0
    %4975 = vmatprep.subr.mxu0 0.0
    %4976 = vmatpush1.msra.mxu0 0.0
    %4977 = vmatprep.subr.mxu0 0.0
    %4978 = vmatpush1.msra.mxu0 0.0
    %4979 = vmatprep.subr.mxu0 0.0
    %4980 = vmatpush1.msra.mxu0 0.0
    %4981 = vmatprep.subr.mxu0 0.0
    %4982 = vmatpush1.msra.mxu0 0.0
    %4983 = vmatprep.subr.mxu0 0.0
    %4984 = vmatpush1.msra.mxu0 0.0
    %4985 = vmatprep.subr.mxu0 0.0
    %4986 = vmatpush1.msra.mxu0 0.0
    %4987 = vmatprep.subr.mxu0 0.0
    %4988 = vmatpush1.msra.mxu0 0.0
    %4989 = vmatprep.subr.mxu0 0.0
    %4990 = vmatpush1.msra.mxu0 0.0
    %4991 = vmatprep.mubr.f32.mxu0 0.0
    %4992 = vmatmul.mubr.f32.gmra.mrb[0].mxu0 %v4925
    %v4993 = vpop.f32.mrb[0].mxu0
    %v4994 = vadd.f32 %v4919, %v4993
    %v4995 = vpop.f32.mrb[0].mxu0
    %4996 = vdwg.mxu0
    %v4997 = vadd.f32 %v4994, %v558
    %v4998 = vxor.u32 %v4997, 2147483648
    %v4999 = vmul.f32 %v4998, 1.442695
    %v5000 = vpow.pop %v4999
    %v5001 = vadd.f32 %v5000, 1.0
    %v5002 = vrcp.pop %v5001
    %v5003 = vmul.f32 1.0, %v5002
    %v5004 = vtanh.pop %v4997
    %v5005 = vmul.f32 %v5003, %v4233
    %5007 = vrot.lane.b32.xlu0 %v5004, 64
    %v5008 = vpop.permute.xlu0 %5007
    %v5010 = vmul.f32 %v5003, %v5008
    %5012 = vrot.lane.b32.xlu0 %v5010, 32
    %v5013 = vpop.permute.xlu0 %5012
    %v5015 = vadd.f32 %v5005, %v5013
    %v5016 = vtanh.pop %v5015
    %5018 = vrot.lane.b32.xlu0 %v5016, 64
    %v5019 = vpop.permute.xlu0 %5018
    %v5021 = vmul.f32 %v5003, %v5019
    %5022 = vmatprep.subr.mxu0 0.0
    %5023 = vmatpush1.msra.mxu0 %v201
    %5024 = vmatprep.subr.mxu0 0.0
    %5025 = vmatpush1.msra.mxu0 %v202
    %5026 = vmatprep.subr.mxu0 0.0
    %5027 = vmatpush1.msra.mxu0 %v203
    %5028 = vmatprep.subr.mxu0 0.0
    %5029 = vmatpush1.msra.mxu0 %v204
    %5030 = vmatprep.subr.mxu0 0.0
    %5031 = vmatpush1.msra.mxu0 0.0
    %5032 = vmatprep.subr.mxu0 0.0
    %5033 = vmatpush1.msra.mxu0 0.0
    %5034 = vmatprep.subr.mxu0 0.0
    %5035 = vmatpush1.msra.mxu0 0.0
    %5036 = vmatprep.subr.mxu0 0.0
    %5037 = vmatpush1.msra.mxu0 0.0
    %5038 = vmatprep.subr.mxu0 0.0
    %5039 = vmatpush1.msra.mxu0 0.0
    %5040 = vmatprep.subr.mxu0 0.0
    %5041 = vmatpush1.msra.mxu0 0.0
    %5042 = vmatprep.subr.mxu0 0.0
    %5043 = vmatpush1.msra.mxu0 0.0
    %5044 = vmatprep.subr.mxu0 0.0
    %5045 = vmatpush1.msra.mxu0 0.0
    %5046 = vmatprep.subr.mxu0 0.0
    %5047 = vmatpush1.msra.mxu0 0.0
    %5048 = vmatprep.subr.mxu0 0.0
    %5049 = vmatpush1.msra.mxu0 0.0
    %5050 = vmatprep.subr.mxu0 0.0
    %5051 = vmatpush1.msra.mxu0 0.0
    %5052 = vmatprep.subr.mxu0 0.0
    %5053 = vmatpush1.msra.mxu0 0.0
    %5054 = vmatprep.subr.mxu0 0.0
    %5055 = vmatpush1.msra.mxu0 0.0
    %5056 = vmatprep.subr.mxu0 0.0
    %5057 = vmatpush1.msra.mxu0 0.0
    %5058 = vmatprep.subr.mxu0 0.0
    %5059 = vmatpush1.msra.mxu0 0.0
    %5060 = vmatprep.subr.mxu0 0.0
    %5061 = vmatpush1.msra.mxu0 0.0
    %5062 = vmatprep.subr.mxu0 0.0
    %5063 = vmatpush1.msra.mxu0 0.0
    %5064 = vmatprep.subr.mxu0 0.0
    %5065 = vmatpush1.msra.mxu0 0.0
    %5066 = vmatprep.subr.mxu0 0.0
    %5067 = vmatpush1.msra.mxu0 0.0
    %5068 = vmatprep.subr.mxu0 0.0
    %5069 = vmatpush1.msra.mxu0 0.0
    %5070 = vmatprep.subr.mxu0 0.0
    %5071 = vmatpush1.msra.mxu0 0.0
    %5072 = vmatprep.subr.mxu0 0.0
    %5073 = vmatpush1.msra.mxu0 0.0
    %5074 = vmatprep.subr.mxu0 0.0
    %5075 = vmatpush1.msra.mxu0 0.0
    %5076 = vmatprep.subr.mxu0 0.0
    %5077 = vmatpush1.msra.mxu0 0.0
    %5078 = vmatprep.subr.mxu0 0.0
    %5079 = vmatpush1.msra.mxu0 0.0
    %5080 = vmatprep.subr.mxu0 0.0
    %5081 = vmatpush1.msra.mxu0 0.0
    %5082 = vmatprep.subr.mxu0 0.0
    %5083 = vmatpush1.msra.mxu0 0.0
    %5084 = vmatprep.subr.mxu0 0.0
    %5085 = vmatpush1.msra.mxu0 0.0
    %5086 = vmatprep.mubr.f32.mxu0 0.0
    %5087 = vmatmul.mubr.f32.gmra.mrb[0].mxu0 %v4925
    %v5088 = vpop.f32.mrb[0].mxu0
    %v5089 = vadd.f32 0.0, %v5088
    %v5090 = vpop.f32.mrb[0].mxu0
    %5091 = vdwg.mxu0
    %v5092 = vrot.slane %v185, 7
    %v5093 = vrot.slane %v186, 6
    %v5094 = vsel %vm303, %v5093, %v5092
    %v5095 = vsel %vm305, %v5094, 0
    %5097 = vmatprep.subr.mxu0 0.0
    %5098 = vmatpush1.msra.mxu0 %v187
    %5099 = vmatprep.subr.mxu0 0.0
    %5100 = vmatpush1.msra.mxu0 %v188
    %5101 = vmatprep.subr.mxu0 0.0
    %5102 = vmatpush1.msra.mxu0 0.0
    %5103 = vmatprep.subr.mxu0 0.0
    %5104 = vmatpush1.msra.mxu0 0.0
    %5105 = vmatprep.subr.mxu0 0.0
    %5106 = vmatpush1.msra.mxu0 0.0
    %5107 = vmatprep.subr.mxu0 0.0
    %5108 = vmatpush1.msra.mxu0 0.0
    %5109 = vmatprep.subr.mxu0 0.0
    %5110 = vmatpush1.msra.mxu0 0.0
    %5111 = vmatprep.subr.mxu0 0.0
    %5112 = vmatpush1.msra.mxu0 0.0
    %5113 = vmatprep.subr.mxu0 0.0
    %5114 = vmatpush1.msra.mxu0 0.0
    %5115 = vmatprep.subr.mxu0 0.0
    %5116 = vmatpush1.msra.mxu0 0.0
    %5117 = vmatprep.subr.mxu0 0.0
    %5118 = vmatpush1.msra.mxu0 0.0
    %5119 = vmatprep.subr.mxu0 0.0
    %5120 = vmatpush1.msra.mxu0 0.0
    %5121 = vmatprep.subr.mxu0 0.0
    %5122 = vmatpush1.msra.mxu0 0.0
    %5123 = vmatprep.subr.mxu0 0.0
    %5124 = vmatpush1.msra.mxu0 0.0
    %5125 = vmatprep.subr.mxu0 0.0
    %5126 = vmatpush1.msra.mxu0 0.0
    %5127 = vmatprep.subr.mxu0 0.0
    %5128 = vmatpush1.msra.mxu0 0.0
    %5129 = vmatprep.subr.mxu0 0.0
    %5130 = vmatpush1.msra.mxu0 0.0
    %5131 = vmatprep.subr.mxu0 0.0
    %5132 = vmatpush1.msra.mxu0 0.0
    %5133 = vmatprep.subr.mxu0 0.0
    %5134 = vmatpush1.msra.mxu0 0.0
    %5135 = vmatprep.subr.mxu0 0.0
    %5136 = vmatpush1.msra.mxu0 0.0
    %5137 = vmatprep.subr.mxu0 0.0
    %5138 = vmatpush1.msra.mxu0 0.0
    %5139 = vmatprep.subr.mxu0 0.0
    %5140 = vmatpush1.msra.mxu0 0.0
    %5141 = vmatprep.subr.mxu0 0.0
    %5142 = vmatpush1.msra.mxu0 0.0
    %5143 = vmatprep.subr.mxu0 0.0
    %5144 = vmatpush1.msra.mxu0 0.0
    %5145 = vmatprep.subr.mxu0 0.0
    %5146 = vmatpush1.msra.mxu0 0.0
    %5147 = vmatprep.subr.mxu0 0.0
    %5148 = vmatpush1.msra.mxu0 0.0
    %5149 = vmatprep.subr.mxu0 0.0
    %5150 = vmatpush1.msra.mxu0 0.0
    %5151 = vmatprep.subr.mxu0 0.0
    %5152 = vmatpush1.msra.mxu0 0.0
    %5153 = vmatprep.subr.mxu0 0.0
    %5154 = vmatpush1.msra.mxu0 0.0
    %5155 = vmatprep.subr.mxu0 0.0
    %5156 = vmatpush1.msra.mxu0 0.0
    %5157 = vmatprep.subr.mxu0 0.0
    %5158 = vmatpush1.msra.mxu0 0.0
    %5159 = vmatprep.subr.mxu0 0.0
    %5160 = vmatpush1.msra.mxu0 0.0
    %5161 = vmatprep.mubr.f32.mxu0 0.0
    %5162 = vmatmul.mubr.f32.gmra.mrb[0].mxu0 %v5095
    %v5163 = vpop.f32.mrb[0].mxu0
    %v5164 = vadd.f32 %v5089, %v5163
    %v5165 = vpop.f32.mrb[0].mxu0
    %5166 = vdwg.mxu0
    %v5167 = vadd.f32 %v5164, %v382
    %v5168 = vxor.u32 %v5167, 2147483648
    %v5169 = vmul.f32 %v5168, 1.442695
    %v5170 = vpow.pop %v5169
    %v5171 = vadd.f32 %v5170, 1.0
    %v5172 = vrcp.pop %v5171
    %v5173 = vmul.f32 1.0, %v5172
    %v5174 = vtanh.pop %v5167
    %v5175 = vmul.f32 %v5173, %v4403
    %5177 = vrot.lane.b32.xlu0 %v5174, 64
    %v5178 = vpop.permute.xlu0 %5177
    %v5180 = vmul.f32 %v5173, %v5178
    %5182 = vrot.lane.b32.xlu0 %v5180, 32
    %v5183 = vpop.permute.xlu0 %5182
    %v5185 = vadd.f32 %v5175, %v5183
    %v5186 = vtanh.pop %v5185
    %5188 = vrot.lane.b32.xlu0 %v5186, 64
    %v5189 = vpop.permute.xlu0 %5188
    %v5191 = vmul.f32 %v5173, %v5189
    %5192 = vmatprep.subr.mxu0 0.0
    %5193 = vmatpush1.msra.mxu0 %v213
    %5194 = vmatprep.subr.mxu0 0.0
    %5195 = vmatpush1.msra.mxu0 %v214
    %5196 = vmatprep.subr.mxu0 0.0
    %5197 = vmatpush1.msra.mxu0 %v215
    %5198 = vmatprep.subr.mxu0 0.0
    %5199 = vmatpush1.msra.mxu0 %v216
    %5200 = vmatprep.subr.mxu0 0.0
    %5201 = vmatpush1.msra.mxu0 0.0
    %5202 = vmatprep.subr.mxu0 0.0
    %5203 = vmatpush1.msra.mxu0 0.0
    %5204 = vmatprep.subr.mxu0 0.0
    %5205 = vmatpush1.msra.mxu0 0.0
    %5206 = vmatprep.subr.mxu0 0.0
    %5207 = vmatpush1.msra.mxu0 0.0
    %5208 = vmatprep.subr.mxu0 0.0
    %5209 = vmatpush1.msra.mxu0 0.0
    %5210 = vmatprep.subr.mxu0 0.0
    %5211 = vmatpush1.msra.mxu0 0.0
    %5212 = vmatprep.subr.mxu0 0.0
    %5213 = vmatpush1.msra.mxu0 0.0
    %5214 = vmatprep.subr.mxu0 0.0
    %5215 = vmatpush1.msra.mxu0 0.0
    %5216 = vmatprep.subr.mxu0 0.0
    %5217 = vmatpush1.msra.mxu0 0.0
    %5218 = vmatprep.subr.mxu0 0.0
    %5219 = vmatpush1.msra.mxu0 0.0
    %5220 = vmatprep.subr.mxu0 0.0
    %5221 = vmatpush1.msra.mxu0 0.0
    %5222 = vmatprep.subr.mxu0 0.0
    %5223 = vmatpush1.msra.mxu0 0.0
    %5224 = vmatprep.subr.mxu0 0.0
    %5225 = vmatpush1.msra.mxu0 0.0
    %5226 = vmatprep.subr.mxu0 0.0
    %5227 = vmatpush1.msra.mxu0 0.0
    %5228 = vmatprep.subr.mxu0 0.0
    %5229 = vmatpush1.msra.mxu0 0.0
    %5230 = vmatprep.subr.mxu0 0.0
    %5231 = vmatpush1.msra.mxu0 0.0
    %5232 = vmatprep.subr.mxu0 0.0
    %5233 = vmatpush1.msra.mxu0 0.0
    %5234 = vmatprep.subr.mxu0 0.0
    %5235 = vmatpush1.msra.mxu0 0.0
    %5236 = vmatprep.subr.mxu0 0.0
    %5237 = vmatpush1.msra.mxu0 0.0
    %5238 = vmatprep.subr.mxu0 0.0
    %5239 = vmatpush1.msra.mxu0 0.0
    %5240 = vmatprep.subr.mxu0 0.0
    %5241 = vmatpush1.msra.mxu0 0.0
    %5242 = vmatprep.subr.mxu0 0.0
    %5243 = vmatpush1.msra.mxu0 0.0
    %5244 = vmatprep.subr.mxu0 0.0
    %5245 = vmatpush1.msra.mxu0 0.0
    %5246 = vmatprep.subr.mxu0 0.0
    %5247 = vmatpush1.msra.mxu0 0.0
    %5248 = vmatprep.subr.mxu0 0.0
    %5249 = vmatpush1.msra.mxu0 0.0
    %5250 = vmatprep.subr.mxu0 0.0
    %5251 = vmatpush1.msra.mxu0 0.0
    %5252 = vmatprep.subr.mxu0 0.0
    %5253 = vmatpush1.msra.mxu0 0.0
    %5254 = vmatprep.subr.mxu0 0.0
    %5255 = vmatpush1.msra.mxu0 0.0
    %5256 = vmatprep.mubr.f32.mxu0 0.0
    %5257 = vmatmul.mubr.f32.gmra.mrb[0].mxu0 %v4583
    %v5258 = vpop.f32.mrb[0].mxu0
    %v5259 = vadd.f32 0.0, %v5258
    %v5260 = vpop.f32.mrb[0].mxu0
    %5261 = vdwg.mxu0
    %5263 = vrot.lane.b32.xlu0 %v4851, 32
    %v5264 = vpop.permute.xlu0 %5263
    %v5265 = vsel %vm226, %v5264, 0
    %5267 = vmatprep.subr.mxu0 0.0
    %5268 = vmatpush1.msra.mxu0 %v197
    %5269 = vmatprep.subr.mxu0 0.0
    %5270 = vmatpush1.msra.mxu0 %v198
    %5271 = vmatprep.subr.mxu0 0.0
    %5272 = vmatpush1.msra.mxu0 %v199
    %5273 = vmatprep.subr.mxu0 0.0
    %5274 = vmatpush1.msra.mxu0 %v200
    %5275 = vmatprep.subr.mxu0 0.0
    %5276 = vmatpush1.msra.mxu0 0.0
    %5277 = vmatprep.subr.mxu0 0.0
    %5278 = vmatpush1.msra.mxu0 0.0
    %5279 = vmatprep.subr.mxu0 0.0
    %5280 = vmatpush1.msra.mxu0 0.0
    %5281 = vmatprep.subr.mxu0 0.0
    %5282 = vmatpush1.msra.mxu0 0.0
    %5283 = vmatprep.subr.mxu0 0.0
    %5284 = vmatpush1.msra.mxu0 0.0
    %5285 = vmatprep.subr.mxu0 0.0
    %5286 = vmatpush1.msra.mxu0 0.0
    %5287 = vmatprep.subr.mxu0 0.0
    %5288 = vmatpush1.msra.mxu0 0.0
    %5289 = vmatprep.subr.mxu0 0.0
    %5290 = vmatpush1.msra.mxu0 0.0
    %5291 = vmatprep.subr.mxu0 0.0
    %5292 = vmatpush1.msra.mxu0 0.0
    %5293 = vmatprep.subr.mxu0 0.0
    %5294 = vmatpush1.msra.mxu0 0.0
    %5295 = vmatprep.subr.mxu0 0.0
    %5296 = vmatpush1.msra.mxu0 0.0
    %5297 = vmatprep.subr.mxu0 0.0
    %5298 = vmatpush1.msra.mxu0 0.0
    %5299 = vmatprep.subr.mxu0 0.0
    %5300 = vmatpush1.msra.mxu0 0.0
    %5301 = vmatprep.subr.mxu0 0.0
    %5302 = vmatpush1.msra.mxu0 0.0
    %5303 = vmatprep.subr.mxu0 0.0
    %5304 = vmatpush1.msra.mxu0 0.0
    %5305 = vmatprep.subr.mxu0 0.0
    %5306 = vmatpush1.msra.mxu0 0.0
    %5307 = vmatprep.subr.mxu0 0.0
    %5308 = vmatpush1.msra.mxu0 0.0
    %5309 = vmatprep.subr.mxu0 0.0
    %5310 = vmatpush1.msra.mxu0 0.0
    %5311 = vmatprep.subr.mxu0 0.0
    %5312 = vmatpush1.msra.mxu0 0.0
    %5313 = vmatprep.subr.mxu0 0.0
    %5314 = vmatpush1.msra.mxu0 0.0
    %5315 = vmatprep.subr.mxu0 0.0
    %5316 = vmatpush1.msra.mxu0 0.0
    %5317 = vmatprep.subr.mxu0 0.0
    %5318 = vmatpush1.msra.mxu0 0.0
    %5319 = vmatprep.subr.mxu0 0.0
    %5320 = vmatpush1.msra.mxu0 0.0
    %5321 = vmatprep.subr.mxu0 0.0
    %5322 = vmatpush1.msra.mxu0 0.0
    %5323 = vmatprep.subr.mxu0 0.0
    %5324 = vmatpush1.msra.mxu0 0.0
    %5325 = vmatprep.subr.mxu0 0.0
    %5326 = vmatpush1.msra.mxu0 0.0
    %5327 = vmatprep.subr.mxu0 0.0
    %5328 = vmatpush1.msra.mxu0 0.0
    %5329 = vmatprep.subr.mxu0 0.0
    %5330 = vmatpush1.msra.mxu0 0.0
    %5331 = vmatprep.mubr.f32.mxu0 0.0
    %5332 = vmatmul.mubr.f32.gmra.mrb[0].mxu0 %v5265
    %v5333 = vpop.f32.mrb[0].mxu0
    %v5334 = vadd.f32 %v5259, %v5333
    %v5335 = vpop.f32.mrb[0].mxu0
    %5336 = vdwg.mxu0
    %v5337 = vadd.f32 %v5334, %v1419
    %v5338 = vxor.u32 %v5337, 2147483648
    %v5339 = vmul.f32 %v5338, 1.442695
    %v5340 = vpow.pop %v5339
    %v5341 = vadd.f32 %v5340, 1.0
    %v5342 = vrcp.pop %v5341
    %v5343 = vmul.f32 1.0, %v5342
    %v5344 = vtanh.pop %v5337
    %v5345 = vmul.f32 %v5343, %v4573
    %5347 = vrot.lane.b32.xlu0 %v5344, 64
    %v5348 = vpop.permute.xlu0 %5347
    %v5350 = vmul.f32 %v5343, %v5348
    %5352 = vrot.lane.b32.xlu0 %v5350, 32
    %v5353 = vpop.permute.xlu0 %5352
    %v5355 = vadd.f32 %v5345, %v5353
    %v5356 = vtanh.pop %v5355
    %5358 = vrot.lane.b32.xlu0 %v5356, 64
    %v5359 = vpop.permute.xlu0 %5358
    %v5361 = vmul.f32 %v5343, %v5359
    %5363 = vrot.lane.b32.xlu0 %v5361, 32
    %v5364 = vpop.permute.xlu0 %5363
    %v5365 = vsel %vm226, %v5364, 0
    %5367 = vmatprep.subr.mxu0 0.0
    %5368 = vmatpush1.msra.mxu0 %v221
    %5369 = vmatprep.subr.mxu0 0.0
    %5370 = vmatpush1.msra.mxu0 %v222
    %5371 = vmatprep.subr.mxu0 0.0
    %5372 = vmatpush1.msra.mxu0 %v223
    %5373 = vmatprep.subr.mxu0 0.0
    %5374 = vmatpush1.msra.mxu0 %v224
    %5375 = vmatprep.subr.mxu0 0.0
    %5376 = vmatpush1.msra.mxu0 0.0
    %5377 = vmatprep.subr.mxu0 0.0
    %5378 = vmatpush1.msra.mxu0 0.0
    %5379 = vmatprep.subr.mxu0 0.0
    %5380 = vmatpush1.msra.mxu0 0.0
    %5381 = vmatprep.subr.mxu0 0.0
    %5382 = vmatpush1.msra.mxu0 0.0
    %5383 = vmatprep.subr.mxu0 0.0
    %5384 = vmatpush1.msra.mxu0 0.0
    %5385 = vmatprep.subr.mxu0 0.0
    %5386 = vmatpush1.msra.mxu0 0.0
    %5387 = vmatprep.subr.mxu0 0.0
    %5388 = vmatpush1.msra.mxu0 0.0
    %5389 = vmatprep.subr.mxu0 0.0
    %5390 = vmatpush1.msra.mxu0 0.0
    %5391 = vmatprep.subr.mxu0 0.0
    %5392 = vmatpush1.msra.mxu0 0.0
    %5393 = vmatprep.subr.mxu0 0.0
    %5394 = vmatpush1.msra.mxu0 0.0
    %5395 = vmatprep.subr.mxu0 0.0
    %5396 = vmatpush1.msra.mxu0 0.0
    %5397 = vmatprep.subr.mxu0 0.0
    %5398 = vmatpush1.msra.mxu0 0.0
    %5399 = vmatprep.subr.mxu0 0.0
    %5400 = vmatpush1.msra.mxu0 0.0
    %5401 = vmatprep.subr.mxu0 0.0
    %5402 = vmatpush1.msra.mxu0 0.0
    %5403 = vmatprep.subr.mxu0 0.0
    %5404 = vmatpush1.msra.mxu0 0.0
    %5405 = vmatprep.subr.mxu0 0.0
    %5406 = vmatpush1.msra.mxu0 0.0
    %5407 = vmatprep.subr.mxu0 0.0
    %5408 = vmatpush1.msra.mxu0 0.0
    %5409 = vmatprep.subr.mxu0 0.0
    %5410 = vmatpush1.msra.mxu0 0.0
    %5411 = vmatprep.subr.mxu0 0.0
    %5412 = vmatpush1.msra.mxu0 0.0
    %5413 = vmatprep.subr.mxu0 0.0
    %5414 = vmatpush1.msra.mxu0 0.0
    %5415 = vmatprep.subr.mxu0 0.0
    %5416 = vmatpush1.msra.mxu0 0.0
    %5417 = vmatprep.subr.mxu0 0.0
    %5418 = vmatpush1.msra.mxu0 0.0
    %5419 = vmatprep.subr.mxu0 0.0
    %5420 = vmatpush1.msra.mxu0 0.0
    %5421 = vmatprep.subr.mxu0 0.0
    %5422 = vmatpush1.msra.mxu0 0.0
    %5423 = vmatprep.subr.mxu0 0.0
    %5424 = vmatpush1.msra.mxu0 0.0
    %5425 = vmatprep.subr.mxu0 0.0
    %5426 = vmatpush1.msra.mxu0 0.0
    %5427 = vmatprep.subr.mxu0 0.0
    %5428 = vmatpush1.msra.mxu0 0.0
    %5429 = vmatprep.subr.mxu0 0.0
    %5430 = vmatpush1.msra.mxu0 0.0
    %5431 = vmatprep.mubr.f32.mxu0 0.0
    %5432 = vmatmul.mubr.f32.gmra.mrb[0].mxu0 %v5365
    %v5433 = vpop.f32.mrb[0].mxu0
    %v5434 = vadd.f32 %v1450, %v5433
    %v5435 = vpop.f32.mrb[0].mxu0
    %5436 = vdwg.mxu0
    %v5439 = vunpack.c.l.s4 1966171168
    %v5440 = vunpack.c.0.s8 %v5439
    %v5441 = vlaneseq
    %v5442 = vshrl.u32 %v5441, 7
    %v5443 = vsub.s32 %v5440, %v5442
    %v5444 = vrot.slane %v5434, %v5443
    %v5445 = vcombine.high %v5444, %v5444
    %v5447 = vunpack.c.l.s4 1966171168
    %v5448 = vunpack.c.0.s8 %v5447
    %v5449 = vlaneseq
    %v5450 = vshrl.u32 %v5449, 7
    %v5451 = vsub.s32 %v5448, %v5450
    %v5452 = vrot.slane %v5444, %v5451
    %v5454 = vunpack.c.l.s4 1966171168
    %v5455 = vunpack.c.0.s8 %v5454
    %v5456 = vlaneseq
    %v5457 = vshrl.u32 %v5456, 7
    %v5458 = vsub.s32 %v5455, %v5457
    %v5459 = vrot.slane %v5445, %v5458
    %5462 = vst [vmem:[#allocation19 + $0x5] sm:$0x1] %v5452
    %5463 = vst [vmem:[#allocation19 + $0xd] sm:$0x1] %v5459
    %5464 = vmatprep.subr.mxu0 0.0
    %5465 = vmatpush1.msra.mxu0 %v209
    %5466 = vmatprep.subr.mxu0 0.0
    %5467 = vmatpush1.msra.mxu0 %v210
    %5468 = vmatprep.subr.mxu0 0.0
    %5469 = vmatpush1.msra.mxu0 %v211
    %5470 = vmatprep.subr.mxu0 0.0
    %5471 = vmatpush1.msra.mxu0 %v212
    %5472 = vmatprep.subr.mxu0 0.0
    %5473 = vmatpush1.msra.mxu0 0.0
    %5474 = vmatprep.subr.mxu0 0.0
    %5475 = vmatpush1.msra.mxu0 0.0
    %5476 = vmatprep.subr.mxu0 0.0
    %5477 = vmatpush1.msra.mxu0 0.0
    %5478 = vmatprep.subr.mxu0 0.0
    %5479 = vmatpush1.msra.mxu0 0.0
    %5480 = vmatprep.subr.mxu0 0.0
    %5481 = vmatpush1.msra.mxu0 0.0
    %5482 = vmatprep.subr.mxu0 0.0
    %5483 = vmatpush1.msra.mxu0 0.0
    %5484 = vmatprep.subr.mxu0 0.0
    %5485 = vmatpush1.msra.mxu0 0.0
    %5486 = vmatprep.subr.mxu0 0.0
    %5487 = vmatpush1.msra.mxu0 0.0
    %5488 = vmatprep.subr.mxu0 0.0
    %5489 = vmatpush1.msra.mxu0 0.0
    %5490 = vmatprep.subr.mxu0 0.0
    %5491 = vmatpush1.msra.mxu0 0.0
    %5492 = vmatprep.subr.mxu0 0.0
    %5493 = vmatpush1.msra.mxu0 0.0
    %5494 = vmatprep.subr.mxu0 0.0
    %5495 = vmatpush1.msra.mxu0 0.0
    %5496 = vmatprep.subr.mxu0 0.0
    %5497 = vmatpush1.msra.mxu0 0.0
    %5498 = vmatprep.subr.mxu0 0.0
    %5499 = vmatpush1.msra.mxu0 0.0
    %5500 = vmatprep.subr.mxu0 0.0
    %5501 = vmatpush1.msra.mxu0 0.0
    %5502 = vmatprep.subr.mxu0 0.0
    %5503 = vmatpush1.msra.mxu0 0.0
    %5504 = vmatprep.subr.mxu0 0.0
    %5505 = vmatpush1.msra.mxu0 0.0
    %5506 = vmatprep.subr.mxu0 0.0
    %5507 = vmatpush1.msra.mxu0 0.0
    %5508 = vmatprep.subr.mxu0 0.0
    %5509 = vmatpush1.msra.mxu0 0.0
    %5510 = vmatprep.subr.mxu0 0.0
    %5511 = vmatpush1.msra.mxu0 0.0
    %5512 = vmatprep.subr.mxu0 0.0
    %5513 = vmatpush1.msra.mxu0 0.0
    %5514 = vmatprep.subr.mxu0 0.0
    %5515 = vmatpush1.msra.mxu0 0.0
    %5516 = vmatprep.subr.mxu0 0.0
    %5517 = vmatpush1.msra.mxu0 0.0
    %5518 = vmatprep.subr.mxu0 0.0
    %5519 = vmatpush1.msra.mxu0 0.0
    %5520 = vmatprep.subr.mxu0 0.0
    %5521 = vmatpush1.msra.mxu0 0.0
    %5522 = vmatprep.subr.mxu0 0.0
    %5523 = vmatpush1.msra.mxu0 0.0
    %5524 = vmatprep.subr.mxu0 0.0
    %5525 = vmatpush1.msra.mxu0 0.0
    %5526 = vmatprep.subr.mxu0 0.0
    %5527 = vmatpush1.msra.mxu0 0.0
    %5528 = vmatprep.mubr.f32.mxu0 0.0
    %5529 = vmatmul.mubr.f32.gmra.mrb[0].mxu0 %v5265
    %v5530 = vpop.f32.mrb[0].mxu0
    %v5531 = vadd.f32 0.0, %v5530
    %v5532 = vpop.f32.mrb[0].mxu0
    %5533 = vdwg.mxu0
    %5535 = vrot.lane.b32.xlu0 %v5021, 32
    %v5536 = vpop.permute.xlu0 %5535
    %v5537 = vsel %vm226, %v5536, 0
    %5539 = vmatprep.subr.mxu0 0.0
    %5540 = vmatpush1.msra.mxu0 %v193
    %5541 = vmatprep.subr.mxu0 0.0
    %5542 = vmatpush1.msra.mxu0 %v194
    %5543 = vmatprep.subr.mxu0 0.0
    %5544 = vmatpush1.msra.mxu0 %v195
    %5545 = vmatprep.subr.mxu0 0.0
    %5546 = vmatpush1.msra.mxu0 %v196
    %5547 = vmatprep.subr.mxu0 0.0
    %5548 = vmatpush1.msra.mxu0 0.0
    %5549 = vmatprep.subr.mxu0 0.0
    %5550 = vmatpush1.msra.mxu0 0.0
    %5551 = vmatprep.subr.mxu0 0.0
    %5552 = vmatpush1.msra.mxu0 0.0
    %5553 = vmatprep.subr.mxu0 0.0
    %5554 = vmatpush1.msra.mxu0 0.0
    %5555 = vmatprep.subr.mxu0 0.0
    %5556 = vmatpush1.msra.mxu0 0.0
    %5557 = vmatprep.subr.mxu0 0.0
    %5558 = vmatpush1.msra.mxu0 0.0
    %5559 = vmatprep.subr.mxu0 0.0
    %5560 = vmatpush1.msra.mxu0 0.0
    %5561 = vmatprep.subr.mxu0 0.0
    %5562 = vmatpush1.msra.mxu0 0.0
    %5563 = vmatprep.subr.mxu0 0.0
    %5564 = vmatpush1.msra.mxu0 0.0
    %5565 = vmatprep.subr.mxu0 0.0
    %5566 = vmatpush1.msra.mxu0 0.0
    %5567 = vmatprep.subr.mxu0 0.0
    %5568 = vmatpush1.msra.mxu0 0.0
    %5569 = vmatprep.subr.mxu0 0.0
    %5570 = vmatpush1.msra.mxu0 0.0
    %5571 = vmatprep.subr.mxu0 0.0
    %5572 = vmatpush1.msra.mxu0 0.0
    %5573 = vmatprep.subr.mxu0 0.0
    %5574 = vmatpush1.msra.mxu0 0.0
    %5575 = vmatprep.subr.mxu0 0.0
    %5576 = vmatpush1.msra.mxu0 0.0
    %5577 = vmatprep.subr.mxu0 0.0
    %5578 = vmatpush1.msra.mxu0 0.0
    %5579 = vmatprep.subr.mxu0 0.0
    %5580 = vmatpush1.msra.mxu0 0.0
    %5581 = vmatprep.subr.mxu0 0.0
    %5582 = vmatpush1.msra.mxu0 0.0
    %5583 = vmatprep.subr.mxu0 0.0
    %5584 = vmatpush1.msra.mxu0 0.0
    %5585 = vmatprep.subr.mxu0 0.0
    %5586 = vmatpush1.msra.mxu0 0.0
    %5587 = vmatprep.subr.mxu0 0.0
    %5588 = vmatpush1.msra.mxu0 0.0
    %5589 = vmatprep.subr.mxu0 0.0
    %5590 = vmatpush1.msra.mxu0 0.0
    %5591 = vmatprep.subr.mxu0 0.0
    %5592 = vmatpush1.msra.mxu0 0.0
    %5593 = vmatprep.subr.mxu0 0.0
    %5594 = vmatpush1.msra.mxu0 0.0
    %5595 = vmatprep.subr.mxu0 0.0
    %5596 = vmatpush1.msra.mxu0 0.0
    %5597 = vmatprep.subr.mxu0 0.0
    %5598 = vmatpush1.msra.mxu0 0.0
    %5599 = vmatprep.subr.mxu0 0.0
    %5600 = vmatpush1.msra.mxu0 0.0
    %5601 = vmatprep.subr.mxu0 0.0
    %5602 = vmatpush1.msra.mxu0 0.0
    %5603 = vmatprep.mubr.f32.mxu0 0.0
    %5604 = vmatmul.mubr.f32.gmra.mrb[0].mxu0 %v5537
    %v5605 = vpop.f32.mrb[0].mxu0
    %v5606 = vadd.f32 %v5531, %v5605
    %v5607 = vpop.f32.mrb[0].mxu0
    %5608 = vdwg.mxu0
    %v5609 = vadd.f32 %v5606, %v903
    %v5610 = vxor.u32 %v5609, 2147483648
    %v5611 = vmul.f32 %v5610, 1.442695
    %v5612 = vpow.pop %v5611
    %v5613 = vadd.f32 %v5612, 1.0
    %v5614 = vrcp.pop %v5613
    %v5615 = vmul.f32 1.0, %v5614
    %v5616 = vtanh.pop %v5609
    %v5617 = vmul.f32 %v5615, %v4845
    %5619 = vrot.lane.b32.xlu0 %v5616, 64
    %v5620 = vpop.permute.xlu0 %5619
    %v5622 = vmul.f32 %v5615, %v5620
    %5624 = vrot.lane.b32.xlu0 %v5622, 32
    %v5625 = vpop.permute.xlu0 %5624
    %v5627 = vadd.f32 %v5617, %v5625
    %v5628 = vtanh.pop %v5627
    %5630 = vrot.lane.b32.xlu0 %v5628, 64
    %v5631 = vpop.permute.xlu0 %5630
    %v5633 = vmul.f32 %v5615, %v5631
    %5634 = vmatprep.subr.mxu0 0.0
    %5635 = vmatpush1.msra.mxu0 %v205
    %5636 = vmatprep.subr.mxu0 0.0
    %5637 = vmatpush1.msra.mxu0 %v206
    %5638 = vmatprep.subr.mxu0 0.0
    %5639 = vmatpush1.msra.mxu0 %v207
    %5640 = vmatprep.subr.mxu0 0.0
    %5641 = vmatpush1.msra.mxu0 %v208
    %5642 = vmatprep.subr.mxu0 0.0
    %5643 = vmatpush1.msra.mxu0 0.0
    %5644 = vmatprep.subr.mxu0 0.0
    %5645 = vmatpush1.msra.mxu0 0.0
    %5646 = vmatprep.subr.mxu0 0.0
    %5647 = vmatpush1.msra.mxu0 0.0
    %5648 = vmatprep.subr.mxu0 0.0
    %5649 = vmatpush1.msra.mxu0 0.0
    %5650 = vmatprep.subr.mxu0 0.0
    %5651 = vmatpush1.msra.mxu0 0.0
    %5652 = vmatprep.subr.mxu0 0.0
    %5653 = vmatpush1.msra.mxu0 0.0
    %5654 = vmatprep.subr.mxu0 0.0
    %5655 = vmatpush1.msra.mxu0 0.0
    %5656 = vmatprep.subr.mxu0 0.0
    %5657 = vmatpush1.msra.mxu0 0.0
    %5658 = vmatprep.subr.mxu0 0.0
    %5659 = vmatpush1.msra.mxu0 0.0
    %5660 = vmatprep.subr.mxu0 0.0
    %5661 = vmatpush1.msra.mxu0 0.0
    %5662 = vmatprep.subr.mxu0 0.0
    %5663 = vmatpush1.msra.mxu0 0.0
    %5664 = vmatprep.subr.mxu0 0.0
    %5665 = vmatpush1.msra.mxu0 0.0
    %5666 = vmatprep.subr.mxu0 0.0
    %5667 = vmatpush1.msra.mxu0 0.0
    %5668 = vmatprep.subr.mxu0 0.0
    %5669 = vmatpush1.msra.mxu0 0.0
    %5670 = vmatprep.subr.mxu0 0.0
    %5671 = vmatpush1.msra.mxu0 0.0
    %5672 = vmatprep.subr.mxu0 0.0
    %5673 = vmatpush1.msra.mxu0 0.0
    %5674 = vmatprep.subr.mxu0 0.0
    %5675 = vmatpush1.msra.mxu0 0.0
    %5676 = vmatprep.subr.mxu0 0.0
    %5677 = vmatpush1.msra.mxu0 0.0
    %5678 = vmatprep.subr.mxu0 0.0
    %5679 = vmatpush1.msra.mxu0 0.0
    %5680 = vmatprep.subr.mxu0 0.0
    %5681 = vmatpush1.msra.mxu0 0.0
    %5682 = vmatprep.subr.mxu0 0.0
    %5683 = vmatpush1.msra.mxu0 0.0
    %5684 = vmatprep.subr.mxu0 0.0
    %5685 = vmatpush1.msra.mxu0 0.0
    %5686 = vmatprep.subr.mxu0 0.0
    %5687 = vmatpush1.msra.mxu0 0.0
    %5688 = vmatprep.subr.mxu0 0.0
    %5689 = vmatpush1.msra.mxu0 0.0
    %5690 = vmatprep.subr.mxu0 0.0
    %5691 = vmatpush1.msra.mxu0 0.0
    %5692 = vmatprep.subr.mxu0 0.0
    %5693 = vmatpush1.msra.mxu0 0.0
    %5694 = vmatprep.subr.mxu0 0.0
    %5695 = vmatpush1.msra.mxu0 0.0
    %5696 = vmatprep.subr.mxu0 0.0
    %5697 = vmatpush1.msra.mxu0 0.0
    %5698 = vmatprep.mubr.f32.mxu0 0.0
    %5699 = vmatmul.mubr.f32.gmra.mrb[0].mxu0 %v5537
    %v5700 = vpop.f32.mrb[0].mxu0
    %v5701 = vadd.f32 0.0, %v5700
    %v5702 = vpop.f32.mrb[0].mxu0
    %5703 = vdwg.mxu0
    %5705 = vrot.lane.b32.xlu0 %v5191, 32
    %v5706 = vpop.permute.xlu0 %5705
    %v5707 = vsel %vm226, %v5706, 0
    %5709 = vmatprep.subr.mxu0 0.0
    %5710 = vmatpush1.msra.mxu0 %v189
    %5711 = vmatprep.subr.mxu0 0.0
    %5712 = vmatpush1.msra.mxu0 %v190
    %5713 = vmatprep.subr.mxu0 0.0
    %5714 = vmatpush1.msra.mxu0 %v191
    %5715 = vmatprep.subr.mxu0 0.0
    %5716 = vmatpush1.msra.mxu0 %v192
    %5717 = vmatprep.subr.mxu0 0.0
    %5718 = vmatpush1.msra.mxu0 0.0
    %5719 = vmatprep.subr.mxu0 0.0
    %5720 = vmatpush1.msra.mxu0 0.0
    %5721 = vmatprep.subr.mxu0 0.0
    %5722 = vmatpush1.msra.mxu0 0.0
    %5723 = vmatprep.subr.mxu0 0.0
    %5724 = vmatpush1.msra.mxu0 0.0
    %5725 = vmatprep.subr.mxu0 0.0
    %5726 = vmatpush1.msra.mxu0 0.0
    %5727 = vmatprep.subr.mxu0 0.0
    %5728 = vmatpush1.msra.mxu0 0.0
    %5729 = vmatprep.subr.mxu0 0.0
    %5730 = vmatpush1.msra.mxu0 0.0
    %5731 = vmatprep.subr.mxu0 0.0
    %5732 = vmatpush1.msra.mxu0 0.0
    %5733 = vmatprep.subr.mxu0 0.0
    %5734 = vmatpush1.msra.mxu0 0.0
    %5735 = vmatprep.subr.mxu0 0.0
    %5736 = vmatpush1.msra.mxu0 0.0
    %5737 = vmatprep.subr.mxu0 0.0
    %5738 = vmatpush1.msra.mxu0 0.0
    %5739 = vmatprep.subr.mxu0 0.0
    %5740 = vmatpush1.msra.mxu0 0.0
    %5741 = vmatprep.subr.mxu0 0.0
    %5742 = vmatpush1.msra.mxu0 0.0
    %5743 = vmatprep.subr.mxu0 0.0
    %5744 = vmatpush1.msra.mxu0 0.0
    %5745 = vmatprep.subr.mxu0 0.0
    %5746 = vmatpush1.msra.mxu0 0.0
    %5747 = vmatprep.subr.mxu0 0.0
    %5748 = vmatpush1.msra.mxu0 0.0
    %5749 = vmatprep.subr.mxu0 0.0
    %5750 = vmatpush1.msra.mxu0 0.0
    %5751 = vmatprep.subr.mxu0 0.0
    %5752 = vmatpush1.msra.mxu0 0.0
    %5753 = vmatprep.subr.mxu0 0.0
    %5754 = vmatpush1.msra.mxu0 0.0
    %5755 = vmatprep.subr.mxu0 0.0
    %5756 = vmatpush1.msra.mxu0 0.0
    %5757 = vmatprep.subr.mxu0 0.0
    %5758 = vmatpush1.msra.mxu0 0.0
    %5759 = vmatprep.subr.mxu0 0.0
    %5760 = vmatpush1.msra.mxu0 0.0
    %5761 = vmatprep.subr.mxu0 0.0
    %5762 = vmatpush1.msra.mxu0 0.0
    %5763 = vmatprep.subr.mxu0 0.0
    %5764 = vmatpush1.msra.mxu0 0.0
    %5765 = vmatprep.subr.mxu0 0.0
    %5766 = vmatpush1.msra.mxu0 0.0
    %5767 = vmatprep.subr.mxu0 0.0
    %5768 = vmatpush1.msra.mxu0 0.0
    %5769 = vmatprep.subr.mxu0 0.0
    %5770 = vmatpush1.msra.mxu0 0.0
    %5771 = vmatprep.subr.mxu0 0.0
    %5772 = vmatpush1.msra.mxu0 0.0
    %5773 = vmatprep.mubr.f32.mxu0 0.0
    %5774 = vmatmul.mubr.f32.gmra.mrb[0].mxu0 %v5707
    %v5775 = vpop.f32.mrb[0].mxu0
    %v5776 = vadd.f32 %v5701, %v5775
    %v5777 = vpop.f32.mrb[0].mxu0
    %5778 = vdwg.mxu0
    %v5779 = vadd.f32 %v5776, %v558
    %v5780 = vxor.u32 %v5779, 2147483648
    %v5781 = vmul.f32 %v5780, 1.442695
    %v5782 = vpow.pop %v5781
    %v5783 = vadd.f32 %v5782, 1.0
    %v5784 = vrcp.pop %v5783
    %v5785 = vmul.f32 1.0, %v5784
    %v5786 = vtanh.pop %v5779
    %v5787 = vmul.f32 %v5785, %v5015
    %5789 = vrot.lane.b32.xlu0 %v5786, 64
    %v5790 = vpop.permute.xlu0 %5789
    %v5792 = vmul.f32 %v5785, %v5790
    %5794 = vrot.lane.b32.xlu0 %v5792, 32
    %v5795 = vpop.permute.xlu0 %5794
    %v5797 = vadd.f32 %v5787, %v5795
    %v5798 = vtanh.pop %v5797
    %5800 = vrot.lane.b32.xlu0 %v5798, 64
    %v5801 = vpop.permute.xlu0 %5800
    %v5803 = vmul.f32 %v5785, %v5801
    %5804 = vmatprep.subr.mxu0 0.0
    %5805 = vmatpush1.msra.mxu0 %v213
    %5806 = vmatprep.subr.mxu0 0.0
    %5807 = vmatpush1.msra.mxu0 %v214
    %5808 = vmatprep.subr.mxu0 0.0
    %5809 = vmatpush1.msra.mxu0 %v215
    %5810 = vmatprep.subr.mxu0 0.0
    %5811 = vmatpush1.msra.mxu0 %v216
    %5812 = vmatprep.subr.mxu0 0.0
    %5813 = vmatpush1.msra.mxu0 0.0
    %5814 = vmatprep.subr.mxu0 0.0
    %5815 = vmatpush1.msra.mxu0 0.0
    %5816 = vmatprep.subr.mxu0 0.0
    %5817 = vmatpush1.msra.mxu0 0.0
    %5818 = vmatprep.subr.mxu0 0.0
    %5819 = vmatpush1.msra.mxu0 0.0
    %5820 = vmatprep.subr.mxu0 0.0
    %5821 = vmatpush1.msra.mxu0 0.0
    %5822 = vmatprep.subr.mxu0 0.0
    %5823 = vmatpush1.msra.mxu0 0.0
    %5824 = vmatprep.subr.mxu0 0.0
    %5825 = vmatpush1.msra.mxu0 0.0
    %5826 = vmatprep.subr.mxu0 0.0
    %5827 = vmatpush1.msra.mxu0 0.0
    %5828 = vmatprep.subr.mxu0 0.0
    %5829 = vmatpush1.msra.mxu0 0.0
    %5830 = vmatprep.subr.mxu0 0.0
    %5831 = vmatpush1.msra.mxu0 0.0
    %5832 = vmatprep.subr.mxu0 0.0
    %5833 = vmatpush1.msra.mxu0 0.0
    %5834 = vmatprep.subr.mxu0 0.0
    %5835 = vmatpush1.msra.mxu0 0.0
    %5836 = vmatprep.subr.mxu0 0.0
    %5837 = vmatpush1.msra.mxu0 0.0
    %5838 = vmatprep.subr.mxu0 0.0
    %5839 = vmatpush1.msra.mxu0 0.0
    %5840 = vmatprep.subr.mxu0 0.0
    %5841 = vmatpush1.msra.mxu0 0.0
    %5842 = vmatprep.subr.mxu0 0.0
    %5843 = vmatpush1.msra.mxu0 0.0
    %5844 = vmatprep.subr.mxu0 0.0
    %5845 = vmatpush1.msra.mxu0 0.0
    %5846 = vmatprep.subr.mxu0 0.0
    %5847 = vmatpush1.msra.mxu0 0.0
    %5848 = vmatprep.subr.mxu0 0.0
    %5849 = vmatpush1.msra.mxu0 0.0
    %5850 = vmatprep.subr.mxu0 0.0
    %5851 = vmatpush1.msra.mxu0 0.0
    %5852 = vmatprep.subr.mxu0 0.0
    %5853 = vmatpush1.msra.mxu0 0.0
    %5854 = vmatprep.subr.mxu0 0.0
    %5855 = vmatpush1.msra.mxu0 0.0
    %5856 = vmatprep.subr.mxu0 0.0
    %5857 = vmatpush1.msra.mxu0 0.0
    %5858 = vmatprep.subr.mxu0 0.0
    %5859 = vmatpush1.msra.mxu0 0.0
    %5860 = vmatprep.subr.mxu0 0.0
    %5861 = vmatpush1.msra.mxu0 0.0
    %5862 = vmatprep.subr.mxu0 0.0
    %5863 = vmatpush1.msra.mxu0 0.0
    %5864 = vmatprep.subr.mxu0 0.0
    %5865 = vmatpush1.msra.mxu0 0.0
    %5866 = vmatprep.subr.mxu0 0.0
    %5867 = vmatpush1.msra.mxu0 0.0
    %5868 = vmatprep.mubr.f32.mxu0 0.0
    %5869 = vmatmul.mubr.f32.gmra.mrb[0].mxu0 %v5365
    %v5870 = vpop.f32.mrb[0].mxu0
    %v5871 = vadd.f32 0.0, %v5870
    %v5872 = vpop.f32.mrb[0].mxu0
    %5873 = vdwg.mxu0
    %5875 = vrot.lane.b32.xlu0 %v5633, 32
    %v5876 = vpop.permute.xlu0 %5875
    %v5877 = vsel %vm226, %v5876, 0
    %5879 = vmatprep.subr.mxu0 0.0
    %5880 = vmatpush1.msra.mxu0 %v197
    %5881 = vmatprep.subr.mxu0 0.0
    %5882 = vmatpush1.msra.mxu0 %v198
    %5883 = vmatprep.subr.mxu0 0.0
    %5884 = vmatpush1.msra.mxu0 %v199
    %5885 = vmatprep.subr.mxu0 0.0
    %5886 = vmatpush1.msra.mxu0 %v200
    %5887 = vmatprep.subr.mxu0 0.0
    %5888 = vmatpush1.msra.mxu0 0.0
    %5889 = vmatprep.subr.mxu0 0.0
    %5890 = vmatpush1.msra.mxu0 0.0
    %5891 = vmatprep.subr.mxu0 0.0
    %5892 = vmatpush1.msra.mxu0 0.0
    %5893 = vmatprep.subr.mxu0 0.0
    %5894 = vmatpush1.msra.mxu0 0.0
    %5895 = vmatprep.subr.mxu0 0.0
    %5896 = vmatpush1.msra.mxu0 0.0
    %5897 = vmatprep.subr.mxu0 0.0
    %5898 = vmatpush1.msra.mxu0 0.0
    %5899 = vmatprep.subr.mxu0 0.0
    %5900 = vmatpush1.msra.mxu0 0.0
    %5901 = vmatprep.subr.mxu0 0.0
    %5902 = vmatpush1.msra.mxu0 0.0
    %5903 = vmatprep.subr.mxu0 0.0
    %5904 = vmatpush1.msra.mxu0 0.0
    %5905 = vmatprep.subr.mxu0 0.0
    %5906 = vmatpush1.msra.mxu0 0.0
    %5907 = vmatprep.subr.mxu0 0.0
    %5908 = vmatpush1.msra.mxu0 0.0
    %5909 = vmatprep.subr.mxu0 0.0
    %5910 = vmatpush1.msra.mxu0 0.0
    %5911 = vmatprep.subr.mxu0 0.0
    %5912 = vmatpush1.msra.mxu0 0.0
    %5913 = vmatprep.subr.mxu0 0.0
    %5914 = vmatpush1.msra.mxu0 0.0
    %5915 = vmatprep.subr.mxu0 0.0
    %5916 = vmatpush1.msra.mxu0 0.0
    %5917 = vmatprep.subr.mxu0 0.0
    %5918 = vmatpush1.msra.mxu0 0.0
    %5919 = vmatprep.subr.mxu0 0.0
    %5920 = vmatpush1.msra.mxu0 0.0
    %5921 = vmatprep.subr.mxu0 0.0
    %5922 = vmatpush1.msra.mxu0 0.0
    %5923 = vmatprep.subr.mxu0 0.0
    %5924 = vmatpush1.msra.mxu0 0.0
    %5925 = vmatprep.subr.mxu0 0.0
    %5926 = vmatpush1.msra.mxu0 0.0
    %5927 = vmatprep.subr.mxu0 0.0
    %5928 = vmatpush1.msra.mxu0 0.0
    %5929 = vmatprep.subr.mxu0 0.0
    %5930 = vmatpush1.msra.mxu0 0.0
    %5931 = vmatprep.subr.mxu0 0.0
    %5932 = vmatpush1.msra.mxu0 0.0
    %5933 = vmatprep.subr.mxu0 0.0
    %5934 = vmatpush1.msra.mxu0 0.0
    %5935 = vmatprep.subr.mxu0 0.0
    %5936 = vmatpush1.msra.mxu0 0.0
    %5937 = vmatprep.subr.mxu0 0.0
    %5938 = vmatpush1.msra.mxu0 0.0
    %5939 = vmatprep.subr.mxu0 0.0
    %5940 = vmatpush1.msra.mxu0 0.0
    %5941 = vmatprep.subr.mxu0 0.0
    %5942 = vmatpush1.msra.mxu0 0.0
    %5943 = vmatprep.mubr.f32.mxu0 0.0
    %5944 = vmatmul.mubr.f32.gmra.mrb[0].mxu0 %v5877
    %v5945 = vpop.f32.mrb[0].mxu0
    %v5946 = vadd.f32 %v5871, %v5945
    %v5947 = vpop.f32.mrb[0].mxu0
    %5948 = vdwg.mxu0
    %v5949 = vadd.f32 %v5946, %v1419
    %v5950 = vxor.u32 %v5949, 2147483648
    %v5951 = vmul.f32 %v5950, 1.442695
    %v5952 = vpow.pop %v5951
    %v5953 = vadd.f32 %v5952, 1.0
    %v5954 = vrcp.pop %v5953
    %v5955 = vmul.f32 1.0, %v5954
    %v5956 = vtanh.pop %v5949
    %v5957 = vmul.f32 %v5955, %v5355
    %5959 = vrot.lane.b32.xlu0 %v5956, 64
    %v5960 = vpop.permute.xlu0 %5959
    %v5962 = vmul.f32 %v5955, %v5960
    %5964 = vrot.lane.b32.xlu0 %v5962, 32
    %v5965 = vpop.permute.xlu0 %5964
    %v5967 = vadd.f32 %v5957, %v5965
    %v5968 = vtanh.pop %v5967
    %5970 = vrot.lane.b32.xlu0 %v5968, 64
    %v5971 = vpop.permute.xlu0 %5970
    %v5973 = vmul.f32 %v5955, %v5971
    %5975 = vrot.lane.b32.xlu0 %v5973, 32
    %v5976 = vpop.permute.xlu0 %5975
    %v5977 = vsel %vm226, %v5976, 0
    %5979 = vmatprep.subr.mxu0 0.0
    %5980 = vmatpush1.msra.mxu0 %v221
    %5981 = vmatprep.subr.mxu0 0.0
    %5982 = vmatpush1.msra.mxu0 %v222
    %5983 = vmatprep.subr.mxu0 0.0
    %5984 = vmatpush1.msra.mxu0 %v223
    %5985 = vmatprep.subr.mxu0 0.0
    %5986 = vmatpush1.msra.mxu0 %v224
    %5987 = vmatprep.subr.mxu0 0.0
    %5988 = vmatpush1.msra.mxu0 0.0
    %5989 = vmatprep.subr.mxu0 0.0
    %5990 = vmatpush1.msra.mxu0 0.0
    %5991 = vmatprep.subr.mxu0 0.0
    %5992 = vmatpush1.msra.mxu0 0.0
    %5993 = vmatprep.subr.mxu0 0.0
    %5994 = vmatpush1.msra.mxu0 0.0
    %5995 = vmatprep.subr.mxu0 0.0
    %5996 = vmatpush1.msra.mxu0 0.0
    %5997 = vmatprep.subr.mxu0 0.0
    %5998 = vmatpush1.msra.mxu0 0.0
    %5999 = vmatprep.subr.mxu0 0.0
    %6000 = vmatpush1.msra.mxu0 0.0
    %6001 = vmatprep.subr.mxu0 0.0
    %6002 = vmatpush1.msra.mxu0 0.0
    %6003 = vmatprep.subr.mxu0 0.0
    %6004 = vmatpush1.msra.mxu0 0.0
    %6005 = vmatprep.subr.mxu0 0.0
    %6006 = vmatpush1.msra.mxu0 0.0
    %6007 = vmatprep.subr.mxu0 0.0
    %6008 = vmatpush1.msra.mxu0 0.0
    %6009 = vmatprep.subr.mxu0 0.0
    %6010 = vmatpush1.msra.mxu0 0.0
    %6011 = vmatprep.subr.mxu0 0.0
    %6012 = vmatpush1.msra.mxu0 0.0
    %6013 = vmatprep.subr.mxu0 0.0
    %6014 = vmatpush1.msra.mxu0 0.0
    %6015 = vmatprep.subr.mxu0 0.0
    %6016 = vmatpush1.msra.mxu0 0.0
    %6017 = vmatprep.subr.mxu0 0.0
    %6018 = vmatpush1.msra.mxu0 0.0
    %6019 = vmatprep.subr.mxu0 0.0
    %6020 = vmatpush1.msra.mxu0 0.0
    %6021 = vmatprep.subr.mxu0 0.0
    %6022 = vmatpush1.msra.mxu0 0.0
    %6023 = vmatprep.subr.mxu0 0.0
    %6024 = vmatpush1.msra.mxu0 0.0
    %6025 = vmatprep.subr.mxu0 0.0
    %6026 = vmatpush1.msra.mxu0 0.0
    %6027 = vmatprep.subr.mxu0 0.0
    %6028 = vmatpush1.msra.mxu0 0.0
    %6029 = vmatprep.subr.mxu0 0.0
    %6030 = vmatpush1.msra.mxu0 0.0
    %6031 = vmatprep.subr.mxu0 0.0
    %6032 = vmatpush1.msra.mxu0 0.0
    %6033 = vmatprep.subr.mxu0 0.0
    %6034 = vmatpush1.msra.mxu0 0.0
    %6035 = vmatprep.subr.mxu0 0.0
    %6036 = vmatpush1.msra.mxu0 0.0
    %6037 = vmatprep.subr.mxu0 0.0
    %6038 = vmatpush1.msra.mxu0 0.0
    %6039 = vmatprep.subr.mxu0 0.0
    %6040 = vmatpush1.msra.mxu0 0.0
    %6041 = vmatprep.subr.mxu0 0.0
    %6042 = vmatpush1.msra.mxu0 0.0
    %6043 = vmatprep.mubr.f32.mxu0 0.0
    %6044 = vmatmul.mubr.f32.gmra.mrb[0].mxu0 %v5977
    %v6045 = vpop.f32.mrb[0].mxu0
    %v6046 = vadd.f32 %v1450, %v6045
    %v6047 = vpop.f32.mrb[0].mxu0
    %6048 = vdwg.mxu0
    %v6051 = vunpack.c.l.s4 1966171168
    %v6052 = vunpack.c.0.s8 %v6051
    %v6053 = vlaneseq
    %v6054 = vshrl.u32 %v6053, 7
    %v6055 = vsub.s32 %v6052, %v6054
    %v6056 = vrot.slane %v6046, %v6055
    %v6057 = vcombine.high %v6056, %v6056
    %v6059 = vunpack.c.l.s4 1966171168
    %v6060 = vunpack.c.0.s8 %v6059
    %v6061 = vlaneseq
    %v6062 = vshrl.u32 %v6061, 7
    %v6063 = vsub.s32 %v6060, %v6062
    %v6064 = vrot.slane %v6056, %v6063
    %v6066 = vunpack.c.l.s4 1966171168
    %v6067 = vunpack.c.0.s8 %v6066
    %v6068 = vlaneseq
    %v6069 = vshrl.u32 %v6068, 7
    %v6070 = vsub.s32 %v6067, %v6069
    %v6071 = vrot.slane %v6057, %v6070
    %6074 = vst [vmem:[#allocation19 + $0x6] sm:$0x1] %v6064
    %6075 = vst [vmem:[#allocation19 + $0xe] sm:$0x1] %v6071
    %6076 = vmatprep.subr.mxu0 0.0
    %6077 = vmatpush1.msra.mxu0 %v209
    %6078 = vmatprep.subr.mxu0 0.0
    %6079 = vmatpush1.msra.mxu0 %v210
    %6080 = vmatprep.subr.mxu0 0.0
    %6081 = vmatpush1.msra.mxu0 %v211
    %6082 = vmatprep.subr.mxu0 0.0
    %6083 = vmatpush1.msra.mxu0 %v212
    %6084 = vmatprep.subr.mxu0 0.0
    %6085 = vmatpush1.msra.mxu0 0.0
    %6086 = vmatprep.subr.mxu0 0.0
    %6087 = vmatpush1.msra.mxu0 0.0
    %6088 = vmatprep.subr.mxu0 0.0
    %6089 = vmatpush1.msra.mxu0 0.0
    %6090 = vmatprep.subr.mxu0 0.0
    %6091 = vmatpush1.msra.mxu0 0.0
    %6092 = vmatprep.subr.mxu0 0.0
    %6093 = vmatpush1.msra.mxu0 0.0
    %6094 = vmatprep.subr.mxu0 0.0
    %6095 = vmatpush1.msra.mxu0 0.0
    %6096 = vmatprep.subr.mxu0 0.0
    %6097 = vmatpush1.msra.mxu0 0.0
    %6098 = vmatprep.subr.mxu0 0.0
    %6099 = vmatpush1.msra.mxu0 0.0
    %6100 = vmatprep.subr.mxu0 0.0
    %6101 = vmatpush1.msra.mxu0 0.0
    %6102 = vmatprep.subr.mxu0 0.0
    %6103 = vmatpush1.msra.mxu0 0.0
    %6104 = vmatprep.subr.mxu0 0.0
    %6105 = vmatpush1.msra.mxu0 0.0
    %6106 = vmatprep.subr.mxu0 0.0
    %6107 = vmatpush1.msra.mxu0 0.0
    %6108 = vmatprep.subr.mxu0 0.0
    %6109 = vmatpush1.msra.mxu0 0.0
    %6110 = vmatprep.subr.mxu0 0.0
    %6111 = vmatpush1.msra.mxu0 0.0
    %6112 = vmatprep.subr.mxu0 0.0
    %6113 = vmatpush1.msra.mxu0 0.0
    %6114 = vmatprep.subr.mxu0 0.0
    %6115 = vmatpush1.msra.mxu0 0.0
    %6116 = vmatprep.subr.mxu0 0.0
    %6117 = vmatpush1.msra.mxu0 0.0
    %6118 = vmatprep.subr.mxu0 0.0
    %6119 = vmatpush1.msra.mxu0 0.0
    %6120 = vmatprep.subr.mxu0 0.0
    %6121 = vmatpush1.msra.mxu0 0.0
    %6122 = vmatprep.subr.mxu0 0.0
    %6123 = vmatpush1.msra.mxu0 0.0
    %6124 = vmatprep.subr.mxu0 0.0
    %6125 = vmatpush1.msra.mxu0 0.0
    %6126 = vmatprep.subr.mxu0 0.0
    %6127 = vmatpush1.msra.mxu0 0.0
    %6128 = vmatprep.subr.mxu0 0.0
    %6129 = vmatpush1.msra.mxu0 0.0
    %6130 = vmatprep.subr.mxu0 0.0
    %6131 = vmatpush1.msra.mxu0 0.0
    %6132 = vmatprep.subr.mxu0 0.0
    %6133 = vmatpush1.msra.mxu0 0.0
    %6134 = vmatprep.subr.mxu0 0.0
    %6135 = vmatpush1.msra.mxu0 0.0
    %6136 = vmatprep.subr.mxu0 0.0
    %6137 = vmatpush1.msra.mxu0 0.0
    %6138 = vmatprep.subr.mxu0 0.0
    %6139 = vmatpush1.msra.mxu0 0.0
    %6140 = vmatprep.mubr.f32.mxu0 0.0
    %6141 = vmatmul.mubr.f32.gmra.mrb[0].mxu0 %v5877
    %v6142 = vpop.f32.mrb[0].mxu0
    %v6143 = vadd.f32 0.0, %v6142
    %v6144 = vpop.f32.mrb[0].mxu0
    %6145 = vdwg.mxu0
    %6147 = vrot.lane.b32.xlu0 %v5803, 32
    %v6148 = vpop.permute.xlu0 %6147
    %v6149 = vsel %vm226, %v6148, 0
    %6151 = vmatprep.subr.mxu0 0.0
    %6152 = vmatpush1.msra.mxu0 %v193
    %6153 = vmatprep.subr.mxu0 0.0
    %6154 = vmatpush1.msra.mxu0 %v194
    %6155 = vmatprep.subr.mxu0 0.0
    %6156 = vmatpush1.msra.mxu0 %v195
    %6157 = vmatprep.subr.mxu0 0.0
    %6158 = vmatpush1.msra.mxu0 %v196
    %6159 = vmatprep.subr.mxu0 0.0
    %6160 = vmatpush1.msra.mxu0 0.0
    %6161 = vmatprep.subr.mxu0 0.0
    %6162 = vmatpush1.msra.mxu0 0.0
    %6163 = vmatprep.subr.mxu0 0.0
    %6164 = vmatpush1.msra.mxu0 0.0
    %6165 = vmatprep.subr.mxu0 0.0
    %6166 = vmatpush1.msra.mxu0 0.0
    %6167 = vmatprep.subr.mxu0 0.0
    %6168 = vmatpush1.msra.mxu0 0.0
    %6169 = vmatprep.subr.mxu0 0.0
    %6170 = vmatpush1.msra.mxu0 0.0
    %6171 = vmatprep.subr.mxu0 0.0
    %6172 = vmatpush1.msra.mxu0 0.0
    %6173 = vmatprep.subr.mxu0 0.0
    %6174 = vmatpush1.msra.mxu0 0.0
    %6175 = vmatprep.subr.mxu0 0.0
    %6176 = vmatpush1.msra.mxu0 0.0
    %6177 = vmatprep.subr.mxu0 0.0
    %6178 = vmatpush1.msra.mxu0 0.0
    %6179 = vmatprep.subr.mxu0 0.0
    %6180 = vmatpush1.msra.mxu0 0.0
    %6181 = vmatprep.subr.mxu0 0.0
    %6182 = vmatpush1.msra.mxu0 0.0
    %6183 = vmatprep.subr.mxu0 0.0
    %6184 = vmatpush1.msra.mxu0 0.0
    %6185 = vmatprep.subr.mxu0 0.0
    %6186 = vmatpush1.msra.mxu0 0.0
    %6187 = vmatprep.subr.mxu0 0.0
    %6188 = vmatpush1.msra.mxu0 0.0
    %6189 = vmatprep.subr.mxu0 0.0
    %6190 = vmatpush1.msra.mxu0 0.0
    %6191 = vmatprep.subr.mxu0 0.0
    %6192 = vmatpush1.msra.mxu0 0.0
    %6193 = vmatprep.subr.mxu0 0.0
    %6194 = vmatpush1.msra.mxu0 0.0
    %6195 = vmatprep.subr.mxu0 0.0
    %6196 = vmatpush1.msra.mxu0 0.0
    %6197 = vmatprep.subr.mxu0 0.0
    %6198 = vmatpush1.msra.mxu0 0.0
    %6199 = vmatprep.subr.mxu0 0.0
    %6200 = vmatpush1.msra.mxu0 0.0
    %6201 = vmatprep.subr.mxu0 0.0
    %6202 = vmatpush1.msra.mxu0 0.0
    %6203 = vmatprep.subr.mxu0 0.0
    %6204 = vmatpush1.msra.mxu0 0.0
    %6205 = vmatprep.subr.mxu0 0.0
    %6206 = vmatpush1.msra.mxu0 0.0
    %6207 = vmatprep.subr.mxu0 0.0
    %6208 = vmatpush1.msra.mxu0 0.0
    %6209 = vmatprep.subr.mxu0 0.0
    %6210 = vmatpush1.msra.mxu0 0.0
    %6211 = vmatprep.subr.mxu0 0.0
    %6212 = vmatpush1.msra.mxu0 0.0
    %6213 = vmatprep.subr.mxu0 0.0
    %6214 = vmatpush1.msra.mxu0 0.0
    %6215 = vmatprep.mubr.f32.mxu0 0.0
    %6216 = vmatmul.mubr.f32.gmra.mrb[0].mxu0 %v6149
    %v6217 = vpop.f32.mrb[0].mxu0
    %v6218 = vadd.f32 %v6143, %v6217
    %v6219 = vpop.f32.mrb[0].mxu0
    %6220 = vdwg.mxu0
    %v6221 = vadd.f32 %v6218, %v903
    %v6222 = vxor.u32 %v6221, 2147483648
    %v6223 = vmul.f32 %v6222, 1.442695
    %v6224 = vpow.pop %v6223
    %v6225 = vadd.f32 %v6224, 1.0
    %v6226 = vrcp.pop %v6225
    %v6227 = vmul.f32 1.0, %v6226
    %v6228 = vtanh.pop %v6221
    %v6229 = vmul.f32 %v6227, %v5627
    %6231 = vrot.lane.b32.xlu0 %v6228, 64
    %v6232 = vpop.permute.xlu0 %6231
    %v6234 = vmul.f32 %v6227, %v6232
    %6236 = vrot.lane.b32.xlu0 %v6234, 32
    %v6237 = vpop.permute.xlu0 %6236
    %v6239 = vadd.f32 %v6229, %v6237
    %v6240 = vtanh.pop %v6239
    %6242 = vrot.lane.b32.xlu0 %v6240, 64
    %v6243 = vpop.permute.xlu0 %6242
    %v6245 = vmul.f32 %v6227, %v6243
    %6246 = vmatprep.subr.mxu0 0.0
    %6247 = vmatpush1.msra.mxu0 %v213
    %6248 = vmatprep.subr.mxu0 0.0
    %6249 = vmatpush1.msra.mxu0 %v214
    %6250 = vmatprep.subr.mxu0 0.0
    %6251 = vmatpush1.msra.mxu0 %v215
    %6252 = vmatprep.subr.mxu0 0.0
    %6253 = vmatpush1.msra.mxu0 %v216
    %6254 = vmatprep.subr.mxu0 0.0
    %6255 = vmatpush1.msra.mxu0 0.0
    %6256 = vmatprep.subr.mxu0 0.0
    %6257 = vmatpush1.msra.mxu0 0.0
    %6258 = vmatprep.subr.mxu0 0.0
    %6259 = vmatpush1.msra.mxu0 0.0
    %6260 = vmatprep.subr.mxu0 0.0
    %6261 = vmatpush1.msra.mxu0 0.0
    %6262 = vmatprep.subr.mxu0 0.0
    %6263 = vmatpush1.msra.mxu0 0.0
    %6264 = vmatprep.subr.mxu0 0.0
    %6265 = vmatpush1.msra.mxu0 0.0
    %6266 = vmatprep.subr.mxu0 0.0
    %6267 = vmatpush1.msra.mxu0 0.0
    %6268 = vmatprep.subr.mxu0 0.0
    %6269 = vmatpush1.msra.mxu0 0.0
    %6270 = vmatprep.subr.mxu0 0.0
    %6271 = vmatpush1.msra.mxu0 0.0
    %6272 = vmatprep.subr.mxu0 0.0
    %6273 = vmatpush1.msra.mxu0 0.0
    %6274 = vmatprep.subr.mxu0 0.0
    %6275 = vmatpush1.msra.mxu0 0.0
    %6276 = vmatprep.subr.mxu0 0.0
    %6277 = vmatpush1.msra.mxu0 0.0
    %6278 = vmatprep.subr.mxu0 0.0
    %6279 = vmatpush1.msra.mxu0 0.0
    %6280 = vmatprep.subr.mxu0 0.0
    %6281 = vmatpush1.msra.mxu0 0.0
    %6282 = vmatprep.subr.mxu0 0.0
    %6283 = vmatpush1.msra.mxu0 0.0
    %6284 = vmatprep.subr.mxu0 0.0
    %6285 = vmatpush1.msra.mxu0 0.0
    %6286 = vmatprep.subr.mxu0 0.0
    %6287 = vmatpush1.msra.mxu0 0.0
    %6288 = vmatprep.subr.mxu0 0.0
    %6289 = vmatpush1.msra.mxu0 0.0
    %6290 = vmatprep.subr.mxu0 0.0
    %6291 = vmatpush1.msra.mxu0 0.0
    %6292 = vmatprep.subr.mxu0 0.0
    %6293 = vmatpush1.msra.mxu0 0.0
    %6294 = vmatprep.subr.mxu0 0.0
    %6295 = vmatpush1.msra.mxu0 0.0
    %6296 = vmatprep.subr.mxu0 0.0
    %6297 = vmatpush1.msra.mxu0 0.0
    %6298 = vmatprep.subr.mxu0 0.0
    %6299 = vmatpush1.msra.mxu0 0.0
    %6300 = vmatprep.subr.mxu0 0.0
    %6301 = vmatpush1.msra.mxu0 0.0
    %6302 = vmatprep.subr.mxu0 0.0
    %6303 = vmatpush1.msra.mxu0 0.0
    %6304 = vmatprep.subr.mxu0 0.0
    %6305 = vmatpush1.msra.mxu0 0.0
    %6306 = vmatprep.subr.mxu0 0.0
    %6307 = vmatpush1.msra.mxu0 0.0
    %6308 = vmatprep.subr.mxu0 0.0
    %6309 = vmatpush1.msra.mxu0 0.0
    %6310 = vmatprep.mubr.f32.mxu0 0.0
    %6311 = vmatmul.mubr.f32.gmra.mrb[0].mxu0 %v5977
    %v6312 = vpop.f32.mrb[0].mxu0
    %v6313 = vadd.f32 0.0, %v6312
    %v6314 = vpop.f32.mrb[0].mxu0
    %6315 = vdwg.mxu0
    %6317 = vrot.lane.b32.xlu0 %v6245, 32
    %v6318 = vpop.permute.xlu0 %6317
    %v6319 = vsel %vm226, %v6318, 0
    %6321 = vmatprep.subr.mxu0 0.0
    %6322 = vmatpush1.msra.mxu0 %v197
    %6323 = vmatprep.subr.mxu0 0.0
    %6324 = vmatpush1.msra.mxu0 %v198
    %6325 = vmatprep.subr.mxu0 0.0
    %6326 = vmatpush1.msra.mxu0 %v199
    %6327 = vmatprep.subr.mxu0 0.0
    %6328 = vmatpush1.msra.mxu0 %v200
    %6329 = vmatprep.subr.mxu0 0.0
    %6330 = vmatpush1.msra.mxu0 0.0
    %6331 = vmatprep.subr.mxu0 0.0
    %6332 = vmatpush1.msra.mxu0 0.0
    %6333 = vmatprep.subr.mxu0 0.0
    %6334 = vmatpush1.msra.mxu0 0.0
    %6335 = vmatprep.subr.mxu0 0.0
    %6336 = vmatpush1.msra.mxu0 0.0
    %6337 = vmatprep.subr.mxu0 0.0
    %6338 = vmatpush1.msra.mxu0 0.0
    %6339 = vmatprep.subr.mxu0 0.0
    %6340 = vmatpush1.msra.mxu0 0.0
    %6341 = vmatprep.subr.mxu0 0.0
    %6342 = vmatpush1.msra.mxu0 0.0
    %6343 = vmatprep.subr.mxu0 0.0
    %6344 = vmatpush1.msra.mxu0 0.0
    %6345 = vmatprep.subr.mxu0 0.0
    %6346 = vmatpush1.msra.mxu0 0.0
    %6347 = vmatprep.subr.mxu0 0.0
    %6348 = vmatpush1.msra.mxu0 0.0
    %6349 = vmatprep.subr.mxu0 0.0
    %6350 = vmatpush1.msra.mxu0 0.0
    %6351 = vmatprep.subr.mxu0 0.0
    %6352 = vmatpush1.msra.mxu0 0.0
    %6353 = vmatprep.subr.mxu0 0.0
    %6354 = vmatpush1.msra.mxu0 0.0
    %6355 = vmatprep.subr.mxu0 0.0
    %6356 = vmatpush1.msra.mxu0 0.0
    %6357 = vmatprep.subr.mxu0 0.0
    %6358 = vmatpush1.msra.mxu0 0.0
    %6359 = vmatprep.subr.mxu0 0.0
    %6360 = vmatpush1.msra.mxu0 0.0
    %6361 = vmatprep.subr.mxu0 0.0
    %6362 = vmatpush1.msra.mxu0 0.0
    %6363 = vmatprep.subr.mxu0 0.0
    %6364 = vmatpush1.msra.mxu0 0.0
    %6365 = vmatprep.subr.mxu0 0.0
    %6366 = vmatpush1.msra.mxu0 0.0
    %6367 = vmatprep.subr.mxu0 0.0
    %6368 = vmatpush1.msra.mxu0 0.0
    %6369 = vmatprep.subr.mxu0 0.0
    %6370 = vmatpush1.msra.mxu0 0.0
    %6371 = vmatprep.subr.mxu0 0.0
    %6372 = vmatpush1.msra.mxu0 0.0
    %6373 = vmatprep.subr.mxu0 0.0
    %6374 = vmatpush1.msra.mxu0 0.0
    %6375 = vmatprep.subr.mxu0 0.0
    %6376 = vmatpush1.msra.mxu0 0.0
    %6377 = vmatprep.subr.mxu0 0.0
    %6378 = vmatpush1.msra.mxu0 0.0
    %6379 = vmatprep.subr.mxu0 0.0
    %6380 = vmatpush1.msra.mxu0 0.0
    %6381 = vmatprep.subr.mxu0 0.0
    %6382 = vmatpush1.msra.mxu0 0.0
    %6383 = vmatprep.subr.mxu0 0.0
    %6384 = vmatpush1.msra.mxu0 0.0
    %6385 = vmatprep.mubr.f32.mxu0 0.0
    %6386 = vmatmul.mubr.f32.gmra.mrb[0].mxu0 %v6319
    %v6387 = vpop.f32.mrb[0].mxu0
    %v6388 = vadd.f32 %v6313, %v6387
    %v6389 = vpop.f32.mrb[0].mxu0
    %6390 = vdwg.mxu0
    %v6391 = vadd.f32 %v6388, %v1419
    %v6392 = vxor.u32 %v6391, 2147483648
    %v6393 = vmul.f32 %v6392, 1.442695
    %v6394 = vpow.pop %v6393
    %v6395 = vadd.f32 %v6394, 1.0
    %v6396 = vrcp.pop %v6395
    %v6397 = vmul.f32 1.0, %v6396
    %v6398 = vtanh.pop %v6391
    %v6399 = vmul.f32 %v6397, %v5967
    %6401 = vrot.lane.b32.xlu0 %v6398, 64
    %v6402 = vpop.permute.xlu0 %6401
    %v6404 = vmul.f32 %v6397, %v6402
    %6406 = vrot.lane.b32.xlu0 %v6404, 32
    %v6407 = vpop.permute.xlu0 %6406
    %v6409 = vadd.f32 %v6399, %v6407
    %v6410 = vtanh.pop %v6409
    %6412 = vrot.lane.b32.xlu0 %v6410, 64
    %v6413 = vpop.permute.xlu0 %6412
    %v6415 = vmul.f32 %v6397, %v6413
    %6417 = vrot.lane.b32.xlu0 %v6415, 32
    %v6418 = vpop.permute.xlu0 %6417
    %v6419 = vsel %vm226, %v6418, 0
    %6421 = vmatprep.subr.mxu0 0.0
    %6422 = vmatpush1.msra.mxu0 %v221
    %6423 = vmatprep.subr.mxu0 0.0
    %6424 = vmatpush1.msra.mxu0 %v222
    %6425 = vmatprep.subr.mxu0 0.0
    %6426 = vmatpush1.msra.mxu0 %v223
    %6427 = vmatprep.subr.mxu0 0.0
    %6428 = vmatpush1.msra.mxu0 %v224
    %6429 = vmatprep.subr.mxu0 0.0
    %6430 = vmatpush1.msra.mxu0 0.0
    %6431 = vmatprep.subr.mxu0 0.0
    %6432 = vmatpush1.msra.mxu0 0.0
    %6433 = vmatprep.subr.mxu0 0.0
    %6434 = vmatpush1.msra.mxu0 0.0
    %6435 = vmatprep.subr.mxu0 0.0
    %6436 = vmatpush1.msra.mxu0 0.0
    %6437 = vmatprep.subr.mxu0 0.0
    %6438 = vmatpush1.msra.mxu0 0.0
    %6439 = vmatprep.subr.mxu0 0.0
    %6440 = vmatpush1.msra.mxu0 0.0
    %6441 = vmatprep.subr.mxu0 0.0
    %6442 = vmatpush1.msra.mxu0 0.0
    %6443 = vmatprep.subr.mxu0 0.0
    %6444 = vmatpush1.msra.mxu0 0.0
    %6445 = vmatprep.subr.mxu0 0.0
    %6446 = vmatpush1.msra.mxu0 0.0
    %6447 = vmatprep.subr.mxu0 0.0
    %6448 = vmatpush1.msra.mxu0 0.0
    %6449 = vmatprep.subr.mxu0 0.0
    %6450 = vmatpush1.msra.mxu0 0.0
    %6451 = vmatprep.subr.mxu0 0.0
    %6452 = vmatpush1.msra.mxu0 0.0
    %6453 = vmatprep.subr.mxu0 0.0
    %6454 = vmatpush1.msra.mxu0 0.0
    %6455 = vmatprep.subr.mxu0 0.0
    %6456 = vmatpush1.msra.mxu0 0.0
    %6457 = vmatprep.subr.mxu0 0.0
    %6458 = vmatpush1.msra.mxu0 0.0
    %6459 = vmatprep.subr.mxu0 0.0
    %6460 = vmatpush1.msra.mxu0 0.0
    %6461 = vmatprep.subr.mxu0 0.0
    %6462 = vmatpush1.msra.mxu0 0.0
    %6463 = vmatprep.subr.mxu0 0.0
    %6464 = vmatpush1.msra.mxu0 0.0
    %6465 = vmatprep.subr.mxu0 0.0
    %6466 = vmatpush1.msra.mxu0 0.0
    %6467 = vmatprep.subr.mxu0 0.0
    %6468 = vmatpush1.msra.mxu0 0.0
    %6469 = vmatprep.subr.mxu0 0.0
    %6470 = vmatpush1.msra.mxu0 0.0
    %6471 = vmatprep.subr.mxu0 0.0
    %6472 = vmatpush1.msra.mxu0 0.0
    %6473 = vmatprep.subr.mxu0 0.0
    %6474 = vmatpush1.msra.mxu0 0.0
    %6475 = vmatprep.subr.mxu0 0.0
    %6476 = vmatpush1.msra.mxu0 0.0
    %6477 = vmatprep.subr.mxu0 0.0
    %6478 = vmatpush1.msra.mxu0 0.0
    %6479 = vmatprep.subr.mxu0 0.0
    %6480 = vmatpush1.msra.mxu0 0.0
    %6481 = vmatprep.subr.mxu0 0.0
    %6482 = vmatpush1.msra.mxu0 0.0
    %6483 = vmatprep.subr.mxu0 0.0
    %6484 = vmatpush1.msra.mxu0 0.0
    %6485 = vmatprep.mubr.f32.mxu0 0.0
    %6486 = vmatmul.mubr.f32.gmra.mrb[0].mxu0 %v6419
    %v6487 = vpop.f32.mrb[0].mxu0
    %v6488 = vadd.f32 %v1450, %v6487
    %v6489 = vpop.f32.mrb[0].mxu0
    %6490 = vdwg.mxu0
    %v6493 = vunpack.c.l.s4 1966171168
    %v6494 = vunpack.c.0.s8 %v6493
    %v6495 = vlaneseq
    %v6496 = vshrl.u32 %v6495, 7
    %v6497 = vsub.s32 %v6494, %v6496
    %v6498 = vrot.slane %v6488, %v6497
    %v6499 = vcombine.high %v6498, %v6498
    %v6501 = vunpack.c.l.s4 1966171168
    %v6502 = vunpack.c.0.s8 %v6501
    %v6503 = vlaneseq
    %v6504 = vshrl.u32 %v6503, 7
    %v6505 = vsub.s32 %v6502, %v6504
    %v6506 = vrot.slane %v6498, %v6505
    %v6508 = vunpack.c.l.s4 1966171168
    %v6509 = vunpack.c.0.s8 %v6508
    %v6510 = vlaneseq
    %v6511 = vshrl.u32 %v6510, 7
    %v6512 = vsub.s32 %v6509, %v6511
    %v6513 = vrot.slane %v6499, %v6512
    %6516 = vst [vmem:[#allocation19 + $0x7] sm:$0x1] %v6506
    %6517 = vst [vmem:[#allocation19 + $0xf] sm:$0x1] %v6513
    // Predicated region
    $region102: #{lstm_model_forward.1} parent=1 // pred_check
      _
    $region103: #{lstm_model_forward.1} parent=1 // pred_check_branch
      %6519 = sbr.rel (0) target = $region105
    $region104: #{lstm_model_forward.1} parent=1 // pred_region
      %s6521 = ssub.s32 256, 256
      %6522 = vsyncadd [#allocation4], %s6521
      %s6523 = sshll.u32 [#allocation19], 4
      %s6524 = int_to_ptr.vmem [resolvable:$true] %s6523
      %6529 = dma.vmem_to_hbm [thread:$0]  %s6524, 256, %s15, [#allocation4], 128, 128, 8
    $region105: #{lstm_model_forward.1} parent=1 // pred_fallthru
      _
    // Predicated region
    $region106: #{lstm_model_forward.1} parent=1 // pred_check
      _
    $region107: #{lstm_model_forward.1} parent=1 // pred_check_branch
      %6531 = sbr.rel (0) target = $region109
    $region108: #{lstm_model_forward.1} parent=1 // pred_region
      %6532 = dma.done [#allocation4], 256
    $region109: #{lstm_model_forward.1} parent=1 // pred_fallthru
      _
    %6533 = vsyncpa [#allocation3], 1
    %6534 = vsyncpa [#allocation6], 1
    %6535 = vsyncpa [#allocation9], 1
    %6536 = vsyncpa [#allocation12], 1
    %6537 = vsyncpa [#allocation15], 1
    %6538 = vsyncpa [#allocation18], 1
    %6539 = vsyncpa [#allocation4], 1

</llo_original>
